<compile_context>
chip_gen: v7x
topology: tpu7x:2x2x1
jax: 0.10.0
libtpu: 0.0.40
codegen_flags: <defaults>
</compile_context>

<pallas_src>
import jax
import jax.numpy as jnp
from jax.experimental import pallas as pl
from jax.experimental.pallas import tpu as pltpu


# ----------------------------- tiling helpers ------------------------------ #

def _round_up(x, m):
    return ((x + m - 1) // m) * m


def _pick_tile(d, pref, mult):
    """Choose (block_size, padded_dim) for one axis.

    The block size is a multiple of `mult` (TPU layout alignment).  If the
    (aligned) dim fits inside the preferred tile we use a single full block
    (no grid axis splitting, no padding beyond alignment); otherwise we pick
    the largest divisor of the padded dim that is <= pref.
    """
    dp = _round_up(d, mult)
    if dp <= pref:
        return dp, dp
    t = (pref // mult) * mult
    while t >= mult:
        if dp % t == 0:
            return t, dp
        t -= mult
    t = (pref // mult) * mult
    return t, _round_up(dp, t)


# ----------------------------- Pallas kernels ------------------------------ #
# Tiled matmul with f32 VMEM accumulator; epilogue fused on the last K block.

def _mm_kernel(x_ref, w_ref, o_ref, acc_ref):
    @pl.when(pl.program_id(2) == 0)
    def _init():
        acc_ref[...] = jnp.zeros_like(acc_ref)

    acc_ref[...] += jnp.dot(x_ref[...], w_ref[...],
                            preferred_element_type=jnp.float32)

    @pl.when(pl.program_id(2) == pl.num_programs(2) - 1)
    def _store():
        o_ref[...] = acc_ref[...].astype(o_ref.dtype)


def _mm_relu_kernel(x_ref, w_ref, o_ref, acc_ref):
    @pl.when(pl.program_id(2) == 0)
    def _init():
        acc_ref[...] = jnp.zeros_like(acc_ref)

    acc_ref[...] += jnp.dot(x_ref[...], w_ref[...],
                            preferred_element_type=jnp.float32)

    @pl.when(pl.program_id(2) == pl.num_programs(2) - 1)
    def _store():
        o_ref[...] = jnp.maximum(acc_ref[...], 0.0).astype(o_ref.dtype)


def _mm_add_relu_kernel(x_ref, w_ref, r_ref, o_ref, acc_ref):
    @pl.when(pl.program_id(2) == 0)
    def _init():
        acc_ref[...] = jnp.zeros_like(acc_ref)

    acc_ref[...] += jnp.dot(x_ref[...], w_ref[...],
                            preferred_element_type=jnp.float32)

    @pl.when(pl.program_id(2) == pl.num_programs(2) - 1)
    def _store():
        res = r_ref[...].astype(jnp.float32)
        o_ref[...] = jnp.maximum(acc_ref[...] + res, 0.0).astype(o_ref.dtype)


def _mm_bias_kernel(x_ref, w_ref, b_ref, o_ref, acc_ref):
    @pl.when(pl.program_id(2) == 0)
    def _init():
        acc_ref[...] = jnp.zeros_like(acc_ref)

    acc_ref[...] += jnp.dot(x_ref[...], w_ref[...],
                            preferred_element_type=jnp.float32)

    @pl.when(pl.program_id(2) == pl.num_programs(2) - 1)
    def _store():
        o_ref[...] = (acc_ref[...] + b_ref[...]).astype(o_ref.dtype)


def _max3_kernel(a_ref, b_ref, c_ref, o_ref):
    o_ref[...] = jnp.maximum(jnp.maximum(a_ref[...], b_ref[...]), c_ref[...])


def _mean_kernel(x_ref, o_ref):
    # x block: (B, L, bc) -> mean over L in f32 -> (B, bc)
    o_ref[...] = jnp.mean(x_ref[...].astype(jnp.float32), axis=1)


# ------------------------------ matmul wrapper ------------------------------ #

def matmul_pallas(x, w, residual=None, bias=None, relu=False,
                  out_dtype=jnp.float32, tm=256, tn=256, tk=512):
    """out = x @ w (+ residual | + bias), optional ReLU.   x:[M,K], w:[K,N].

    MXU operands are cast to bf16 (no-op when already bf16); accumulation and
    the fused epilogue run in float32 inside the kernel; the result is stored
    in `out_dtype`.  Grid = (M/bm, N/bn, K/bk) with the reduction axis last
    ("arbitrary") and M/N "parallel" (megacore split on v7x).
    """
    M, K = x.shape
    K2, N = w.shape
    assert K2 == K

    bm, Mp = _pick_tile(M, tm, 16)    # bf16 sublane packing -> multiples of 16
    bn, Np = _pick_tile(N, tn, 128)   # lane-dense outputs (unmasked vst)
    bk, Kp = _pick_tile(K, tk, 128)   # lane-aligned contraction
    # TODO(synk): a tap-accumulation (implicit-GEMM) path would avoid the
    #             K-dim zero padding of the Cin=1, K=7 stem conv entirely.

    xp = x if (Mp == M and Kp == K) else jnp.pad(x, ((0, Mp - M), (0, Kp - K)))
    wp = w if (Kp == K and Np == N) else jnp.pad(w, ((0, Kp - K), (0, Np - N)))
    xp = xp.astype(jnp.bfloat16)
    wp = wp.astype(jnp.bfloat16)

    grid = (Mp // bm, Np // bn, Kp // bk)
    x_spec = pl.BlockSpec((bm, bk), lambda i, j, k: (i, k))
    w_spec = pl.BlockSpec((bk, bn), lambda i, j, k: (k, j))
    o_spec = pl.BlockSpec((bm, bn), lambda i, j, k: (i, j))

    in_specs = [x_spec, w_spec]
    args = [xp, wp]
    if residual is not None:
        rp = residual
        if Mp != M or Np != N:
            rp = jnp.pad(rp, ((0, Mp - M), (0, Np - N)))
        in_specs.append(pl.BlockSpec((bm, bn), lambda i, j, k: (i, j)))
        args.append(rp)
        kernel = _mm_add_relu_kernel
    elif bias is not None:
        bp = bias.reshape(1, N).astype(jnp.float32)
        if Np != N:
            bp = jnp.pad(bp, ((0, 0), (0, Np - N)))
        in_specs.append(pl.BlockSpec((1, bn), lambda i, j, k: (0, j)))
        args.append(bp)
        kernel = _mm_bias_kernel
    elif relu:
        kernel = _mm_relu_kernel
    else:
        kernel = _mm_kernel

    out_bytes = Mp * Np * jnp.dtype(out_dtype).itemsize
    flops = 2 * Mp * Np * Kp
    bytes_accessed = (Mp * Kp + Kp * Np) * 2 + out_bytes

    out = pl.pallas_call(
        kernel,
        out_shape=jax.ShapeDtypeStruct((Mp, Np), out_dtype),
        grid=grid,
        in_specs=in_specs,
        out_specs=o_spec,
        scratch_shapes=[pltpu.VMEM((bm, bn), jnp.float32)],
        compiler_params=pltpu.CompilerParams(
            dimension_semantics=("parallel", "parallel", "arbitrary")),
        cost_estimate=pl.CostEstimate(
            flops=flops, transcendentals=0, bytes_accessed=bytes_accessed),
    )(*args)

    if Mp != M or Np != N:
        out = out[:M, :N]
    return out


# ------------------------------ layer wrappers ------------------------------ #

def conv1d_cl(x, w, stride=1, padding=0, relu=False, residual=None):
    """Conv1d (bias=False) on channels-last activations.

    x: [B, L, Cin], w: [Cout, Cin, K] (PyTorch layout) -> [B, L_out, Cout] bf16.
    With `residual` given, computes relu(conv(x) + residual) fused in the
    matmul epilogue (BasicBlock tail).
    """
    B, L, Cin = x.shape
    Cout, _, K = w.shape
    L_out = (L + 2 * padding - K) // stride + 1
    if padding:
        x = jnp.pad(x, ((0, 0), (padding, padding), (0, 0)))
    span = stride * (L_out - 1) + 1
    if K == 1:
        patches = x[:, :span:stride, :].reshape(B * L_out, Cin)
    else:
        # channels-last im2col: column index = tap * Cin + channel
        taps = [x[:, k: k + span: stride, :] for k in range(K)]
        patches = jnp.concatenate(taps, axis=-1).reshape(B * L_out, K * Cin)
    wmat = jnp.transpose(w, (2, 1, 0)).reshape(K * Cin, Cout)
    res2d = residual.reshape(B * L_out, Cout) if residual is not None else None
    y = matmul_pallas(patches, wmat, residual=res2d, relu=relu,
                      out_dtype=jnp.bfloat16)
    return y.reshape(B, L_out, Cout)


def maxpool1d_cl(x):
    """MaxPool1d(kernel_size=3, stride=2, padding=1) on channels-last [B, L, C]."""
    B, L, C = x.shape
    L_out = (L + 2 - 3) // 2 + 1
    xp = jnp.pad(x, ((0, 0), (1, 1), (0, 0)), constant_values=-jnp.inf)
    span = 2 * (L_out - 1) + 1
    taps = [xp[:, k: k + span: 2, :].reshape(B * L_out, C) for k in range(3)]

    M = B * L_out
    bm, Mp = _pick_tile(M, 512, 16)   # bf16 sublane packing
    if Mp != M:
        taps = [jnp.pad(t, ((0, Mp - M), (0, 0))) for t in taps]

    out = pl.pallas_call(
        _max3_kernel,
        out_shape=jax.ShapeDtypeStruct((Mp, C), x.dtype),
        grid=(Mp // bm,),
        in_specs=[pl.BlockSpec((bm, C), lambda i: (i, 0))] * 3,
        out_specs=pl.BlockSpec((bm, C), lambda i: (i, 0)),
        compiler_params=pltpu.CompilerParams(dimension_semantics=("parallel",)),
    )(*taps)
    if Mp != M:
        out = out[:M]
    return out.reshape(B, L_out, C)


def avgpool_cl(x):
    """AdaptiveAvgPool1d(1) + flatten on channels-last input: [B, L, C] -> [B, C] f32."""
    B, L, C = x.shape
    bc, Cp = _pick_tile(C, 512, 128)
    xp = x if Cp == C else jnp.pad(x, ((0, 0), (0, 0), (0, Cp - C)))
    out = pl.pallas_call(
        _mean_kernel,
        out_shape=jax.ShapeDtypeStruct((B, Cp), jnp.float32),
        grid=(Cp // bc,),
        in_specs=[pl.BlockSpec((B, L, bc), lambda j: (0, 0, j))],
        out_specs=pl.BlockSpec((B, bc), lambda j: (0, j)),
        compiler_params=pltpu.CompilerParams(dimension_semantics=("parallel",)),
    )(xp)
    return out if Cp == C else out[:, :C]


def linear_pallas(x, w, b):
    """x:[B,F], w:[N,F], b:[N] -> [B,N] f32 (fused bias in the matmul epilogue)."""
    return matmul_pallas(x, jnp.transpose(w), bias=b, out_dtype=jnp.float32)


# --------------------------------- model ----------------------------------- #

def init_params(key, in_channels=1, n_class=6):
    keys = iter(jax.random.split(key, 32))

    def conv_w(cout, cin, k):
        fan_in = cin * k
        return jax.random.normal(next(keys), (cout, cin, k), jnp.float32) / jnp.sqrt(
            jnp.float32(fan_in))

    def block(inplanes, planes, stride):
        d = {"conv1": conv_w(planes, inplanes, 3), "conv2": conv_w(planes, planes, 3)}
        if stride != 1 or inplanes != planes:
            d["down"] = conv_w(planes, inplanes, 1)
        return d

    p = {}
    p["conv1"] = conv_w(128, in_channels, 7)
    p["layer1"] = block(128, 128, 1)
    p["layer2"] = block(128, 128, 2)
    p["layer3"] = block(128, 256, 2)
    p["layer4"] = block(256, 512, 2)
    p["fc_w"] = jax.random.normal(next(keys), (n_class, 512), jnp.float32) / jnp.sqrt(512.0)
    p["fc_b"] = jnp.zeros((n_class,), jnp.float32)
    return p


def basic_block_forward(x, p, stride):
    identity = conv1d_cl(x, p["down"], stride=stride) if "down" in p else x
    out = conv1d_cl(x, p["conv1"], stride=stride, padding=1, relu=True)
    # conv2 + residual add + relu fused in one Pallas kernel epilogue
    out = conv1d_cl(out, p["conv2"], stride=1, padding=1, residual=identity)
    return out


def resnet_forward(params, x_ncl):
    # PyTorch Conv1d input is (N, C, L); convert once to channels-last (N, L, C).
    h = jnp.transpose(x_ncl, (0, 2, 1))
    h = conv1d_cl(h, params["conv1"], stride=2, padding=3, relu=True)   # conv1 + relu
    h = maxpool1d_cl(h)                                                 # maxpool
    h = basic_block_forward(h, params["layer1"], 1)
    h = basic_block_forward(h, params["layer2"], 2)
    h = basic_block_forward(h, params["layer3"], 2)
    h = basic_block_forward(h, params["layer4"], 2)
    act = avgpool_cl(h)                                                 # [B, 512] f32
    return linear_pallas(act, params["fc_w"], params["fc_b"])           # [B, n_class]


if __name__ == "__main__":
    key = jax.random.PRNGKey(0)
    pkey, xkey = jax.random.split(key)
    params = init_params(pkey, in_channels=1, n_class=6)
    # PyTorch Conv1d input is (N, C, L); small deterministic example
    x = jax.random.normal(xkey, (2, 1, 64), jnp.float32)
    out = jax.jit(resnet_forward)(params, x)
    out = jax.block_until_ready(out)
    assert out.shape == (2, 6), out.shape
    assert jnp.all(jnp.isfinite(out))
    print("KERNEL_OK")
</pallas_src>

<mosaic_0001>
module attributes {stable_mosaic.version = 11 : i64} {
  func.func @_max3_kernel(%arg0: i32, %arg1: memref<32x128xbf16, #tpu.memory_space<vmem>>, %arg2: memref<32x128xbf16, #tpu.memory_space<vmem>>, %arg3: memref<32x128xbf16, #tpu.memory_space<vmem>>, %arg4: memref<32x128xbf16, #tpu.memory_space<vmem>>) attributes {dimension_semantics = [#tpu.dimension_semantics<parallel>], iteration_bounds = array<i64: 1>, scalar_prefetch = 0 : i64, scratch_operands = 0 : i64, tpu.core_type = #tpu.core_type<tc>, window_params = [{transform_indices = @transform_0, window_bounds = array<i64: 32, 128>}, {transform_indices = @transform_1, window_bounds = array<i64: 32, 128>}, {transform_indices = @transform_2, window_bounds = array<i64: 32, 128>}, {transform_indices = @transform_3, window_bounds = array<i64: 32, 128>}]} {
    %c0 = arith.constant 0 : index
    %c0_0 = arith.constant 0 : index
    %0 = vector.load %arg1[%c0, %c0_0] : memref<32x128xbf16, #tpu.memory_space<vmem>>, vector<32x128xbf16>
    %c0_1 = arith.constant 0 : index
    %c0_2 = arith.constant 0 : index
    %1 = vector.load %arg2[%c0_1, %c0_2] : memref<32x128xbf16, #tpu.memory_space<vmem>>, vector<32x128xbf16>
    %2 = arith.maximumf %0, %1 : vector<32x128xbf16>
    %c0_3 = arith.constant 0 : index
    %c0_4 = arith.constant 0 : index
    %3 = vector.load %arg3[%c0_3, %c0_4] : memref<32x128xbf16, #tpu.memory_space<vmem>>, vector<32x128xbf16>
    %4 = arith.maximumf %2, %3 : vector<32x128xbf16>
    %c0_5 = arith.constant 0 : index
    %c0_6 = arith.constant 0 : index
    %5 = vector.load %arg4[%c0_5, %c0_6] : memref<32x128xbf16, #tpu.memory_space<vmem>>, vector<32x128xbf16>
    tpu.vector_store %arg4[%c0_5, %c0_6], %4 {strides = array<i32>} : memref<32x128xbf16, #tpu.memory_space<vmem>>, vector<32x128xbf16>,
    return
  }
  func.func @transform_0(%arg0: i32) -> (i32, i32) {
    %c0_i32 = arith.constant 0 : i32
    %c0_i32_0 = arith.constant 0 : i32
    return %arg0, %c0_i32 : i32, i32
  }
  func.func @transform_1(%arg0: i32) -> (i32, i32) {
    %c0_i32 = arith.constant 0 : i32
    %c0_i32_0 = arith.constant 0 : i32
    return %arg0, %c0_i32 : i32, i32
  }
  func.func @transform_2(%arg0: i32) -> (i32, i32) {
    %c0_i32 = arith.constant 0 : i32
    %c0_i32_0 = arith.constant 0 : i32
    return %arg0, %c0_i32 : i32, i32
  }
  func.func @transform_3(%arg0: i32) -> (i32, i32) {
    %c0_i32 = arith.constant 0 : i32
    %c0_i32_0 = arith.constant 0 : i32
    return %arg0, %c0_i32 : i32, i32
  }
}

module attributes {stable_mosaic.version = 11 : i64} {
  func.func @_mm_relu_kernel(%arg0: i32, %arg1: i32, %arg2: i32, %arg3: memref<64x128xbf16, #tpu.memory_space<vmem>>, %arg4: memref<128x128xbf16, #tpu.memory_space<vmem>>, %arg5: memref<64x128xbf16, #tpu.memory_space<vmem>>, %arg6: memref<64x128xf32, #tpu.memory_space<vmem>>) attributes {dimension_semantics = [#tpu.dimension_semantics<parallel>, #tpu.dimension_semantics<parallel>, #tpu.dimension_semantics<arbitrary>], iteration_bounds = array<i64: 1, 1, 1>, scalar_prefetch = 0 : i64, scratch_operands = 1 : i64, tpu.core_type = #tpu.core_type<tc>, window_params = [{transform_indices = @transform_0, window_bounds = array<i64: 64, 128>}, {transform_indices = @transform_1, window_bounds = array<i64: 128, 128>}, {transform_indices = @transform_2, window_bounds = array<i64: 64, 128>}]} {
    %c0_i32 = arith.constant 0 : i32
    %0 = arith.cmpi eq, %arg2, %c0_i32 : i32
    %1 = arith.extui %0 : i1 to i32
    %c0_i32_0 = arith.constant 0 : i32
    %2 = arith.cmpi ne, %1, %c0_i32_0 : i32
    scf.if %2 {
      %cst_10 = arith.constant 0.000000e+00 : f32
      %12 = vector.broadcast %cst_10 : f32 to vector<64x128xf32>
      %c0_11 = arith.constant 0 : index
      %c0_12 = arith.constant 0 : index
      %13 = vector.load %arg6[%c0_11, %c0_12] : memref<64x128xf32, #tpu.memory_space<vmem>>, vector<64x128xf32>
      tpu.vector_store %arg6[%c0_11, %c0_12], %12 {strides = array<i32>} : memref<64x128xf32, #tpu.memory_space<vmem>>, vector<64x128xf32>,
    } else {
    }
    %c0 = arith.constant 0 : index
    %c0_1 = arith.constant 0 : index
    %3 = vector.load %arg6[%c0, %c0_1] : memref<64x128xf32, #tpu.memory_space<vmem>>, vector<64x128xf32>
    %c0_2 = arith.constant 0 : index
    %c0_3 = arith.constant 0 : index
    %4 = vector.load %arg3[%c0_2, %c0_3] : memref<64x128xbf16, #tpu.memory_space<vmem>>, vector<64x128xbf16>
    %c0_4 = arith.constant 0 : index
    %c0_5 = arith.constant 0 : index
    %5 = vector.load %arg4[%c0_4, %c0_5] : memref<128x128xbf16, #tpu.memory_space<vmem>>, vector<128x128xbf16>
    %cst = arith.constant dense<0.000000e+00> : vector<64x128xf32>
    %6 = tpu.matmul %4, %5, %cst {dimension_numbers = #tpu.dot_dimension_numbers<[1], [0], [0], [1], [0, 0, 1, 1], [], []>} : vector<64x128xbf16>, vector<128x128xbf16>, vector<64x128xf32> -> vector<64x128xf32>
    %7 = arith.addf %3, %6 : vector<64x128xf32>
    %c0_6 = arith.constant 0 : index
    %c0_7 = arith.constant 0 : index
    %8 = vector.load %arg6[%c0_6, %c0_7] : memref<64x128xf32, #tpu.memory_space<vmem>>, vector<64x128xf32>
    tpu.vector_store %arg6[%c0_6, %c0_7], %7 {strides = array<i32>} : memref<64x128xf32, #tpu.memory_space<vmem>>, vector<64x128xf32>,
    %c0_i32_8 = arith.constant 0 : i32
    %9 = arith.cmpi eq, %arg2, %c0_i32_8 : i32
    %10 = arith.extui %9 : i1 to i32
    %c0_i32_9 = arith.constant 0 : i32
    %11 = arith.cmpi ne, %10, %c0_i32_9 : i32
    scf.if %11 {
      %c0_10 = arith.constant 0 : index
      %c0_11 = arith.constant 0 : index
      %12 = vector.load %arg6[%c0_10, %c0_11] : memref<64x128xf32, #tpu.memory_space<vmem>>, vector<64x128xf32>
      %cst_12 = arith.constant 0.000000e+00 : f32
      %13 = vector.broadcast %cst_12 : f32 to vector<64x128xf32>
      %14 = arith.maximumf %12, %13 : vector<64x128xf32>
      %15 = arith.truncf %14 : vector<64x128xf32> to vector<64x128xbf16>
      %c0_13 = arith.constant 0 : index
      %c0_14 = arith.constant 0 : index
      %16 = vector.load %arg5[%c0_13, %c0_14] : memref<64x128xbf16, #tpu.memory_space<vmem>>, vector<64x128xbf16>
      tpu.vector_store %arg5[%c0_13, %c0_14], %15 {strides = array<i32>} : memref<64x128xbf16, #tpu.memory_space<vmem>>, vector<64x128xbf16>,
    } else {
    }
    return
  }
  func.func @transform_0(%arg0: i32, %arg1: i32, %arg2: i32) -> (i32, i32) {
    %c0_i32 = arith.constant 0 : i32
    return %arg0, %arg2 : i32, i32
  }
  func.func @transform_1(%arg0: i32, %arg1: i32, %arg2: i32) -> (i32, i32) {
    %c0_i32 = arith.constant 0 : i32
    return %arg2, %arg1 : i32, i32
  }
  func.func @transform_2(%arg0: i32, %arg1: i32, %arg2: i32) -> (i32, i32) {
    %c0_i32 = arith.constant 0 : i32
    return %arg0, %arg1 : i32, i32
  }
}

module attributes {stable_mosaic.version = 11 : i64} {
  func.func @_mm_relu_kernel(%arg0: i32, %arg1: i32, %arg2: i32, %arg3: memref<32x384xbf16, #tpu.memory_space<vmem>>, %arg4: memref<384x128xbf16, #tpu.memory_space<vmem>>, %arg5: memref<32x128xbf16, #tpu.memory_space<vmem>>, %arg6: memref<32x128xf32, #tpu.memory_space<vmem>>) attributes {dimension_semantics = [#tpu.dimension_semantics<parallel>, #tpu.dimension_semantics<parallel>, #tpu.dimension_semantics<arbitrary>], iteration_bounds = array<i64: 1, 1, 1>, scalar_prefetch = 0 : i64, scratch_operands = 1 : i64, tpu.core_type = #tpu.core_type<tc>, window_params = [{transform_indices = @transform_0, window_bounds = array<i64: 32, 384>}, {transform_indices = @transform_1, window_bounds = array<i64: 384, 128>}, {transform_indices = @transform_2, window_bounds = array<i64: 32, 128>}]} {
    %c0_i32 = arith.constant 0 : i32
    %0 = arith.cmpi eq, %arg2, %c0_i32 : i32
    %1 = arith.extui %0 : i1 to i32
    %c0_i32_0 = arith.constant 0 : i32
    %2 = arith.cmpi ne, %1, %c0_i32_0 : i32
    scf.if %2 {
      %cst_10 = arith.constant 0.000000e+00 : f32
      %12 = vector.broadcast %cst_10 : f32 to vector<32x128xf32>
      %c0_11 = arith.constant 0 : index
      %c0_12 = arith.constant 0 : index
      %13 = vector.load %arg6[%c0_11, %c0_12] : memref<32x128xf32, #tpu.memory_space<vmem>>, vector<32x128xf32>
      tpu.vector_store %arg6[%c0_11, %c0_12], %12 {strides = array<i32>} : memref<32x128xf32, #tpu.memory_space<vmem>>, vector<32x128xf32>,
    } else {
    }
    %c0 = arith.constant 0 : index
    %c0_1 = arith.constant 0 : index
    %3 = vector.load %arg6[%c0, %c0_1] : memref<32x128xf32, #tpu.memory_space<vmem>>, vector<32x128xf32>
    %c0_2 = arith.constant 0 : index
    %c0_3 = arith.constant 0 : index
    %4 = vector.load %arg3[%c0_2, %c0_3] : memref<32x384xbf16, #tpu.memory_space<vmem>>, vector<32x384xbf16>
    %c0_4 = arith.constant 0 : index
    %c0_5 = arith.constant 0 : index
    %5 = vector.load %arg4[%c0_4, %c0_5] : memref<384x128xbf16, #tpu.memory_space<vmem>>, vector<384x128xbf16>
    %cst = arith.constant dense<0.000000e+00> : vector<32x128xf32>
    %6 = tpu.matmul %4, %5, %cst {dimension_numbers = #tpu.dot_dimension_numbers<[1], [0], [0], [1], [0, 0, 1, 1], [], []>} : vector<32x384xbf16>, vector<384x128xbf16>, vector<32x128xf32> -> vector<32x128xf32>
    %7 = arith.addf %3, %6 : vector<32x128xf32>
    %c0_6 = arith.constant 0 : index
    %c0_7 = arith.constant 0 : index
    %8 = vector.load %arg6[%c0_6, %c0_7] : memref<32x128xf32, #tpu.memory_space<vmem>>, vector<32x128xf32>
    tpu.vector_store %arg6[%c0_6, %c0_7], %7 {strides = array<i32>} : memref<32x128xf32, #tpu.memory_space<vmem>>, vector<32x128xf32>,
    %c0_i32_8 = arith.constant 0 : i32
    %9 = arith.cmpi eq, %arg2, %c0_i32_8 : i32
    %10 = arith.extui %9 : i1 to i32
    %c0_i32_9 = arith.constant 0 : i32
    %11 = arith.cmpi ne, %10, %c0_i32_9 : i32
    scf.if %11 {
      %c0_10 = arith.constant 0 : index
      %c0_11 = arith.constant 0 : index
      %12 = vector.load %arg6[%c0_10, %c0_11] : memref<32x128xf32, #tpu.memory_space<vmem>>, vector<32x128xf32>
      %cst_12 = arith.constant 0.000000e+00 : f32
      %13 = vector.broadcast %cst_12 : f32 to vector<32x128xf32>
      %14 = arith.maximumf %12, %13 : vector<32x128xf32>
      %15 = arith.truncf %14 : vector<32x128xf32> to vector<32x128xbf16>
      %c0_13 = arith.constant 0 : index
      %c0_14 = arith.constant 0 : index
      %16 = vector.load %arg5[%c0_13, %c0_14] : memref<32x128xbf16, #tpu.memory_space<vmem>>, vector<32x128xbf16>
      tpu.vector_store %arg5[%c0_13, %c0_14], %15 {strides = array<i32>} : memref<32x128xbf16, #tpu.memory_space<vmem>>, vector<32x128xbf16>,
    } else {
    }
    return
  }
  func.func @transform_0(%arg0: i32, %arg1: i32, %arg2: i32) -> (i32, i32) {
    %c0_i32 = arith.constant 0 : i32
    return %arg0, %arg2 : i32, i32
  }
  func.func @transform_1(%arg0: i32, %arg1: i32, %arg2: i32) -> (i32, i32) {
    %c0_i32 = arith.constant 0 : i32
    return %arg2, %arg1 : i32, i32
  }
  func.func @transform_2(%arg0: i32, %arg1: i32, %arg2: i32) -> (i32, i32) {
    %c0_i32 = arith.constant 0 : i32
    return %arg0, %arg1 : i32, i32
  }
}

module attributes {stable_mosaic.version = 11 : i64} {
  func.func @_mm_add_relu_kernel(%arg0: i32, %arg1: i32, %arg2: i32, %arg3: memref<32x384xbf16, #tpu.memory_space<vmem>>, %arg4: memref<384x128xbf16, #tpu.memory_space<vmem>>, %arg5: memref<32x128xbf16, #tpu.memory_space<vmem>>, %arg6: memref<32x128xbf16, #tpu.memory_space<vmem>>, %arg7: memref<32x128xf32, #tpu.memory_space<vmem>>) attributes {dimension_semantics = [#tpu.dimension_semantics<parallel>, #tpu.dimension_semantics<parallel>, #tpu.dimension_semantics<arbitrary>], iteration_bounds = array<i64: 1, 1, 1>, scalar_prefetch = 0 : i64, scratch_operands = 1 : i64, tpu.core_type = #tpu.core_type<tc>, window_params = [{transform_indices = @transform_0, window_bounds = array<i64: 32, 384>}, {transform_indices = @transform_1, window_bounds = array<i64: 384, 128>}, {transform_indices = @transform_2, window_bounds = array<i64: 32, 128>}, {transform_indices = @transform_3, window_bounds = array<i64: 32, 128>}]} {
    %c0_i32 = arith.constant 0 : i32
    %0 = arith.cmpi eq, %arg2, %c0_i32 : i32
    %1 = arith.extui %0 : i1 to i32
    %c0_i32_0 = arith.constant 0 : i32
    %2 = arith.cmpi ne, %1, %c0_i32_0 : i32
    scf.if %2 {
      %cst_10 = arith.constant 0.000000e+00 : f32
      %12 = vector.broadcast %cst_10 : f32 to vector<32x128xf32>
      %c0_11 = arith.constant 0 : index
      %c0_12 = arith.constant 0 : index
      %13 = vector.load %arg7[%c0_11, %c0_12] : memref<32x128xf32, #tpu.memory_space<vmem>>, vector<32x128xf32>
      tpu.vector_store %arg7[%c0_11, %c0_12], %12 {strides = array<i32>} : memref<32x128xf32, #tpu.memory_space<vmem>>, vector<32x128xf32>,
    } else {
    }
    %c0 = arith.constant 0 : index
    %c0_1 = arith.constant 0 : index
    %3 = vector.load %arg7[%c0, %c0_1] : memref<32x128xf32, #tpu.memory_space<vmem>>, vector<32x128xf32>
    %c0_2 = arith.constant 0 : index
    %c0_3 = arith.constant 0 : index
    %4 = vector.load %arg3[%c0_2, %c0_3] : memref<32x384xbf16, #tpu.memory_space<vmem>>, vector<32x384xbf16>
    %c0_4 = arith.constant 0 : index
    %c0_5 = arith.constant 0 : index
    %5 = vector.load %arg4[%c0_4, %c0_5] : memref<384x128xbf16, #tpu.memory_space<vmem>>, vector<384x128xbf16>
    %cst = arith.constant dense<0.000000e+00> : vector<32x128xf32>
    %6 = tpu.matmul %4, %5, %cst {dimension_numbers = #tpu.dot_dimension_numbers<[1], [0], [0], [1], [0, 0, 1, 1], [], []>} : vector<32x384xbf16>, vector<384x128xbf16>, vector<32x128xf32> -> vector<32x128xf32>
    %7 = arith.addf %3, %6 : vector<32x128xf32>
    %c0_6 = arith.constant 0 : index
    %c0_7 = arith.constant 0 : index
    %8 = vector.load %arg7[%c0_6, %c0_7] : memref<32x128xf32, #tpu.memory_space<vmem>>, vector<32x128xf32>
    tpu.vector_store %arg7[%c0_6, %c0_7], %7 {strides = array<i32>} : memref<32x128xf32, #tpu.memory_space<vmem>>, vector<32x128xf32>,
    %c0_i32_8 = arith.constant 0 : i32
    %9 = arith.cmpi eq, %arg2, %c0_i32_8 : i32
    %10 = arith.extui %9 : i1 to i32
    %c0_i32_9 = arith.constant 0 : i32
    %11 = arith.cmpi ne, %10, %c0_i32_9 : i32
    scf.if %11 {
      %c0_10 = arith.constant 0 : index
      %c0_11 = arith.constant 0 : index
      %12 = vector.load %arg5[%c0_10, %c0_11] : memref<32x128xbf16, #tpu.memory_space<vmem>>, vector<32x128xbf16>
      %13 = arith.extf %12 : vector<32x128xbf16> to vector<32x128xf32>
      %c0_12 = arith.constant 0 : index
      %c0_13 = arith.constant 0 : index
      %14 = vector.load %arg7[%c0_12, %c0_13] : memref<32x128xf32, #tpu.memory_space<vmem>>, vector<32x128xf32>
      %15 = arith.addf %14, %13 : vector<32x128xf32>
      %cst_14 = arith.constant 0.000000e+00 : f32
      %16 = vector.broadcast %cst_14 : f32 to vector<32x128xf32>
      %17 = arith.maximumf %15, %16 : vector<32x128xf32>
      %18 = arith.truncf %17 : vector<32x128xf32> to vector<32x128xbf16>
      %c0_15 = arith.constant 0 : index
      %c0_16 = arith.constant 0 : index
      %19 = vector.load %arg6[%c0_15, %c0_16] : memref<32x128xbf16, #tpu.memory_space<vmem>>, vector<32x128xbf16>
      tpu.vector_store %arg6[%c0_15, %c0_16], %18 {strides = array<i32>} : memref<32x128xbf16, #tpu.memory_space<vmem>>, vector<32x128xbf16>,
    } else {
    }
    return
  }
  func.func @transform_0(%arg0: i32, %arg1: i32, %arg2: i32) -> (i32, i32) {
    %c0_i32 = arith.constant 0 : i32
    return %arg0, %arg2 : i32, i32
  }
  func.func @transform_1(%arg0: i32, %arg1: i32, %arg2: i32) -> (i32, i32) {
    %c0_i32 = arith.constant 0 : i32
    return %arg2, %arg1 : i32, i32
  }
  func.func @transform_2(%arg0: i32, %arg1: i32, %arg2: i32) -> (i32, i32) {
    %c0_i32 = arith.constant 0 : i32
    return %arg0, %arg1 : i32, i32
  }
  func.func @transform_3(%arg0: i32, %arg1: i32, %arg2: i32) -> (i32, i32) {
    %c0_i32 = arith.constant 0 : i32
    return %arg0, %arg1 : i32, i32
  }
}

module attributes {stable_mosaic.version = 11 : i64} {
  func.func @_mm_kernel(%arg0: i32, %arg1: i32, %arg2: i32, %arg3: memref<16x128xbf16, #tpu.memory_space<vmem>>, %arg4: memref<128x128xbf16, #tpu.memory_space<vmem>>, %arg5: memref<16x128xbf16, #tpu.memory_space<vmem>>, %arg6: memref<16x128xf32, #tpu.memory_space<vmem>>) attributes {dimension_semantics = [#tpu.dimension_semantics<parallel>, #tpu.dimension_semantics<parallel>, #tpu.dimension_semantics<arbitrary>], iteration_bounds = array<i64: 1, 1, 1>, scalar_prefetch = 0 : i64, scratch_operands = 1 : i64, tpu.core_type = #tpu.core_type<tc>, window_params = [{transform_indices = @transform_0, window_bounds = array<i64: 16, 128>}, {transform_indices = @transform_1, window_bounds = array<i64: 128, 128>}, {transform_indices = @transform_2, window_bounds = array<i64: 16, 128>}]} {
    %c0_i32 = arith.constant 0 : i32
    %0 = arith.cmpi eq, %arg2, %c0_i32 : i32
    %1 = arith.extui %0 : i1 to i32
    %c0_i32_0 = arith.constant 0 : i32
    %2 = arith.cmpi ne, %1, %c0_i32_0 : i32
    scf.if %2 {
      %cst_10 = arith.constant 0.000000e+00 : f32
      %12 = vector.broadcast %cst_10 : f32 to vector<16x128xf32>
      %c0_11 = arith.constant 0 : index
      %c0_12 = arith.constant 0 : index
      %13 = vector.load %arg6[%c0_11, %c0_12] : memref<16x128xf32, #tpu.memory_space<vmem>>, vector<16x128xf32>
      tpu.vector_store %arg6[%c0_11, %c0_12], %12 {strides = array<i32>} : memref<16x128xf32, #tpu.memory_space<vmem>>, vector<16x128xf32>,
    } else {
    }
    %c0 = arith.constant 0 : index
    %c0_1 = arith.constant 0 : index
    %3 = vector.load %arg6[%c0, %c0_1] : memref<16x128xf32, #tpu.memory_space<vmem>>, vector<16x128xf32>
    %c0_2 = arith.constant 0 : index
    %c0_3 = arith.constant 0 : index
    %4 = vector.load %arg3[%c0_2, %c0_3] : memref<16x128xbf16, #tpu.memory_space<vmem>>, vector<16x128xbf16>
    %c0_4 = arith.constant 0 : index
    %c0_5 = arith.constant 0 : index
    %5 = vector.load %arg4[%c0_4, %c0_5] : memref<128x128xbf16, #tpu.memory_space<vmem>>, vector<128x128xbf16>
    %cst = arith.constant dense<0.000000e+00> : vector<16x128xf32>
    %6 = tpu.matmul %4, %5, %cst {dimension_numbers = #tpu.dot_dimension_numbers<[1], [0], [0], [1], [0, 0, 1, 1], [], []>} : vector<16x128xbf16>, vector<128x128xbf16>, vector<16x128xf32> -> vector<16x128xf32>
    %7 = arith.addf %3, %6 : vector<16x128xf32>
    %c0_6 = arith.constant 0 : index
    %c0_7 = arith.constant 0 : index
    %8 = vector.load %arg6[%c0_6, %c0_7] : memref<16x128xf32, #tpu.memory_space<vmem>>, vector<16x128xf32>
    tpu.vector_store %arg6[%c0_6, %c0_7], %7 {strides = array<i32>} : memref<16x128xf32, #tpu.memory_space<vmem>>, vector<16x128xf32>,
    %c0_i32_8 = arith.constant 0 : i32
    %9 = arith.cmpi eq, %arg2, %c0_i32_8 : i32
    %10 = arith.extui %9 : i1 to i32
    %c0_i32_9 = arith.constant 0 : i32
    %11 = arith.cmpi ne, %10, %c0_i32_9 : i32
    scf.if %11 {
      %c0_10 = arith.constant 0 : index
      %c0_11 = arith.constant 0 : index
      %12 = vector.load %arg6[%c0_10, %c0_11] : memref<16x128xf32, #tpu.memory_space<vmem>>, vector<16x128xf32>
      %13 = arith.truncf %12 : vector<16x128xf32> to vector<16x128xbf16>
      %c0_12 = arith.constant 0 : index
      %c0_13 = arith.constant 0 : index
      %14 = vector.load %arg5[%c0_12, %c0_13] : memref<16x128xbf16, #tpu.memory_space<vmem>>, vector<16x128xbf16>
      tpu.vector_store %arg5[%c0_12, %c0_13], %13 {strides = array<i32>} : memref<16x128xbf16, #tpu.memory_space<vmem>>, vector<16x128xbf16>,
    } else {
    }
    return
  }
  func.func @transform_0(%arg0: i32, %arg1: i32, %arg2: i32) -> (i32, i32) {
    %c0_i32 = arith.constant 0 : i32
    return %arg0, %arg2 : i32, i32
  }
  func.func @transform_1(%arg0: i32, %arg1: i32, %arg2: i32) -> (i32, i32) {
    %c0_i32 = arith.constant 0 : i32
    return %arg2, %arg1 : i32, i32
  }
  func.func @transform_2(%arg0: i32, %arg1: i32, %arg2: i32) -> (i32, i32) {
    %c0_i32 = arith.constant 0 : i32
    return %arg0, %arg1 : i32, i32
  }
}

module attributes {stable_mosaic.version = 11 : i64} {
  func.func @_mm_add_relu_kernel(%arg0: i32, %arg1: i32, %arg2: i32, %arg3: memref<16x384xbf16, #tpu.memory_space<vmem>>, %arg4: memref<384x128xbf16, #tpu.memory_space<vmem>>, %arg5: memref<16x128xbf16, #tpu.memory_space<vmem>>, %arg6: memref<16x128xbf16, #tpu.memory_space<vmem>>, %arg7: memref<16x128xf32, #tpu.memory_space<vmem>>) attributes {dimension_semantics = [#tpu.dimension_semantics<parallel>, #tpu.dimension_semantics<parallel>, #tpu.dimension_semantics<arbitrary>], iteration_bounds = array<i64: 1, 1, 1>, scalar_prefetch = 0 : i64, scratch_operands = 1 : i64, tpu.core_type = #tpu.core_type<tc>, window_params = [{transform_indices = @transform_0, window_bounds = array<i64: 16, 384>}, {transform_indices = @transform_1, window_bounds = array<i64: 384, 128>}, {transform_indices = @transform_2, window_bounds = array<i64: 16, 128>}, {transform_indices = @transform_3, window_bounds = array<i64: 16, 128>}]} {
    %c0_i32 = arith.constant 0 : i32
    %0 = arith.cmpi eq, %arg2, %c0_i32 : i32
    %1 = arith.extui %0 : i1 to i32
    %c0_i32_0 = arith.constant 0 : i32
    %2 = arith.cmpi ne, %1, %c0_i32_0 : i32
    scf.if %2 {
      %cst_10 = arith.constant 0.000000e+00 : f32
      %12 = vector.broadcast %cst_10 : f32 to vector<16x128xf32>
      %c0_11 = arith.constant 0 : index
      %c0_12 = arith.constant 0 : index
      %13 = vector.load %arg7[%c0_11, %c0_12] : memref<16x128xf32, #tpu.memory_space<vmem>>, vector<16x128xf32>
      tpu.vector_store %arg7[%c0_11, %c0_12], %12 {strides = array<i32>} : memref<16x128xf32, #tpu.memory_space<vmem>>, vector<16x128xf32>,
    } else {
    }
    %c0 = arith.constant 0 : index
    %c0_1 = arith.constant 0 : index
    %3 = vector.load %arg7[%c0, %c0_1] : memref<16x128xf32, #tpu.memory_space<vmem>>, vector<16x128xf32>
    %c0_2 = arith.constant 0 : index
    %c0_3 = arith.constant 0 : index
    %4 = vector.load %arg3[%c0_2, %c0_3] : memref<16x384xbf16, #tpu.memory_space<vmem>>, vector<16x384xbf16>
    %c0_4 = arith.constant 0 : index
    %c0_5 = arith.constant 0 : index
    %5 = vector.load %arg4[%c0_4, %c0_5] : memref<384x128xbf16, #tpu.memory_space<vmem>>, vector<384x128xbf16>
    %cst = arith.constant dense<0.000000e+00> : vector<16x128xf32>
    %6 = tpu.matmul %4, %5, %cst {dimension_numbers = #tpu.dot_dimension_numbers<[1], [0], [0], [1], [0, 0, 1, 1], [], []>} : vector<16x384xbf16>, vector<384x128xbf16>, vector<16x128xf32> -> vector<16x128xf32>
    %7 = arith.addf %3, %6 : vector<16x128xf32>
    %c0_6 = arith.constant 0 : index
    %c0_7 = arith.constant 0 : index
    %8 = vector.load %arg7[%c0_6, %c0_7] : memref<16x128xf32, #tpu.memory_space<vmem>>, vector<16x128xf32>
    tpu.vector_store %arg7[%c0_6, %c0_7], %7 {strides = array<i32>} : memref<16x128xf32, #tpu.memory_space<vmem>>, vector<16x128xf32>,
    %c0_i32_8 = arith.constant 0 : i32
    %9 = arith.cmpi eq, %arg2, %c0_i32_8 : i32
    %10 = arith.extui %9 : i1 to i32
    %c0_i32_9 = arith.constant 0 : i32
    %11 = arith.cmpi ne, %10, %c0_i32_9 : i32
    scf.if %11 {
      %c0_10 = arith.constant 0 : index
      %c0_11 = arith.constant 0 : index
      %12 = vector.load %arg5[%c0_10, %c0_11] : memref<16x128xbf16, #tpu.memory_space<vmem>>, vector<16x128xbf16>
      %13 = arith.extf %12 : vector<16x128xbf16> to vector<16x128xf32>
      %c0_12 = arith.constant 0 : index
      %c0_13 = arith.constant 0 : index
      %14 = vector.load %arg7[%c0_12, %c0_13] : memref<16x128xf32, #tpu.memory_space<vmem>>, vector<16x128xf32>
      %15 = arith.addf %14, %13 : vector<16x128xf32>
      %cst_14 = arith.constant 0.000000e+00 : f32
      %16 = vector.broadcast %cst_14 : f32 to vector<16x128xf32>
      %17 = arith.maximumf %15, %16 : vector<16x128xf32>
      %18 = arith.truncf %17 : vector<16x128xf32> to vector<16x128xbf16>
      %c0_15 = arith.constant 0 : index
      %c0_16 = arith.constant 0 : index
      %19 = vector.load %arg6[%c0_15, %c0_16] : memref<16x128xbf16, #tpu.memory_space<vmem>>, vector<16x128xbf16>
      tpu.vector_store %arg6[%c0_15, %c0_16], %18 {strides = array<i32>} : memref<16x128xbf16, #tpu.memory_space<vmem>>, vector<16x128xbf16>,
    } else {
    }
    return
  }
  func.func @transform_0(%arg0: i32, %arg1: i32, %arg2: i32) -> (i32, i32) {
    %c0_i32 = arith.constant 0 : i32
    return %arg0, %arg2 : i32, i32
  }
  func.func @transform_1(%arg0: i32, %arg1: i32, %arg2: i32) -> (i32, i32) {
    %c0_i32 = arith.constant 0 : i32
    return %arg2, %arg1 : i32, i32
  }
  func.func @transform_2(%arg0: i32, %arg1: i32, %arg2: i32) -> (i32, i32) {
    %c0_i32 = arith.constant 0 : i32
    return %arg0, %arg1 : i32, i32
  }
  func.func @transform_3(%arg0: i32, %arg1: i32, %arg2: i32) -> (i32, i32) {
    %c0_i32 = arith.constant 0 : i32
    return %arg0, %arg1 : i32, i32
  }
}

module attributes {stable_mosaic.version = 11 : i64} {
  func.func @_mm_relu_kernel(%arg0: i32, %arg1: i32, %arg2: i32, %arg3: memref<16x384xbf16, #tpu.memory_space<vmem>>, %arg4: memref<384x128xbf16, #tpu.memory_space<vmem>>, %arg5: memref<16x128xbf16, #tpu.memory_space<vmem>>, %arg6: memref<16x128xf32, #tpu.memory_space<vmem>>) attributes {dimension_semantics = [#tpu.dimension_semantics<parallel>, #tpu.dimension_semantics<parallel>, #tpu.dimension_semantics<arbitrary>], iteration_bounds = array<i64: 1, 1, 1>, scalar_prefetch = 0 : i64, scratch_operands = 1 : i64, tpu.core_type = #tpu.core_type<tc>, window_params = [{transform_indices = @transform_0, window_bounds = array<i64: 16, 384>}, {transform_indices = @transform_1, window_bounds = array<i64: 384, 128>}, {transform_indices = @transform_2, window_bounds = array<i64: 16, 128>}]} {
    %c0_i32 = arith.constant 0 : i32
    %0 = arith.cmpi eq, %arg2, %c0_i32 : i32
    %1 = arith.extui %0 : i1 to i32
    %c0_i32_0 = arith.constant 0 : i32
    %2 = arith.cmpi ne, %1, %c0_i32_0 : i32
    scf.if %2 {
      %cst_10 = arith.constant 0.000000e+00 : f32
      %12 = vector.broadcast %cst_10 : f32 to vector<16x128xf32>
      %c0_11 = arith.constant 0 : index
      %c0_12 = arith.constant 0 : index
      %13 = vector.load %arg6[%c0_11, %c0_12] : memref<16x128xf32, #tpu.memory_space<vmem>>, vector<16x128xf32>
      tpu.vector_store %arg6[%c0_11, %c0_12], %12 {strides = array<i32>} : memref<16x128xf32, #tpu.memory_space<vmem>>, vector<16x128xf32>,
    } else {
    }
    %c0 = arith.constant 0 : index
    %c0_1 = arith.constant 0 : index
    %3 = vector.load %arg6[%c0, %c0_1] : memref<16x128xf32, #tpu.memory_space<vmem>>, vector<16x128xf32>
    %c0_2 = arith.constant 0 : index
    %c0_3 = arith.constant 0 : index
    %4 = vector.load %arg3[%c0_2, %c0_3] : memref<16x384xbf16, #tpu.memory_space<vmem>>, vector<16x384xbf16>
    %c0_4 = arith.constant 0 : index
    %c0_5 = arith.constant 0 : index
    %5 = vector.load %arg4[%c0_4, %c0_5] : memref<384x128xbf16, #tpu.memory_space<vmem>>, vector<384x128xbf16>
    %cst = arith.constant dense<0.000000e+00> : vector<16x128xf32>
    %6 = tpu.matmul %4, %5, %cst {dimension_numbers = #tpu.dot_dimension_numbers<[1], [0], [0], [1], [0, 0, 1, 1], [], []>} : vector<16x384xbf16>, vector<384x128xbf16>, vector<16x128xf32> -> vector<16x128xf32>
    %7 = arith.addf %3, %6 : vector<16x128xf32>
    %c0_6 = arith.constant 0 : index
    %c0_7 = arith.constant 0 : index
    %8 = vector.load %arg6[%c0_6, %c0_7] : memref<16x128xf32, #tpu.memory_space<vmem>>, vector<16x128xf32>
    tpu.vector_store %arg6[%c0_6, %c0_7], %7 {strides = array<i32>} : memref<16x128xf32, #tpu.memory_space<vmem>>, vector<16x128xf32>,
    %c0_i32_8 = arith.constant 0 : i32
    %9 = arith.cmpi eq, %arg2, %c0_i32_8 : i32
    %10 = arith.extui %9 : i1 to i32
    %c0_i32_9 = arith.constant 0 : i32
    %11 = arith.cmpi ne, %10, %c0_i32_9 : i32
    scf.if %11 {
      %c0_10 = arith.constant 0 : index
      %c0_11 = arith.constant 0 : index
      %12 = vector.load %arg6[%c0_10, %c0_11] : memref<16x128xf32, #tpu.memory_space<vmem>>, vector<16x128xf32>
      %cst_12 = arith.constant 0.000000e+00 : f32
      %13 = vector.broadcast %cst_12 : f32 to vector<16x128xf32>
      %14 = arith.maximumf %12, %13 : vector<16x128xf32>
      %15 = arith.truncf %14 : vector<16x128xf32> to vector<16x128xbf16>
      %c0_13 = arith.constant 0 : index
      %c0_14 = arith.constant 0 : index
      %16 = vector.load %arg5[%c0_13, %c0_14] : memref<16x128xbf16, #tpu.memory_space<vmem>>, vector<16x128xbf16>
      tpu.vector_store %arg5[%c0_13, %c0_14], %15 {strides = array<i32>} : memref<16x128xbf16, #tpu.memory_space<vmem>>, vector<16x128xbf16>,
    } else {
    }
    return
  }
  func.func @transform_0(%arg0: i32, %arg1: i32, %arg2: i32) -> (i32, i32) {
    %c0_i32 = arith.constant 0 : i32
    return %arg0, %arg2 : i32, i32
  }
  func.func @transform_1(%arg0: i32, %arg1: i32, %arg2: i32) -> (i32, i32) {
    %c0_i32 = arith.constant 0 : i32
    return %arg2, %arg1 : i32, i32
  }
  func.func @transform_2(%arg0: i32, %arg1: i32, %arg2: i32) -> (i32, i32) {
    %c0_i32 = arith.constant 0 : i32
    return %arg0, %arg1 : i32, i32
  }
}

module attributes {stable_mosaic.version = 11 : i64} {
  func.func @_mm_relu_kernel(%arg0: i32, %arg1: i32, %arg2: i32, %arg3: memref<16x384xbf16, #tpu.memory_space<vmem>>, %arg4: memref<384x256xbf16, #tpu.memory_space<vmem>>, %arg5: memref<16x256xbf16, #tpu.memory_space<vmem>>, %arg6: memref<16x256xf32, #tpu.memory_space<vmem>>) attributes {dimension_semantics = [#tpu.dimension_semantics<parallel>, #tpu.dimension_semantics<parallel>, #tpu.dimension_semantics<arbitrary>], iteration_bounds = array<i64: 1, 1, 1>, scalar_prefetch = 0 : i64, scratch_operands = 1 : i64, tpu.core_type = #tpu.core_type<tc>, window_params = [{transform_indices = @transform_0, window_bounds = array<i64: 16, 384>}, {transform_indices = @transform_1, window_bounds = array<i64: 384, 256>}, {transform_indices = @transform_2, window_bounds = array<i64: 16, 256>}]} {
    %c0_i32 = arith.constant 0 : i32
    %0 = arith.cmpi eq, %arg2, %c0_i32 : i32
    %1 = arith.extui %0 : i1 to i32
    %c0_i32_0 = arith.constant 0 : i32
    %2 = arith.cmpi ne, %1, %c0_i32_0 : i32
    scf.if %2 {
      %cst_10 = arith.constant 0.000000e+00 : f32
      %12 = vector.broadcast %cst_10 : f32 to vector<16x256xf32>
      %c0_11 = arith.constant 0 : index
      %c0_12 = arith.constant 0 : index
      %13 = vector.load %arg6[%c0_11, %c0_12] : memref<16x256xf32, #tpu.memory_space<vmem>>, vector<16x256xf32>
      tpu.vector_store %arg6[%c0_11, %c0_12], %12 {strides = array<i32>} : memref<16x256xf32, #tpu.memory_space<vmem>>, vector<16x256xf32>,
    } else {
    }
    %c0 = arith.constant 0 : index
    %c0_1 = arith.constant 0 : index
    %3 = vector.load %arg6[%c0, %c0_1] : memref<16x256xf32, #tpu.memory_space<vmem>>, vector<16x256xf32>
    %c0_2 = arith.constant 0 : index
    %c0_3 = arith.constant 0 : index
    %4 = vector.load %arg3[%c0_2, %c0_3] : memref<16x384xbf16, #tpu.memory_space<vmem>>, vector<16x384xbf16>
    %c0_4 = arith.constant 0 : index
    %c0_5 = arith.constant 0 : index
    %5 = vector.load %arg4[%c0_4, %c0_5] : memref<384x256xbf16, #tpu.memory_space<vmem>>, vector<384x256xbf16>
    %cst = arith.constant dense<0.000000e+00> : vector<16x256xf32>
    %6 = tpu.matmul %4, %5, %cst {dimension_numbers = #tpu.dot_dimension_numbers<[1], [0], [0], [1], [0, 0, 1, 1], [], []>} : vector<16x384xbf16>, vector<384x256xbf16>, vector<16x256xf32> -> vector<16x256xf32>
    %7 = arith.addf %3, %6 : vector<16x256xf32>
    %c0_6 = arith.constant 0 : index
    %c0_7 = arith.constant 0 : index
    %8 = vector.load %arg6[%c0_6, %c0_7] : memref<16x256xf32, #tpu.memory_space<vmem>>, vector<16x256xf32>
    tpu.vector_store %arg6[%c0_6, %c0_7], %7 {strides = array<i32>} : memref<16x256xf32, #tpu.memory_space<vmem>>, vector<16x256xf32>,
    %c0_i32_8 = arith.constant 0 : i32
    %9 = arith.cmpi eq, %arg2, %c0_i32_8 : i32
    %10 = arith.extui %9 : i1 to i32
    %c0_i32_9 = arith.constant 0 : i32
    %11 = arith.cmpi ne, %10, %c0_i32_9 : i32
    scf.if %11 {
      %c0_10 = arith.constant 0 : index
      %c0_11 = arith.constant 0 : index
      %12 = vector.load %arg6[%c0_10, %c0_11] : memref<16x256xf32, #tpu.memory_space<vmem>>, vector<16x256xf32>
      %cst_12 = arith.constant 0.000000e+00 : f32
      %13 = vector.broadcast %cst_12 : f32 to vector<16x256xf32>
      %14 = arith.maximumf %12, %13 : vector<16x256xf32>
      %15 = arith.truncf %14 : vector<16x256xf32> to vector<16x256xbf16>
      %c0_13 = arith.constant 0 : index
      %c0_14 = arith.constant 0 : index
      %16 = vector.load %arg5[%c0_13, %c0_14] : memref<16x256xbf16, #tpu.memory_space<vmem>>, vector<16x256xbf16>
      tpu.vector_store %arg5[%c0_13, %c0_14], %15 {strides = array<i32>} : memref<16x256xbf16, #tpu.memory_space<vmem>>, vector<16x256xbf16>,
    } else {
    }
    return
  }
  func.func @transform_0(%arg0: i32, %arg1: i32, %arg2: i32) -> (i32, i32) {
    %c0_i32 = arith.constant 0 : i32
    return %arg0, %arg2 : i32, i32
  }
  func.func @transform_1(%arg0: i32, %arg1: i32, %arg2: i32) -> (i32, i32) {
    %c0_i32 = arith.constant 0 : i32
    return %arg2, %arg1 : i32, i32
  }
  func.func @transform_2(%arg0: i32, %arg1: i32, %arg2: i32) -> (i32, i32) {
    %c0_i32 = arith.constant 0 : i32
    return %arg0, %arg1 : i32, i32
  }
}

module attributes {stable_mosaic.version = 11 : i64} {
  func.func @_mm_add_relu_kernel(%arg0: i32, %arg1: i32, %arg2: i32, %arg3: memref<16x384xbf16, #tpu.memory_space<vmem>>, %arg4: memref<384x256xbf16, #tpu.memory_space<vmem>>, %arg5: memref<16x256xbf16, #tpu.memory_space<vmem>>, %arg6: memref<16x256xbf16, #tpu.memory_space<vmem>>, %arg7: memref<16x256xf32, #tpu.memory_space<vmem>>) attributes {dimension_semantics = [#tpu.dimension_semantics<parallel>, #tpu.dimension_semantics<parallel>, #tpu.dimension_semantics<arbitrary>], iteration_bounds = array<i64: 1, 1, 2>, scalar_prefetch = 0 : i64, scratch_operands = 1 : i64, tpu.core_type = #tpu.core_type<tc>, window_params = [{transform_indices = @transform_0, window_bounds = array<i64: 16, 384>}, {transform_indices = @transform_1, window_bounds = array<i64: 384, 256>}, {transform_indices = @transform_2, window_bounds = array<i64: 16, 256>}, {transform_indices = @transform_3, window_bounds = array<i64: 16, 256>}]} {
    %c0_i32 = arith.constant 0 : i32
    %0 = arith.cmpi eq, %arg2, %c0_i32 : i32
    %1 = arith.extui %0 : i1 to i32
    %c0_i32_0 = arith.constant 0 : i32
    %2 = arith.cmpi ne, %1, %c0_i32_0 : i32
    scf.if %2 {
      %cst_9 = arith.constant 0.000000e+00 : f32
      %12 = vector.broadcast %cst_9 : f32 to vector<16x256xf32>
      %c0_10 = arith.constant 0 : index
      %c0_11 = arith.constant 0 : index
      %13 = vector.load %arg7[%c0_10, %c0_11] : memref<16x256xf32, #tpu.memory_space<vmem>>, vector<16x256xf32>
      tpu.vector_store %arg7[%c0_10, %c0_11], %12 {strides = array<i32>} : memref<16x256xf32, #tpu.memory_space<vmem>>, vector<16x256xf32>,
    } else {
    }
    %c0 = arith.constant 0 : index
    %c0_1 = arith.constant 0 : index
    %3 = vector.load %arg7[%c0, %c0_1] : memref<16x256xf32, #tpu.memory_space<vmem>>, vector<16x256xf32>
    %c0_2 = arith.constant 0 : index
    %c0_3 = arith.constant 0 : index
    %4 = vector.load %arg3[%c0_2, %c0_3] : memref<16x384xbf16, #tpu.memory_space<vmem>>, vector<16x384xbf16>
    %c0_4 = arith.constant 0 : index
    %c0_5 = arith.constant 0 : index
    %5 = vector.load %arg4[%c0_4, %c0_5] : memref<384x256xbf16, #tpu.memory_space<vmem>>, vector<384x256xbf16>
    %cst = arith.constant dense<0.000000e+00> : vector<16x256xf32>
    %6 = tpu.matmul %4, %5, %cst {dimension_numbers = #tpu.dot_dimension_numbers<[1], [0], [0], [1], [0, 0, 1, 1], [], []>} : vector<16x384xbf16>, vector<384x256xbf16>, vector<16x256xf32> -> vector<16x256xf32>
    %7 = arith.addf %3, %6 : vector<16x256xf32>
    %c0_6 = arith.constant 0 : index
    %c0_7 = arith.constant 0 : index
    %8 = vector.load %arg7[%c0_6, %c0_7] : memref<16x256xf32, #tpu.memory_space<vmem>>, vector<16x256xf32>
    tpu.vector_store %arg7[%c0_6, %c0_7], %7 {strides = array<i32>} : memref<16x256xf32, #tpu.memory_space<vmem>>, vector<16x256xf32>,
    %c1_i32 = arith.constant 1 : i32
    %9 = arith.cmpi eq, %arg2, %c1_i32 : i32
    %10 = arith.extui %9 : i1 to i32
    %c0_i32_8 = arith.constant 0 : i32
    %11 = arith.cmpi ne, %10, %c0_i32_8 : i32
    scf.if %11 {
      %c0_9 = arith.constant 0 : index
      %c0_10 = arith.constant 0 : index
      %12 = vector.load %arg5[%c0_9, %c0_10] : memref<16x256xbf16, #tpu.memory_space<vmem>>, vector<16x256xbf16>
      %13 = arith.extf %12 : vector<16x256xbf16> to vector<16x256xf32>
      %c0_11 = arith.constant 0 : index
      %c0_12 = arith.constant 0 : index
      %14 = vector.load %arg7[%c0_11, %c0_12] : memref<16x256xf32, #tpu.memory_space<vmem>>, vector<16x256xf32>
      %15 = arith.addf %14, %13 : vector<16x256xf32>
      %cst_13 = arith.constant 0.000000e+00 : f32
      %16 = vector.broadcast %cst_13 : f32 to vector<16x256xf32>
      %17 = arith.maximumf %15, %16 : vector<16x256xf32>
      %18 = arith.truncf %17 : vector<16x256xf32> to vector<16x256xbf16>
      %c0_14 = arith.constant 0 : index
      %c0_15 = arith.constant 0 : index
      %19 = vector.load %arg6[%c0_14, %c0_15] : memref<16x256xbf16, #tpu.memory_space<vmem>>, vector<16x256xbf16>
      tpu.vector_store %arg6[%c0_14, %c0_15], %18 {strides = array<i32>} : memref<16x256xbf16, #tpu.memory_space<vmem>>, vector<16x256xbf16>,
    } else {
    }
    return
  }
  func.func @transform_0(%arg0: i32, %arg1: i32, %arg2: i32) -> (i32, i32) {
    %c0_i32 = arith.constant 0 : i32
    return %arg0, %arg2 : i32, i32
  }
  func.func @transform_1(%arg0: i32, %arg1: i32, %arg2: i32) -> (i32, i32) {
    %c0_i32 = arith.constant 0 : i32
    return %arg2, %arg1 : i32, i32
  }
  func.func @transform_2(%arg0: i32, %arg1: i32, %arg2: i32) -> (i32, i32) {
    %c0_i32 = arith.constant 0 : i32
    return %arg0, %arg1 : i32, i32
  }
  func.func @transform_3(%arg0: i32, %arg1: i32, %arg2: i32) -> (i32, i32) {
    %c0_i32 = arith.constant 0 : i32
    return %arg0, %arg1 : i32, i32
  }
}

module attributes {stable_mosaic.version = 11 : i64} {
  func.func @_mm_kernel(%arg0: i32, %arg1: i32, %arg2: i32, %arg3: memref<16x128xbf16, #tpu.memory_space<vmem>>, %arg4: memref<128x256xbf16, #tpu.memory_space<vmem>>, %arg5: memref<16x256xbf16, #tpu.memory_space<vmem>>, %arg6: memref<16x256xf32, #tpu.memory_space<vmem>>) attributes {dimension_semantics = [#tpu.dimension_semantics<parallel>, #tpu.dimension_semantics<parallel>, #tpu.dimension_semantics<arbitrary>], iteration_bounds = array<i64: 1, 1, 1>, scalar_prefetch = 0 : i64, scratch_operands = 1 : i64, tpu.core_type = #tpu.core_type<tc>, window_params = [{transform_indices = @transform_0, window_bounds = array<i64: 16, 128>}, {transform_indices = @transform_1, window_bounds = array<i64: 128, 256>}, {transform_indices = @transform_2, window_bounds = array<i64: 16, 256>}]} {
    %c0_i32 = arith.constant 0 : i32
    %0 = arith.cmpi eq, %arg2, %c0_i32 : i32
    %1 = arith.extui %0 : i1 to i32
    %c0_i32_0 = arith.constant 0 : i32
    %2 = arith.cmpi ne, %1, %c0_i32_0 : i32
    scf.if %2 {
      %cst_10 = arith.constant 0.000000e+00 : f32
      %12 = vector.broadcast %cst_10 : f32 to vector<16x256xf32>
      %c0_11 = arith.constant 0 : index
      %c0_12 = arith.constant 0 : index
      %13 = vector.load %arg6[%c0_11, %c0_12] : memref<16x256xf32, #tpu.memory_space<vmem>>, vector<16x256xf32>
      tpu.vector_store %arg6[%c0_11, %c0_12], %12 {strides = array<i32>} : memref<16x256xf32, #tpu.memory_space<vmem>>, vector<16x256xf32>,
    } else {
    }
    %c0 = arith.constant 0 : index
    %c0_1 = arith.constant 0 : index
    %3 = vector.load %arg6[%c0, %c0_1] : memref<16x256xf32, #tpu.memory_space<vmem>>, vector<16x256xf32>
    %c0_2 = arith.constant 0 : index
    %c0_3 = arith.constant 0 : index
    %4 = vector.load %arg3[%c0_2, %c0_3] : memref<16x128xbf16, #tpu.memory_space<vmem>>, vector<16x128xbf16>
    %c0_4 = arith.constant 0 : index
    %c0_5 = arith.constant 0 : index
    %5 = vector.load %arg4[%c0_4, %c0_5] : memref<128x256xbf16, #tpu.memory_space<vmem>>, vector<128x256xbf16>
    %cst = arith.constant dense<0.000000e+00> : vector<16x256xf32>
    %6 = tpu.matmul %4, %5, %cst {dimension_numbers = #tpu.dot_dimension_numbers<[1], [0], [0], [1], [0, 0, 1, 1], [], []>} : vector<16x128xbf16>, vector<128x256xbf16>, vector<16x256xf32> -> vector<16x256xf32>
    %7 = arith.addf %3, %6 : vector<16x256xf32>
    %c0_6 = arith.constant 0 : index
    %c0_7 = arith.constant 0 : index
    %8 = vector.load %arg6[%c0_6, %c0_7] : memref<16x256xf32, #tpu.memory_space<vmem>>, vector<16x256xf32>
    tpu.vector_store %arg6[%c0_6, %c0_7], %7 {strides = array<i32>} : memref<16x256xf32, #tpu.memory_space<vmem>>, vector<16x256xf32>,
    %c0_i32_8 = arith.constant 0 : i32
    %9 = arith.cmpi eq, %arg2, %c0_i32_8 : i32
    %10 = arith.extui %9 : i1 to i32
    %c0_i32_9 = arith.constant 0 : i32
    %11 = arith.cmpi ne, %10, %c0_i32_9 : i32
    scf.if %11 {
      %c0_10 = arith.constant 0 : index
      %c0_11 = arith.constant 0 : index
      %12 = vector.load %arg6[%c0_10, %c0_11] : memref<16x256xf32, #tpu.memory_space<vmem>>, vector<16x256xf32>
      %13 = arith.truncf %12 : vector<16x256xf32> to vector<16x256xbf16>
      %c0_12 = arith.constant 0 : index
      %c0_13 = arith.constant 0 : index
      %14 = vector.load %arg5[%c0_12, %c0_13] : memref<16x256xbf16, #tpu.memory_space<vmem>>, vector<16x256xbf16>
      tpu.vector_store %arg5[%c0_12, %c0_13], %13 {strides = array<i32>} : memref<16x256xbf16, #tpu.memory_space<vmem>>, vector<16x256xbf16>,
    } else {
    }
    return
  }
  func.func @transform_0(%arg0: i32, %arg1: i32, %arg2: i32) -> (i32, i32) {
    %c0_i32 = arith.constant 0 : i32
    return %arg0, %arg2 : i32, i32
  }
  func.func @transform_1(%arg0: i32, %arg1: i32, %arg2: i32) -> (i32, i32) {
    %c0_i32 = arith.constant 0 : i32
    return %arg2, %arg1 : i32, i32
  }
  func.func @transform_2(%arg0: i32, %arg1: i32, %arg2: i32) -> (i32, i32) {
    %c0_i32 = arith.constant 0 : i32
    return %arg0, %arg1 : i32, i32
  }
}

module attributes {stable_mosaic.version = 11 : i64} {
  func.func @_mm_relu_kernel(%arg0: i32, %arg1: i32, %arg2: i32, %arg3: memref<16x384xbf16, #tpu.memory_space<vmem>>, %arg4: memref<384x256xbf16, #tpu.memory_space<vmem>>, %arg5: memref<16x256xbf16, #tpu.memory_space<vmem>>, %arg6: memref<16x256xf32, #tpu.memory_space<vmem>>) attributes {dimension_semantics = [#tpu.dimension_semantics<parallel>, #tpu.dimension_semantics<parallel>, #tpu.dimension_semantics<arbitrary>], iteration_bounds = array<i64: 1, 2, 2>, scalar_prefetch = 0 : i64, scratch_operands = 1 : i64, tpu.core_type = #tpu.core_type<tc>, window_params = [{transform_indices = @transform_0, window_bounds = array<i64: 16, 384>}, {transform_indices = @transform_1, window_bounds = array<i64: 384, 256>}, {transform_indices = @transform_2, window_bounds = array<i64: 16, 256>}]} {
    %c0_i32 = arith.constant 0 : i32
    %0 = arith.cmpi eq, %arg2, %c0_i32 : i32
    %1 = arith.extui %0 : i1 to i32
    %c0_i32_0 = arith.constant 0 : i32
    %2 = arith.cmpi ne, %1, %c0_i32_0 : i32
    scf.if %2 {
      %cst_9 = arith.constant 0.000000e+00 : f32
      %12 = vector.broadcast %cst_9 : f32 to vector<16x256xf32>
      %c0_10 = arith.constant 0 : index
      %c0_11 = arith.constant 0 : index
      %13 = vector.load %arg6[%c0_10, %c0_11] : memref<16x256xf32, #tpu.memory_space<vmem>>, vector<16x256xf32>
      tpu.vector_store %arg6[%c0_10, %c0_11], %12 {strides = array<i32>} : memref<16x256xf32, #tpu.memory_space<vmem>>, vector<16x256xf32>,
    } else {
    }
    %c0 = arith.constant 0 : index
    %c0_1 = arith.constant 0 : index
    %3 = vector.load %arg6[%c0, %c0_1] : memref<16x256xf32, #tpu.memory_space<vmem>>, vector<16x256xf32>
    %c0_2 = arith.constant 0 : index
    %c0_3 = arith.constant 0 : index
    %4 = vector.load %arg3[%c0_2, %c0_3] : memref<16x384xbf16, #tpu.memory_space<vmem>>, vector<16x384xbf16>
    %c0_4 = arith.constant 0 : index
    %c0_5 = arith.constant 0 : index
    %5 = vector.load %arg4[%c0_4, %c0_5] : memref<384x256xbf16, #tpu.memory_space<vmem>>, vector<384x256xbf16>
    %cst = arith.constant dense<0.000000e+00> : vector<16x256xf32>
    %6 = tpu.matmul %4, %5, %cst {dimension_numbers = #tpu.dot_dimension_numbers<[1], [0], [0], [1], [0, 0, 1, 1], [], []>} : vector<16x384xbf16>, vector<384x256xbf16>, vector<16x256xf32> -> vector<16x256xf32>
    %7 = arith.addf %3, %6 : vector<16x256xf32>
    %c0_6 = arith.constant 0 : index
    %c0_7 = arith.constant 0 : index
    %8 = vector.load %arg6[%c0_6, %c0_7] : memref<16x256xf32, #tpu.memory_space<vmem>>, vector<16x256xf32>
    tpu.vector_store %arg6[%c0_6, %c0_7], %7 {strides = array<i32>} : memref<16x256xf32, #tpu.memory_space<vmem>>, vector<16x256xf32>,
    %c1_i32 = arith.constant 1 : i32
    %9 = arith.cmpi eq, %arg2, %c1_i32 : i32
    %10 = arith.extui %9 : i1 to i32
    %c0_i32_8 = arith.constant 0 : i32
    %11 = arith.cmpi ne, %10, %c0_i32_8 : i32
    scf.if %11 {
      %c0_9 = arith.constant 0 : index
      %c0_10 = arith.constant 0 : index
      %12 = vector.load %arg6[%c0_9, %c0_10] : memref<16x256xf32, #tpu.memory_space<vmem>>, vector<16x256xf32>
      %cst_11 = arith.constant 0.000000e+00 : f32
      %13 = vector.broadcast %cst_11 : f32 to vector<16x256xf32>
      %14 = arith.maximumf %12, %13 : vector<16x256xf32>
      %15 = arith.truncf %14 : vector<16x256xf32> to vector<16x256xbf16>
      %c0_12 = arith.constant 0 : index
      %c0_13 = arith.constant 0 : index
      %16 = vector.load %arg5[%c0_12, %c0_13] : memref<16x256xbf16, #tpu.memory_space<vmem>>, vector<16x256xbf16>
      tpu.vector_store %arg5[%c0_12, %c0_13], %15 {strides = array<i32>} : memref<16x256xbf16, #tpu.memory_space<vmem>>, vector<16x256xbf16>,
    } else {
    }
    return
  }
  func.func @transform_0(%arg0: i32, %arg1: i32, %arg2: i32) -> (i32, i32) {
    %c0_i32 = arith.constant 0 : i32
    return %arg0, %arg2 : i32, i32
  }
  func.func @transform_1(%arg0: i32, %arg1: i32, %arg2: i32) -> (i32, i32) {
    %c0_i32 = arith.constant 0 : i32
    return %arg2, %arg1 : i32, i32
  }
  func.func @transform_2(%arg0: i32, %arg1: i32, %arg2: i32) -> (i32, i32) {
    %c0_i32 = arith.constant 0 : i32
    return %arg0, %arg1 : i32, i32
  }
}

module attributes {stable_mosaic.version = 11 : i64} {
  func.func @_mm_kernel(%arg0: i32, %arg1: i32, %arg2: i32, %arg3: memref<16x256xbf16, #tpu.memory_space<vmem>>, %arg4: memref<256x256xbf16, #tpu.memory_space<vmem>>, %arg5: memref<16x256xbf16, #tpu.memory_space<vmem>>, %arg6: memref<16x256xf32, #tpu.memory_space<vmem>>) attributes {dimension_semantics = [#tpu.dimension_semantics<parallel>, #tpu.dimension_semantics<parallel>, #tpu.dimension_semantics<arbitrary>], iteration_bounds = array<i64: 1, 2, 1>, scalar_prefetch = 0 : i64, scratch_operands = 1 : i64, tpu.core_type = #tpu.core_type<tc>, window_params = [{transform_indices = @transform_0, window_bounds = array<i64: 16, 256>}, {transform_indices = @transform_1, window_bounds = array<i64: 256, 256>}, {transform_indices = @transform_2, window_bounds = array<i64: 16, 256>}]} {
    %c0_i32 = arith.constant 0 : i32
    %0 = arith.cmpi eq, %arg2, %c0_i32 : i32
    %1 = arith.extui %0 : i1 to i32
    %c0_i32_0 = arith.constant 0 : i32
    %2 = arith.cmpi ne, %1, %c0_i32_0 : i32
    scf.if %2 {
      %cst_10 = arith.constant 0.000000e+00 : f32
      %12 = vector.broadcast %cst_10 : f32 to vector<16x256xf32>
      %c0_11 = arith.constant 0 : index
      %c0_12 = arith.constant 0 : index
      %13 = vector.load %arg6[%c0_11, %c0_12] : memref<16x256xf32, #tpu.memory_space<vmem>>, vector<16x256xf32>
      tpu.vector_store %arg6[%c0_11, %c0_12], %12 {strides = array<i32>} : memref<16x256xf32, #tpu.memory_space<vmem>>, vector<16x256xf32>,
    } else {
    }
    %c0 = arith.constant 0 : index
    %c0_1 = arith.constant 0 : index
    %3 = vector.load %arg6[%c0, %c0_1] : memref<16x256xf32, #tpu.memory_space<vmem>>, vector<16x256xf32>
    %c0_2 = arith.constant 0 : index
    %c0_3 = arith.constant 0 : index
    %4 = vector.load %arg3[%c0_2, %c0_3] : memref<16x256xbf16, #tpu.memory_space<vmem>>, vector<16x256xbf16>
    %c0_4 = arith.constant 0 : index
    %c0_5 = arith.constant 0 : index
    %5 = vector.load %arg4[%c0_4, %c0_5] : memref<256x256xbf16, #tpu.memory_space<vmem>>, vector<256x256xbf16>
    %cst = arith.constant dense<0.000000e+00> : vector<16x256xf32>
    %6 = tpu.matmul %4, %5, %cst {dimension_numbers = #tpu.dot_dimension_numbers<[1], [0], [0], [1], [0, 0, 1, 1], [], []>} : vector<16x256xbf16>, vector<256x256xbf16>, vector<16x256xf32> -> vector<16x256xf32>
    %7 = arith.addf %3, %6 : vector<16x256xf32>
    %c0_6 = arith.constant 0 : index
    %c0_7 = arith.constant 0 : index
    %8 = vector.load %arg6[%c0_6, %c0_7] : memref<16x256xf32, #tpu.memory_space<vmem>>, vector<16x256xf32>
    tpu.vector_store %arg6[%c0_6, %c0_7], %7 {strides = array<i32>} : memref<16x256xf32, #tpu.memory_space<vmem>>, vector<16x256xf32>,
    %c0_i32_8 = arith.constant 0 : i32
    %9 = arith.cmpi eq, %arg2, %c0_i32_8 : i32
    %10 = arith.extui %9 : i1 to i32
    %c0_i32_9 = arith.constant 0 : i32
    %11 = arith.cmpi ne, %10, %c0_i32_9 : i32
    scf.if %11 {
      %c0_10 = arith.constant 0 : index
      %c0_11 = arith.constant 0 : index
      %12 = vector.load %arg6[%c0_10, %c0_11] : memref<16x256xf32, #tpu.memory_space<vmem>>, vector<16x256xf32>
      %13 = arith.truncf %12 : vector<16x256xf32> to vector<16x256xbf16>
      %c0_12 = arith.constant 0 : index
      %c0_13 = arith.constant 0 : index
      %14 = vector.load %arg5[%c0_12, %c0_13] : memref<16x256xbf16, #tpu.memory_space<vmem>>, vector<16x256xbf16>
      tpu.vector_store %arg5[%c0_12, %c0_13], %13 {strides = array<i32>} : memref<16x256xbf16, #tpu.memory_space<vmem>>, vector<16x256xbf16>,
    } else {
    }
    return
  }
  func.func @transform_0(%arg0: i32, %arg1: i32, %arg2: i32) -> (i32, i32) {
    %c0_i32 = arith.constant 0 : i32
    return %arg0, %arg2 : i32, i32
  }
  func.func @transform_1(%arg0: i32, %arg1: i32, %arg2: i32) -> (i32, i32) {
    %c0_i32 = arith.constant 0 : i32
    return %arg2, %arg1 : i32, i32
  }
  func.func @transform_2(%arg0: i32, %arg1: i32, %arg2: i32) -> (i32, i32) {
    %c0_i32 = arith.constant 0 : i32
    return %arg0, %arg1 : i32, i32
  }
}

module attributes {stable_mosaic.version = 11 : i64} {
  func.func @_mm_add_relu_kernel(%arg0: i32, %arg1: i32, %arg2: i32, %arg3: memref<16x512xbf16, #tpu.memory_space<vmem>>, %arg4: memref<512x256xbf16, #tpu.memory_space<vmem>>, %arg5: memref<16x256xbf16, #tpu.memory_space<vmem>>, %arg6: memref<16x256xbf16, #tpu.memory_space<vmem>>, %arg7: memref<16x256xf32, #tpu.memory_space<vmem>>) attributes {dimension_semantics = [#tpu.dimension_semantics<parallel>, #tpu.dimension_semantics<parallel>, #tpu.dimension_semantics<arbitrary>], iteration_bounds = array<i64: 1, 2, 3>, scalar_prefetch = 0 : i64, scratch_operands = 1 : i64, tpu.core_type = #tpu.core_type<tc>, window_params = [{transform_indices = @transform_0, window_bounds = array<i64: 16, 512>}, {transform_indices = @transform_1, window_bounds = array<i64: 512, 256>}, {transform_indices = @transform_2, window_bounds = array<i64: 16, 256>}, {transform_indices = @transform_3, window_bounds = array<i64: 16, 256>}]} {
    %c0_i32 = arith.constant 0 : i32
    %0 = arith.cmpi eq, %arg2, %c0_i32 : i32
    %1 = arith.extui %0 : i1 to i32
    %c0_i32_0 = arith.constant 0 : i32
    %2 = arith.cmpi ne, %1, %c0_i32_0 : i32
    scf.if %2 {
      %cst_9 = arith.constant 0.000000e+00 : f32
      %12 = vector.broadcast %cst_9 : f32 to vector<16x256xf32>
      %c0_10 = arith.constant 0 : index
      %c0_11 = arith.constant 0 : index
      %13 = vector.load %arg7[%c0_10, %c0_11] : memref<16x256xf32, #tpu.memory_space<vmem>>, vector<16x256xf32>
      tpu.vector_store %arg7[%c0_10, %c0_11], %12 {strides = array<i32>} : memref<16x256xf32, #tpu.memory_space<vmem>>, vector<16x256xf32>,
    } else {
    }
    %c0 = arith.constant 0 : index
    %c0_1 = arith.constant 0 : index
    %3 = vector.load %arg7[%c0, %c0_1] : memref<16x256xf32, #tpu.memory_space<vmem>>, vector<16x256xf32>
    %c0_2 = arith.constant 0 : index
    %c0_3 = arith.constant 0 : index
    %4 = vector.load %arg3[%c0_2, %c0_3] : memref<16x512xbf16, #tpu.memory_space<vmem>>, vector<16x512xbf16>
    %c0_4 = arith.constant 0 : index
    %c0_5 = arith.constant 0 : index
    %5 = vector.load %arg4[%c0_4, %c0_5] : memref<512x256xbf16, #tpu.memory_space<vmem>>, vector<512x256xbf16>
    %cst = arith.constant dense<0.000000e+00> : vector<16x256xf32>
    %6 = tpu.matmul %4, %5, %cst {dimension_numbers = #tpu.dot_dimension_numbers<[1], [0], [0], [1], [0, 0, 1, 1], [], []>} : vector<16x512xbf16>, vector<512x256xbf16>, vector<16x256xf32> -> vector<16x256xf32>
    %7 = arith.addf %3, %6 : vector<16x256xf32>
    %c0_6 = arith.constant 0 : index
    %c0_7 = arith.constant 0 : index
    %8 = vector.load %arg7[%c0_6, %c0_7] : memref<16x256xf32, #tpu.memory_space<vmem>>, vector<16x256xf32>
    tpu.vector_store %arg7[%c0_6, %c0_7], %7 {strides = array<i32>} : memref<16x256xf32, #tpu.memory_space<vmem>>, vector<16x256xf32>,
    %c2_i32 = arith.constant 2 : i32
    %9 = arith.cmpi eq, %arg2, %c2_i32 : i32
    %10 = arith.extui %9 : i1 to i32
    %c0_i32_8 = arith.constant 0 : i32
    %11 = arith.cmpi ne, %10, %c0_i32_8 : i32
    scf.if %11 {
      %c0_9 = arith.constant 0 : index
      %c0_10 = arith.constant 0 : index
      %12 = vector.load %arg5[%c0_9, %c0_10] : memref<16x256xbf16, #tpu.memory_space<vmem>>, vector<16x256xbf16>
      %13 = arith.extf %12 : vector<16x256xbf16> to vector<16x256xf32>
      %c0_11 = arith.constant 0 : index
      %c0_12 = arith.constant 0 : index
      %14 = vector.load %arg7[%c0_11, %c0_12] : memref<16x256xf32, #tpu.memory_space<vmem>>, vector<16x256xf32>
      %15 = arith.addf %14, %13 : vector<16x256xf32>
      %cst_13 = arith.constant 0.000000e+00 : f32
      %16 = vector.broadcast %cst_13 : f32 to vector<16x256xf32>
      %17 = arith.maximumf %15, %16 : vector<16x256xf32>
      %18 = arith.truncf %17 : vector<16x256xf32> to vector<16x256xbf16>
      %c0_14 = arith.constant 0 : index
      %c0_15 = arith.constant 0 : index
      %19 = vector.load %arg6[%c0_14, %c0_15] : memref<16x256xbf16, #tpu.memory_space<vmem>>, vector<16x256xbf16>
      tpu.vector_store %arg6[%c0_14, %c0_15], %18 {strides = array<i32>} : memref<16x256xbf16, #tpu.memory_space<vmem>>, vector<16x256xbf16>,
    } else {
    }
    return
  }
  func.func @transform_0(%arg0: i32, %arg1: i32, %arg2: i32) -> (i32, i32) {
    %c0_i32 = arith.constant 0 : i32
    return %arg0, %arg2 : i32, i32
  }
  func.func @transform_1(%arg0: i32, %arg1: i32, %arg2: i32) -> (i32, i32) {
    %c0_i32 = arith.constant 0 : i32
    return %arg2, %arg1 : i32, i32
  }
  func.func @transform_2(%arg0: i32, %arg1: i32, %arg2: i32) -> (i32, i32) {
    %c0_i32 = arith.constant 0 : i32
    return %arg0, %arg1 : i32, i32
  }
  func.func @transform_3(%arg0: i32, %arg1: i32, %arg2: i32) -> (i32, i32) {
    %c0_i32 = arith.constant 0 : i32
    return %arg0, %arg1 : i32, i32
  }
}

module attributes {stable_mosaic.version = 11 : i64} {
  func.func @_mean_kernel(%arg0: i32, %arg1: memref<2x2x512xbf16, #tpu.memory_space<vmem>>, %arg2: memref<2x512xf32, #tpu.memory_space<vmem>>) attributes {dimension_semantics = [#tpu.dimension_semantics<parallel>], iteration_bounds = array<i64: 1>, scalar_prefetch = 0 : i64, scratch_operands = 0 : i64, tpu.core_type = #tpu.core_type<tc>, window_params = [{transform_indices = @transform_0, window_bounds = array<i64: 2, 2, 512>}, {transform_indices = @transform_1, window_bounds = array<i64: 2, 512>}]} {
    %c0 = arith.constant 0 : index
    %c0_0 = arith.constant 0 : index
    %c0_1 = arith.constant 0 : index
    %0 = vector.load %arg1[%c0, %c0_0, %c0_1] : memref<2x2x512xbf16, #tpu.memory_space<vmem>>, vector<2x2x512xbf16>
    %1 = arith.extf %0 : vector<2x2x512xbf16> to vector<2x2x512xf32>
    %cst = arith.constant dense<0.000000e+00> : vector<2x512xf32>
    %2 = vector.multi_reduction <add>, %1, %cst [1] : vector<2x2x512xf32> to vector<2x512xf32>
    %cst_2 = arith.constant 2.000000e+00 : f32
    %3 = vector.broadcast %cst_2 : f32 to vector<2x512xf32>
    %4 = arith.divf %2, %3 : vector<2x512xf32>
    %c0_3 = arith.constant 0 : index
    %c0_4 = arith.constant 0 : index
    %5 = vector.load %arg2[%c0_3, %c0_4] : memref<2x512xf32, #tpu.memory_space<vmem>>, vector<2x512xf32>
    tpu.vector_store %arg2[%c0_3, %c0_4], %4 {strides = array<i32>} : memref<2x512xf32, #tpu.memory_space<vmem>>, vector<2x512xf32>,
    return
  }
  func.func @transform_0(%arg0: i32) -> (i32, i32, i32) {
    %c0_i32 = arith.constant 0 : i32
    %c0_i32_0 = arith.constant 0 : i32
    %c0_i32_1 = arith.constant 0 : i32
    return %c0_i32, %c0_i32_0, %arg0 : i32, i32, i32
  }
  func.func @transform_1(%arg0: i32) -> (i32, i32) {
    %c0_i32 = arith.constant 0 : i32
    %c0_i32_0 = arith.constant 0 : i32
    return %c0_i32, %arg0 : i32, i32
  }
}

module attributes {stable_mosaic.version = 11 : i64} {
  func.func @_mm_bias_kernel(%arg0: i32, %arg1: i32, %arg2: i32, %arg3: memref<16x512xbf16, #tpu.memory_space<vmem>>, %arg4: memref<512x128xbf16, #tpu.memory_space<vmem>>, %arg5: memref<1x128xf32, #tpu.memory_space<vmem>>, %arg6: memref<16x128xf32, #tpu.memory_space<vmem>>, %arg7: memref<16x128xf32, #tpu.memory_space<vmem>>) attributes {dimension_semantics = [#tpu.dimension_semantics<parallel>, #tpu.dimension_semantics<parallel>, #tpu.dimension_semantics<arbitrary>], iteration_bounds = array<i64: 1, 1, 1>, scalar_prefetch = 0 : i64, scratch_operands = 1 : i64, tpu.core_type = #tpu.core_type<tc>, window_params = [{transform_indices = @transform_0, window_bounds = array<i64: 16, 512>}, {transform_indices = @transform_1, window_bounds = array<i64: 512, 128>}, {transform_indices = @transform_2, window_bounds = array<i64: 1, 128>}, {transform_indices = @transform_3, window_bounds = array<i64: 16, 128>}]} {
    %c0_i32 = arith.constant 0 : i32
    %0 = arith.cmpi eq, %arg2, %c0_i32 : i32
    %1 = arith.extui %0 : i1 to i32
    %c0_i32_0 = arith.constant 0 : i32
    %2 = arith.cmpi ne, %1, %c0_i32_0 : i32
    scf.if %2 {
      %cst_10 = arith.constant 0.000000e+00 : f32
      %12 = vector.broadcast %cst_10 : f32 to vector<16x128xf32>
      %c0_11 = arith.constant 0 : index
      %c0_12 = arith.constant 0 : index
      %13 = vector.load %arg7[%c0_11, %c0_12] : memref<16x128xf32, #tpu.memory_space<vmem>>, vector<16x128xf32>
      tpu.vector_store %arg7[%c0_11, %c0_12], %12 {strides = array<i32>} : memref<16x128xf32, #tpu.memory_space<vmem>>, vector<16x128xf32>,
    } else {
    }
    %c0 = arith.constant 0 : index
    %c0_1 = arith.constant 0 : index
    %3 = vector.load %arg7[%c0, %c0_1] : memref<16x128xf32, #tpu.memory_space<vmem>>, vector<16x128xf32>
    %c0_2 = arith.constant 0 : index
    %c0_3 = arith.constant 0 : index
    %4 = vector.load %arg3[%c0_2, %c0_3] : memref<16x512xbf16, #tpu.memory_space<vmem>>, vector<16x512xbf16>
    %c0_4 = arith.constant 0 : index
    %c0_5 = arith.constant 0 : index
    %5 = vector.load %arg4[%c0_4, %c0_5] : memref<512x128xbf16, #tpu.memory_space<vmem>>, vector<512x128xbf16>
    %cst = arith.constant dense<0.000000e+00> : vector<16x128xf32>
    %6 = tpu.matmul %4, %5, %cst {dimension_numbers = #tpu.dot_dimension_numbers<[1], [0], [0], [1], [0, 0, 1, 1], [], []>} : vector<16x512xbf16>, vector<512x128xbf16>, vector<16x128xf32> -> vector<16x128xf32>
    %7 = arith.addf %3, %6 : vector<16x128xf32>
    %c0_6 = arith.constant 0 : index
    %c0_7 = arith.constant 0 : index
    %8 = vector.load %arg7[%c0_6, %c0_7] : memref<16x128xf32, #tpu.memory_space<vmem>>, vector<16x128xf32>
    tpu.vector_store %arg7[%c0_6, %c0_7], %7 {strides = array<i32>} : memref<16x128xf32, #tpu.memory_space<vmem>>, vector<16x128xf32>,
    %c0_i32_8 = arith.constant 0 : i32
    %9 = arith.cmpi eq, %arg2, %c0_i32_8 : i32
    %10 = arith.extui %9 : i1 to i32
    %c0_i32_9 = arith.constant 0 : i32
    %11 = arith.cmpi ne, %10, %c0_i32_9 : i32
    scf.if %11 {
      %c0_10 = arith.constant 0 : index
      %c0_11 = arith.constant 0 : index
      %12 = vector.load %arg7[%c0_10, %c0_11] : memref<16x128xf32, #tpu.memory_space<vmem>>, vector<16x128xf32>
      %c0_12 = arith.constant 0 : index
      %c0_13 = arith.constant 0 : index
      %13 = vector.load %arg5[%c0_12, %c0_13] : memref<1x128xf32, #tpu.memory_space<vmem>>, vector<1x128xf32>
      %14 = vector.broadcast %13 : vector<1x128xf32> to vector<16x128xf32>
      %15 = arith.addf %12, %14 : vector<16x128xf32>
      %c0_14 = arith.constant 0 : index
      %c0_15 = arith.constant 0 : index
      %16 = vector.load %arg6[%c0_14, %c0_15] : memref<16x128xf32, #tpu.memory_space<vmem>>, vector<16x128xf32>
      tpu.vector_store %arg6[%c0_14, %c0_15], %15 {strides = array<i32>} : memref<16x128xf32, #tpu.memory_space<vmem>>, vector<16x128xf32>,
    } else {
    }
    return
  }
  func.func @transform_0(%arg0: i32, %arg1: i32, %arg2: i32) -> (i32, i32) {
    %c0_i32 = arith.constant 0 : i32
    return %arg0, %arg2 : i32, i32
  }
  func.func @transform_1(%arg0: i32, %arg1: i32, %arg2: i32) -> (i32, i32) {
    %c0_i32 = arith.constant 0 : i32
    return %arg2, %arg1 : i32, i32
  }
  func.func @transform_2(%arg0: i32, %arg1: i32, %arg2: i32) -> (i32, i32) {
    %c0_i32 = arith.constant 0 : i32
    %c0_i32_0 = arith.constant 0 : i32
    return %c0_i32, %arg1 : i32, i32
  }
  func.func @transform_3(%arg0: i32, %arg1: i32, %arg2: i32) -> (i32, i32) {
    %c0_i32 = arith.constant 0 : i32
    return %arg0, %arg1 : i32, i32
  }
}

</mosaic_0001>

<llo_original>
// kernel: resnet_forward.16
$region0: #{resnet_forward.16}
  #allocation0 [shape = 'u32[]', space=smem, size = 0x4, offset = 0x4, fixed_abs, tag = 'smem constant byte address 0x4 - core index']
  #allocation1 [shape = 'u32[144,128]{1,0:T(1,128)}', space=vmem, size = 0x12000, scoped, tag = 'internal scratch']
  %s0 = inlined_call_operand.vmem [shape: bf16[32,128], index: 0, kind: input, shape index: {}]
  %s1 = inlined_call_operand.vmem [shape: bf16[32,128], index: 1, kind: input, shape index: {}]
  %s2 = inlined_call_operand.vmem [shape: bf16[32,128], index: 2, kind: input, shape index: {}]
  %s3 = inlined_call_operand.vmem [shape: bf16[32,128], index: 3, kind: output, shape index: {}]
  %s4 = sld [smem:[#allocation0]]
  $region22: #{resnet_forward.16} parent=0
    _
  %s6 = ssub.s32 1, %s4
  %s7 = scalar_select 0, %s6, %s4
  // Predicated region
  $region2: #{resnet_forward.16} parent=0 // pred_check
    _
  $region3: #{resnet_forward.16} parent=0 // pred_check_branch
    %9 = sbr.rel (0) target = $region5
  $region4: #{resnet_forward.16} parent=0 // pred_region
    _
  $region5: #{resnet_forward.16} parent=0 // pred_fallthru
    _
  // Predicated region
  $region6: #{resnet_forward.16} parent=0 // pred_check
    _
  $region7: #{resnet_forward.16} parent=0 // pred_check_branch
    %11 = sbr.rel (0) target = $region9
  $region8: #{resnet_forward.16} parent=0 // pred_region
    _
  $region9: #{resnet_forward.16} parent=0 // pred_fallthru
    _
  // Predicated region
  $region10: #{resnet_forward.16} parent=0 // pred_check
    _
  $region11: #{resnet_forward.16} parent=0 // pred_check_branch
    %13 = sbr.rel (0) target = $region13
  $region12: #{resnet_forward.16} parent=0 // pred_region
    _
  $region13: #{resnet_forward.16} parent=0 // pred_fallthru
    _
  %v14 = vld [vmem:[%s0] sm:$0xf]
  %v15 = vld [vmem:[%s0 + $0x4] sm:$0xf]
  %v16 = vld [vmem:[%s0 + $0x8] sm:$0xf]
  %v17 = vld [vmem:[%s0 + $0xc] sm:$0xf]
  %v18 = vld [vmem:[%s1] sm:$0xf]
  %v19 = vld [vmem:[%s1 + $0x4] sm:$0xf]
  %v20 = vld [vmem:[%s1 + $0x8] sm:$0xf]
  %v21 = vld [vmem:[%s1 + $0xc] sm:$0xf]
  %v22 = vmax.bf16 %v14, %v18
  %v23 = vmax.bf16 %v15, %v19
  %v24 = vmax.bf16 %v16, %v20
  %v25 = vmax.bf16 %v17, %v21
  %v26 = vld [vmem:[%s2] sm:$0xf]
  %v27 = vld [vmem:[%s2 + $0x4] sm:$0xf]
  %v28 = vld [vmem:[%s2 + $0x8] sm:$0xf]
  %v29 = vld [vmem:[%s2 + $0xc] sm:$0xf]
  %v30 = vmax.bf16 %v22, %v26
  %v31 = vmax.bf16 %v23, %v27
  %v32 = vmax.bf16 %v24, %v28
  %v33 = vmax.bf16 %v25, %v29
  %34 = vst [vmem:[%s3] sm:$0xf] %v30
  %35 = vst [vmem:[%s3 + $0x4] sm:$0xf] %v31
  %36 = vst [vmem:[%s3 + $0x8] sm:$0xf] %v32
  %37 = vst [vmem:[%s3 + $0xc] sm:$0xf] %v33
  // Predicated region
  $region14: #{resnet_forward.16} parent=0 // pred_check
    _
  $region15: #{resnet_forward.16} parent=0 // pred_check_branch
    %39 = sbr.rel (0) target = $region17
  $region16: #{resnet_forward.16} parent=0 // pred_region
    _
  $region17: #{resnet_forward.16} parent=0 // pred_fallthru
    _
  // Predicated region
  $region18: #{resnet_forward.16} parent=0 // pred_check
    _
  $region19: #{resnet_forward.16} parent=0 // pred_check_branch
    %41 = sbr.rel (0) target = $region21
  $region20: #{resnet_forward.16} parent=0 // pred_region
    _
  $region21: #{resnet_forward.16} parent=0 // pred_fallthru
    _

// kernel: resnet_forward.15
$region0: #{resnet_forward.15}
  #allocation0 [shape = 'u32[]', space=smem, size = 0x4, offset = 0x4, fixed_abs, tag = 'smem constant byte address 0x4 - core index']
  #allocation1 [shape = 'u32[144,128]{1,0:T(1,128)}', space=vmem, size = 0x12000, scoped, tag = 'internal scratch']
  #allocation2 [shape = 'f32[64,128]{1,0:T(8,128)}', space=vmem, size = 0x8000, scoped, tag = 'scratch operand']
  %s0 = inlined_call_operand.vmem [shape: bf16[64,128], index: 0, kind: input, shape index: {}]
  %s1 = inlined_call_operand.vmem [shape: bf16[128,128], index: 1, kind: input, shape index: {}]
  %s2 = inlined_call_operand.vmem [shape: bf16[64,128], index: 2, kind: output, shape index: {}]
  %s3 = sld [smem:[#allocation0]]
  $region26: #{resnet_forward.15} parent=0
    _
  %s5 = ssub.s32 1, %s3
  %s6 = scalar_select 0, %s5, %s3
  // Predicated region
  $region2: #{resnet_forward.15} parent=0 // pred_check
    _
  $region3: #{resnet_forward.15} parent=0 // pred_check_branch
    %8 = sbr.rel (0) target = $region5
  $region4: #{resnet_forward.15} parent=0 // pred_region
    _
  $region5: #{resnet_forward.15} parent=0 // pred_fallthru
    _
  // Predicated region
  $region6: #{resnet_forward.15} parent=0 // pred_check
    _
  $region7: #{resnet_forward.15} parent=0 // pred_check_branch
    %10 = sbr.rel (0) target = $region9
  $region8: #{resnet_forward.15} parent=0 // pred_region
    _
  $region9: #{resnet_forward.15} parent=0 // pred_fallthru
    _
  %p12 = scmp.eq.s32.totalorder 0, 0
  // Predicated region
  $region10: #{resnet_forward.15} parent=0 // pred_check
    %p13 = pneg %p12
  $region11: #{resnet_forward.15} parent=0 // pred_check_branch
    %15 = sbr.rel (%p13) target = $region13
  $region12: #{resnet_forward.15} parent=0 // pred_region
    %16 = vst [vmem:[#allocation2] sm:$0xff] 0.0
    %17 = vst [vmem:[#allocation2 + $0x8] sm:$0xff] 0.0
    %18 = vst [vmem:[#allocation2 + $0x10] sm:$0xff] 0.0
    %19 = vst [vmem:[#allocation2 + $0x18] sm:$0xff] 0.0
    %20 = vst [vmem:[#allocation2 + $0x20] sm:$0xff] 0.0
    %21 = vst [vmem:[#allocation2 + $0x28] sm:$0xff] 0.0
    %22 = vst [vmem:[#allocation2 + $0x30] sm:$0xff] 0.0
    %23 = vst [vmem:[#allocation2 + $0x38] sm:$0xff] 0.0
  $region13: #{resnet_forward.15} parent=0 // pred_fallthru
    _
  %v24 = vld [vmem:[#allocation2] sm:$0xff]
  %v25 = vld [vmem:[#allocation2 + $0x8] sm:$0xff]
  %v26 = vld [vmem:[#allocation2 + $0x10] sm:$0xff]
  %v27 = vld [vmem:[#allocation2 + $0x18] sm:$0xff]
  %v28 = vld [vmem:[#allocation2 + $0x20] sm:$0xff]
  %v29 = vld [vmem:[#allocation2 + $0x28] sm:$0xff]
  %v30 = vld [vmem:[#allocation2 + $0x30] sm:$0xff]
  %v31 = vld [vmem:[#allocation2 + $0x38] sm:$0xff]
  %v32 = vld [vmem:[%s0] sm:$0xf]
  %v33 = vld [vmem:[%s0 + $0x4] sm:$0xf]
  %v34 = vld [vmem:[%s0 + $0x8] sm:$0xf]
  %v35 = vld [vmem:[%s0 + $0xc] sm:$0xf]
  %v36 = vld [vmem:[%s0 + $0x10] sm:$0xf]
  %v37 = vld [vmem:[%s0 + $0x14] sm:$0xf]
  %v38 = vld [vmem:[%s0 + $0x18] sm:$0xf]
  %v39 = vld [vmem:[%s0 + $0x1c] sm:$0xf]
  %v40 = vld [vmem:[%s1] sm:$0xf]
  %v41 = vld [vmem:[%s1 + $0x4] sm:$0xf]
  %v42 = vld [vmem:[%s1 + $0x8] sm:$0xf]
  %v43 = vld [vmem:[%s1 + $0xc] sm:$0xf]
  %v44 = vld [vmem:[%s1 + $0x10] sm:$0xf]
  %v45 = vld [vmem:[%s1 + $0x14] sm:$0xf]
  %v46 = vld [vmem:[%s1 + $0x18] sm:$0xf]
  %v47 = vld [vmem:[%s1 + $0x1c] sm:$0xf]
  %v48 = vld [vmem:[%s1 + $0x20] sm:$0xf]
  %v49 = vld [vmem:[%s1 + $0x24] sm:$0xf]
  %v50 = vld [vmem:[%s1 + $0x28] sm:$0xf]
  %v51 = vld [vmem:[%s1 + $0x2c] sm:$0xf]
  %v52 = vld [vmem:[%s1 + $0x30] sm:$0xf]
  %v53 = vld [vmem:[%s1 + $0x34] sm:$0xf]
  %v54 = vld [vmem:[%s1 + $0x38] sm:$0xf]
  %v55 = vld [vmem:[%s1 + $0x3c] sm:$0xf]
  %v64 = vunpack.c.l.b16 %v32
  %v65 = vunpack.c.l.b16 %v33
  %v66 = vunpack.c.l.b16 %v34
  %v67 = vunpack.c.l.b16 %v35
  %v68 = vunpack.c.l.b16 %v36
  %v69 = vunpack.c.l.b16 %v37
  %v70 = vunpack.c.l.b16 %v38
  %v71 = vunpack.c.l.b16 %v39
  %v72 = vpack.c.b16 %v65, %v64
  %v73 = vpack.c.b16 %v67, %v66
  %v74 = vpack.c.b16 %v69, %v68
  %v75 = vpack.c.b16 %v71, %v70
  %v96 = vunpack.c.l.b16 %v40
  %v97 = vunpack.c.l.b16 %v41
  %v98 = vunpack.c.l.b16 %v42
  %v99 = vunpack.c.l.b16 %v43
  %v100 = vunpack.c.l.b16 %v44
  %v101 = vunpack.c.l.b16 %v45
  %v102 = vunpack.c.l.b16 %v46
  %v103 = vunpack.c.l.b16 %v47
  %v104 = vunpack.c.l.b16 %v48
  %v105 = vunpack.c.l.b16 %v49
  %v106 = vunpack.c.l.b16 %v50
  %v107 = vunpack.c.l.b16 %v51
  %v108 = vunpack.c.l.b16 %v52
  %v109 = vunpack.c.l.b16 %v53
  %v110 = vunpack.c.l.b16 %v54
  %v111 = vunpack.c.l.b16 %v55
  %v112 = vpack.c.b16 %v97, %v96
  %v113 = vpack.c.b16 %v99, %v98
  %v114 = vpack.c.b16 %v101, %v100
  %v115 = vpack.c.b16 %v103, %v102
  %v116 = vpack.c.b16 %v105, %v104
  %v117 = vpack.c.b16 %v107, %v106
  %v118 = vpack.c.b16 %v109, %v108
  %v119 = vpack.c.b16 %v111, %v110
  %128 = vmatprep.subr.bf16.mxu0 0
  %129 = vmatpush1.bf16.msra.mxu0 %v112
  %130 = vmatprep.subr.bf16.mxu0 0
  %131 = vmatpush1.bf16.msra.mxu0 %v113
  %132 = vmatprep.subr.bf16.mxu0 0
  %133 = vmatpush1.bf16.msra.mxu0 %v114
  %134 = vmatprep.subr.bf16.mxu0 0
  %135 = vmatpush1.bf16.msra.mxu0 %v115
  %136 = vmatprep.subr.bf16.mxu0 0
  %137 = vmatpush1.bf16.msra.mxu0 %v116
  %138 = vmatprep.subr.bf16.mxu0 0
  %139 = vmatpush1.bf16.msra.mxu0 %v117
  %140 = vmatprep.subr.bf16.mxu0 0
  %141 = vmatpush1.bf16.msra.mxu0 %v118
  %142 = vmatprep.subr.bf16.mxu0 0
  %143 = vmatpush1.bf16.msra.mxu0 %v119
  %144 = vmatprep.subr.bf16.mxu0 0
  %145 = vmatpush1.bf16.msra.mxu0 0
  %146 = vmatprep.subr.bf16.mxu0 0
  %147 = vmatpush1.bf16.msra.mxu0 0
  %148 = vmatprep.subr.bf16.mxu0 0
  %149 = vmatpush1.bf16.msra.mxu0 0
  %150 = vmatprep.subr.bf16.mxu0 0
  %151 = vmatpush1.bf16.msra.mxu0 0
  %152 = vmatprep.subr.bf16.mxu0 0
  %153 = vmatpush1.bf16.msra.mxu0 0
  %154 = vmatprep.subr.bf16.mxu0 0
  %155 = vmatpush1.bf16.msra.mxu0 0
  %156 = vmatprep.subr.bf16.mxu0 0
  %157 = vmatpush1.bf16.msra.mxu0 0
  %158 = vmatprep.subr.bf16.mxu0 0
  %159 = vmatpush1.bf16.msra.mxu0 0
  %160 = vmatprep.mubr.bf16.mxu0 0
  %161 = vmatmul.mubr.bf16.gmra.mrb[0].mxu0 %v72
  %v162 = vpop.f32.mrb[0].mxu0
  %v163 = vadd.f32 0.0, %v162
  %v164 = vpop.f32.mrb[0].mxu0
  %v165 = vpop.f32.mrb[0].mxu0
  %v166 = vadd.f32 0.0, %v165
  %v167 = vpop.f32.mrb[0].mxu0
  %168 = vmatprep.mubr.bf16.mxu0 0
  %169 = vmatmul.mubr.bf16.gmra.mrb[0].mxu0 %v73
  %v170 = vpop.f32.mrb[0].mxu0
  %v171 = vadd.f32 0.0, %v170
  %v172 = vpop.f32.mrb[0].mxu0
  %v173 = vpop.f32.mrb[0].mxu0
  %v174 = vadd.f32 0.0, %v173
  %v175 = vpop.f32.mrb[0].mxu0
  %176 = vmatprep.mubr.bf16.mxu0 0
  %177 = vmatmul.mubr.bf16.gmra.mrb[0].mxu0 %v74
  %v178 = vpop.f32.mrb[0].mxu0
  %v179 = vadd.f32 0.0, %v178
  %v180 = vpop.f32.mrb[0].mxu0
  %v181 = vpop.f32.mrb[0].mxu0
  %v182 = vadd.f32 0.0, %v181
  %v183 = vpop.f32.mrb[0].mxu0
  %184 = vmatprep.mubr.bf16.mxu0 0
  %185 = vmatmul.mubr.bf16.gmra.mrb[0].mxu0 %v75
  %v186 = vpop.f32.mrb[0].mxu0
  %v187 = vadd.f32 0.0, %v186
  %v188 = vpop.f32.mrb[0].mxu0
  %v189 = vpop.f32.mrb[0].mxu0
  %v190 = vadd.f32 0.0, %v189
  %v191 = vpop.f32.mrb[0].mxu0
  %192 = vdwg.mxu0
  %v193 = vadd.f32 %v24, %v163
  %v194 = vadd.f32 %v25, %v166
  %v195 = vadd.f32 %v26, %v171
  %v196 = vadd.f32 %v27, %v174
  %v197 = vadd.f32 %v28, %v179
  %v198 = vadd.f32 %v29, %v182
  %v199 = vadd.f32 %v30, %v187
  %v200 = vadd.f32 %v31, %v190
  %201 = vst [vmem:[#allocation2] sm:$0xff] %v193
  %202 = vst [vmem:[#allocation2 + $0x8] sm:$0xff] %v194
  %203 = vst [vmem:[#allocation2 + $0x10] sm:$0xff] %v195
  %204 = vst [vmem:[#allocation2 + $0x18] sm:$0xff] %v196
  %205 = vst [vmem:[#allocation2 + $0x20] sm:$0xff] %v197
  %206 = vst [vmem:[#allocation2 + $0x28] sm:$0xff] %v198
  %207 = vst [vmem:[#allocation2 + $0x30] sm:$0xff] %v199
  %208 = vst [vmem:[#allocation2 + $0x38] sm:$0xff] %v200
  // Predicated region
  $region14: #{resnet_forward.15} parent=0 // pred_check
    %p209 = pneg %p12
  $region15: #{resnet_forward.15} parent=0 // pred_check_branch
    %211 = sbr.rel (%p209) target = $region17
  $region16: #{resnet_forward.15} parent=0 // pred_region
    %v212 = vld [vmem:[#allocation2] sm:$0xff]
    %v213 = vld [vmem:[#allocation2 + $0x8] sm:$0xff]
    %v214 = vld [vmem:[#allocation2 + $0x10] sm:$0xff]
    %v215 = vld [vmem:[#allocation2 + $0x18] sm:$0xff]
    %v216 = vld [vmem:[#allocation2 + $0x20] sm:$0xff]
    %v217 = vld [vmem:[#allocation2 + $0x28] sm:$0xff]
    %v218 = vld [vmem:[#allocation2 + $0x30] sm:$0xff]
    %v219 = vld [vmem:[#allocation2 + $0x38] sm:$0xff]
    %v220 = vmax.f32 %v212, 0.0
    %v221 = vmax.f32 %v213, 0.0
    %v222 = vmax.f32 %v214, 0.0
    %v223 = vmax.f32 %v215, 0.0
    %v224 = vmax.f32 %v216, 0.0
    %v225 = vmax.f32 %v217, 0.0
    %v226 = vmax.f32 %v218, 0.0
    %v227 = vmax.f32 %v219, 0.0
    %v228 = vpack.c.bf16 %v221, %v220
    %v229 = vpack.c.bf16 %v223, %v222
    %v230 = vpack.c.bf16 %v225, %v224
    %v231 = vpack.c.bf16 %v227, %v226
    %v236 = vunpack.c.l.b16 %v228
    %v237 = vunpack.c.h.b16 %v228
    %v238 = vunpack.c.l.b16 %v229
    %v239 = vunpack.c.h.b16 %v229
    %v240 = vunpack.c.l.b16 %v230
    %v241 = vunpack.c.h.b16 %v230
    %v242 = vunpack.c.l.b16 %v231
    %v243 = vunpack.c.h.b16 %v231
    %v244 = vpack.c.b16 %v236, %v236
    %v245 = vpack.c.b16 %v237, %v237
    %v246 = vpack.c.b16 %v238, %v238
    %v247 = vpack.c.b16 %v239, %v239
    %v248 = vpack.c.b16 %v240, %v240
    %v249 = vpack.c.b16 %v241, %v241
    %v250 = vpack.c.b16 %v242, %v242
    %v251 = vpack.c.b16 %v243, %v243
    %260 = vst [vmem:[%s2] sm:$0xf] %v244
    %261 = vst [vmem:[%s2 + $0x4] sm:$0xf] %v245
    %262 = vst [vmem:[%s2 + $0x8] sm:$0xf] %v246
    %263 = vst [vmem:[%s2 + $0xc] sm:$0xf] %v247
    %264 = vst [vmem:[%s2 + $0x10] sm:$0xf] %v248
    %265 = vst [vmem:[%s2 + $0x14] sm:$0xf] %v249
    %266 = vst [vmem:[%s2 + $0x18] sm:$0xf] %v250
    %267 = vst [vmem:[%s2 + $0x1c] sm:$0xf] %v251
  $region17: #{resnet_forward.15} parent=0 // pred_fallthru
    _
  // Predicated region
  $region18: #{resnet_forward.15} parent=0 // pred_check
    _
  $region19: #{resnet_forward.15} parent=0 // pred_check_branch
    %269 = sbr.rel (0) target = $region21
  $region20: #{resnet_forward.15} parent=0 // pred_region
    _
  $region21: #{resnet_forward.15} parent=0 // pred_fallthru
    _
  // Predicated region
  $region22: #{resnet_forward.15} parent=0 // pred_check
    _
  $region23: #{resnet_forward.15} parent=0 // pred_check_branch
    %271 = sbr.rel (0) target = $region25
  $region24: #{resnet_forward.15} parent=0 // pred_region
    _
  $region25: #{resnet_forward.15} parent=0 // pred_fallthru
    _

// kernel: resnet_forward.17
$region0: #{resnet_forward.17}
  #allocation0 [shape = 'u32[]', space=smem, size = 0x4, offset = 0x4, fixed_abs, tag = 'smem constant byte address 0x4 - core index']
  #allocation1 [shape = 'u32[144,128]{1,0:T(1,128)}', space=vmem, size = 0x12000, scoped, tag = 'internal scratch']
  #allocation2 [shape = 'f32[32,128]{1,0:T(8,128)}', space=vmem, size = 0x4000, scoped, tag = 'scratch operand']
  %s0 = inlined_call_operand.vmem [shape: bf16[32,384], index: 0, kind: input, shape index: {}]
  %s1 = inlined_call_operand.vmem [shape: bf16[384,128], index: 1, kind: input, shape index: {}]
  %s2 = inlined_call_operand.vmem [shape: bf16[32,128], index: 2, kind: output, shape index: {}]
  %s3 = sld [smem:[#allocation0]]
  $region26: #{resnet_forward.17} parent=0
    _
  %s5 = ssub.s32 1, %s3
  %s6 = scalar_select 0, %s5, %s3
  // Predicated region
  $region2: #{resnet_forward.17} parent=0 // pred_check
    _
  $region3: #{resnet_forward.17} parent=0 // pred_check_branch
    %8 = sbr.rel (0) target = $region5
  $region4: #{resnet_forward.17} parent=0 // pred_region
    _
  $region5: #{resnet_forward.17} parent=0 // pred_fallthru
    _
  // Predicated region
  $region6: #{resnet_forward.17} parent=0 // pred_check
    _
  $region7: #{resnet_forward.17} parent=0 // pred_check_branch
    %10 = sbr.rel (0) target = $region9
  $region8: #{resnet_forward.17} parent=0 // pred_region
    _
  $region9: #{resnet_forward.17} parent=0 // pred_fallthru
    _
  %p12 = scmp.eq.s32.totalorder 0, 0
  // Predicated region
  $region10: #{resnet_forward.17} parent=0 // pred_check
    %p13 = pneg %p12
  $region11: #{resnet_forward.17} parent=0 // pred_check_branch
    %15 = sbr.rel (%p13) target = $region13
  $region12: #{resnet_forward.17} parent=0 // pred_region
    %16 = vst [vmem:[#allocation2] sm:$0xff] 0.0
    %17 = vst [vmem:[#allocation2 + $0x8] sm:$0xff] 0.0
    %18 = vst [vmem:[#allocation2 + $0x10] sm:$0xff] 0.0
    %19 = vst [vmem:[#allocation2 + $0x18] sm:$0xff] 0.0
  $region13: #{resnet_forward.17} parent=0 // pred_fallthru
    _
  %v20 = vld [vmem:[#allocation2] sm:$0xff]
  %v21 = vld [vmem:[#allocation2 + $0x8] sm:$0xff]
  %v22 = vld [vmem:[#allocation2 + $0x10] sm:$0xff]
  %v23 = vld [vmem:[#allocation2 + $0x18] sm:$0xff]
  %v24 = vld [vmem:[%s0] sm:$0xff]
  %v25 = vld [vmem:[%s0 + $0x8] sm:$0xf]
  %v26 = vld [vmem:[%s0 + $0xc] sm:$0xff]
  %v27 = vld [vmem:[%s0 + $0x14] sm:$0xf]
  %v28 = vld [vmem:[%s0 + $0x18] sm:$0xff]
  %v29 = vld [vmem:[%s0 + $0x20] sm:$0xf]
  %v30 = vld [vmem:[%s0 + $0x24] sm:$0xff]
  %v31 = vld [vmem:[%s0 + $0x2c] sm:$0xf]
  %v32 = vld [vmem:[%s1] sm:$0xf]
  %v33 = vld [vmem:[%s1 + $0x4] sm:$0xf]
  %v34 = vld [vmem:[%s1 + $0x8] sm:$0xf]
  %v35 = vld [vmem:[%s1 + $0xc] sm:$0xf]
  %v36 = vld [vmem:[%s1 + $0x10] sm:$0xf]
  %v37 = vld [vmem:[%s1 + $0x14] sm:$0xf]
  %v38 = vld [vmem:[%s1 + $0x18] sm:$0xf]
  %v39 = vld [vmem:[%s1 + $0x1c] sm:$0xf]
  %v40 = vld [vmem:[%s1 + $0x20] sm:$0xf]
  %v41 = vld [vmem:[%s1 + $0x24] sm:$0xf]
  %v42 = vld [vmem:[%s1 + $0x28] sm:$0xf]
  %v43 = vld [vmem:[%s1 + $0x2c] sm:$0xf]
  %v44 = vld [vmem:[%s1 + $0x30] sm:$0xf]
  %v45 = vld [vmem:[%s1 + $0x34] sm:$0xf]
  %v46 = vld [vmem:[%s1 + $0x38] sm:$0xf]
  %v47 = vld [vmem:[%s1 + $0x3c] sm:$0xf]
  %v48 = vld [vmem:[%s1 + $0x40] sm:$0xf]
  %v49 = vld [vmem:[%s1 + $0x44] sm:$0xf]
  %v50 = vld [vmem:[%s1 + $0x48] sm:$0xf]
  %v51 = vld [vmem:[%s1 + $0x4c] sm:$0xf]
  %v52 = vld [vmem:[%s1 + $0x50] sm:$0xf]
  %v53 = vld [vmem:[%s1 + $0x54] sm:$0xf]
  %v54 = vld [vmem:[%s1 + $0x58] sm:$0xf]
  %v55 = vld [vmem:[%s1 + $0x5c] sm:$0xf]
  %v56 = vld [vmem:[%s1 + $0x60] sm:$0xf]
  %v57 = vld [vmem:[%s1 + $0x64] sm:$0xf]
  %v58 = vld [vmem:[%s1 + $0x68] sm:$0xf]
  %v59 = vld [vmem:[%s1 + $0x6c] sm:$0xf]
  %v60 = vld [vmem:[%s1 + $0x70] sm:$0xf]
  %v61 = vld [vmem:[%s1 + $0x74] sm:$0xf]
  %v62 = vld [vmem:[%s1 + $0x78] sm:$0xf]
  %v63 = vld [vmem:[%s1 + $0x7c] sm:$0xf]
  %v64 = vld [vmem:[%s1 + $0x80] sm:$0xf]
  %v65 = vld [vmem:[%s1 + $0x84] sm:$0xf]
  %v66 = vld [vmem:[%s1 + $0x88] sm:$0xf]
  %v67 = vld [vmem:[%s1 + $0x8c] sm:$0xf]
  %v68 = vld [vmem:[%s1 + $0x90] sm:$0xf]
  %v69 = vld [vmem:[%s1 + $0x94] sm:$0xf]
  %v70 = vld [vmem:[%s1 + $0x98] sm:$0xf]
  %v71 = vld [vmem:[%s1 + $0x9c] sm:$0xf]
  %v72 = vld [vmem:[%s1 + $0xa0] sm:$0xf]
  %v73 = vld [vmem:[%s1 + $0xa4] sm:$0xf]
  %v74 = vld [vmem:[%s1 + $0xa8] sm:$0xf]
  %v75 = vld [vmem:[%s1 + $0xac] sm:$0xf]
  %v76 = vld [vmem:[%s1 + $0xb0] sm:$0xf]
  %v77 = vld [vmem:[%s1 + $0xb4] sm:$0xf]
  %v78 = vld [vmem:[%s1 + $0xb8] sm:$0xf]
  %v79 = vld [vmem:[%s1 + $0xbc] sm:$0xf]
  %v88 = vunpack.c.l.b16 %v24
  %v89 = vunpack.c.h.b16 %v24
  %v90 = vunpack.c.l.b16 %v25
  %v91 = vunpack.c.l.b16 %v26
  %v92 = vunpack.c.h.b16 %v26
  %v93 = vunpack.c.l.b16 %v27
  %v94 = vunpack.c.l.b16 %v28
  %v95 = vunpack.c.h.b16 %v28
  %v96 = vunpack.c.l.b16 %v29
  %v97 = vunpack.c.l.b16 %v30
  %v98 = vunpack.c.h.b16 %v30
  %v99 = vunpack.c.l.b16 %v31
  %v100 = vpack.c.b16 %v91, %v88
  %v101 = vpack.c.b16 %v92, %v89
  %v102 = vpack.c.b16 %v93, %v90
  %v103 = vpack.c.b16 %v97, %v94
  %v104 = vpack.c.b16 %v98, %v95
  %v105 = vpack.c.b16 %v99, %v96
  %v160 = vunpack.c.l.b16 %v32
  %v161 = vunpack.c.l.b16 %v33
  %v162 = vunpack.c.l.b16 %v34
  %v163 = vunpack.c.l.b16 %v35
  %v164 = vunpack.c.l.b16 %v36
  %v165 = vunpack.c.l.b16 %v37
  %v166 = vunpack.c.l.b16 %v38
  %v167 = vunpack.c.l.b16 %v39
  %v168 = vunpack.c.l.b16 %v40
  %v169 = vunpack.c.l.b16 %v41
  %v170 = vunpack.c.l.b16 %v42
  %v171 = vunpack.c.l.b16 %v43
  %v172 = vunpack.c.l.b16 %v44
  %v173 = vunpack.c.l.b16 %v45
  %v174 = vunpack.c.l.b16 %v46
  %v175 = vunpack.c.l.b16 %v47
  %v176 = vunpack.c.l.b16 %v48
  %v177 = vunpack.c.l.b16 %v49
  %v178 = vunpack.c.l.b16 %v50
  %v179 = vunpack.c.l.b16 %v51
  %v180 = vunpack.c.l.b16 %v52
  %v181 = vunpack.c.l.b16 %v53
  %v182 = vunpack.c.l.b16 %v54
  %v183 = vunpack.c.l.b16 %v55
  %v184 = vunpack.c.l.b16 %v56
  %v185 = vunpack.c.l.b16 %v57
  %v186 = vunpack.c.l.b16 %v58
  %v187 = vunpack.c.l.b16 %v59
  %v188 = vunpack.c.l.b16 %v60
  %v189 = vunpack.c.l.b16 %v61
  %v190 = vunpack.c.l.b16 %v62
  %v191 = vunpack.c.l.b16 %v63
  %v192 = vunpack.c.l.b16 %v64
  %v193 = vunpack.c.l.b16 %v65
  %v194 = vunpack.c.l.b16 %v66
  %v195 = vunpack.c.l.b16 %v67
  %v196 = vunpack.c.l.b16 %v68
  %v197 = vunpack.c.l.b16 %v69
  %v198 = vunpack.c.l.b16 %v70
  %v199 = vunpack.c.l.b16 %v71
  %v200 = vunpack.c.l.b16 %v72
  %v201 = vunpack.c.l.b16 %v73
  %v202 = vunpack.c.l.b16 %v74
  %v203 = vunpack.c.l.b16 %v75
  %v204 = vunpack.c.l.b16 %v76
  %v205 = vunpack.c.l.b16 %v77
  %v206 = vunpack.c.l.b16 %v78
  %v207 = vunpack.c.l.b16 %v79
  %v208 = vpack.c.b16 %v161, %v160
  %v209 = vpack.c.b16 %v163, %v162
  %v210 = vpack.c.b16 %v165, %v164
  %v211 = vpack.c.b16 %v167, %v166
  %v212 = vpack.c.b16 %v169, %v168
  %v213 = vpack.c.b16 %v171, %v170
  %v214 = vpack.c.b16 %v173, %v172
  %v215 = vpack.c.b16 %v175, %v174
  %v216 = vpack.c.b16 %v177, %v176
  %v217 = vpack.c.b16 %v179, %v178
  %v218 = vpack.c.b16 %v181, %v180
  %v219 = vpack.c.b16 %v183, %v182
  %v220 = vpack.c.b16 %v185, %v184
  %v221 = vpack.c.b16 %v187, %v186
  %v222 = vpack.c.b16 %v189, %v188
  %v223 = vpack.c.b16 %v191, %v190
  %v224 = vpack.c.b16 %v193, %v192
  %v225 = vpack.c.b16 %v195, %v194
  %v226 = vpack.c.b16 %v197, %v196
  %v227 = vpack.c.b16 %v199, %v198
  %v228 = vpack.c.b16 %v201, %v200
  %v229 = vpack.c.b16 %v203, %v202
  %v230 = vpack.c.b16 %v205, %v204
  %v231 = vpack.c.b16 %v207, %v206
  %256 = vmatprep.subr.bf16.mxu0 0
  %257 = vmatpush1.bf16.msra.mxu0 %v208
  %258 = vmatprep.subr.bf16.mxu0 0
  %259 = vmatpush1.bf16.msra.mxu0 %v209
  %260 = vmatprep.subr.bf16.mxu0 0
  %261 = vmatpush1.bf16.msra.mxu0 %v210
  %262 = vmatprep.subr.bf16.mxu0 0
  %263 = vmatpush1.bf16.msra.mxu0 %v211
  %264 = vmatprep.subr.bf16.mxu0 0
  %265 = vmatpush1.bf16.msra.mxu0 %v212
  %266 = vmatprep.subr.bf16.mxu0 0
  %267 = vmatpush1.bf16.msra.mxu0 %v213
  %268 = vmatprep.subr.bf16.mxu0 0
  %269 = vmatpush1.bf16.msra.mxu0 %v214
  %270 = vmatprep.subr.bf16.mxu0 0
  %271 = vmatpush1.bf16.msra.mxu0 %v215
  %272 = vmatprep.subr.bf16.mxu0 0
  %273 = vmatpush1.bf16.msra.mxu0 %v216
  %274 = vmatprep.subr.bf16.mxu0 0
  %275 = vmatpush1.bf16.msra.mxu0 %v217
  %276 = vmatprep.subr.bf16.mxu0 0
  %277 = vmatpush1.bf16.msra.mxu0 %v218
  %278 = vmatprep.subr.bf16.mxu0 0
  %279 = vmatpush1.bf16.msra.mxu0 %v219
  %280 = vmatprep.subr.bf16.mxu0 0
  %281 = vmatpush1.bf16.msra.mxu0 %v220
  %282 = vmatprep.subr.bf16.mxu0 0
  %283 = vmatpush1.bf16.msra.mxu0 %v221
  %284 = vmatprep.subr.bf16.mxu0 0
  %285 = vmatpush1.bf16.msra.mxu0 %v222
  %286 = vmatprep.subr.bf16.mxu0 0
  %287 = vmatpush1.bf16.msra.mxu0 %v223
  %288 = vmatprep.mubr.bf16.mxu0 %v101
  %289 = vmatmul.mubr.bf16.gmra.mrb[0].mxu0 %v100
  %v290 = vpop.f32.mrb[0].mxu0
  %v291 = vadd.f32 0.0, %v290
  %v292 = vpop.f32.mrb[0].mxu0
  %v293 = vpop.f32.mrb[0].mxu0
  %v294 = vadd.f32 0.0, %v293
  %v295 = vpop.f32.mrb[0].mxu0
  %296 = vmatprep.mubr.bf16.mxu0 %v104
  %297 = vmatmul.mubr.bf16.gmra.mrb[0].mxu0 %v103
  %v298 = vpop.f32.mrb[0].mxu0
  %v299 = vadd.f32 0.0, %v298
  %v300 = vpop.f32.mrb[0].mxu0
  %v301 = vpop.f32.mrb[0].mxu0
  %v302 = vadd.f32 0.0, %v301
  %v303 = vpop.f32.mrb[0].mxu0
  %304 = vdwg.mxu0
  %305 = vmatprep.subr.bf16.mxu0 0
  %306 = vmatpush1.bf16.msra.mxu0 %v224
  %307 = vmatprep.subr.bf16.mxu0 0
  %308 = vmatpush1.bf16.msra.mxu0 %v225
  %309 = vmatprep.subr.bf16.mxu0 0
  %310 = vmatpush1.bf16.msra.mxu0 %v226
  %311 = vmatprep.subr.bf16.mxu0 0
  %312 = vmatpush1.bf16.msra.mxu0 %v227
  %313 = vmatprep.subr.bf16.mxu0 0
  %314 = vmatpush1.bf16.msra.mxu0 %v228
  %315 = vmatprep.subr.bf16.mxu0 0
  %316 = vmatpush1.bf16.msra.mxu0 %v229
  %317 = vmatprep.subr.bf16.mxu0 0
  %318 = vmatpush1.bf16.msra.mxu0 %v230
  %319 = vmatprep.subr.bf16.mxu0 0
  %320 = vmatpush1.bf16.msra.mxu0 %v231
  %321 = vmatprep.subr.bf16.mxu0 0
  %322 = vmatpush1.bf16.msra.mxu0 0
  %323 = vmatprep.subr.bf16.mxu0 0
  %324 = vmatpush1.bf16.msra.mxu0 0
  %325 = vmatprep.subr.bf16.mxu0 0
  %326 = vmatpush1.bf16.msra.mxu0 0
  %327 = vmatprep.subr.bf16.mxu0 0
  %328 = vmatpush1.bf16.msra.mxu0 0
  %329 = vmatprep.subr.bf16.mxu0 0
  %330 = vmatpush1.bf16.msra.mxu0 0
  %331 = vmatprep.subr.bf16.mxu0 0
  %332 = vmatpush1.bf16.msra.mxu0 0
  %333 = vmatprep.subr.bf16.mxu0 0
  %334 = vmatpush1.bf16.msra.mxu0 0
  %335 = vmatprep.subr.bf16.mxu0 0
  %336 = vmatpush1.bf16.msra.mxu0 0
  %337 = vmatprep.mubr.bf16.mxu0 0
  %338 = vmatmul.mubr.bf16.gmra.mrb[0].mxu0 %v102
  %v339 = vpop.f32.mrb[0].mxu0
  %v340 = vadd.f32 %v291, %v339
  %v341 = vpop.f32.mrb[0].mxu0
  %v342 = vpop.f32.mrb[0].mxu0
  %v343 = vadd.f32 %v294, %v342
  %v344 = vpop.f32.mrb[0].mxu0
  %345 = vmatprep.mubr.bf16.mxu0 0
  %346 = vmatmul.mubr.bf16.gmra.mrb[0].mxu0 %v105
  %v347 = vpop.f32.mrb[0].mxu0
  %v348 = vadd.f32 %v299, %v347
  %v349 = vpop.f32.mrb[0].mxu0
  %v350 = vpop.f32.mrb[0].mxu0
  %v351 = vadd.f32 %v302, %v350
  %v352 = vpop.f32.mrb[0].mxu0
  %353 = vdwg.mxu0
  %v354 = vadd.f32 %v20, %v340
  %v355 = vadd.f32 %v21, %v343
  %v356 = vadd.f32 %v22, %v348
  %v357 = vadd.f32 %v23, %v351
  %358 = vst [vmem:[#allocation2] sm:$0xff] %v354
  %359 = vst [vmem:[#allocation2 + $0x8] sm:$0xff] %v355
  %360 = vst [vmem:[#allocation2 + $0x10] sm:$0xff] %v356
  %361 = vst [vmem:[#allocation2 + $0x18] sm:$0xff] %v357
  // Predicated region
  $region14: #{resnet_forward.17} parent=0 // pred_check
    %p362 = pneg %p12
  $region15: #{resnet_forward.17} parent=0 // pred_check_branch
    %364 = sbr.rel (%p362) target = $region17
  $region16: #{resnet_forward.17} parent=0 // pred_region
    %v365 = vld [vmem:[#allocation2] sm:$0xff]
    %v366 = vld [vmem:[#allocation2 + $0x8] sm:$0xff]
    %v367 = vld [vmem:[#allocation2 + $0x10] sm:$0xff]
    %v368 = vld [vmem:[#allocation2 + $0x18] sm:$0xff]
    %v369 = vmax.f32 %v365, 0.0
    %v370 = vmax.f32 %v366, 0.0
    %v371 = vmax.f32 %v367, 0.0
    %v372 = vmax.f32 %v368, 0.0
    %v373 = vpack.c.bf16 %v370, %v369
    %v374 = vpack.c.bf16 %v372, %v371
    %v377 = vunpack.c.l.b16 %v373
    %v378 = vunpack.c.h.b16 %v373
    %v379 = vunpack.c.l.b16 %v374
    %v380 = vunpack.c.h.b16 %v374
    %v381 = vpack.c.b16 %v377, %v377
    %v382 = vpack.c.b16 %v378, %v378
    %v383 = vpack.c.b16 %v379, %v379
    %v384 = vpack.c.b16 %v380, %v380
    %389 = vst [vmem:[%s2] sm:$0xf] %v381
    %390 = vst [vmem:[%s2 + $0x4] sm:$0xf] %v382
    %391 = vst [vmem:[%s2 + $0x8] sm:$0xf] %v383
    %392 = vst [vmem:[%s2 + $0xc] sm:$0xf] %v384
  $region17: #{resnet_forward.17} parent=0 // pred_fallthru
    _
  // Predicated region
  $region18: #{resnet_forward.17} parent=0 // pred_check
    _
  $region19: #{resnet_forward.17} parent=0 // pred_check_branch
    %394 = sbr.rel (0) target = $region21
  $region20: #{resnet_forward.17} parent=0 // pred_region
    _
  $region21: #{resnet_forward.17} parent=0 // pred_fallthru
    _
  // Predicated region
  $region22: #{resnet_forward.17} parent=0 // pred_check
    _
  $region23: #{resnet_forward.17} parent=0 // pred_check_branch
    %396 = sbr.rel (0) target = $region25
  $region24: #{resnet_forward.17} parent=0 // pred_region
    _
  $region25: #{resnet_forward.17} parent=0 // pred_fallthru
    _

// kernel: resnet_forward.18
$region0: #{resnet_forward.18}
  #allocation0 [shape = 'u32[]', space=smem, size = 0x4, offset = 0x4, fixed_abs, tag = 'smem constant byte address 0x4 - core index']
  #allocation1 [shape = 'u32[144,128]{1,0:T(1,128)}', space=vmem, size = 0x12000, scoped, tag = 'internal scratch']
  #allocation2 [shape = 'f32[32,128]{1,0:T(8,128)}', space=vmem, size = 0x4000, scoped, tag = 'scratch operand']
  %s0 = inlined_call_operand.vmem [shape: bf16[32,384], index: 0, kind: input, shape index: {}]
  %s1 = inlined_call_operand.vmem [shape: bf16[384,128], index: 1, kind: input, shape index: {}]
  %s2 = inlined_call_operand.vmem [shape: bf16[32,128], index: 2, kind: input, shape index: {}]
  %s3 = inlined_call_operand.vmem [shape: bf16[32,128], index: 3, kind: output, shape index: {}]
  %s4 = sld [smem:[#allocation0]]
  $region30: #{resnet_forward.18} parent=0
    _
  %s6 = ssub.s32 1, %s4
  %s7 = scalar_select 0, %s6, %s4
  // Predicated region
  $region2: #{resnet_forward.18} parent=0 // pred_check
    _
  $region3: #{resnet_forward.18} parent=0 // pred_check_branch
    %9 = sbr.rel (0) target = $region5
  $region4: #{resnet_forward.18} parent=0 // pred_region
    _
  $region5: #{resnet_forward.18} parent=0 // pred_fallthru
    _
  // Predicated region
  $region6: #{resnet_forward.18} parent=0 // pred_check
    _
  $region7: #{resnet_forward.18} parent=0 // pred_check_branch
    %11 = sbr.rel (0) target = $region9
  $region8: #{resnet_forward.18} parent=0 // pred_region
    _
  $region9: #{resnet_forward.18} parent=0 // pred_fallthru
    _
  // Predicated region
  $region10: #{resnet_forward.18} parent=0 // pred_check
    _
  $region11: #{resnet_forward.18} parent=0 // pred_check_branch
    %13 = sbr.rel (0) target = $region13
  $region12: #{resnet_forward.18} parent=0 // pred_region
    _
  $region13: #{resnet_forward.18} parent=0 // pred_fallthru
    _
  %p15 = scmp.eq.s32.totalorder 0, 0
  // Predicated region
  $region14: #{resnet_forward.18} parent=0 // pred_check
    %p16 = pneg %p15
  $region15: #{resnet_forward.18} parent=0 // pred_check_branch
    %18 = sbr.rel (%p16) target = $region17
  $region16: #{resnet_forward.18} parent=0 // pred_region
    %19 = vst [vmem:[#allocation2] sm:$0xff] 0.0
    %20 = vst [vmem:[#allocation2 + $0x8] sm:$0xff] 0.0
    %21 = vst [vmem:[#allocation2 + $0x10] sm:$0xff] 0.0
    %22 = vst [vmem:[#allocation2 + $0x18] sm:$0xff] 0.0
  $region17: #{resnet_forward.18} parent=0 // pred_fallthru
    _
  %v23 = vld [vmem:[#allocation2] sm:$0xff]
  %v24 = vld [vmem:[#allocation2 + $0x8] sm:$0xff]
  %v25 = vld [vmem:[#allocation2 + $0x10] sm:$0xff]
  %v26 = vld [vmem:[#allocation2 + $0x18] sm:$0xff]
  %v27 = vld [vmem:[%s0] sm:$0xff]
  %v28 = vld [vmem:[%s0 + $0x8] sm:$0xf]
  %v29 = vld [vmem:[%s0 + $0xc] sm:$0xff]
  %v30 = vld [vmem:[%s0 + $0x14] sm:$0xf]
  %v31 = vld [vmem:[%s0 + $0x18] sm:$0xff]
  %v32 = vld [vmem:[%s0 + $0x20] sm:$0xf]
  %v33 = vld [vmem:[%s0 + $0x24] sm:$0xff]
  %v34 = vld [vmem:[%s0 + $0x2c] sm:$0xf]
  %v35 = vld [vmem:[%s1] sm:$0xf]
  %v36 = vld [vmem:[%s1 + $0x4] sm:$0xf]
  %v37 = vld [vmem:[%s1 + $0x8] sm:$0xf]
  %v38 = vld [vmem:[%s1 + $0xc] sm:$0xf]
  %v39 = vld [vmem:[%s1 + $0x10] sm:$0xf]
  %v40 = vld [vmem:[%s1 + $0x14] sm:$0xf]
  %v41 = vld [vmem:[%s1 + $0x18] sm:$0xf]
  %v42 = vld [vmem:[%s1 + $0x1c] sm:$0xf]
  %v43 = vld [vmem:[%s1 + $0x20] sm:$0xf]
  %v44 = vld [vmem:[%s1 + $0x24] sm:$0xf]
  %v45 = vld [vmem:[%s1 + $0x28] sm:$0xf]
  %v46 = vld [vmem:[%s1 + $0x2c] sm:$0xf]
  %v47 = vld [vmem:[%s1 + $0x30] sm:$0xf]
  %v48 = vld [vmem:[%s1 + $0x34] sm:$0xf]
  %v49 = vld [vmem:[%s1 + $0x38] sm:$0xf]
  %v50 = vld [vmem:[%s1 + $0x3c] sm:$0xf]
  %v51 = vld [vmem:[%s1 + $0x40] sm:$0xf]
  %v52 = vld [vmem:[%s1 + $0x44] sm:$0xf]
  %v53 = vld [vmem:[%s1 + $0x48] sm:$0xf]
  %v54 = vld [vmem:[%s1 + $0x4c] sm:$0xf]
  %v55 = vld [vmem:[%s1 + $0x50] sm:$0xf]
  %v56 = vld [vmem:[%s1 + $0x54] sm:$0xf]
  %v57 = vld [vmem:[%s1 + $0x58] sm:$0xf]
  %v58 = vld [vmem:[%s1 + $0x5c] sm:$0xf]
  %v59 = vld [vmem:[%s1 + $0x60] sm:$0xf]
  %v60 = vld [vmem:[%s1 + $0x64] sm:$0xf]
  %v61 = vld [vmem:[%s1 + $0x68] sm:$0xf]
  %v62 = vld [vmem:[%s1 + $0x6c] sm:$0xf]
  %v63 = vld [vmem:[%s1 + $0x70] sm:$0xf]
  %v64 = vld [vmem:[%s1 + $0x74] sm:$0xf]
  %v65 = vld [vmem:[%s1 + $0x78] sm:$0xf]
  %v66 = vld [vmem:[%s1 + $0x7c] sm:$0xf]
  %v67 = vld [vmem:[%s1 + $0x80] sm:$0xf]
  %v68 = vld [vmem:[%s1 + $0x84] sm:$0xf]
  %v69 = vld [vmem:[%s1 + $0x88] sm:$0xf]
  %v70 = vld [vmem:[%s1 + $0x8c] sm:$0xf]
  %v71 = vld [vmem:[%s1 + $0x90] sm:$0xf]
  %v72 = vld [vmem:[%s1 + $0x94] sm:$0xf]
  %v73 = vld [vmem:[%s1 + $0x98] sm:$0xf]
  %v74 = vld [vmem:[%s1 + $0x9c] sm:$0xf]
  %v75 = vld [vmem:[%s1 + $0xa0] sm:$0xf]
  %v76 = vld [vmem:[%s1 + $0xa4] sm:$0xf]
  %v77 = vld [vmem:[%s1 + $0xa8] sm:$0xf]
  %v78 = vld [vmem:[%s1 + $0xac] sm:$0xf]
  %v79 = vld [vmem:[%s1 + $0xb0] sm:$0xf]
  %v80 = vld [vmem:[%s1 + $0xb4] sm:$0xf]
  %v81 = vld [vmem:[%s1 + $0xb8] sm:$0xf]
  %v82 = vld [vmem:[%s1 + $0xbc] sm:$0xf]
  %v91 = vunpack.c.l.b16 %v27
  %v92 = vunpack.c.h.b16 %v27
  %v93 = vunpack.c.l.b16 %v28
  %v94 = vunpack.c.l.b16 %v29
  %v95 = vunpack.c.h.b16 %v29
  %v96 = vunpack.c.l.b16 %v30
  %v97 = vunpack.c.l.b16 %v31
  %v98 = vunpack.c.h.b16 %v31
  %v99 = vunpack.c.l.b16 %v32
  %v100 = vunpack.c.l.b16 %v33
  %v101 = vunpack.c.h.b16 %v33
  %v102 = vunpack.c.l.b16 %v34
  %v103 = vpack.c.b16 %v94, %v91
  %v104 = vpack.c.b16 %v95, %v92
  %v105 = vpack.c.b16 %v96, %v93
  %v106 = vpack.c.b16 %v100, %v97
  %v107 = vpack.c.b16 %v101, %v98
  %v108 = vpack.c.b16 %v102, %v99
  %v163 = vunpack.c.l.b16 %v35
  %v164 = vunpack.c.l.b16 %v36
  %v165 = vunpack.c.l.b16 %v37
  %v166 = vunpack.c.l.b16 %v38
  %v167 = vunpack.c.l.b16 %v39
  %v168 = vunpack.c.l.b16 %v40
  %v169 = vunpack.c.l.b16 %v41
  %v170 = vunpack.c.l.b16 %v42
  %v171 = vunpack.c.l.b16 %v43
  %v172 = vunpack.c.l.b16 %v44
  %v173 = vunpack.c.l.b16 %v45
  %v174 = vunpack.c.l.b16 %v46
  %v175 = vunpack.c.l.b16 %v47
  %v176 = vunpack.c.l.b16 %v48
  %v177 = vunpack.c.l.b16 %v49
  %v178 = vunpack.c.l.b16 %v50
  %v179 = vunpack.c.l.b16 %v51
  %v180 = vunpack.c.l.b16 %v52
  %v181 = vunpack.c.l.b16 %v53
  %v182 = vunpack.c.l.b16 %v54
  %v183 = vunpack.c.l.b16 %v55
  %v184 = vunpack.c.l.b16 %v56
  %v185 = vunpack.c.l.b16 %v57
  %v186 = vunpack.c.l.b16 %v58
  %v187 = vunpack.c.l.b16 %v59
  %v188 = vunpack.c.l.b16 %v60
  %v189 = vunpack.c.l.b16 %v61
  %v190 = vunpack.c.l.b16 %v62
  %v191 = vunpack.c.l.b16 %v63
  %v192 = vunpack.c.l.b16 %v64
  %v193 = vunpack.c.l.b16 %v65
  %v194 = vunpack.c.l.b16 %v66
  %v195 = vunpack.c.l.b16 %v67
  %v196 = vunpack.c.l.b16 %v68
  %v197 = vunpack.c.l.b16 %v69
  %v198 = vunpack.c.l.b16 %v70
  %v199 = vunpack.c.l.b16 %v71
  %v200 = vunpack.c.l.b16 %v72
  %v201 = vunpack.c.l.b16 %v73
  %v202 = vunpack.c.l.b16 %v74
  %v203 = vunpack.c.l.b16 %v75
  %v204 = vunpack.c.l.b16 %v76
  %v205 = vunpack.c.l.b16 %v77
  %v206 = vunpack.c.l.b16 %v78
  %v207 = vunpack.c.l.b16 %v79
  %v208 = vunpack.c.l.b16 %v80
  %v209 = vunpack.c.l.b16 %v81
  %v210 = vunpack.c.l.b16 %v82
  %v211 = vpack.c.b16 %v164, %v163
  %v212 = vpack.c.b16 %v166, %v165
  %v213 = vpack.c.b16 %v168, %v167
  %v214 = vpack.c.b16 %v170, %v169
  %v215 = vpack.c.b16 %v172, %v171
  %v216 = vpack.c.b16 %v174, %v173
  %v217 = vpack.c.b16 %v176, %v175
  %v218 = vpack.c.b16 %v178, %v177
  %v219 = vpack.c.b16 %v180, %v179
  %v220 = vpack.c.b16 %v182, %v181
  %v221 = vpack.c.b16 %v184, %v183
  %v222 = vpack.c.b16 %v186, %v185
  %v223 = vpack.c.b16 %v188, %v187
  %v224 = vpack.c.b16 %v190, %v189
  %v225 = vpack.c.b16 %v192, %v191
  %v226 = vpack.c.b16 %v194, %v193
  %v227 = vpack.c.b16 %v196, %v195
  %v228 = vpack.c.b16 %v198, %v197
  %v229 = vpack.c.b16 %v200, %v199
  %v230 = vpack.c.b16 %v202, %v201
  %v231 = vpack.c.b16 %v204, %v203
  %v232 = vpack.c.b16 %v206, %v205
  %v233 = vpack.c.b16 %v208, %v207
  %v234 = vpack.c.b16 %v210, %v209
  %259 = vmatprep.subr.bf16.mxu0 0
  %260 = vmatpush1.bf16.msra.mxu0 %v211
  %261 = vmatprep.subr.bf16.mxu0 0
  %262 = vmatpush1.bf16.msra.mxu0 %v212
  %263 = vmatprep.subr.bf16.mxu0 0
  %264 = vmatpush1.bf16.msra.mxu0 %v213
  %265 = vmatprep.subr.bf16.mxu0 0
  %266 = vmatpush1.bf16.msra.mxu0 %v214
  %267 = vmatprep.subr.bf16.mxu0 0
  %268 = vmatpush1.bf16.msra.mxu0 %v215
  %269 = vmatprep.subr.bf16.mxu0 0
  %270 = vmatpush1.bf16.msra.mxu0 %v216
  %271 = vmatprep.subr.bf16.mxu0 0
  %272 = vmatpush1.bf16.msra.mxu0 %v217
  %273 = vmatprep.subr.bf16.mxu0 0
  %274 = vmatpush1.bf16.msra.mxu0 %v218
  %275 = vmatprep.subr.bf16.mxu0 0
  %276 = vmatpush1.bf16.msra.mxu0 %v219
  %277 = vmatprep.subr.bf16.mxu0 0
  %278 = vmatpush1.bf16.msra.mxu0 %v220
  %279 = vmatprep.subr.bf16.mxu0 0
  %280 = vmatpush1.bf16.msra.mxu0 %v221
  %281 = vmatprep.subr.bf16.mxu0 0
  %282 = vmatpush1.bf16.msra.mxu0 %v222
  %283 = vmatprep.subr.bf16.mxu0 0
  %284 = vmatpush1.bf16.msra.mxu0 %v223
  %285 = vmatprep.subr.bf16.mxu0 0
  %286 = vmatpush1.bf16.msra.mxu0 %v224
  %287 = vmatprep.subr.bf16.mxu0 0
  %288 = vmatpush1.bf16.msra.mxu0 %v225
  %289 = vmatprep.subr.bf16.mxu0 0
  %290 = vmatpush1.bf16.msra.mxu0 %v226
  %291 = vmatprep.mubr.bf16.mxu0 %v104
  %292 = vmatmul.mubr.bf16.gmra.mrb[0].mxu0 %v103
  %v293 = vpop.f32.mrb[0].mxu0
  %v294 = vadd.f32 0.0, %v293
  %v295 = vpop.f32.mrb[0].mxu0
  %v296 = vpop.f32.mrb[0].mxu0
  %v297 = vadd.f32 0.0, %v296
  %v298 = vpop.f32.mrb[0].mxu0
  %299 = vmatprep.mubr.bf16.mxu0 %v107
  %300 = vmatmul.mubr.bf16.gmra.mrb[0].mxu0 %v106
  %v301 = vpop.f32.mrb[0].mxu0
  %v302 = vadd.f32 0.0, %v301
  %v303 = vpop.f32.mrb[0].mxu0
  %v304 = vpop.f32.mrb[0].mxu0
  %v305 = vadd.f32 0.0, %v304
  %v306 = vpop.f32.mrb[0].mxu0
  %307 = vdwg.mxu0
  %308 = vmatprep.subr.bf16.mxu0 0
  %309 = vmatpush1.bf16.msra.mxu0 %v227
  %310 = vmatprep.subr.bf16.mxu0 0
  %311 = vmatpush1.bf16.msra.mxu0 %v228
  %312 = vmatprep.subr.bf16.mxu0 0
  %313 = vmatpush1.bf16.msra.mxu0 %v229
  %314 = vmatprep.subr.bf16.mxu0 0
  %315 = vmatpush1.bf16.msra.mxu0 %v230
  %316 = vmatprep.subr.bf16.mxu0 0
  %317 = vmatpush1.bf16.msra.mxu0 %v231
  %318 = vmatprep.subr.bf16.mxu0 0
  %319 = vmatpush1.bf16.msra.mxu0 %v232
  %320 = vmatprep.subr.bf16.mxu0 0
  %321 = vmatpush1.bf16.msra.mxu0 %v233
  %322 = vmatprep.subr.bf16.mxu0 0
  %323 = vmatpush1.bf16.msra.mxu0 %v234
  %324 = vmatprep.subr.bf16.mxu0 0
  %325 = vmatpush1.bf16.msra.mxu0 0
  %326 = vmatprep.subr.bf16.mxu0 0
  %327 = vmatpush1.bf16.msra.mxu0 0
  %328 = vmatprep.subr.bf16.mxu0 0
  %329 = vmatpush1.bf16.msra.mxu0 0
  %330 = vmatprep.subr.bf16.mxu0 0
  %331 = vmatpush1.bf16.msra.mxu0 0
  %332 = vmatprep.subr.bf16.mxu0 0
  %333 = vmatpush1.bf16.msra.mxu0 0
  %334 = vmatprep.subr.bf16.mxu0 0
  %335 = vmatpush1.bf16.msra.mxu0 0
  %336 = vmatprep.subr.bf16.mxu0 0
  %337 = vmatpush1.bf16.msra.mxu0 0
  %338 = vmatprep.subr.bf16.mxu0 0
  %339 = vmatpush1.bf16.msra.mxu0 0
  %340 = vmatprep.mubr.bf16.mxu0 0
  %341 = vmatmul.mubr.bf16.gmra.mrb[0].mxu0 %v105
  %v342 = vpop.f32.mrb[0].mxu0
  %v343 = vadd.f32 %v294, %v342
  %v344 = vpop.f32.mrb[0].mxu0
  %v345 = vpop.f32.mrb[0].mxu0
  %v346 = vadd.f32 %v297, %v345
  %v347 = vpop.f32.mrb[0].mxu0
  %348 = vmatprep.mubr.bf16.mxu0 0
  %349 = vmatmul.mubr.bf16.gmra.mrb[0].mxu0 %v108
  %v350 = vpop.f32.mrb[0].mxu0
  %v351 = vadd.f32 %v302, %v350
  %v352 = vpop.f32.mrb[0].mxu0
  %v353 = vpop.f32.mrb[0].mxu0
  %v354 = vadd.f32 %v305, %v353
  %v355 = vpop.f32.mrb[0].mxu0
  %356 = vdwg.mxu0
  %v357 = vadd.f32 %v23, %v343
  %v358 = vadd.f32 %v24, %v346
  %v359 = vadd.f32 %v25, %v351
  %v360 = vadd.f32 %v26, %v354
  %361 = vst [vmem:[#allocation2] sm:$0xff] %v357
  %362 = vst [vmem:[#allocation2 + $0x8] sm:$0xff] %v358
  %363 = vst [vmem:[#allocation2 + $0x10] sm:$0xff] %v359
  %364 = vst [vmem:[#allocation2 + $0x18] sm:$0xff] %v360
  // Predicated region
  $region18: #{resnet_forward.18} parent=0 // pred_check
    %p365 = pneg %p15
  $region19: #{resnet_forward.18} parent=0 // pred_check_branch
    %367 = sbr.rel (%p365) target = $region21
  $region20: #{resnet_forward.18} parent=0 // pred_region
    %v368 = vld [vmem:[%s2] sm:$0xf]
    %v369 = vld [vmem:[%s2 + $0x4] sm:$0xf]
    %v370 = vld [vmem:[%s2 + $0x8] sm:$0xf]
    %v371 = vld [vmem:[%s2 + $0xc] sm:$0xf]
    %v372 = vunpack.c.l.bf16 %v368
    %v373 = vunpack.c.l.bf16 %v369
    %v374 = vunpack.c.l.bf16 %v370
    %v375 = vunpack.c.l.bf16 %v371
    %v376 = vld [vmem:[#allocation2] sm:$0xff]
    %v377 = vld [vmem:[#allocation2 + $0x8] sm:$0xff]
    %v378 = vld [vmem:[#allocation2 + $0x10] sm:$0xff]
    %v379 = vld [vmem:[#allocation2 + $0x18] sm:$0xff]
    %v380 = vadd.f32 %v376, %v372
    %v381 = vadd.f32 %v377, %v373
    %v382 = vadd.f32 %v378, %v374
    %v383 = vadd.f32 %v379, %v375
    %v384 = vmax.f32 %v380, 0.0
    %v385 = vmax.f32 %v381, 0.0
    %v386 = vmax.f32 %v382, 0.0
    %v387 = vmax.f32 %v383, 0.0
    %v388 = vpack.c.bf16 %v385, %v384
    %v389 = vpack.c.bf16 %v387, %v386
    %v392 = vunpack.c.l.b16 %v388
    %v393 = vunpack.c.h.b16 %v388
    %v394 = vunpack.c.l.b16 %v389
    %v395 = vunpack.c.h.b16 %v389
    %v396 = vpack.c.b16 %v392, %v392
    %v397 = vpack.c.b16 %v393, %v393
    %v398 = vpack.c.b16 %v394, %v394
    %v399 = vpack.c.b16 %v395, %v395
    %404 = vst [vmem:[%s3] sm:$0xf] %v396
    %405 = vst [vmem:[%s3 + $0x4] sm:$0xf] %v397
    %406 = vst [vmem:[%s3 + $0x8] sm:$0xf] %v398
    %407 = vst [vmem:[%s3 + $0xc] sm:$0xf] %v399
  $region21: #{resnet_forward.18} parent=0 // pred_fallthru
    _
  // Predicated region
  $region22: #{resnet_forward.18} parent=0 // pred_check
    _
  $region23: #{resnet_forward.18} parent=0 // pred_check_branch
    %409 = sbr.rel (0) target = $region25
  $region24: #{resnet_forward.18} parent=0 // pred_region
    _
  $region25: #{resnet_forward.18} parent=0 // pred_fallthru
    _
  // Predicated region
  $region26: #{resnet_forward.18} parent=0 // pred_check
    _
  $region27: #{resnet_forward.18} parent=0 // pred_check_branch
    %411 = sbr.rel (0) target = $region29
  $region28: #{resnet_forward.18} parent=0 // pred_region
    _
  $region29: #{resnet_forward.18} parent=0 // pred_fallthru
    _

// kernel: resnet_forward.19
$region0: #{resnet_forward.19}
  #allocation0 [shape = 'u32[]', space=smem, size = 0x4, offset = 0x4, fixed_abs, tag = 'smem constant byte address 0x4 - core index']
  #allocation1 [shape = 'u32[144,128]{1,0:T(1,128)}', space=vmem, size = 0x12000, scoped, tag = 'internal scratch']
  #allocation2 [shape = 'f32[16,128]{1,0:T(8,128)}', space=vmem, size = 0x2000, scoped, tag = 'scratch operand']
  %s0 = inlined_call_operand.vmem [shape: bf16[16,128], index: 0, kind: input, shape index: {}]
  %s1 = inlined_call_operand.vmem [shape: bf16[128,128], index: 1, kind: input, shape index: {}]
  %s2 = inlined_call_operand.vmem [shape: bf16[16,128], index: 2, kind: output, shape index: {}]
  %s3 = sld [smem:[#allocation0]]
  $region26: #{resnet_forward.19} parent=0
    _
  %s5 = ssub.s32 1, %s3
  %s6 = scalar_select 0, %s5, %s3
  // Predicated region
  $region2: #{resnet_forward.19} parent=0 // pred_check
    _
  $region3: #{resnet_forward.19} parent=0 // pred_check_branch
    %8 = sbr.rel (0) target = $region5
  $region4: #{resnet_forward.19} parent=0 // pred_region
    _
  $region5: #{resnet_forward.19} parent=0 // pred_fallthru
    _
  // Predicated region
  $region6: #{resnet_forward.19} parent=0 // pred_check
    _
  $region7: #{resnet_forward.19} parent=0 // pred_check_branch
    %10 = sbr.rel (0) target = $region9
  $region8: #{resnet_forward.19} parent=0 // pred_region
    _
  $region9: #{resnet_forward.19} parent=0 // pred_fallthru
    _
  %p12 = scmp.eq.s32.totalorder 0, 0
  // Predicated region
  $region10: #{resnet_forward.19} parent=0 // pred_check
    %p13 = pneg %p12
  $region11: #{resnet_forward.19} parent=0 // pred_check_branch
    %15 = sbr.rel (%p13) target = $region13
  $region12: #{resnet_forward.19} parent=0 // pred_region
    %16 = vst [vmem:[#allocation2] sm:$0xff] 0.0
    %17 = vst [vmem:[#allocation2 + $0x8] sm:$0xff] 0.0
  $region13: #{resnet_forward.19} parent=0 // pred_fallthru
    _
  %v18 = vld [vmem:[#allocation2] sm:$0xff]
  %v19 = vld [vmem:[#allocation2 + $0x8] sm:$0xff]
  %v20 = vld [vmem:[%s0] sm:$0xf]
  %v21 = vld [vmem:[%s0 + $0x4] sm:$0xf]
  %v22 = vld [vmem:[%s1] sm:$0xf]
  %v23 = vld [vmem:[%s1 + $0x4] sm:$0xf]
  %v24 = vld [vmem:[%s1 + $0x8] sm:$0xf]
  %v25 = vld [vmem:[%s1 + $0xc] sm:$0xf]
  %v26 = vld [vmem:[%s1 + $0x10] sm:$0xf]
  %v27 = vld [vmem:[%s1 + $0x14] sm:$0xf]
  %v28 = vld [vmem:[%s1 + $0x18] sm:$0xf]
  %v29 = vld [vmem:[%s1 + $0x1c] sm:$0xf]
  %v30 = vld [vmem:[%s1 + $0x20] sm:$0xf]
  %v31 = vld [vmem:[%s1 + $0x24] sm:$0xf]
  %v32 = vld [vmem:[%s1 + $0x28] sm:$0xf]
  %v33 = vld [vmem:[%s1 + $0x2c] sm:$0xf]
  %v34 = vld [vmem:[%s1 + $0x30] sm:$0xf]
  %v35 = vld [vmem:[%s1 + $0x34] sm:$0xf]
  %v36 = vld [vmem:[%s1 + $0x38] sm:$0xf]
  %v37 = vld [vmem:[%s1 + $0x3c] sm:$0xf]
  %v40 = vunpack.c.l.b16 %v20
  %v41 = vunpack.c.l.b16 %v21
  %v42 = vpack.c.b16 %v41, %v40
  %v60 = vunpack.c.l.b16 %v22
  %v61 = vunpack.c.l.b16 %v23
  %v62 = vunpack.c.l.b16 %v24
  %v63 = vunpack.c.l.b16 %v25
  %v64 = vunpack.c.l.b16 %v26
  %v65 = vunpack.c.l.b16 %v27
  %v66 = vunpack.c.l.b16 %v28
  %v67 = vunpack.c.l.b16 %v29
  %v68 = vunpack.c.l.b16 %v30
  %v69 = vunpack.c.l.b16 %v31
  %v70 = vunpack.c.l.b16 %v32
  %v71 = vunpack.c.l.b16 %v33
  %v72 = vunpack.c.l.b16 %v34
  %v73 = vunpack.c.l.b16 %v35
  %v74 = vunpack.c.l.b16 %v36
  %v75 = vunpack.c.l.b16 %v37
  %v76 = vpack.c.b16 %v61, %v60
  %v77 = vpack.c.b16 %v63, %v62
  %v78 = vpack.c.b16 %v65, %v64
  %v79 = vpack.c.b16 %v67, %v66
  %v80 = vpack.c.b16 %v69, %v68
  %v81 = vpack.c.b16 %v71, %v70
  %v82 = vpack.c.b16 %v73, %v72
  %v83 = vpack.c.b16 %v75, %v74
  %92 = vmatprep.subr.bf16.mxu0 0
  %93 = vmatpush1.bf16.msra.mxu0 %v76
  %94 = vmatprep.subr.bf16.mxu0 0
  %95 = vmatpush1.bf16.msra.mxu0 %v77
  %96 = vmatprep.subr.bf16.mxu0 0
  %97 = vmatpush1.bf16.msra.mxu0 %v78
  %98 = vmatprep.subr.bf16.mxu0 0
  %99 = vmatpush1.bf16.msra.mxu0 %v79
  %100 = vmatprep.subr.bf16.mxu0 0
  %101 = vmatpush1.bf16.msra.mxu0 %v80
  %102 = vmatprep.subr.bf16.mxu0 0
  %103 = vmatpush1.bf16.msra.mxu0 %v81
  %104 = vmatprep.subr.bf16.mxu0 0
  %105 = vmatpush1.bf16.msra.mxu0 %v82
  %106 = vmatprep.subr.bf16.mxu0 0
  %107 = vmatpush1.bf16.msra.mxu0 %v83
  %108 = vmatprep.subr.bf16.mxu0 0
  %109 = vmatpush1.bf16.msra.mxu0 0
  %110 = vmatprep.subr.bf16.mxu0 0
  %111 = vmatpush1.bf16.msra.mxu0 0
  %112 = vmatprep.subr.bf16.mxu0 0
  %113 = vmatpush1.bf16.msra.mxu0 0
  %114 = vmatprep.subr.bf16.mxu0 0
  %115 = vmatpush1.bf16.msra.mxu0 0
  %116 = vmatprep.subr.bf16.mxu0 0
  %117 = vmatpush1.bf16.msra.mxu0 0
  %118 = vmatprep.subr.bf16.mxu0 0
  %119 = vmatpush1.bf16.msra.mxu0 0
  %120 = vmatprep.subr.bf16.mxu0 0
  %121 = vmatpush1.bf16.msra.mxu0 0
  %122 = vmatprep.subr.bf16.mxu0 0
  %123 = vmatpush1.bf16.msra.mxu0 0
  %124 = vmatprep.mubr.bf16.mxu0 0
  %125 = vmatmul.mubr.bf16.gmra.mrb[0].mxu0 %v42
  %v126 = vpop.f32.mrb[0].mxu0
  %v127 = vadd.f32 0.0, %v126
  %v128 = vpop.f32.mrb[0].mxu0
  %v129 = vpop.f32.mrb[0].mxu0
  %v130 = vadd.f32 0.0, %v129
  %v131 = vpop.f32.mrb[0].mxu0
  %132 = vdwg.mxu0
  %v133 = vadd.f32 %v18, %v127
  %v134 = vadd.f32 %v19, %v130
  %135 = vst [vmem:[#allocation2] sm:$0xff] %v133
  %136 = vst [vmem:[#allocation2 + $0x8] sm:$0xff] %v134
  // Predicated region
  $region14: #{resnet_forward.19} parent=0 // pred_check
    %p137 = pneg %p12
  $region15: #{resnet_forward.19} parent=0 // pred_check_branch
    %139 = sbr.rel (%p137) target = $region17
  $region16: #{resnet_forward.19} parent=0 // pred_region
    %v140 = vld [vmem:[#allocation2] sm:$0xff]
    %v141 = vld [vmem:[#allocation2 + $0x8] sm:$0xff]
    %v142 = vpack.c.bf16 %v141, %v140
    %v144 = vunpack.c.l.b16 %v142
    %v145 = vunpack.c.h.b16 %v142
    %v146 = vpack.c.b16 %v144, %v144
    %v147 = vpack.c.b16 %v145, %v145
    %150 = vst [vmem:[%s2] sm:$0xf] %v146
    %151 = vst [vmem:[%s2 + $0x4] sm:$0xf] %v147
  $region17: #{resnet_forward.19} parent=0 // pred_fallthru
    _
  // Predicated region
  $region18: #{resnet_forward.19} parent=0 // pred_check
    _
  $region19: #{resnet_forward.19} parent=0 // pred_check_branch
    %153 = sbr.rel (0) target = $region21
  $region20: #{resnet_forward.19} parent=0 // pred_region
    _
  $region21: #{resnet_forward.19} parent=0 // pred_fallthru
    _
  // Predicated region
  $region22: #{resnet_forward.19} parent=0 // pred_check
    _
  $region23: #{resnet_forward.19} parent=0 // pred_check_branch
    %155 = sbr.rel (0) target = $region25
  $region24: #{resnet_forward.19} parent=0 // pred_region
    _
  $region25: #{resnet_forward.19} parent=0 // pred_fallthru
    _

// kernel: resnet_forward.21
$region0: #{resnet_forward.21}
  #allocation0 [shape = 'u32[]', space=smem, size = 0x4, offset = 0x4, fixed_abs, tag = 'smem constant byte address 0x4 - core index']
  #allocation1 [shape = 'u32[144,128]{1,0:T(1,128)}', space=vmem, size = 0x12000, scoped, tag = 'internal scratch']
  #allocation2 [shape = 'f32[16,128]{1,0:T(8,128)}', space=vmem, size = 0x2000, scoped, tag = 'scratch operand']
  %s0 = inlined_call_operand.vmem [shape: bf16[16,384], index: 0, kind: input, shape index: {}]
  %s1 = inlined_call_operand.vmem [shape: bf16[384,128], index: 1, kind: input, shape index: {}]
  %s2 = inlined_call_operand.vmem [shape: bf16[16,128], index: 2, kind: input, shape index: {}]
  %s3 = inlined_call_operand.vmem [shape: bf16[16,128], index: 3, kind: output, shape index: {}]
  %s4 = sld [smem:[#allocation0]]
  $region30: #{resnet_forward.21} parent=0
    _
  %s6 = ssub.s32 1, %s4
  %s7 = scalar_select 0, %s6, %s4
  // Predicated region
  $region2: #{resnet_forward.21} parent=0 // pred_check
    _
  $region3: #{resnet_forward.21} parent=0 // pred_check_branch
    %9 = sbr.rel (0) target = $region5
  $region4: #{resnet_forward.21} parent=0 // pred_region
    _
  $region5: #{resnet_forward.21} parent=0 // pred_fallthru
    _
  // Predicated region
  $region6: #{resnet_forward.21} parent=0 // pred_check
    _
  $region7: #{resnet_forward.21} parent=0 // pred_check_branch
    %11 = sbr.rel (0) target = $region9
  $region8: #{resnet_forward.21} parent=0 // pred_region
    _
  $region9: #{resnet_forward.21} parent=0 // pred_fallthru
    _
  // Predicated region
  $region10: #{resnet_forward.21} parent=0 // pred_check
    _
  $region11: #{resnet_forward.21} parent=0 // pred_check_branch
    %13 = sbr.rel (0) target = $region13
  $region12: #{resnet_forward.21} parent=0 // pred_region
    _
  $region13: #{resnet_forward.21} parent=0 // pred_fallthru
    _
  %p15 = scmp.eq.s32.totalorder 0, 0
  // Predicated region
  $region14: #{resnet_forward.21} parent=0 // pred_check
    %p16 = pneg %p15
  $region15: #{resnet_forward.21} parent=0 // pred_check_branch
    %18 = sbr.rel (%p16) target = $region17
  $region16: #{resnet_forward.21} parent=0 // pred_region
    %19 = vst [vmem:[#allocation2] sm:$0xff] 0.0
    %20 = vst [vmem:[#allocation2 + $0x8] sm:$0xff] 0.0
  $region17: #{resnet_forward.21} parent=0 // pred_fallthru
    _
  %v21 = vld [vmem:[#allocation2] sm:$0xff]
  %v22 = vld [vmem:[#allocation2 + $0x8] sm:$0xff]
  %v23 = vld [vmem:[%s0] sm:$0xff]
  %v24 = vld [vmem:[%s0 + $0x8] sm:$0xf]
  %v25 = vld [vmem:[%s0 + $0xc] sm:$0xff]
  %v26 = vld [vmem:[%s0 + $0x14] sm:$0xf]
  %v27 = vld [vmem:[%s1] sm:$0xf]
  %v28 = vld [vmem:[%s1 + $0x4] sm:$0xf]
  %v29 = vld [vmem:[%s1 + $0x8] sm:$0xf]
  %v30 = vld [vmem:[%s1 + $0xc] sm:$0xf]
  %v31 = vld [vmem:[%s1 + $0x10] sm:$0xf]
  %v32 = vld [vmem:[%s1 + $0x14] sm:$0xf]
  %v33 = vld [vmem:[%s1 + $0x18] sm:$0xf]
  %v34 = vld [vmem:[%s1 + $0x1c] sm:$0xf]
  %v35 = vld [vmem:[%s1 + $0x20] sm:$0xf]
  %v36 = vld [vmem:[%s1 + $0x24] sm:$0xf]
  %v37 = vld [vmem:[%s1 + $0x28] sm:$0xf]
  %v38 = vld [vmem:[%s1 + $0x2c] sm:$0xf]
  %v39 = vld [vmem:[%s1 + $0x30] sm:$0xf]
  %v40 = vld [vmem:[%s1 + $0x34] sm:$0xf]
  %v41 = vld [vmem:[%s1 + $0x38] sm:$0xf]
  %v42 = vld [vmem:[%s1 + $0x3c] sm:$0xf]
  %v43 = vld [vmem:[%s1 + $0x40] sm:$0xf]
  %v44 = vld [vmem:[%s1 + $0x44] sm:$0xf]
  %v45 = vld [vmem:[%s1 + $0x48] sm:$0xf]
  %v46 = vld [vmem:[%s1 + $0x4c] sm:$0xf]
  %v47 = vld [vmem:[%s1 + $0x50] sm:$0xf]
  %v48 = vld [vmem:[%s1 + $0x54] sm:$0xf]
  %v49 = vld [vmem:[%s1 + $0x58] sm:$0xf]
  %v50 = vld [vmem:[%s1 + $0x5c] sm:$0xf]
  %v51 = vld [vmem:[%s1 + $0x60] sm:$0xf]
  %v52 = vld [vmem:[%s1 + $0x64] sm:$0xf]
  %v53 = vld [vmem:[%s1 + $0x68] sm:$0xf]
  %v54 = vld [vmem:[%s1 + $0x6c] sm:$0xf]
  %v55 = vld [vmem:[%s1 + $0x70] sm:$0xf]
  %v56 = vld [vmem:[%s1 + $0x74] sm:$0xf]
  %v57 = vld [vmem:[%s1 + $0x78] sm:$0xf]
  %v58 = vld [vmem:[%s1 + $0x7c] sm:$0xf]
  %v59 = vld [vmem:[%s1 + $0x80] sm:$0xf]
  %v60 = vld [vmem:[%s1 + $0x84] sm:$0xf]
  %v61 = vld [vmem:[%s1 + $0x88] sm:$0xf]
  %v62 = vld [vmem:[%s1 + $0x8c] sm:$0xf]
  %v63 = vld [vmem:[%s1 + $0x90] sm:$0xf]
  %v64 = vld [vmem:[%s1 + $0x94] sm:$0xf]
  %v65 = vld [vmem:[%s1 + $0x98] sm:$0xf]
  %v66 = vld [vmem:[%s1 + $0x9c] sm:$0xf]
  %v67 = vld [vmem:[%s1 + $0xa0] sm:$0xf]
  %v68 = vld [vmem:[%s1 + $0xa4] sm:$0xf]
  %v69 = vld [vmem:[%s1 + $0xa8] sm:$0xf]
  %v70 = vld [vmem:[%s1 + $0xac] sm:$0xf]
  %v71 = vld [vmem:[%s1 + $0xb0] sm:$0xf]
  %v72 = vld [vmem:[%s1 + $0xb4] sm:$0xf]
  %v73 = vld [vmem:[%s1 + $0xb8] sm:$0xf]
  %v74 = vld [vmem:[%s1 + $0xbc] sm:$0xf]
  %v79 = vunpack.c.l.b16 %v23
  %v80 = vunpack.c.h.b16 %v23
  %v81 = vunpack.c.l.b16 %v24
  %v82 = vunpack.c.l.b16 %v25
  %v83 = vunpack.c.h.b16 %v25
  %v84 = vunpack.c.l.b16 %v26
  %v85 = vpack.c.b16 %v82, %v79
  %v86 = vpack.c.b16 %v83, %v80
  %v87 = vpack.c.b16 %v84, %v81
  %v139 = vunpack.c.l.b16 %v27
  %v140 = vunpack.c.l.b16 %v28
  %v141 = vunpack.c.l.b16 %v29
  %v142 = vunpack.c.l.b16 %v30
  %v143 = vunpack.c.l.b16 %v31
  %v144 = vunpack.c.l.b16 %v32
  %v145 = vunpack.c.l.b16 %v33
  %v146 = vunpack.c.l.b16 %v34
  %v147 = vunpack.c.l.b16 %v35
  %v148 = vunpack.c.l.b16 %v36
  %v149 = vunpack.c.l.b16 %v37
  %v150 = vunpack.c.l.b16 %v38
  %v151 = vunpack.c.l.b16 %v39
  %v152 = vunpack.c.l.b16 %v40
  %v153 = vunpack.c.l.b16 %v41
  %v154 = vunpack.c.l.b16 %v42
  %v155 = vunpack.c.l.b16 %v43
  %v156 = vunpack.c.l.b16 %v44
  %v157 = vunpack.c.l.b16 %v45
  %v158 = vunpack.c.l.b16 %v46
  %v159 = vunpack.c.l.b16 %v47
  %v160 = vunpack.c.l.b16 %v48
  %v161 = vunpack.c.l.b16 %v49
  %v162 = vunpack.c.l.b16 %v50
  %v163 = vunpack.c.l.b16 %v51
  %v164 = vunpack.c.l.b16 %v52
  %v165 = vunpack.c.l.b16 %v53
  %v166 = vunpack.c.l.b16 %v54
  %v167 = vunpack.c.l.b16 %v55
  %v168 = vunpack.c.l.b16 %v56
  %v169 = vunpack.c.l.b16 %v57
  %v170 = vunpack.c.l.b16 %v58
  %v171 = vunpack.c.l.b16 %v59
  %v172 = vunpack.c.l.b16 %v60
  %v173 = vunpack.c.l.b16 %v61
  %v174 = vunpack.c.l.b16 %v62
  %v175 = vunpack.c.l.b16 %v63
  %v176 = vunpack.c.l.b16 %v64
  %v177 = vunpack.c.l.b16 %v65
  %v178 = vunpack.c.l.b16 %v66
  %v179 = vunpack.c.l.b16 %v67
  %v180 = vunpack.c.l.b16 %v68
  %v181 = vunpack.c.l.b16 %v69
  %v182 = vunpack.c.l.b16 %v70
  %v183 = vunpack.c.l.b16 %v71
  %v184 = vunpack.c.l.b16 %v72
  %v185 = vunpack.c.l.b16 %v73
  %v186 = vunpack.c.l.b16 %v74
  %v187 = vpack.c.b16 %v140, %v139
  %v188 = vpack.c.b16 %v142, %v141
  %v189 = vpack.c.b16 %v144, %v143
  %v190 = vpack.c.b16 %v146, %v145
  %v191 = vpack.c.b16 %v148, %v147
  %v192 = vpack.c.b16 %v150, %v149
  %v193 = vpack.c.b16 %v152, %v151
  %v194 = vpack.c.b16 %v154, %v153
  %v195 = vpack.c.b16 %v156, %v155
  %v196 = vpack.c.b16 %v158, %v157
  %v197 = vpack.c.b16 %v160, %v159
  %v198 = vpack.c.b16 %v162, %v161
  %v199 = vpack.c.b16 %v164, %v163
  %v200 = vpack.c.b16 %v166, %v165
  %v201 = vpack.c.b16 %v168, %v167
  %v202 = vpack.c.b16 %v170, %v169
  %v203 = vpack.c.b16 %v172, %v171
  %v204 = vpack.c.b16 %v174, %v173
  %v205 = vpack.c.b16 %v176, %v175
  %v206 = vpack.c.b16 %v178, %v177
  %v207 = vpack.c.b16 %v180, %v179
  %v208 = vpack.c.b16 %v182, %v181
  %v209 = vpack.c.b16 %v184, %v183
  %v210 = vpack.c.b16 %v186, %v185
  %235 = vmatprep.subr.bf16.mxu0 0
  %236 = vmatpush1.bf16.msra.mxu0 %v187
  %237 = vmatprep.subr.bf16.mxu0 0
  %238 = vmatpush1.bf16.msra.mxu0 %v188
  %239 = vmatprep.subr.bf16.mxu0 0
  %240 = vmatpush1.bf16.msra.mxu0 %v189
  %241 = vmatprep.subr.bf16.mxu0 0
  %242 = vmatpush1.bf16.msra.mxu0 %v190
  %243 = vmatprep.subr.bf16.mxu0 0
  %244 = vmatpush1.bf16.msra.mxu0 %v191
  %245 = vmatprep.subr.bf16.mxu0 0
  %246 = vmatpush1.bf16.msra.mxu0 %v192
  %247 = vmatprep.subr.bf16.mxu0 0
  %248 = vmatpush1.bf16.msra.mxu0 %v193
  %249 = vmatprep.subr.bf16.mxu0 0
  %250 = vmatpush1.bf16.msra.mxu0 %v194
  %251 = vmatprep.subr.bf16.mxu0 0
  %252 = vmatpush1.bf16.msra.mxu0 %v195
  %253 = vmatprep.subr.bf16.mxu0 0
  %254 = vmatpush1.bf16.msra.mxu0 %v196
  %255 = vmatprep.subr.bf16.mxu0 0
  %256 = vmatpush1.bf16.msra.mxu0 %v197
  %257 = vmatprep.subr.bf16.mxu0 0
  %258 = vmatpush1.bf16.msra.mxu0 %v198
  %259 = vmatprep.subr.bf16.mxu0 0
  %260 = vmatpush1.bf16.msra.mxu0 %v199
  %261 = vmatprep.subr.bf16.mxu0 0
  %262 = vmatpush1.bf16.msra.mxu0 %v200
  %263 = vmatprep.subr.bf16.mxu0 0
  %264 = vmatpush1.bf16.msra.mxu0 %v201
  %265 = vmatprep.subr.bf16.mxu0 0
  %266 = vmatpush1.bf16.msra.mxu0 %v202
  %267 = vmatprep.mubr.bf16.mxu0 %v86
  %268 = vmatmul.mubr.bf16.gmra.mrb[0].mxu0 %v85
  %v269 = vpop.f32.mrb[0].mxu0
  %v270 = vadd.f32 0.0, %v269
  %v271 = vpop.f32.mrb[0].mxu0
  %v272 = vpop.f32.mrb[0].mxu0
  %v273 = vadd.f32 0.0, %v272
  %v274 = vpop.f32.mrb[0].mxu0
  %275 = vdwg.mxu0
  %276 = vmatprep.subr.bf16.mxu0 0
  %277 = vmatpush1.bf16.msra.mxu0 %v203
  %278 = vmatprep.subr.bf16.mxu0 0
  %279 = vmatpush1.bf16.msra.mxu0 %v204
  %280 = vmatprep.subr.bf16.mxu0 0
  %281 = vmatpush1.bf16.msra.mxu0 %v205
  %282 = vmatprep.subr.bf16.mxu0 0
  %283 = vmatpush1.bf16.msra.mxu0 %v206
  %284 = vmatprep.subr.bf16.mxu0 0
  %285 = vmatpush1.bf16.msra.mxu0 %v207
  %286 = vmatprep.subr.bf16.mxu0 0
  %287 = vmatpush1.bf16.msra.mxu0 %v208
  %288 = vmatprep.subr.bf16.mxu0 0
  %289 = vmatpush1.bf16.msra.mxu0 %v209
  %290 = vmatprep.subr.bf16.mxu0 0
  %291 = vmatpush1.bf16.msra.mxu0 %v210
  %292 = vmatprep.subr.bf16.mxu0 0
  %293 = vmatpush1.bf16.msra.mxu0 0
  %294 = vmatprep.subr.bf16.mxu0 0
  %295 = vmatpush1.bf16.msra.mxu0 0
  %296 = vmatprep.subr.bf16.mxu0 0
  %297 = vmatpush1.bf16.msra.mxu0 0
  %298 = vmatprep.subr.bf16.mxu0 0
  %299 = vmatpush1.bf16.msra.mxu0 0
  %300 = vmatprep.subr.bf16.mxu0 0
  %301 = vmatpush1.bf16.msra.mxu0 0
  %302 = vmatprep.subr.bf16.mxu0 0
  %303 = vmatpush1.bf16.msra.mxu0 0
  %304 = vmatprep.subr.bf16.mxu0 0
  %305 = vmatpush1.bf16.msra.mxu0 0
  %306 = vmatprep.subr.bf16.mxu0 0
  %307 = vmatpush1.bf16.msra.mxu0 0
  %308 = vmatprep.mubr.bf16.mxu0 0
  %309 = vmatmul.mubr.bf16.gmra.mrb[0].mxu0 %v87
  %v310 = vpop.f32.mrb[0].mxu0
  %v311 = vadd.f32 %v270, %v310
  %v312 = vpop.f32.mrb[0].mxu0
  %v313 = vpop.f32.mrb[0].mxu0
  %v314 = vadd.f32 %v273, %v313
  %v315 = vpop.f32.mrb[0].mxu0
  %316 = vdwg.mxu0
  %v317 = vadd.f32 %v21, %v311
  %v318 = vadd.f32 %v22, %v314
  %319 = vst [vmem:[#allocation2] sm:$0xff] %v317
  %320 = vst [vmem:[#allocation2 + $0x8] sm:$0xff] %v318
  // Predicated region
  $region18: #{resnet_forward.21} parent=0 // pred_check
    %p321 = pneg %p15
  $region19: #{resnet_forward.21} parent=0 // pred_check_branch
    %323 = sbr.rel (%p321) target = $region21
  $region20: #{resnet_forward.21} parent=0 // pred_region
    %v324 = vld [vmem:[%s2] sm:$0xf]
    %v325 = vld [vmem:[%s2 + $0x4] sm:$0xf]
    %v326 = vunpack.c.l.bf16 %v324
    %v327 = vunpack.c.l.bf16 %v325
    %v328 = vld [vmem:[#allocation2] sm:$0xff]
    %v329 = vld [vmem:[#allocation2 + $0x8] sm:$0xff]
    %v330 = vadd.f32 %v328, %v326
    %v331 = vadd.f32 %v329, %v327
    %v332 = vmax.f32 %v330, 0.0
    %v333 = vmax.f32 %v331, 0.0
    %v334 = vpack.c.bf16 %v333, %v332
    %v336 = vunpack.c.l.b16 %v334
    %v337 = vunpack.c.h.b16 %v334
    %v338 = vpack.c.b16 %v336, %v336
    %v339 = vpack.c.b16 %v337, %v337
    %342 = vst [vmem:[%s3] sm:$0xf] %v338
    %343 = vst [vmem:[%s3 + $0x4] sm:$0xf] %v339
  $region21: #{resnet_forward.21} parent=0 // pred_fallthru
    _
  // Predicated region
  $region22: #{resnet_forward.21} parent=0 // pred_check
    _
  $region23: #{resnet_forward.21} parent=0 // pred_check_branch
    %345 = sbr.rel (0) target = $region25
  $region24: #{resnet_forward.21} parent=0 // pred_region
    _
  $region25: #{resnet_forward.21} parent=0 // pred_fallthru
    _
  // Predicated region
  $region26: #{resnet_forward.21} parent=0 // pred_check
    _
  $region27: #{resnet_forward.21} parent=0 // pred_check_branch
    %347 = sbr.rel (0) target = $region29
  $region28: #{resnet_forward.21} parent=0 // pred_region
    _
  $region29: #{resnet_forward.21} parent=0 // pred_fallthru
    _

// kernel: resnet_forward.20
$region0: #{resnet_forward.20}
  #allocation0 [shape = 'u32[]', space=smem, size = 0x4, offset = 0x4, fixed_abs, tag = 'smem constant byte address 0x4 - core index']
  #allocation1 [shape = 'u32[144,128]{1,0:T(1,128)}', space=vmem, size = 0x12000, scoped, tag = 'internal scratch']
  #allocation2 [shape = 'f32[16,128]{1,0:T(8,128)}', space=vmem, size = 0x2000, scoped, tag = 'scratch operand']
  %s0 = inlined_call_operand.vmem [shape: bf16[16,384], index: 0, kind: input, shape index: {}]
  %s1 = inlined_call_operand.vmem [shape: bf16[384,128], index: 1, kind: input, shape index: {}]
  %s2 = inlined_call_operand.vmem [shape: bf16[16,128], index: 2, kind: output, shape index: {}]
  %s3 = sld [smem:[#allocation0]]
  $region26: #{resnet_forward.20} parent=0
    _
  %s5 = ssub.s32 1, %s3
  %s6 = scalar_select 0, %s5, %s3
  // Predicated region
  $region2: #{resnet_forward.20} parent=0 // pred_check
    _
  $region3: #{resnet_forward.20} parent=0 // pred_check_branch
    %8 = sbr.rel (0) target = $region5
  $region4: #{resnet_forward.20} parent=0 // pred_region
    _
  $region5: #{resnet_forward.20} parent=0 // pred_fallthru
    _
  // Predicated region
  $region6: #{resnet_forward.20} parent=0 // pred_check
    _
  $region7: #{resnet_forward.20} parent=0 // pred_check_branch
    %10 = sbr.rel (0) target = $region9
  $region8: #{resnet_forward.20} parent=0 // pred_region
    _
  $region9: #{resnet_forward.20} parent=0 // pred_fallthru
    _
  %p12 = scmp.eq.s32.totalorder 0, 0
  // Predicated region
  $region10: #{resnet_forward.20} parent=0 // pred_check
    %p13 = pneg %p12
  $region11: #{resnet_forward.20} parent=0 // pred_check_branch
    %15 = sbr.rel (%p13) target = $region13
  $region12: #{resnet_forward.20} parent=0 // pred_region
    %16 = vst [vmem:[#allocation2] sm:$0xff] 0.0
    %17 = vst [vmem:[#allocation2 + $0x8] sm:$0xff] 0.0
  $region13: #{resnet_forward.20} parent=0 // pred_fallthru
    _
  %v18 = vld [vmem:[#allocation2] sm:$0xff]
  %v19 = vld [vmem:[#allocation2 + $0x8] sm:$0xff]
  %v20 = vld [vmem:[%s0] sm:$0xff]
  %v21 = vld [vmem:[%s0 + $0x8] sm:$0xf]
  %v22 = vld [vmem:[%s0 + $0xc] sm:$0xff]
  %v23 = vld [vmem:[%s0 + $0x14] sm:$0xf]
  %v24 = vld [vmem:[%s1] sm:$0xf]
  %v25 = vld [vmem:[%s1 + $0x4] sm:$0xf]
  %v26 = vld [vmem:[%s1 + $0x8] sm:$0xf]
  %v27 = vld [vmem:[%s1 + $0xc] sm:$0xf]
  %v28 = vld [vmem:[%s1 + $0x10] sm:$0xf]
  %v29 = vld [vmem:[%s1 + $0x14] sm:$0xf]
  %v30 = vld [vmem:[%s1 + $0x18] sm:$0xf]
  %v31 = vld [vmem:[%s1 + $0x1c] sm:$0xf]
  %v32 = vld [vmem:[%s1 + $0x20] sm:$0xf]
  %v33 = vld [vmem:[%s1 + $0x24] sm:$0xf]
  %v34 = vld [vmem:[%s1 + $0x28] sm:$0xf]
  %v35 = vld [vmem:[%s1 + $0x2c] sm:$0xf]
  %v36 = vld [vmem:[%s1 + $0x30] sm:$0xf]
  %v37 = vld [vmem:[%s1 + $0x34] sm:$0xf]
  %v38 = vld [vmem:[%s1 + $0x38] sm:$0xf]
  %v39 = vld [vmem:[%s1 + $0x3c] sm:$0xf]
  %v40 = vld [vmem:[%s1 + $0x40] sm:$0xf]
  %v41 = vld [vmem:[%s1 + $0x44] sm:$0xf]
  %v42 = vld [vmem:[%s1 + $0x48] sm:$0xf]
  %v43 = vld [vmem:[%s1 + $0x4c] sm:$0xf]
  %v44 = vld [vmem:[%s1 + $0x50] sm:$0xf]
  %v45 = vld [vmem:[%s1 + $0x54] sm:$0xf]
  %v46 = vld [vmem:[%s1 + $0x58] sm:$0xf]
  %v47 = vld [vmem:[%s1 + $0x5c] sm:$0xf]
  %v48 = vld [vmem:[%s1 + $0x60] sm:$0xf]
  %v49 = vld [vmem:[%s1 + $0x64] sm:$0xf]
  %v50 = vld [vmem:[%s1 + $0x68] sm:$0xf]
  %v51 = vld [vmem:[%s1 + $0x6c] sm:$0xf]
  %v52 = vld [vmem:[%s1 + $0x70] sm:$0xf]
  %v53 = vld [vmem:[%s1 + $0x74] sm:$0xf]
  %v54 = vld [vmem:[%s1 + $0x78] sm:$0xf]
  %v55 = vld [vmem:[%s1 + $0x7c] sm:$0xf]
  %v56 = vld [vmem:[%s1 + $0x80] sm:$0xf]
  %v57 = vld [vmem:[%s1 + $0x84] sm:$0xf]
  %v58 = vld [vmem:[%s1 + $0x88] sm:$0xf]
  %v59 = vld [vmem:[%s1 + $0x8c] sm:$0xf]
  %v60 = vld [vmem:[%s1 + $0x90] sm:$0xf]
  %v61 = vld [vmem:[%s1 + $0x94] sm:$0xf]
  %v62 = vld [vmem:[%s1 + $0x98] sm:$0xf]
  %v63 = vld [vmem:[%s1 + $0x9c] sm:$0xf]
  %v64 = vld [vmem:[%s1 + $0xa0] sm:$0xf]
  %v65 = vld [vmem:[%s1 + $0xa4] sm:$0xf]
  %v66 = vld [vmem:[%s1 + $0xa8] sm:$0xf]
  %v67 = vld [vmem:[%s1 + $0xac] sm:$0xf]
  %v68 = vld [vmem:[%s1 + $0xb0] sm:$0xf]
  %v69 = vld [vmem:[%s1 + $0xb4] sm:$0xf]
  %v70 = vld [vmem:[%s1 + $0xb8] sm:$0xf]
  %v71 = vld [vmem:[%s1 + $0xbc] sm:$0xf]
  %v76 = vunpack.c.l.b16 %v20
  %v77 = vunpack.c.h.b16 %v20
  %v78 = vunpack.c.l.b16 %v21
  %v79 = vunpack.c.l.b16 %v22
  %v80 = vunpack.c.h.b16 %v22
  %v81 = vunpack.c.l.b16 %v23
  %v82 = vpack.c.b16 %v79, %v76
  %v83 = vpack.c.b16 %v80, %v77
  %v84 = vpack.c.b16 %v81, %v78
  %v136 = vunpack.c.l.b16 %v24
  %v137 = vunpack.c.l.b16 %v25
  %v138 = vunpack.c.l.b16 %v26
  %v139 = vunpack.c.l.b16 %v27
  %v140 = vunpack.c.l.b16 %v28
  %v141 = vunpack.c.l.b16 %v29
  %v142 = vunpack.c.l.b16 %v30
  %v143 = vunpack.c.l.b16 %v31
  %v144 = vunpack.c.l.b16 %v32
  %v145 = vunpack.c.l.b16 %v33
  %v146 = vunpack.c.l.b16 %v34
  %v147 = vunpack.c.l.b16 %v35
  %v148 = vunpack.c.l.b16 %v36
  %v149 = vunpack.c.l.b16 %v37
  %v150 = vunpack.c.l.b16 %v38
  %v151 = vunpack.c.l.b16 %v39
  %v152 = vunpack.c.l.b16 %v40
  %v153 = vunpack.c.l.b16 %v41
  %v154 = vunpack.c.l.b16 %v42
  %v155 = vunpack.c.l.b16 %v43
  %v156 = vunpack.c.l.b16 %v44
  %v157 = vunpack.c.l.b16 %v45
  %v158 = vunpack.c.l.b16 %v46
  %v159 = vunpack.c.l.b16 %v47
  %v160 = vunpack.c.l.b16 %v48
  %v161 = vunpack.c.l.b16 %v49
  %v162 = vunpack.c.l.b16 %v50
  %v163 = vunpack.c.l.b16 %v51
  %v164 = vunpack.c.l.b16 %v52
  %v165 = vunpack.c.l.b16 %v53
  %v166 = vunpack.c.l.b16 %v54
  %v167 = vunpack.c.l.b16 %v55
  %v168 = vunpack.c.l.b16 %v56
  %v169 = vunpack.c.l.b16 %v57
  %v170 = vunpack.c.l.b16 %v58
  %v171 = vunpack.c.l.b16 %v59
  %v172 = vunpack.c.l.b16 %v60
  %v173 = vunpack.c.l.b16 %v61
  %v174 = vunpack.c.l.b16 %v62
  %v175 = vunpack.c.l.b16 %v63
  %v176 = vunpack.c.l.b16 %v64
  %v177 = vunpack.c.l.b16 %v65
  %v178 = vunpack.c.l.b16 %v66
  %v179 = vunpack.c.l.b16 %v67
  %v180 = vunpack.c.l.b16 %v68
  %v181 = vunpack.c.l.b16 %v69
  %v182 = vunpack.c.l.b16 %v70
  %v183 = vunpack.c.l.b16 %v71
  %v184 = vpack.c.b16 %v137, %v136
  %v185 = vpack.c.b16 %v139, %v138
  %v186 = vpack.c.b16 %v141, %v140
  %v187 = vpack.c.b16 %v143, %v142
  %v188 = vpack.c.b16 %v145, %v144
  %v189 = vpack.c.b16 %v147, %v146
  %v190 = vpack.c.b16 %v149, %v148
  %v191 = vpack.c.b16 %v151, %v150
  %v192 = vpack.c.b16 %v153, %v152
  %v193 = vpack.c.b16 %v155, %v154
  %v194 = vpack.c.b16 %v157, %v156
  %v195 = vpack.c.b16 %v159, %v158
  %v196 = vpack.c.b16 %v161, %v160
  %v197 = vpack.c.b16 %v163, %v162
  %v198 = vpack.c.b16 %v165, %v164
  %v199 = vpack.c.b16 %v167, %v166
  %v200 = vpack.c.b16 %v169, %v168
  %v201 = vpack.c.b16 %v171, %v170
  %v202 = vpack.c.b16 %v173, %v172
  %v203 = vpack.c.b16 %v175, %v174
  %v204 = vpack.c.b16 %v177, %v176
  %v205 = vpack.c.b16 %v179, %v178
  %v206 = vpack.c.b16 %v181, %v180
  %v207 = vpack.c.b16 %v183, %v182
  %232 = vmatprep.subr.bf16.mxu0 0
  %233 = vmatpush1.bf16.msra.mxu0 %v184
  %234 = vmatprep.subr.bf16.mxu0 0
  %235 = vmatpush1.bf16.msra.mxu0 %v185
  %236 = vmatprep.subr.bf16.mxu0 0
  %237 = vmatpush1.bf16.msra.mxu0 %v186
  %238 = vmatprep.subr.bf16.mxu0 0
  %239 = vmatpush1.bf16.msra.mxu0 %v187
  %240 = vmatprep.subr.bf16.mxu0 0
  %241 = vmatpush1.bf16.msra.mxu0 %v188
  %242 = vmatprep.subr.bf16.mxu0 0
  %243 = vmatpush1.bf16.msra.mxu0 %v189
  %244 = vmatprep.subr.bf16.mxu0 0
  %245 = vmatpush1.bf16.msra.mxu0 %v190
  %246 = vmatprep.subr.bf16.mxu0 0
  %247 = vmatpush1.bf16.msra.mxu0 %v191
  %248 = vmatprep.subr.bf16.mxu0 0
  %249 = vmatpush1.bf16.msra.mxu0 %v192
  %250 = vmatprep.subr.bf16.mxu0 0
  %251 = vmatpush1.bf16.msra.mxu0 %v193
  %252 = vmatprep.subr.bf16.mxu0 0
  %253 = vmatpush1.bf16.msra.mxu0 %v194
  %254 = vmatprep.subr.bf16.mxu0 0
  %255 = vmatpush1.bf16.msra.mxu0 %v195
  %256 = vmatprep.subr.bf16.mxu0 0
  %257 = vmatpush1.bf16.msra.mxu0 %v196
  %258 = vmatprep.subr.bf16.mxu0 0
  %259 = vmatpush1.bf16.msra.mxu0 %v197
  %260 = vmatprep.subr.bf16.mxu0 0
  %261 = vmatpush1.bf16.msra.mxu0 %v198
  %262 = vmatprep.subr.bf16.mxu0 0
  %263 = vmatpush1.bf16.msra.mxu0 %v199
  %264 = vmatprep.mubr.bf16.mxu0 %v83
  %265 = vmatmul.mubr.bf16.gmra.mrb[0].mxu0 %v82
  %v266 = vpop.f32.mrb[0].mxu0
  %v267 = vadd.f32 0.0, %v266
  %v268 = vpop.f32.mrb[0].mxu0
  %v269 = vpop.f32.mrb[0].mxu0
  %v270 = vadd.f32 0.0, %v269
  %v271 = vpop.f32.mrb[0].mxu0
  %272 = vdwg.mxu0
  %273 = vmatprep.subr.bf16.mxu0 0
  %274 = vmatpush1.bf16.msra.mxu0 %v200
  %275 = vmatprep.subr.bf16.mxu0 0
  %276 = vmatpush1.bf16.msra.mxu0 %v201
  %277 = vmatprep.subr.bf16.mxu0 0
  %278 = vmatpush1.bf16.msra.mxu0 %v202
  %279 = vmatprep.subr.bf16.mxu0 0
  %280 = vmatpush1.bf16.msra.mxu0 %v203
  %281 = vmatprep.subr.bf16.mxu0 0
  %282 = vmatpush1.bf16.msra.mxu0 %v204
  %283 = vmatprep.subr.bf16.mxu0 0
  %284 = vmatpush1.bf16.msra.mxu0 %v205
  %285 = vmatprep.subr.bf16.mxu0 0
  %286 = vmatpush1.bf16.msra.mxu0 %v206
  %287 = vmatprep.subr.bf16.mxu0 0
  %288 = vmatpush1.bf16.msra.mxu0 %v207
  %289 = vmatprep.subr.bf16.mxu0 0
  %290 = vmatpush1.bf16.msra.mxu0 0
  %291 = vmatprep.subr.bf16.mxu0 0
  %292 = vmatpush1.bf16.msra.mxu0 0
  %293 = vmatprep.subr.bf16.mxu0 0
  %294 = vmatpush1.bf16.msra.mxu0 0
  %295 = vmatprep.subr.bf16.mxu0 0
  %296 = vmatpush1.bf16.msra.mxu0 0
  %297 = vmatprep.subr.bf16.mxu0 0
  %298 = vmatpush1.bf16.msra.mxu0 0
  %299 = vmatprep.subr.bf16.mxu0 0
  %300 = vmatpush1.bf16.msra.mxu0 0
  %301 = vmatprep.subr.bf16.mxu0 0
  %302 = vmatpush1.bf16.msra.mxu0 0
  %303 = vmatprep.subr.bf16.mxu0 0
  %304 = vmatpush1.bf16.msra.mxu0 0
  %305 = vmatprep.mubr.bf16.mxu0 0
  %306 = vmatmul.mubr.bf16.gmra.mrb[0].mxu0 %v84
  %v307 = vpop.f32.mrb[0].mxu0
  %v308 = vadd.f32 %v267, %v307
  %v309 = vpop.f32.mrb[0].mxu0
  %v310 = vpop.f32.mrb[0].mxu0
  %v311 = vadd.f32 %v270, %v310
  %v312 = vpop.f32.mrb[0].mxu0
  %313 = vdwg.mxu0
  %v314 = vadd.f32 %v18, %v308
  %v315 = vadd.f32 %v19, %v311
  %316 = vst [vmem:[#allocation2] sm:$0xff] %v314
  %317 = vst [vmem:[#allocation2 + $0x8] sm:$0xff] %v315
  // Predicated region
  $region14: #{resnet_forward.20} parent=0 // pred_check
    %p318 = pneg %p12
  $region15: #{resnet_forward.20} parent=0 // pred_check_branch
    %320 = sbr.rel (%p318) target = $region17
  $region16: #{resnet_forward.20} parent=0 // pred_region
    %v321 = vld [vmem:[#allocation2] sm:$0xff]
    %v322 = vld [vmem:[#allocation2 + $0x8] sm:$0xff]
    %v323 = vmax.f32 %v321, 0.0
    %v324 = vmax.f32 %v322, 0.0
    %v325 = vpack.c.bf16 %v324, %v323
    %v327 = vunpack.c.l.b16 %v325
    %v328 = vunpack.c.h.b16 %v325
    %v329 = vpack.c.b16 %v327, %v327
    %v330 = vpack.c.b16 %v328, %v328
    %333 = vst [vmem:[%s2] sm:$0xf] %v329
    %334 = vst [vmem:[%s2 + $0x4] sm:$0xf] %v330
  $region17: #{resnet_forward.20} parent=0 // pred_fallthru
    _
  // Predicated region
  $region18: #{resnet_forward.20} parent=0 // pred_check
    _
  $region19: #{resnet_forward.20} parent=0 // pred_check_branch
    %336 = sbr.rel (0) target = $region21
  $region20: #{resnet_forward.20} parent=0 // pred_region
    _
  $region21: #{resnet_forward.20} parent=0 // pred_fallthru
    _
  // Predicated region
  $region22: #{resnet_forward.20} parent=0 // pred_check
    _
  $region23: #{resnet_forward.20} parent=0 // pred_check_branch
    %338 = sbr.rel (0) target = $region25
  $region24: #{resnet_forward.20} parent=0 // pred_region
    _
  $region25: #{resnet_forward.20} parent=0 // pred_fallthru
    _

// kernel: resnet_forward.23
$region0: #{resnet_forward.23}
  #allocation0 [shape = 'u32[]', space=smem, size = 0x4, offset = 0x4, fixed_abs, tag = 'smem constant byte address 0x4 - core index']
  #allocation1 [shape = 'u32[144,128]{1,0:T(1,128)}', space=vmem, size = 0x12000, scoped, tag = 'internal scratch']
  #allocation2 [shape = 'f32[16,256]{1,0:T(8,128)}', space=vmem, size = 0x4000, scoped, tag = 'scratch operand']
  %s0 = inlined_call_operand.vmem [shape: bf16[16,384], index: 0, kind: input, shape index: {}]
  %s1 = inlined_call_operand.vmem [shape: bf16[384,256], index: 1, kind: input, shape index: {}]
  %s2 = inlined_call_operand.vmem [shape: bf16[16,256], index: 2, kind: output, shape index: {}]
  %s3 = sld [smem:[#allocation0]]
  $region26: #{resnet_forward.23} parent=0
    _
  %s5 = ssub.s32 1, %s3
  %s6 = scalar_select 0, %s5, %s3
  // Predicated region
  $region2: #{resnet_forward.23} parent=0 // pred_check
    _
  $region3: #{resnet_forward.23} parent=0 // pred_check_branch
    %8 = sbr.rel (0) target = $region5
  $region4: #{resnet_forward.23} parent=0 // pred_region
    _
  $region5: #{resnet_forward.23} parent=0 // pred_fallthru
    _
  // Predicated region
  $region6: #{resnet_forward.23} parent=0 // pred_check
    _
  $region7: #{resnet_forward.23} parent=0 // pred_check_branch
    %10 = sbr.rel (0) target = $region9
  $region8: #{resnet_forward.23} parent=0 // pred_region
    _
  $region9: #{resnet_forward.23} parent=0 // pred_fallthru
    _
  %p12 = scmp.eq.s32.totalorder 0, 0
  // Predicated region
  $region10: #{resnet_forward.23} parent=0 // pred_check
    %p13 = pneg %p12
  $region11: #{resnet_forward.23} parent=0 // pred_check_branch
    %15 = sbr.rel (%p13) target = $region13
  $region12: #{resnet_forward.23} parent=0 // pred_region
    %16 = vst [vmem:[#allocation2] sm:$0xff] 0.0
    %17 = vst [vmem:[#allocation2 + $0x8] sm:$0xff] 0.0
    %18 = vst [vmem:[#allocation2 + $0x10] sm:$0xff] 0.0
    %19 = vst [vmem:[#allocation2 + $0x18] sm:$0xff] 0.0
  $region13: #{resnet_forward.23} parent=0 // pred_fallthru
    _
  %v20 = vld [vmem:[#allocation2] sm:$0xff]
  %v21 = vld [vmem:[#allocation2 + $0x8] sm:$0xff]
  %v22 = vld [vmem:[#allocation2 + $0x10] sm:$0xff]
  %v23 = vld [vmem:[#allocation2 + $0x18] sm:$0xff]
  %v24 = vld [vmem:[%s0] sm:$0xff]
  %v25 = vld [vmem:[%s0 + $0x8] sm:$0xf]
  %v26 = vld [vmem:[%s0 + $0xc] sm:$0xff]
  %v27 = vld [vmem:[%s0 + $0x14] sm:$0xf]
  %v28 = vld [vmem:[%s1] sm:$0xff]
  %v29 = vld [vmem:[%s1 + $0x8] sm:$0xff]
  %v30 = vld [vmem:[%s1 + $0x10] sm:$0xff]
  %v31 = vld [vmem:[%s1 + $0x18] sm:$0xff]
  %v32 = vld [vmem:[%s1 + $0x20] sm:$0xff]
  %v33 = vld [vmem:[%s1 + $0x28] sm:$0xff]
  %v34 = vld [vmem:[%s1 + $0x30] sm:$0xff]
  %v35 = vld [vmem:[%s1 + $0x38] sm:$0xff]
  %v36 = vld [vmem:[%s1 + $0x40] sm:$0xff]
  %v37 = vld [vmem:[%s1 + $0x48] sm:$0xff]
  %v38 = vld [vmem:[%s1 + $0x50] sm:$0xff]
  %v39 = vld [vmem:[%s1 + $0x58] sm:$0xff]
  %v40 = vld [vmem:[%s1 + $0x60] sm:$0xff]
  %v41 = vld [vmem:[%s1 + $0x68] sm:$0xff]
  %v42 = vld [vmem:[%s1 + $0x70] sm:$0xff]
  %v43 = vld [vmem:[%s1 + $0x78] sm:$0xff]
  %v44 = vld [vmem:[%s1 + $0x80] sm:$0xff]
  %v45 = vld [vmem:[%s1 + $0x88] sm:$0xff]
  %v46 = vld [vmem:[%s1 + $0x90] sm:$0xff]
  %v47 = vld [vmem:[%s1 + $0x98] sm:$0xff]
  %v48 = vld [vmem:[%s1 + $0xa0] sm:$0xff]
  %v49 = vld [vmem:[%s1 + $0xa8] sm:$0xff]
  %v50 = vld [vmem:[%s1 + $0xb0] sm:$0xff]
  %v51 = vld [vmem:[%s1 + $0xb8] sm:$0xff]
  %v52 = vld [vmem:[%s1 + $0xc0] sm:$0xff]
  %v53 = vld [vmem:[%s1 + $0xc8] sm:$0xff]
  %v54 = vld [vmem:[%s1 + $0xd0] sm:$0xff]
  %v55 = vld [vmem:[%s1 + $0xd8] sm:$0xff]
  %v56 = vld [vmem:[%s1 + $0xe0] sm:$0xff]
  %v57 = vld [vmem:[%s1 + $0xe8] sm:$0xff]
  %v58 = vld [vmem:[%s1 + $0xf0] sm:$0xff]
  %v59 = vld [vmem:[%s1 + $0xf8] sm:$0xff]
  %v60 = vld [vmem:[%s1 + $0x100] sm:$0xff]
  %v61 = vld [vmem:[%s1 + $0x108] sm:$0xff]
  %v62 = vld [vmem:[%s1 + $0x110] sm:$0xff]
  %v63 = vld [vmem:[%s1 + $0x118] sm:$0xff]
  %v64 = vld [vmem:[%s1 + $0x120] sm:$0xff]
  %v65 = vld [vmem:[%s1 + $0x128] sm:$0xff]
  %v66 = vld [vmem:[%s1 + $0x130] sm:$0xff]
  %v67 = vld [vmem:[%s1 + $0x138] sm:$0xff]
  %v68 = vld [vmem:[%s1 + $0x140] sm:$0xff]
  %v69 = vld [vmem:[%s1 + $0x148] sm:$0xff]
  %v70 = vld [vmem:[%s1 + $0x150] sm:$0xff]
  %v71 = vld [vmem:[%s1 + $0x158] sm:$0xff]
  %v72 = vld [vmem:[%s1 + $0x160] sm:$0xff]
  %v73 = vld [vmem:[%s1 + $0x168] sm:$0xff]
  %v74 = vld [vmem:[%s1 + $0x170] sm:$0xff]
  %v75 = vld [vmem:[%s1 + $0x178] sm:$0xff]
  %v80 = vunpack.c.l.b16 %v24
  %v81 = vunpack.c.h.b16 %v24
  %v82 = vunpack.c.l.b16 %v25
  %v83 = vunpack.c.l.b16 %v26
  %v84 = vunpack.c.h.b16 %v26
  %v85 = vunpack.c.l.b16 %v27
  %v86 = vpack.c.b16 %v83, %v80
  %v87 = vpack.c.b16 %v84, %v81
  %v88 = vpack.c.b16 %v85, %v82
  %v140 = vunpack.c.l.b16 %v28
  %v141 = vunpack.c.h.b16 %v28
  %v142 = vunpack.c.l.b16 %v29
  %v143 = vunpack.c.h.b16 %v29
  %v144 = vunpack.c.l.b16 %v30
  %v145 = vunpack.c.h.b16 %v30
  %v146 = vunpack.c.l.b16 %v31
  %v147 = vunpack.c.h.b16 %v31
  %v148 = vunpack.c.l.b16 %v32
  %v149 = vunpack.c.h.b16 %v32
  %v150 = vunpack.c.l.b16 %v33
  %v151 = vunpack.c.h.b16 %v33
  %v152 = vunpack.c.l.b16 %v34
  %v153 = vunpack.c.h.b16 %v34
  %v154 = vunpack.c.l.b16 %v35
  %v155 = vunpack.c.h.b16 %v35
  %v156 = vunpack.c.l.b16 %v36
  %v157 = vunpack.c.h.b16 %v36
  %v158 = vunpack.c.l.b16 %v37
  %v159 = vunpack.c.h.b16 %v37
  %v160 = vunpack.c.l.b16 %v38
  %v161 = vunpack.c.h.b16 %v38
  %v162 = vunpack.c.l.b16 %v39
  %v163 = vunpack.c.h.b16 %v39
  %v164 = vunpack.c.l.b16 %v40
  %v165 = vunpack.c.h.b16 %v40
  %v166 = vunpack.c.l.b16 %v41
  %v167 = vunpack.c.h.b16 %v41
  %v168 = vunpack.c.l.b16 %v42
  %v169 = vunpack.c.h.b16 %v42
  %v170 = vunpack.c.l.b16 %v43
  %v171 = vunpack.c.h.b16 %v43
  %v172 = vunpack.c.l.b16 %v44
  %v173 = vunpack.c.h.b16 %v44
  %v174 = vunpack.c.l.b16 %v45
  %v175 = vunpack.c.h.b16 %v45
  %v176 = vunpack.c.l.b16 %v46
  %v177 = vunpack.c.h.b16 %v46
  %v178 = vunpack.c.l.b16 %v47
  %v179 = vunpack.c.h.b16 %v47
  %v180 = vunpack.c.l.b16 %v48
  %v181 = vunpack.c.h.b16 %v48
  %v182 = vunpack.c.l.b16 %v49
  %v183 = vunpack.c.h.b16 %v49
  %v184 = vunpack.c.l.b16 %v50
  %v185 = vunpack.c.h.b16 %v50
  %v186 = vunpack.c.l.b16 %v51
  %v187 = vunpack.c.h.b16 %v51
  %v188 = vunpack.c.l.b16 %v52
  %v189 = vunpack.c.h.b16 %v52
  %v190 = vunpack.c.l.b16 %v53
  %v191 = vunpack.c.h.b16 %v53
  %v192 = vunpack.c.l.b16 %v54
  %v193 = vunpack.c.h.b16 %v54
  %v194 = vunpack.c.l.b16 %v55
  %v195 = vunpack.c.h.b16 %v55
  %v196 = vunpack.c.l.b16 %v56
  %v197 = vunpack.c.h.b16 %v56
  %v198 = vunpack.c.l.b16 %v57
  %v199 = vunpack.c.h.b16 %v57
  %v200 = vunpack.c.l.b16 %v58
  %v201 = vunpack.c.h.b16 %v58
  %v202 = vunpack.c.l.b16 %v59
  %v203 = vunpack.c.h.b16 %v59
  %v204 = vunpack.c.l.b16 %v60
  %v205 = vunpack.c.h.b16 %v60
  %v206 = vunpack.c.l.b16 %v61
  %v207 = vunpack.c.h.b16 %v61
  %v208 = vunpack.c.l.b16 %v62
  %v209 = vunpack.c.h.b16 %v62
  %v210 = vunpack.c.l.b16 %v63
  %v211 = vunpack.c.h.b16 %v63
  %v212 = vunpack.c.l.b16 %v64
  %v213 = vunpack.c.h.b16 %v64
  %v214 = vunpack.c.l.b16 %v65
  %v215 = vunpack.c.h.b16 %v65
  %v216 = vunpack.c.l.b16 %v66
  %v217 = vunpack.c.h.b16 %v66
  %v218 = vunpack.c.l.b16 %v67
  %v219 = vunpack.c.h.b16 %v67
  %v220 = vunpack.c.l.b16 %v68
  %v221 = vunpack.c.h.b16 %v68
  %v222 = vunpack.c.l.b16 %v69
  %v223 = vunpack.c.h.b16 %v69
  %v224 = vunpack.c.l.b16 %v70
  %v225 = vunpack.c.h.b16 %v70
  %v226 = vunpack.c.l.b16 %v71
  %v227 = vunpack.c.h.b16 %v71
  %v228 = vunpack.c.l.b16 %v72
  %v229 = vunpack.c.h.b16 %v72
  %v230 = vunpack.c.l.b16 %v73
  %v231 = vunpack.c.h.b16 %v73
  %v232 = vunpack.c.l.b16 %v74
  %v233 = vunpack.c.h.b16 %v74
  %v234 = vunpack.c.l.b16 %v75
  %v235 = vunpack.c.h.b16 %v75
  %v236 = vpack.c.b16 %v142, %v140
  %v237 = vpack.c.b16 %v143, %v141
  %v238 = vpack.c.b16 %v146, %v144
  %v239 = vpack.c.b16 %v147, %v145
  %v240 = vpack.c.b16 %v150, %v148
  %v241 = vpack.c.b16 %v151, %v149
  %v242 = vpack.c.b16 %v154, %v152
  %v243 = vpack.c.b16 %v155, %v153
  %v244 = vpack.c.b16 %v158, %v156
  %v245 = vpack.c.b16 %v159, %v157
  %v246 = vpack.c.b16 %v162, %v160
  %v247 = vpack.c.b16 %v163, %v161
  %v248 = vpack.c.b16 %v166, %v164
  %v249 = vpack.c.b16 %v167, %v165
  %v250 = vpack.c.b16 %v170, %v168
  %v251 = vpack.c.b16 %v171, %v169
  %v252 = vpack.c.b16 %v174, %v172
  %v253 = vpack.c.b16 %v175, %v173
  %v254 = vpack.c.b16 %v178, %v176
  %v255 = vpack.c.b16 %v179, %v177
  %v256 = vpack.c.b16 %v182, %v180
  %v257 = vpack.c.b16 %v183, %v181
  %v258 = vpack.c.b16 %v186, %v184
  %v259 = vpack.c.b16 %v187, %v185
  %v260 = vpack.c.b16 %v190, %v188
  %v261 = vpack.c.b16 %v191, %v189
  %v262 = vpack.c.b16 %v194, %v192
  %v263 = vpack.c.b16 %v195, %v193
  %v264 = vpack.c.b16 %v198, %v196
  %v265 = vpack.c.b16 %v199, %v197
  %v266 = vpack.c.b16 %v202, %v200
  %v267 = vpack.c.b16 %v203, %v201
  %v268 = vpack.c.b16 %v206, %v204
  %v269 = vpack.c.b16 %v207, %v205
  %v270 = vpack.c.b16 %v210, %v208
  %v271 = vpack.c.b16 %v211, %v209
  %v272 = vpack.c.b16 %v214, %v212
  %v273 = vpack.c.b16 %v215, %v213
  %v274 = vpack.c.b16 %v218, %v216
  %v275 = vpack.c.b16 %v219, %v217
  %v276 = vpack.c.b16 %v222, %v220
  %v277 = vpack.c.b16 %v223, %v221
  %v278 = vpack.c.b16 %v226, %v224
  %v279 = vpack.c.b16 %v227, %v225
  %v280 = vpack.c.b16 %v230, %v228
  %v281 = vpack.c.b16 %v231, %v229
  %v282 = vpack.c.b16 %v234, %v232
  %v283 = vpack.c.b16 %v235, %v233
  %332 = vmatprep.subr.bf16.mxu0 %v237
  %333 = vmatpush1.bf16.msra.mxu0 %v236
  %334 = vmatprep.subr.bf16.mxu0 %v239
  %335 = vmatpush1.bf16.msra.mxu0 %v238
  %336 = vmatprep.subr.bf16.mxu0 %v241
  %337 = vmatpush1.bf16.msra.mxu0 %v240
  %338 = vmatprep.subr.bf16.mxu0 %v243
  %339 = vmatpush1.bf16.msra.mxu0 %v242
  %340 = vmatprep.subr.bf16.mxu0 %v245
  %341 = vmatpush1.bf16.msra.mxu0 %v244
  %342 = vmatprep.subr.bf16.mxu0 %v247
  %343 = vmatpush1.bf16.msra.mxu0 %v246
  %344 = vmatprep.subr.bf16.mxu0 %v249
  %345 = vmatpush1.bf16.msra.mxu0 %v248
  %346 = vmatprep.subr.bf16.mxu0 %v251
  %347 = vmatpush1.bf16.msra.mxu0 %v250
  %348 = vmatprep.subr.bf16.mxu0 %v253
  %349 = vmatpush1.bf16.msra.mxu0 %v252
  %350 = vmatprep.subr.bf16.mxu0 %v255
  %351 = vmatpush1.bf16.msra.mxu0 %v254
  %352 = vmatprep.subr.bf16.mxu0 %v257
  %353 = vmatpush1.bf16.msra.mxu0 %v256
  %354 = vmatprep.subr.bf16.mxu0 %v259
  %355 = vmatpush1.bf16.msra.mxu0 %v258
  %356 = vmatprep.subr.bf16.mxu0 %v261
  %357 = vmatpush1.bf16.msra.mxu0 %v260
  %358 = vmatprep.subr.bf16.mxu0 %v263
  %359 = vmatpush1.bf16.msra.mxu0 %v262
  %360 = vmatprep.subr.bf16.mxu0 %v265
  %361 = vmatpush1.bf16.msra.mxu0 %v264
  %362 = vmatprep.subr.bf16.mxu0 %v267
  %363 = vmatpush1.bf16.msra.mxu0 %v266
  %364 = vmatprep.mubr.bf16.mxu0 %v87
  %365 = vmatmul.mubr.bf16.gmra.mrb[0].mxu0 %v86
  %v366 = vpop.f32.mrb[0].mxu0
  %v367 = vadd.f32 0.0, %v366
  %v368 = vpop.f32.mrb[0].mxu0
  %v369 = vadd.f32 0.0, %v368
  %v370 = vpop.f32.mrb[0].mxu0
  %v371 = vadd.f32 0.0, %v370
  %v372 = vpop.f32.mrb[0].mxu0
  %v373 = vadd.f32 0.0, %v372
  %374 = vdwg.mxu0
  %375 = vmatprep.subr.bf16.mxu0 %v269
  %376 = vmatpush1.bf16.msra.mxu0 %v268
  %377 = vmatprep.subr.bf16.mxu0 %v271
  %378 = vmatpush1.bf16.msra.mxu0 %v270
  %379 = vmatprep.subr.bf16.mxu0 %v273
  %380 = vmatpush1.bf16.msra.mxu0 %v272
  %381 = vmatprep.subr.bf16.mxu0 %v275
  %382 = vmatpush1.bf16.msra.mxu0 %v274
  %383 = vmatprep.subr.bf16.mxu0 %v277
  %384 = vmatpush1.bf16.msra.mxu0 %v276
  %385 = vmatprep.subr.bf16.mxu0 %v279
  %386 = vmatpush1.bf16.msra.mxu0 %v278
  %387 = vmatprep.subr.bf16.mxu0 %v281
  %388 = vmatpush1.bf16.msra.mxu0 %v280
  %389 = vmatprep.subr.bf16.mxu0 %v283
  %390 = vmatpush1.bf16.msra.mxu0 %v282
  %391 = vmatprep.subr.bf16.mxu0 0
  %392 = vmatpush1.bf16.msra.mxu0 0
  %393 = vmatprep.subr.bf16.mxu0 0
  %394 = vmatpush1.bf16.msra.mxu0 0
  %395 = vmatprep.subr.bf16.mxu0 0
  %396 = vmatpush1.bf16.msra.mxu0 0
  %397 = vmatprep.subr.bf16.mxu0 0
  %398 = vmatpush1.bf16.msra.mxu0 0
  %399 = vmatprep.subr.bf16.mxu0 0
  %400 = vmatpush1.bf16.msra.mxu0 0
  %401 = vmatprep.subr.bf16.mxu0 0
  %402 = vmatpush1.bf16.msra.mxu0 0
  %403 = vmatprep.subr.bf16.mxu0 0
  %404 = vmatpush1.bf16.msra.mxu0 0
  %405 = vmatprep.subr.bf16.mxu0 0
  %406 = vmatpush1.bf16.msra.mxu0 0
  %407 = vmatprep.mubr.bf16.mxu0 0
  %408 = vmatmul.mubr.bf16.gmra.mrb[0].mxu0 %v88
  %v409 = vpop.f32.mrb[0].mxu0
  %v410 = vadd.f32 %v367, %v409
  %v411 = vpop.f32.mrb[0].mxu0
  %v412 = vadd.f32 %v369, %v411
  %v413 = vpop.f32.mrb[0].mxu0
  %v414 = vadd.f32 %v371, %v413
  %v415 = vpop.f32.mrb[0].mxu0
  %v416 = vadd.f32 %v373, %v415
  %417 = vdwg.mxu0
  %v418 = vadd.f32 %v20, %v410
  %v419 = vadd.f32 %v21, %v412
  %v420 = vadd.f32 %v22, %v414
  %v421 = vadd.f32 %v23, %v416
  %422 = vst [vmem:[#allocation2] sm:$0xff] %v418
  %423 = vst [vmem:[#allocation2 + $0x8] sm:$0xff] %v419
  %424 = vst [vmem:[#allocation2 + $0x10] sm:$0xff] %v420
  %425 = vst [vmem:[#allocation2 + $0x18] sm:$0xff] %v421
  // Predicated region
  $region14: #{resnet_forward.23} parent=0 // pred_check
    %p426 = pneg %p12
  $region15: #{resnet_forward.23} parent=0 // pred_check_branch
    %428 = sbr.rel (%p426) target = $region17
  $region16: #{resnet_forward.23} parent=0 // pred_region
    %v429 = vld [vmem:[#allocation2] sm:$0xff]
    %v430 = vld [vmem:[#allocation2 + $0x8] sm:$0xff]
    %v431 = vld [vmem:[#allocation2 + $0x10] sm:$0xff]
    %v432 = vld [vmem:[#allocation2 + $0x18] sm:$0xff]
    %v433 = vmax.f32 %v429, 0.0
    %v434 = vmax.f32 %v430, 0.0
    %v435 = vmax.f32 %v431, 0.0
    %v436 = vmax.f32 %v432, 0.0
    %v437 = vpack.c.bf16 %v435, %v433
    %v438 = vpack.c.bf16 %v436, %v434
    %v441 = vunpack.c.l.b16 %v437
    %v442 = vunpack.c.l.b16 %v438
    %v443 = vunpack.c.h.b16 %v437
    %v444 = vunpack.c.h.b16 %v438
    %v445 = vpack.c.b16 %v442, %v441
    %v446 = vpack.c.b16 %v444, %v443
    %449 = vst [vmem:[%s2] sm:$0xff] %v445
    %450 = vst [vmem:[%s2 + $0x8] sm:$0xff] %v446
  $region17: #{resnet_forward.23} parent=0 // pred_fallthru
    _
  // Predicated region
  $region18: #{resnet_forward.23} parent=0 // pred_check
    _
  $region19: #{resnet_forward.23} parent=0 // pred_check_branch
    %452 = sbr.rel (0) target = $region21
  $region20: #{resnet_forward.23} parent=0 // pred_region
    _
  $region21: #{resnet_forward.23} parent=0 // pred_fallthru
    _
  // Predicated region
  $region22: #{resnet_forward.23} parent=0 // pred_check
    _
  $region23: #{resnet_forward.23} parent=0 // pred_check_branch
    %454 = sbr.rel (0) target = $region25
  $region24: #{resnet_forward.23} parent=0 // pred_region
    _
  $region25: #{resnet_forward.23} parent=0 // pred_fallthru
    _

// kernel: resnet_forward.22
$region0: #{resnet_forward.22}
  #allocation0 [shape = 'u32[]', space=smem, size = 0x4, offset = 0x4, fixed_abs, tag = 'smem constant byte address 0x4 - core index']
  #allocation1 [shape = 'u32[144,128]{1,0:T(1,128)}', space=vmem, size = 0x12000, scoped, tag = 'internal scratch']
  #allocation2 [shape = 'f32[16,256]{1,0:T(8,128)}', space=vmem, size = 0x4000, scoped, tag = 'scratch operand']
  %s0 = inlined_call_operand.vmem [shape: bf16[16,128], index: 0, kind: input, shape index: {}]
  %s1 = inlined_call_operand.vmem [shape: bf16[128,256], index: 1, kind: input, shape index: {}]
  %s2 = inlined_call_operand.vmem [shape: bf16[16,256], index: 2, kind: output, shape index: {}]
  %s3 = sld [smem:[#allocation0]]
  $region26: #{resnet_forward.22} parent=0
    _
  %s5 = ssub.s32 1, %s3
  %s6 = scalar_select 0, %s5, %s3
  // Predicated region
  $region2: #{resnet_forward.22} parent=0 // pred_check
    _
  $region3: #{resnet_forward.22} parent=0 // pred_check_branch
    %8 = sbr.rel (0) target = $region5
  $region4: #{resnet_forward.22} parent=0 // pred_region
    _
  $region5: #{resnet_forward.22} parent=0 // pred_fallthru
    _
  // Predicated region
  $region6: #{resnet_forward.22} parent=0 // pred_check
    _
  $region7: #{resnet_forward.22} parent=0 // pred_check_branch
    %10 = sbr.rel (0) target = $region9
  $region8: #{resnet_forward.22} parent=0 // pred_region
    _
  $region9: #{resnet_forward.22} parent=0 // pred_fallthru
    _
  %p12 = scmp.eq.s32.totalorder 0, 0
  // Predicated region
  $region10: #{resnet_forward.22} parent=0 // pred_check
    %p13 = pneg %p12
  $region11: #{resnet_forward.22} parent=0 // pred_check_branch
    %15 = sbr.rel (%p13) target = $region13
  $region12: #{resnet_forward.22} parent=0 // pred_region
    %16 = vst [vmem:[#allocation2] sm:$0xff] 0.0
    %17 = vst [vmem:[#allocation2 + $0x8] sm:$0xff] 0.0
    %18 = vst [vmem:[#allocation2 + $0x10] sm:$0xff] 0.0
    %19 = vst [vmem:[#allocation2 + $0x18] sm:$0xff] 0.0
  $region13: #{resnet_forward.22} parent=0 // pred_fallthru
    _
  %v20 = vld [vmem:[#allocation2] sm:$0xff]
  %v21 = vld [vmem:[#allocation2 + $0x8] sm:$0xff]
  %v22 = vld [vmem:[#allocation2 + $0x10] sm:$0xff]
  %v23 = vld [vmem:[#allocation2 + $0x18] sm:$0xff]
  %v24 = vld [vmem:[%s0] sm:$0xf]
  %v25 = vld [vmem:[%s0 + $0x4] sm:$0xf]
  %v26 = vld [vmem:[%s1] sm:$0xff]
  %v27 = vld [vmem:[%s1 + $0x8] sm:$0xff]
  %v28 = vld [vmem:[%s1 + $0x10] sm:$0xff]
  %v29 = vld [vmem:[%s1 + $0x18] sm:$0xff]
  %v30 = vld [vmem:[%s1 + $0x20] sm:$0xff]
  %v31 = vld [vmem:[%s1 + $0x28] sm:$0xff]
  %v32 = vld [vmem:[%s1 + $0x30] sm:$0xff]
  %v33 = vld [vmem:[%s1 + $0x38] sm:$0xff]
  %v34 = vld [vmem:[%s1 + $0x40] sm:$0xff]
  %v35 = vld [vmem:[%s1 + $0x48] sm:$0xff]
  %v36 = vld [vmem:[%s1 + $0x50] sm:$0xff]
  %v37 = vld [vmem:[%s1 + $0x58] sm:$0xff]
  %v38 = vld [vmem:[%s1 + $0x60] sm:$0xff]
  %v39 = vld [vmem:[%s1 + $0x68] sm:$0xff]
  %v40 = vld [vmem:[%s1 + $0x70] sm:$0xff]
  %v41 = vld [vmem:[%s1 + $0x78] sm:$0xff]
  %v44 = vunpack.c.l.b16 %v24
  %v45 = vunpack.c.l.b16 %v25
  %v46 = vpack.c.b16 %v45, %v44
  %v64 = vunpack.c.l.b16 %v26
  %v65 = vunpack.c.h.b16 %v26
  %v66 = vunpack.c.l.b16 %v27
  %v67 = vunpack.c.h.b16 %v27
  %v68 = vunpack.c.l.b16 %v28
  %v69 = vunpack.c.h.b16 %v28
  %v70 = vunpack.c.l.b16 %v29
  %v71 = vunpack.c.h.b16 %v29
  %v72 = vunpack.c.l.b16 %v30
  %v73 = vunpack.c.h.b16 %v30
  %v74 = vunpack.c.l.b16 %v31
  %v75 = vunpack.c.h.b16 %v31
  %v76 = vunpack.c.l.b16 %v32
  %v77 = vunpack.c.h.b16 %v32
  %v78 = vunpack.c.l.b16 %v33
  %v79 = vunpack.c.h.b16 %v33
  %v80 = vunpack.c.l.b16 %v34
  %v81 = vunpack.c.h.b16 %v34
  %v82 = vunpack.c.l.b16 %v35
  %v83 = vunpack.c.h.b16 %v35
  %v84 = vunpack.c.l.b16 %v36
  %v85 = vunpack.c.h.b16 %v36
  %v86 = vunpack.c.l.b16 %v37
  %v87 = vunpack.c.h.b16 %v37
  %v88 = vunpack.c.l.b16 %v38
  %v89 = vunpack.c.h.b16 %v38
  %v90 = vunpack.c.l.b16 %v39
  %v91 = vunpack.c.h.b16 %v39
  %v92 = vunpack.c.l.b16 %v40
  %v93 = vunpack.c.h.b16 %v40
  %v94 = vunpack.c.l.b16 %v41
  %v95 = vunpack.c.h.b16 %v41
  %v96 = vpack.c.b16 %v66, %v64
  %v97 = vpack.c.b16 %v67, %v65
  %v98 = vpack.c.b16 %v70, %v68
  %v99 = vpack.c.b16 %v71, %v69
  %v100 = vpack.c.b16 %v74, %v72
  %v101 = vpack.c.b16 %v75, %v73
  %v102 = vpack.c.b16 %v78, %v76
  %v103 = vpack.c.b16 %v79, %v77
  %v104 = vpack.c.b16 %v82, %v80
  %v105 = vpack.c.b16 %v83, %v81
  %v106 = vpack.c.b16 %v86, %v84
  %v107 = vpack.c.b16 %v87, %v85
  %v108 = vpack.c.b16 %v90, %v88
  %v109 = vpack.c.b16 %v91, %v89
  %v110 = vpack.c.b16 %v94, %v92
  %v111 = vpack.c.b16 %v95, %v93
  %128 = vmatprep.subr.bf16.mxu0 %v97
  %129 = vmatpush1.bf16.msra.mxu0 %v96
  %130 = vmatprep.subr.bf16.mxu0 %v99
  %131 = vmatpush1.bf16.msra.mxu0 %v98
  %132 = vmatprep.subr.bf16.mxu0 %v101
  %133 = vmatpush1.bf16.msra.mxu0 %v100
  %134 = vmatprep.subr.bf16.mxu0 %v103
  %135 = vmatpush1.bf16.msra.mxu0 %v102
  %136 = vmatprep.subr.bf16.mxu0 %v105
  %137 = vmatpush1.bf16.msra.mxu0 %v104
  %138 = vmatprep.subr.bf16.mxu0 %v107
  %139 = vmatpush1.bf16.msra.mxu0 %v106
  %140 = vmatprep.subr.bf16.mxu0 %v109
  %141 = vmatpush1.bf16.msra.mxu0 %v108
  %142 = vmatprep.subr.bf16.mxu0 %v111
  %143 = vmatpush1.bf16.msra.mxu0 %v110
  %144 = vmatprep.subr.bf16.mxu0 0
  %145 = vmatpush1.bf16.msra.mxu0 0
  %146 = vmatprep.subr.bf16.mxu0 0
  %147 = vmatpush1.bf16.msra.mxu0 0
  %148 = vmatprep.subr.bf16.mxu0 0
  %149 = vmatpush1.bf16.msra.mxu0 0
  %150 = vmatprep.subr.bf16.mxu0 0
  %151 = vmatpush1.bf16.msra.mxu0 0
  %152 = vmatprep.subr.bf16.mxu0 0
  %153 = vmatpush1.bf16.msra.mxu0 0
  %154 = vmatprep.subr.bf16.mxu0 0
  %155 = vmatpush1.bf16.msra.mxu0 0
  %156 = vmatprep.subr.bf16.mxu0 0
  %157 = vmatpush1.bf16.msra.mxu0 0
  %158 = vmatprep.subr.bf16.mxu0 0
  %159 = vmatpush1.bf16.msra.mxu0 0
  %160 = vmatprep.mubr.bf16.mxu0 0
  %161 = vmatmul.mubr.bf16.gmra.mrb[0].mxu0 %v46
  %v162 = vpop.f32.mrb[0].mxu0
  %v163 = vadd.f32 0.0, %v162
  %v164 = vpop.f32.mrb[0].mxu0
  %v165 = vadd.f32 0.0, %v164
  %v166 = vpop.f32.mrb[0].mxu0
  %v167 = vadd.f32 0.0, %v166
  %v168 = vpop.f32.mrb[0].mxu0
  %v169 = vadd.f32 0.0, %v168
  %170 = vdwg.mxu0
  %v171 = vadd.f32 %v20, %v163
  %v172 = vadd.f32 %v21, %v165
  %v173 = vadd.f32 %v22, %v167
  %v174 = vadd.f32 %v23, %v169
  %175 = vst [vmem:[#allocation2] sm:$0xff] %v171
  %176 = vst [vmem:[#allocation2 + $0x8] sm:$0xff] %v172
  %177 = vst [vmem:[#allocation2 + $0x10] sm:$0xff] %v173
  %178 = vst [vmem:[#allocation2 + $0x18] sm:$0xff] %v174
  // Predicated region
  $region14: #{resnet_forward.22} parent=0 // pred_check
    %p179 = pneg %p12
  $region15: #{resnet_forward.22} parent=0 // pred_check_branch
    %181 = sbr.rel (%p179) target = $region17
  $region16: #{resnet_forward.22} parent=0 // pred_region
    %v182 = vld [vmem:[#allocation2] sm:$0xff]
    %v183 = vld [vmem:[#allocation2 + $0x8] sm:$0xff]
    %v184 = vld [vmem:[#allocation2 + $0x10] sm:$0xff]
    %v185 = vld [vmem:[#allocation2 + $0x18] sm:$0xff]
    %v186 = vpack.c.bf16 %v184, %v182
    %v187 = vpack.c.bf16 %v185, %v183
    %v190 = vunpack.c.l.b16 %v186
    %v191 = vunpack.c.l.b16 %v187
    %v192 = vunpack.c.h.b16 %v186
    %v193 = vunpack.c.h.b16 %v187
    %v194 = vpack.c.b16 %v191, %v190
    %v195 = vpack.c.b16 %v193, %v192
    %198 = vst [vmem:[%s2] sm:$0xff] %v194
    %199 = vst [vmem:[%s2 + $0x8] sm:$0xff] %v195
  $region17: #{resnet_forward.22} parent=0 // pred_fallthru
    _
  // Predicated region
  $region18: #{resnet_forward.22} parent=0 // pred_check
    _
  $region19: #{resnet_forward.22} parent=0 // pred_check_branch
    %201 = sbr.rel (0) target = $region21
  $region20: #{resnet_forward.22} parent=0 // pred_region
    _
  $region21: #{resnet_forward.22} parent=0 // pred_fallthru
    _
  // Predicated region
  $region22: #{resnet_forward.22} parent=0 // pred_check
    _
  $region23: #{resnet_forward.22} parent=0 // pred_check_branch
    %203 = sbr.rel (0) target = $region25
  $region24: #{resnet_forward.22} parent=0 // pred_region
    _
  $region25: #{resnet_forward.22} parent=0 // pred_fallthru
    _

// kernel: resnet_forward.24
$region0: #{resnet_forward.24}
  #allocation0 [shape = 'u32[]', space=smem, size = 0x4, offset = 0x4, fixed_abs, tag = 'smem constant byte address 0x4 - core index']
  #allocation1 [shape = 'u32[144,128]{1,0:T(1,128)}', space=vmem, size = 0x12000, scoped, tag = 'internal scratch']
  #allocation2 [shape = 'f32[16,256]{1,0:T(8,128)}', space=vmem, size = 0x4000, scoped, tag = 'scratch operand']
  %s0 = inlined_call_operand.vmem [shape: bf16[16,768], index: 0, kind: input, shape index: {}]
  %s1 = inlined_call_operand.vmem [shape: bf16[768,256], index: 1, kind: input, shape index: {}]
  %s2 = inlined_call_operand.vmem [shape: bf16[16,256], index: 2, kind: input, shape index: {}]
  %s3 = inlined_call_operand.vmem [shape: bf16[16,256], index: 3, kind: output, shape index: {}]
  %s4 = sld [smem:[#allocation0]]
  $region79: #{resnet_forward.24} parent=0
    _
  %s6 = ssub.s32 1, %s4
  %s7 = scalar_select 0, %s6, %s4
  $region1: #{resnet_forward.24} parent=0
    #allocation3 [shape = 'u8[24576]{0}', space=vmem, size = 0x6000, scoped, tag = 'input window, operand 0']
    loop: start=0, step=1, limit=4
    $region2: #{resnet_forward.24} parent=1 // loop_pre_header
      _
    $region3: #{resnet_forward.24} parent=1 // loop_header
      %s9 = sphi 0, %s13
      %p10 = scmp.ge.s32.totalorder %s9, 4
      %s16 = sphi 0, %s35
      %s17 = sphi 0, %s31
      %s18 = sphi 0, %s27
      %s19 = sphi 0, %s16
      %s20 = sphi 0, %s17
      %s21 = sphi 0, %s18
      %s22 = sphi 0, %s19
      %s23 = sphi 0, %s20
      %s24 = sphi 0, %s21
      %s40 = sphi 0, %s42
      %s43 = sphi 0, %s40
      %s44 = sphi 0, %s43
      %s60 = sphi 0, %s44
      %s68 = sphi 0, %s70
      %s71 = sphi 0, %s68
      %s72 = sphi 0, %s71
      %s88 = sphi 0, %s72
      %s96 = sphi 0, %s98
      %s99 = sphi 0, %s96
      %s100 = sphi 0, %s99
      %s116 = sphi 0, %s100
      %s124 = sphi 0, %s126
      %s127 = sphi 0, %s124
      %s128 = sphi 0, %s127
      %s144 = sphi 0, %s128
    $region4: #{resnet_forward.24} parent=1 // loop_header_branch
      %12 = sbr.rel (%p10) target = $region8
    $region5: #{resnet_forward.24} parent=1 // loop_body
      %s14 = ssub.s32 %s9, 1
      %s15 = ssub.s32 %s9, 2
      %s25 = sadd.s32 1, %s18
      %p26 = scmp.ge.s32.totalorder %s25, 2
      %s27 = scalar_select %p26, 0, %s25
      %s28 = sadd.s32 1, %s17
      %s29 = scalar_select %p26, %s28, %s17
      %p30 = scmp.ge.s32.totalorder %s29, 1
      %s31 = scalar_select %p30, 0, %s29
      %s32 = sadd.s32 1, %s16
      %s33 = scalar_select %p30, %s32, %s16
      %p34 = scmp.ge.s32.totalorder %s33, 1
      %s35 = scalar_select %p34, 0, %s33
      %s36 = ssub.s32 %s16, %s35
      %s37 = ssub.s32 %s18, %s27
      %s38 = sor.u32 %s36, %s37
      %p39 = scmp.eq.s32.totalorder %s38, 0
      %s41 = sadd.s32 %s40, 1
      %s42 = scalar_select %p39, %s40, %s41
      %p45 = pneg %p39
      %p46 = scmp.eq.s32.totalorder %s9, 1
      %p47 = por %p45, %p46
      %p48 = scmp.ne.s32.totalorder %s40, %s43
      %p49 = scmp.eq.s32.totalorder %s9, 0
      %p50 = por %p48, %p49
      %p51 = scmp.ne.s32.totalorder %s40, %s43
      %p52 = scmp.eq.s32.totalorder %s14, 1
      %p53 = por %p51, %p52
      %p54 = scmp.ne.s32.totalorder %s43, %s44
      %p55 = scmp.eq.s32.totalorder %s14, 0
      %p56 = por %p54, %p55
      %p57 = scmp.ne.s32.totalorder %s43, %s44
      %p58 = scmp.eq.s32.totalorder %s15, 1
      %p59 = por %p57, %p58
      %p61 = scmp.ne.s32.totalorder %s44, %s60
      %p62 = scmp.eq.s32.totalorder %s15, 0
      %p63 = por %p61, %p62
      %s64 = ssub.s32 %s18, %s27
      %s65 = ssub.s32 %s17, %s31
      %s66 = sor.u32 %s64, %s65
      %p67 = scmp.eq.s32.totalorder %s66, 0
      %s69 = sadd.s32 %s68, 1
      %s70 = scalar_select %p67, %s68, %s69
      %p73 = pneg %p67
      %p74 = scmp.eq.s32.totalorder %s9, 1
      %p75 = por %p73, %p74
      %p76 = scmp.ne.s32.totalorder %s68, %s71
      %p77 = scmp.eq.s32.totalorder %s9, 0
      %p78 = por %p76, %p77
      %p79 = scmp.ne.s32.totalorder %s68, %s71
      %p80 = scmp.eq.s32.totalorder %s14, 1
      %p81 = por %p79, %p80
      %p82 = scmp.ne.s32.totalorder %s71, %s72
      %p83 = scmp.eq.s32.totalorder %s14, 0
      %p84 = por %p82, %p83
      %p85 = scmp.ne.s32.totalorder %s71, %s72
      %p86 = scmp.eq.s32.totalorder %s15, 1
      %p87 = por %p85, %p86
      %p89 = scmp.ne.s32.totalorder %s72, %s88
      %p90 = scmp.eq.s32.totalorder %s15, 0
      %p91 = por %p89, %p90
      %s92 = ssub.s32 %s16, %s35
      %s93 = ssub.s32 %s17, %s31
      %s94 = sor.u32 %s92, %s93
      %p95 = scmp.eq.s32.totalorder %s94, 0
      %s97 = sadd.s32 %s96, 1
      %s98 = scalar_select %p95, %s96, %s97
      %p101 = pneg %p95
      %p102 = scmp.eq.s32.totalorder %s9, 1
      %p103 = por %p101, %p102
      %p104 = scmp.ne.s32.totalorder %s96, %s99
      %p105 = scmp.eq.s32.totalorder %s9, 0
      %p106 = por %p104, %p105
      %p107 = scmp.ne.s32.totalorder %s96, %s99
      %p108 = scmp.eq.s32.totalorder %s14, 1
      %p109 = por %p107, %p108
      %p110 = scmp.ne.s32.totalorder %s99, %s100
      %p111 = scmp.eq.s32.totalorder %s14, 0
      %p112 = por %p110, %p111
      %p113 = scmp.ne.s32.totalorder %s99, %s100
      %p114 = scmp.eq.s32.totalorder %s15, 1
      %p115 = por %p113, %p114
      %p117 = scmp.ne.s32.totalorder %s100, %s116
      %p118 = scmp.eq.s32.totalorder %s15, 0
      %p119 = por %p117, %p118
      %s120 = ssub.s32 %s16, %s35
      %s121 = ssub.s32 %s17, %s31
      %s122 = sor.u32 %s120, %s121
      %p123 = scmp.eq.s32.totalorder %s122, 0
      %s125 = sadd.s32 %s124, 1
      %s126 = scalar_select %p123, %s124, %s125
      %p129 = pneg %p123
      %p130 = scmp.eq.s32.totalorder %s9, 1
      %p131 = por %p129, %p130
      %p132 = scmp.ne.s32.totalorder %s124, %s127
      %p133 = scmp.eq.s32.totalorder %s9, 0
      %p134 = por %p132, %p133
      %p135 = scmp.ne.s32.totalorder %s124, %s127
      %p136 = scmp.eq.s32.totalorder %s14, 1
      %p137 = por %p135, %p136
      %p138 = scmp.ne.s32.totalorder %s127, %s128
      %p139 = scmp.eq.s32.totalorder %s14, 0
      %p140 = por %p138, %p139
      %p141 = scmp.ne.s32.totalorder %s127, %s128
      %p142 = scmp.eq.s32.totalorder %s15, 1
      %p143 = por %p141, %p142
      %p145 = scmp.ne.s32.totalorder %s128, %s144
      %p146 = scmp.eq.s32.totalorder %s15, 0
      %p147 = por %p145, %p146
      %p148 = scmp.le.s32.totalorder 1, %s9
      %p149 = scmp.lt.s32.totalorder %s9, 3
      %p150 = pnand %p148, %p149
      %p151 = pneg %p150
      // Predicated region
      $region9: #{resnet_forward.24} parent=5 // pred_check
        _
      $region10: #{resnet_forward.24} parent=5 // pred_check_branch
        %153 = sbr.rel (%p150) target = $region12
      $region11: #{resnet_forward.24} parent=5 // pred_region
        %s154 = ssub.s32 %s9, 1
        // Predicated region
        $region13: #{resnet_forward.24} parent=11 // pred_check
          %p155 = pneg %p112
        $region14: #{resnet_forward.24} parent=11 // pred_check_branch
          %157 = sbr.rel (%p155) target = $region16
        $region15: #{resnet_forward.24} parent=11 // pred_region
          %s158 = smul.u32 2, %s19
          %s159 = smul.u32 2, %s20
          %p160 = scmp.lt.s32.totalorder %s158, 1
          %s161 = scalar_select %p160, %s158, 1
          %p162 = scmp.lt.s32.totalorder %s159, 1
          %s163 = scalar_select %p162, %s159, 1
          %s164 = smul.addr %s161, 2
          %s165 = sadd.s32 %s163, %s164
          %s166 = smul.addr %s165, 4
          %s167 = scalar_lea.vmem %s2, %s166
          %s168 = smul.u32 2, %s19
          %s169 = smul.u32 2, %s20
        $region16: #{resnet_forward.24} parent=11 // pred_fallthru
          _
      $region12: #{resnet_forward.24} parent=5 // pred_fallthru
        _
      %p170 = scmp.lt.s32.totalorder %s9, 2
      // Predicated region
      $region17: #{resnet_forward.24} parent=5 // pred_check
        %p171 = pneg %p170
      $region18: #{resnet_forward.24} parent=5 // pred_check_branch
        %173 = sbr.rel (%p171) target = $region20
      $region19: #{resnet_forward.24} parent=5 // pred_region
        // Predicated region
        $region21: #{resnet_forward.24} parent=19 // pred_check
          %p174 = pneg %p50
        $region22: #{resnet_forward.24} parent=19 // pred_check_branch
          %176 = sbr.rel (%p174) target = $region24
        $region23: #{resnet_forward.24} parent=19 // pred_region
          %s177 = sand.u32 %s40, 1
          %s178 = sand.u32 %s40, 1
          %s179 = smul.addr %s178, 24
          %s180 = scalar_lea.vmem [#allocation3], %s179
          %s181 = smul.u32 2, %s16
          %s182 = smul.u32 3, %s18
          %s183 = smul.addr %s181, 6
          %s184 = sadd.s32 %s182, %s183
          %s185 = smul.addr %s184, 4
          %s186 = scalar_lea.vmem %s0, %s185
          // Predicated region
          $region25: #{resnet_forward.24} parent=23 // pred_check
            _
          $region26: #{resnet_forward.24} parent=23 // pred_check_branch
            %188 = sbr.rel (0) target = $region28
          $region27: #{resnet_forward.24} parent=23 // pred_region
            // Predicated region
            $region29: #{resnet_forward.24} parent=27 // pred_check
              _
            $region30: #{resnet_forward.24} parent=27 // pred_check_branch
              %190 = sbr.rel (0) target = $region32
            $region31: #{resnet_forward.24} parent=27 // pred_region
              %s191 = scalar_lea.vmem %s186, 8
              %s192 = scalar_lea.vmem %s180, 8 [#allocation3]
              loop: start=0, step=1, limit=1
              $region33: #{resnet_forward.24} parent=31 // loop_pre_header
                _
              $region34: #{resnet_forward.24} parent=31 // loop_header
                %s194 = sphi 0, %s198
                %p195 = scmp.ge.s32.totalorder %s194, 1
                %s199 = sphi %s186, %s186
                %s200 = sphi %s180, %s180
              $region35: #{resnet_forward.24} parent=31 // loop_header_branch
                %197 = sbr.rel (%p195) target = $region39
              $region36: #{resnet_forward.24} parent=31 // loop_body
                %v201 = vld [vmem:[%s199] sm:$0xff]
                %202 = vst [vmem:[%s200] sm:$0xff] %v201
                %v203 = vld [vmem:[%s199 + $0x18] sm:$0xff]
                %204 = vst [vmem:[%s200 + $0xc] sm:$0xff] %v203
              $region37: #{resnet_forward.24} parent=31 // loop_footer
                %s198 = sadd.s32 1, %s194
              $region38: #{resnet_forward.24} parent=31 // loop_footer_branch
                %193 = sbr.rel target = $region34
              $region39: #{resnet_forward.24} parent=31 // loop_exit
                _
              loop: start=0, step=1, limit=1
              $region40: #{resnet_forward.24} parent=31 // loop_pre_header
                _
              $region41: #{resnet_forward.24} parent=31 // loop_header
                %s207 = sphi 0, %s211
                %p208 = scmp.ge.s32.totalorder %s207, 1
                %s212 = sphi %s191, %s191
                %s213 = sphi %s192, %s192
              $region42: #{resnet_forward.24} parent=31 // loop_header_branch
                %210 = sbr.rel (%p208) target = $region46
              $region43: #{resnet_forward.24} parent=31 // loop_body
                %v214 = vld [vmem:[%s212] sm:$0xf]
                %215 = vst [vmem:[%s213] sm:$0xf] %v214
                %v216 = vld [vmem:[%s212 + $0x18] sm:$0xf]
                %217 = vst [vmem:[%s213 + $0xc] sm:$0xf] %v216
              $region44: #{resnet_forward.24} parent=31 // loop_footer
                %s211 = sadd.s32 1, %s207
              $region45: #{resnet_forward.24} parent=31 // loop_footer_branch
                %206 = sbr.rel target = $region41
              $region46: #{resnet_forward.24} parent=31 // loop_exit
                _
            $region32: #{resnet_forward.24} parent=27 // pred_fallthru
              _
          $region28: #{resnet_forward.24} parent=23 // pred_fallthru
            _
          %218 = vnop
        $region24: #{resnet_forward.24} parent=19 // pred_fallthru
          _
        // Predicated region
        $region47: #{resnet_forward.24} parent=19 // pred_check
          %p219 = pneg %p78
        $region48: #{resnet_forward.24} parent=19 // pred_check_branch
          %221 = sbr.rel (%p219) target = $region50
        $region49: #{resnet_forward.24} parent=19 // pred_region
          %s222 = smul.u32 48, %s18
          %s223 = smul.u32 2, %s17
          %p224 = scmp.lt.s32.totalorder %s222, 95
          %s225 = scalar_select %p224, %s222, 95
          %p226 = scmp.lt.s32.totalorder %s223, 1
          %s227 = scalar_select %p226, %s223, 1
          %s228 = smul.addr %s225, 2
          %s229 = sadd.s32 %s227, %s228
          %s230 = smul.addr %s229, 4
          %s231 = scalar_lea.vmem %s1, %s230
          %s232 = smul.u32 48, %s18
          %s233 = smul.u32 2, %s17
        $region50: #{resnet_forward.24} parent=19 // pred_fallthru
          _
      $region20: #{resnet_forward.24} parent=5 // pred_fallthru
        _
      %p234 = scmp.le.s32.totalorder 1, %s9
      %p235 = scmp.lt.s32.totalorder %s9, 3
      %p236 = pnand %p234, %p235
      %p237 = pneg %p236
      // Predicated region
      $region51: #{resnet_forward.24} parent=5 // pred_check
        _
      $region52: #{resnet_forward.24} parent=5 // pred_check_branch
        %239 = sbr.rel (%p236) target = $region54
      $region53: #{resnet_forward.24} parent=5 // pred_region
        %s240 = ssub.s32 %s9, 1
        %s241 = sand.u32 %s43, 1
        %s242 = sand.u32 %s43, 1
        %s243 = smul.addr %s242, 24
        %s244 = scalar_lea.vmem [#allocation3], %s243
        // Predicated region
        $region55: #{resnet_forward.24} parent=53 // pred_check
          %p245 = pneg %p56
        $region56: #{resnet_forward.24} parent=53 // pred_check_branch
          %247 = sbr.rel (%p245) target = $region58
        $region57: #{resnet_forward.24} parent=53 // pred_region
          _
        $region58: #{resnet_forward.24} parent=53 // pred_fallthru
          _
        %s248 = sand.u32 %s43, 1
        %s249 = sand.u32 %s43, 1
        %s250 = smul.addr %s249, 24
        %s251 = scalar_lea.vmem [#allocation3], %s250
        %p252 = pneg %p56
        %p253 = pneg %p53
        %s254 = smul.u32 48, %s21
        %s255 = smul.u32 2, %s20
        %p256 = scmp.lt.s32.totalorder %s254, 95
        %s257 = scalar_select %p256, %s254, 95
        %p258 = scmp.lt.s32.totalorder %s255, 1
        %s259 = scalar_select %p258, %s255, 1
        %s260 = smul.addr %s257, 2
        %s261 = sadd.s32 %s259, %s260
        %s262 = smul.addr %s261, 4
        %s263 = scalar_lea.vmem %s1, %s262
        %p264 = pneg %p84
        %p265 = pneg %p81
        %s266 = smul.u32 2, %s19
        %s267 = smul.u32 2, %s20
        %p268 = scmp.lt.s32.totalorder %s266, 1
        %s269 = scalar_select %p268, %s266, 1
        %p270 = scmp.lt.s32.totalorder %s267, 1
        %s271 = scalar_select %p270, %s267, 1
        %s272 = smul.addr %s269, 2
        %s273 = sadd.s32 %s271, %s272
        %s274 = smul.addr %s273, 4
        %s275 = scalar_lea.vmem %s2, %s274
        %p276 = pneg %p112
        %p277 = pneg %p109
        %p278 = pneg %p140
        %p279 = pneg %p137
        %s280 = smul.u32 2, %s19
        %s281 = smul.u32 2, %s20
        %p282 = scmp.lt.s32.totalorder %s280, 1
        %s283 = scalar_select %p282, %s280, 1
        %p284 = scmp.lt.s32.totalorder %s281, 1
        %s285 = scalar_select %p284, %s281, 1
        %s286 = smul.addr %s283, 2
        %s287 = sadd.s32 %s285, %s286
        %s288 = smul.addr %s287, 4
        %s289 = scalar_lea.vmem %s3, %s288
        %s290 = smul.u32 2, %s19
        %s291 = smul.u32 3, %s21
        %s292 = smul.u32 48, %s21
        %s293 = smul.u32 2, %s20
        %p294 = scmp.lt.s32.totalorder %s292, 95
        %s295 = scalar_select %p294, %s292, 95
        %p296 = scmp.lt.s32.totalorder %s293, 1
        %s297 = scalar_select %p296, %s293, 1
        %s298 = smul.addr %s295, 2
        %s299 = sadd.s32 %s297, %s298
        %s300 = smul.addr %s299, 4
        %s301 = scalar_lea.vmem %s1, %s300
        %s302 = smul.u32 48, %s21
        %s303 = smul.u32 2, %s20
        %s304 = smul.u32 2, %s19
        %s305 = smul.u32 2, %s20
        %p306 = scmp.lt.s32.totalorder %s304, 1
        %s307 = scalar_select %p306, %s304, 1
        %p308 = scmp.lt.s32.totalorder %s305, 1
        %s309 = scalar_select %p308, %s305, 1
        %s310 = smul.addr %s307, 2
        %s311 = sadd.s32 %s309, %s310
        %s312 = smul.addr %s311, 4
        %s313 = scalar_lea.vmem %s2, %s312
        %s314 = smul.u32 2, %s19
        %s315 = smul.u32 2, %s20
        %s316 = smul.u32 2, %s19
        %s317 = smul.u32 2, %s20
        %p318 = scmp.lt.s32.totalorder %s316, 1
        %s319 = scalar_select %p318, %s316, 1
        %p320 = scmp.lt.s32.totalorder %s317, 1
        %s321 = scalar_select %p320, %s317, 1
        %s322 = smul.addr %s319, 2
        %s323 = sadd.s32 %s321, %s322
        %s324 = smul.addr %s323, 4
        %s325 = scalar_lea.vmem %s3, %s324
        %s326 = smul.u32 2, %s19
        %s327 = smul.u32 2, %s20
        %p329 = scmp.eq.s32.totalorder %s21, 0
        // Predicated region
        $region59: #{resnet_forward.24} parent=53 // pred_check
          %p330 = pneg %p329
        $region60: #{resnet_forward.24} parent=53 // pred_check_branch
          %332 = sbr.rel (%p330) target = $region62
        $region61: #{resnet_forward.24} parent=53 // pred_region
          %333 = vst [vmem:[#allocation2] sm:$0xff] 0.0
          %334 = vst [vmem:[#allocation2 + $0x8] sm:$0xff] 0.0
          %335 = vst [vmem:[#allocation2 + $0x10] sm:$0xff] 0.0
          %336 = vst [vmem:[#allocation2 + $0x18] sm:$0xff] 0.0
        $region62: #{resnet_forward.24} parent=53 // pred_fallthru
          _
        %v337 = vld [vmem:[#allocation2] sm:$0xff]
        %v338 = vld [vmem:[#allocation2 + $0x8] sm:$0xff]
        %v339 = vld [vmem:[#allocation2 + $0x10] sm:$0xff]
        %v340 = vld [vmem:[#allocation2 + $0x18] sm:$0xff]
        %v341 = vld [vmem:[%s244] sm:$0xff]
        %v342 = vld [vmem:[%s244 + $0x8] sm:$0xf]
        %v343 = vld [vmem:[%s244 + $0xc] sm:$0xff]
        %v344 = vld [vmem:[%s244 + $0x14] sm:$0xf]
        %v345 = vld [vmem:[%s301] sm:$0xff]
        %v346 = vld [vmem:[%s301 + $0x8] sm:$0xff]
        %v347 = vld [vmem:[%s301 + $0x10] sm:$0xff]
        %v348 = vld [vmem:[%s301 + $0x18] sm:$0xff]
        %v349 = vld [vmem:[%s301 + $0x20] sm:$0xff]
        %v350 = vld [vmem:[%s301 + $0x28] sm:$0xff]
        %v351 = vld [vmem:[%s301 + $0x30] sm:$0xff]
        %v352 = vld [vmem:[%s301 + $0x38] sm:$0xff]
        %v353 = vld [vmem:[%s301 + $0x40] sm:$0xff]
        %v354 = vld [vmem:[%s301 + $0x48] sm:$0xff]
        %v355 = vld [vmem:[%s301 + $0x50] sm:$0xff]
        %v356 = vld [vmem:[%s301 + $0x58] sm:$0xff]
        %v357 = vld [vmem:[%s301 + $0x60] sm:$0xff]
        %v358 = vld [vmem:[%s301 + $0x68] sm:$0xff]
        %v359 = vld [vmem:[%s301 + $0x70] sm:$0xff]
        %v360 = vld [vmem:[%s301 + $0x78] sm:$0xff]
        %v361 = vld [vmem:[%s301 + $0x80] sm:$0xff]
        %v362 = vld [vmem:[%s301 + $0x88] sm:$0xff]
        %v363 = vld [vmem:[%s301 + $0x90] sm:$0xff]
        %v364 = vld [vmem:[%s301 + $0x98] sm:$0xff]
        %v365 = vld [vmem:[%s301 + $0xa0] sm:$0xff]
        %v366 = vld [vmem:[%s301 + $0xa8] sm:$0xff]
        %v367 = vld [vmem:[%s301 + $0xb0] sm:$0xff]
        %v368 = vld [vmem:[%s301 + $0xb8] sm:$0xff]
        %v369 = vld [vmem:[%s301 + $0xc0] sm:$0xff]
        %v370 = vld [vmem:[%s301 + $0xc8] sm:$0xff]
        %v371 = vld [vmem:[%s301 + $0xd0] sm:$0xff]
        %v372 = vld [vmem:[%s301 + $0xd8] sm:$0xff]
        %v373 = vld [vmem:[%s301 + $0xe0] sm:$0xff]
        %v374 = vld [vmem:[%s301 + $0xe8] sm:$0xff]
        %v375 = vld [vmem:[%s301 + $0xf0] sm:$0xff]
        %v376 = vld [vmem:[%s301 + $0xf8] sm:$0xff]
        %v377 = vld [vmem:[%s301 + $0x100] sm:$0xff]
        %v378 = vld [vmem:[%s301 + $0x108] sm:$0xff]
        %v379 = vld [vmem:[%s301 + $0x110] sm:$0xff]
        %v380 = vld [vmem:[%s301 + $0x118] sm:$0xff]
        %v381 = vld [vmem:[%s301 + $0x120] sm:$0xff]
        %v382 = vld [vmem:[%s301 + $0x128] sm:$0xff]
        %v383 = vld [vmem:[%s301 + $0x130] sm:$0xff]
        %v384 = vld [vmem:[%s301 + $0x138] sm:$0xff]
        %v385 = vld [vmem:[%s301 + $0x140] sm:$0xff]
        %v386 = vld [vmem:[%s301 + $0x148] sm:$0xff]
        %v387 = vld [vmem:[%s301 + $0x150] sm:$0xff]
        %v388 = vld [vmem:[%s301 + $0x158] sm:$0xff]
        %v389 = vld [vmem:[%s301 + $0x160] sm:$0xff]
        %v390 = vld [vmem:[%s301 + $0x168] sm:$0xff]
        %v391 = vld [vmem:[%s301 + $0x170] sm:$0xff]
        %v392 = vld [vmem:[%s301 + $0x178] sm:$0xff]
        %v397 = vunpack.c.l.b16 %v341
        %v398 = vunpack.c.h.b16 %v341
        %v399 = vunpack.c.l.b16 %v342
        %v400 = vunpack.c.l.b16 %v343
        %v401 = vunpack.c.h.b16 %v343
        %v402 = vunpack.c.l.b16 %v344
        %v403 = vpack.c.b16 %v400, %v397
        %v404 = vpack.c.b16 %v401, %v398
        %v405 = vpack.c.b16 %v402, %v399
        %v457 = vunpack.c.l.b16 %v345
        %v458 = vunpack.c.h.b16 %v345
        %v459 = vunpack.c.l.b16 %v346
        %v460 = vunpack.c.h.b16 %v346
        %v461 = vunpack.c.l.b16 %v347
        %v462 = vunpack.c.h.b16 %v347
        %v463 = vunpack.c.l.b16 %v348
        %v464 = vunpack.c.h.b16 %v348
        %v465 = vunpack.c.l.b16 %v349
        %v466 = vunpack.c.h.b16 %v349
        %v467 = vunpack.c.l.b16 %v350
        %v468 = vunpack.c.h.b16 %v350
        %v469 = vunpack.c.l.b16 %v351
        %v470 = vunpack.c.h.b16 %v351
        %v471 = vunpack.c.l.b16 %v352
        %v472 = vunpack.c.h.b16 %v352
        %v473 = vunpack.c.l.b16 %v353
        %v474 = vunpack.c.h.b16 %v353
        %v475 = vunpack.c.l.b16 %v354
        %v476 = vunpack.c.h.b16 %v354
        %v477 = vunpack.c.l.b16 %v355
        %v478 = vunpack.c.h.b16 %v355
        %v479 = vunpack.c.l.b16 %v356
        %v480 = vunpack.c.h.b16 %v356
        %v481 = vunpack.c.l.b16 %v357
        %v482 = vunpack.c.h.b16 %v357
        %v483 = vunpack.c.l.b16 %v358
        %v484 = vunpack.c.h.b16 %v358
        %v485 = vunpack.c.l.b16 %v359
        %v486 = vunpack.c.h.b16 %v359
        %v487 = vunpack.c.l.b16 %v360
        %v488 = vunpack.c.h.b16 %v360
        %v489 = vunpack.c.l.b16 %v361
        %v490 = vunpack.c.h.b16 %v361
        %v491 = vunpack.c.l.b16 %v362
        %v492 = vunpack.c.h.b16 %v362
        %v493 = vunpack.c.l.b16 %v363
        %v494 = vunpack.c.h.b16 %v363
        %v495 = vunpack.c.l.b16 %v364
        %v496 = vunpack.c.h.b16 %v364
        %v497 = vunpack.c.l.b16 %v365
        %v498 = vunpack.c.h.b16 %v365
        %v499 = vunpack.c.l.b16 %v366
        %v500 = vunpack.c.h.b16 %v366
        %v501 = vunpack.c.l.b16 %v367
        %v502 = vunpack.c.h.b16 %v367
        %v503 = vunpack.c.l.b16 %v368
        %v504 = vunpack.c.h.b16 %v368
        %v505 = vunpack.c.l.b16 %v369
        %v506 = vunpack.c.h.b16 %v369
        %v507 = vunpack.c.l.b16 %v370
        %v508 = vunpack.c.h.b16 %v370
        %v509 = vunpack.c.l.b16 %v371
        %v510 = vunpack.c.h.b16 %v371
        %v511 = vunpack.c.l.b16 %v372
        %v512 = vunpack.c.h.b16 %v372
        %v513 = vunpack.c.l.b16 %v373
        %v514 = vunpack.c.h.b16 %v373
        %v515 = vunpack.c.l.b16 %v374
        %v516 = vunpack.c.h.b16 %v374
        %v517 = vunpack.c.l.b16 %v375
        %v518 = vunpack.c.h.b16 %v375
        %v519 = vunpack.c.l.b16 %v376
        %v520 = vunpack.c.h.b16 %v376
        %v521 = vunpack.c.l.b16 %v377
        %v522 = vunpack.c.h.b16 %v377
        %v523 = vunpack.c.l.b16 %v378
        %v524 = vunpack.c.h.b16 %v378
        %v525 = vunpack.c.l.b16 %v379
        %v526 = vunpack.c.h.b16 %v379
        %v527 = vunpack.c.l.b16 %v380
        %v528 = vunpack.c.h.b16 %v380
        %v529 = vunpack.c.l.b16 %v381
        %v530 = vunpack.c.h.b16 %v381
        %v531 = vunpack.c.l.b16 %v382
        %v532 = vunpack.c.h.b16 %v382
        %v533 = vunpack.c.l.b16 %v383
        %v534 = vunpack.c.h.b16 %v383
        %v535 = vunpack.c.l.b16 %v384
        %v536 = vunpack.c.h.b16 %v384
        %v537 = vunpack.c.l.b16 %v385
        %v538 = vunpack.c.h.b16 %v385
        %v539 = vunpack.c.l.b16 %v386
        %v540 = vunpack.c.h.b16 %v386
        %v541 = vunpack.c.l.b16 %v387
        %v542 = vunpack.c.h.b16 %v387
        %v543 = vunpack.c.l.b16 %v388
        %v544 = vunpack.c.h.b16 %v388
        %v545 = vunpack.c.l.b16 %v389
        %v546 = vunpack.c.h.b16 %v389
        %v547 = vunpack.c.l.b16 %v390
        %v548 = vunpack.c.h.b16 %v390
        %v549 = vunpack.c.l.b16 %v391
        %v550 = vunpack.c.h.b16 %v391
        %v551 = vunpack.c.l.b16 %v392
        %v552 = vunpack.c.h.b16 %v392
        %v553 = vpack.c.b16 %v459, %v457
        %v554 = vpack.c.b16 %v460, %v458
        %v555 = vpack.c.b16 %v463, %v461
        %v556 = vpack.c.b16 %v464, %v462
        %v557 = vpack.c.b16 %v467, %v465
        %v558 = vpack.c.b16 %v468, %v466
        %v559 = vpack.c.b16 %v471, %v469
        %v560 = vpack.c.b16 %v472, %v470
        %v561 = vpack.c.b16 %v475, %v473
        %v562 = vpack.c.b16 %v476, %v474
        %v563 = vpack.c.b16 %v479, %v477
        %v564 = vpack.c.b16 %v480, %v478
        %v565 = vpack.c.b16 %v483, %v481
        %v566 = vpack.c.b16 %v484, %v482
        %v567 = vpack.c.b16 %v487, %v485
        %v568 = vpack.c.b16 %v488, %v486
        %v569 = vpack.c.b16 %v491, %v489
        %v570 = vpack.c.b16 %v492, %v490
        %v571 = vpack.c.b16 %v495, %v493
        %v572 = vpack.c.b16 %v496, %v494
        %v573 = vpack.c.b16 %v499, %v497
        %v574 = vpack.c.b16 %v500, %v498
        %v575 = vpack.c.b16 %v503, %v501
        %v576 = vpack.c.b16 %v504, %v502
        %v577 = vpack.c.b16 %v507, %v505
        %v578 = vpack.c.b16 %v508, %v506
        %v579 = vpack.c.b16 %v511, %v509
        %v580 = vpack.c.b16 %v512, %v510
        %v581 = vpack.c.b16 %v515, %v513
        %v582 = vpack.c.b16 %v516, %v514
        %v583 = vpack.c.b16 %v519, %v517
        %v584 = vpack.c.b16 %v520, %v518
        %v585 = vpack.c.b16 %v523, %v521
        %v586 = vpack.c.b16 %v524, %v522
        %v587 = vpack.c.b16 %v527, %v525
        %v588 = vpack.c.b16 %v528, %v526
        %v589 = vpack.c.b16 %v531, %v529
        %v590 = vpack.c.b16 %v532, %v530
        %v591 = vpack.c.b16 %v535, %v533
        %v592 = vpack.c.b16 %v536, %v534
        %v593 = vpack.c.b16 %v539, %v537
        %v594 = vpack.c.b16 %v540, %v538
        %v595 = vpack.c.b16 %v543, %v541
        %v596 = vpack.c.b16 %v544, %v542
        %v597 = vpack.c.b16 %v547, %v545
        %v598 = vpack.c.b16 %v548, %v546
        %v599 = vpack.c.b16 %v551, %v549
        %v600 = vpack.c.b16 %v552, %v550
        %649 = vmatprep.subr.bf16.mxu0 %v554
        %650 = vmatpush1.bf16.msra.mxu0 %v553
        %651 = vmatprep.subr.bf16.mxu0 %v556
        %652 = vmatpush1.bf16.msra.mxu0 %v555
        %653 = vmatprep.subr.bf16.mxu0 %v558
        %654 = vmatpush1.bf16.msra.mxu0 %v557
        %655 = vmatprep.subr.bf16.mxu0 %v560
        %656 = vmatpush1.bf16.msra.mxu0 %v559
        %657 = vmatprep.subr.bf16.mxu0 %v562
        %658 = vmatpush1.bf16.msra.mxu0 %v561
        %659 = vmatprep.subr.bf16.mxu0 %v564
        %660 = vmatpush1.bf16.msra.mxu0 %v563
        %661 = vmatprep.subr.bf16.mxu0 %v566
        %662 = vmatpush1.bf16.msra.mxu0 %v565
        %663 = vmatprep.subr.bf16.mxu0 %v568
        %664 = vmatpush1.bf16.msra.mxu0 %v567
        %665 = vmatprep.subr.bf16.mxu0 %v570
        %666 = vmatpush1.bf16.msra.mxu0 %v569
        %667 = vmatprep.subr.bf16.mxu0 %v572
        %668 = vmatpush1.bf16.msra.mxu0 %v571
        %669 = vmatprep.subr.bf16.mxu0 %v574
        %670 = vmatpush1.bf16.msra.mxu0 %v573
        %671 = vmatprep.subr.bf16.mxu0 %v576
        %672 = vmatpush1.bf16.msra.mxu0 %v575
        %673 = vmatprep.subr.bf16.mxu0 %v578
        %674 = vmatpush1.bf16.msra.mxu0 %v577
        %675 = vmatprep.subr.bf16.mxu0 %v580
        %676 = vmatpush1.bf16.msra.mxu0 %v579
        %677 = vmatprep.subr.bf16.mxu0 %v582
        %678 = vmatpush1.bf16.msra.mxu0 %v581
        %679 = vmatprep.subr.bf16.mxu0 %v584
        %680 = vmatpush1.bf16.msra.mxu0 %v583
        %681 = vmatprep.mubr.bf16.mxu0 %v404
        %682 = vmatmul.mubr.bf16.gmra.mrb[0].mxu0 %v403
        %v683 = vpop.f32.mrb[0].mxu0
        %v684 = vadd.f32 0.0, %v683
        %v685 = vpop.f32.mrb[0].mxu0
        %v686 = vadd.f32 0.0, %v685
        %v687 = vpop.f32.mrb[0].mxu0
        %v688 = vadd.f32 0.0, %v687
        %v689 = vpop.f32.mrb[0].mxu0
        %v690 = vadd.f32 0.0, %v689
        %691 = vdwg.mxu0
        %692 = vmatprep.subr.bf16.mxu0 %v586
        %693 = vmatpush1.bf16.msra.mxu0 %v585
        %694 = vmatprep.subr.bf16.mxu0 %v588
        %695 = vmatpush1.bf16.msra.mxu0 %v587
        %696 = vmatprep.subr.bf16.mxu0 %v590
        %697 = vmatpush1.bf16.msra.mxu0 %v589
        %698 = vmatprep.subr.bf16.mxu0 %v592
        %699 = vmatpush1.bf16.msra.mxu0 %v591
        %700 = vmatprep.subr.bf16.mxu0 %v594
        %701 = vmatpush1.bf16.msra.mxu0 %v593
        %702 = vmatprep.subr.bf16.mxu0 %v596
        %703 = vmatpush1.bf16.msra.mxu0 %v595
        %704 = vmatprep.subr.bf16.mxu0 %v598
        %705 = vmatpush1.bf16.msra.mxu0 %v597
        %706 = vmatprep.subr.bf16.mxu0 %v600
        %707 = vmatpush1.bf16.msra.mxu0 %v599
        %708 = vmatprep.subr.bf16.mxu0 0
        %709 = vmatpush1.bf16.msra.mxu0 0
        %710 = vmatprep.subr.bf16.mxu0 0
        %711 = vmatpush1.bf16.msra.mxu0 0
        %712 = vmatprep.subr.bf16.mxu0 0
        %713 = vmatpush1.bf16.msra.mxu0 0
        %714 = vmatprep.subr.bf16.mxu0 0
        %715 = vmatpush1.bf16.msra.mxu0 0
        %716 = vmatprep.subr.bf16.mxu0 0
        %717 = vmatpush1.bf16.msra.mxu0 0
        %718 = vmatprep.subr.bf16.mxu0 0
        %719 = vmatpush1.bf16.msra.mxu0 0
        %720 = vmatprep.subr.bf16.mxu0 0
        %721 = vmatpush1.bf16.msra.mxu0 0
        %722 = vmatprep.subr.bf16.mxu0 0
        %723 = vmatpush1.bf16.msra.mxu0 0
        %724 = vmatprep.mubr.bf16.mxu0 0
        %725 = vmatmul.mubr.bf16.gmra.mrb[0].mxu0 %v405
        %v726 = vpop.f32.mrb[0].mxu0
        %v727 = vadd.f32 %v684, %v726
        %v728 = vpop.f32.mrb[0].mxu0
        %v729 = vadd.f32 %v686, %v728
        %v730 = vpop.f32.mrb[0].mxu0
        %v731 = vadd.f32 %v688, %v730
        %v732 = vpop.f32.mrb[0].mxu0
        %v733 = vadd.f32 %v690, %v732
        %734 = vdwg.mxu0
        %v735 = vadd.f32 %v337, %v727
        %v736 = vadd.f32 %v338, %v729
        %v737 = vadd.f32 %v339, %v731
        %v738 = vadd.f32 %v340, %v733
        %739 = vst [vmem:[#allocation2] sm:$0xff] %v735
        %740 = vst [vmem:[#allocation2 + $0x8] sm:$0xff] %v736
        %741 = vst [vmem:[#allocation2 + $0x10] sm:$0xff] %v737
        %742 = vst [vmem:[#allocation2 + $0x18] sm:$0xff] %v738
        %p743 = scmp.eq.s32.totalorder %s21, 1
        // Predicated region
        $region63: #{resnet_forward.24} parent=53 // pred_check
          %p744 = pneg %p743
        $region64: #{resnet_forward.24} parent=53 // pred_check_branch
          %746 = sbr.rel (%p744) target = $region66
        $region65: #{resnet_forward.24} parent=53 // pred_region
          %v747 = vld [vmem:[%s313] sm:$0xff]
          %v748 = vld [vmem:[%s313 + $0x8] sm:$0xff]
          %v749 = vunpack.c.l.bf16 %v747
          %v750 = vunpack.c.h.bf16 %v747
          %v751 = vunpack.c.l.bf16 %v748
          %v752 = vunpack.c.h.bf16 %v748
          %v753 = vld [vmem:[#allocation2] sm:$0xff]
          %v754 = vld [vmem:[#allocation2 + $0x8] sm:$0xff]
          %v755 = vld [vmem:[#allocation2 + $0x10] sm:$0xff]
          %v756 = vld [vmem:[#allocation2 + $0x18] sm:$0xff]
          %v757 = vadd.f32 %v753, %v749
          %v758 = vadd.f32 %v754, %v750
          %v759 = vadd.f32 %v755, %v751
          %v760 = vadd.f32 %v756, %v752
          %v761 = vmax.f32 %v757, 0.0
          %v762 = vmax.f32 %v758, 0.0
          %v763 = vmax.f32 %v759, 0.0
          %v764 = vmax.f32 %v760, 0.0
          %v765 = vpack.c.bf16 %v763, %v761
          %v766 = vpack.c.bf16 %v764, %v762
          %v769 = vunpack.c.l.b16 %v765
          %v770 = vunpack.c.l.b16 %v766
          %v771 = vunpack.c.h.b16 %v765
          %v772 = vunpack.c.h.b16 %v766
          %v773 = vpack.c.b16 %v770, %v769
          %v774 = vpack.c.b16 %v772, %v771
          %777 = vst [vmem:[%s325] sm:$0xff] %v773
          %778 = vst [vmem:[%s325 + $0x8] sm:$0xff] %v774
        $region66: #{resnet_forward.24} parent=53 // pred_fallthru
          _
        %s779 = smul.u32 2, %s19
        %s780 = smul.u32 2, %s20
        %p781 = scmp.lt.s32.totalorder %s779, 1
        %s782 = scalar_select %p781, %s779, 1
        %p783 = scmp.lt.s32.totalorder %s780, 1
        %s784 = scalar_select %p783, %s780, 1
        %s785 = smul.addr %s782, 2
        %s786 = sadd.s32 %s784, %s785
        %s787 = smul.addr %s786, 4
        %s788 = scalar_lea.vmem %s3, %s787
        // Predicated region
        $region67: #{resnet_forward.24} parent=53 // pred_check
          %p789 = pneg %p137
        $region68: #{resnet_forward.24} parent=53 // pred_check_branch
          %791 = sbr.rel (%p789) target = $region70
        $region69: #{resnet_forward.24} parent=53 // pred_region
          %s792 = smul.u32 2, %s19
          %s793 = smul.u32 2, %s20
        $region70: #{resnet_forward.24} parent=53 // pred_fallthru
          _
        // Predicated region
        $region71: #{resnet_forward.24} parent=53 // pred_check
          %p794 = pneg %p137
        $region72: #{resnet_forward.24} parent=53 // pred_check_branch
          %796 = sbr.rel (%p794) target = $region74
        $region73: #{resnet_forward.24} parent=53 // pred_region
          %s797 = smul.u32 2, %s19
          %s798 = smul.u32 2, %s20
          %p799 = scmp.lt.s32.totalorder %s797, 1
          %s800 = scalar_select %p799, %s797, 1
          %p801 = scmp.lt.s32.totalorder %s798, 1
          %s802 = scalar_select %p801, %s798, 1
          %s803 = smul.addr %s800, 2
          %s804 = sadd.s32 %s802, %s803
          %s805 = smul.addr %s804, 4
          %s806 = scalar_lea.vmem %s3, %s805
        $region74: #{resnet_forward.24} parent=53 // pred_fallthru
          _
      $region54: #{resnet_forward.24} parent=5 // pred_fallthru
        _
      %p807 = scmp.le.s32.totalorder 2, %s9
      // Predicated region
      $region75: #{resnet_forward.24} parent=5 // pred_check
        %p808 = pneg %p807
      $region76: #{resnet_forward.24} parent=5 // pred_check_branch
        %810 = sbr.rel (%p808) target = $region78
      $region77: #{resnet_forward.24} parent=5 // pred_region
        %s811 = ssub.s32 %s9, 2
      $region78: #{resnet_forward.24} parent=5 // pred_fallthru
        _
    $region6: #{resnet_forward.24} parent=1 // loop_footer
      %s13 = sadd.s32 1, %s9
    $region7: #{resnet_forward.24} parent=1 // loop_footer_branch
      %8 = sbr.rel target = $region3
    $region8: #{resnet_forward.24} parent=1 // loop_exit
      _

// kernel: resnet_forward.26
$region0: #{resnet_forward.26}
  #allocation0 [shape = 'u32[]', space=smem, size = 0x4, offset = 0x4, fixed_abs, tag = 'smem constant byte address 0x4 - core index']
  #allocation1 [shape = 'u32[144,128]{1,0:T(1,128)}', space=vmem, size = 0x12000, scoped, tag = 'internal scratch']
  #allocation2 [shape = 'f32[16,256]{1,0:T(8,128)}', space=vmem, size = 0x4000, scoped, tag = 'scratch operand']
  %s0 = inlined_call_operand.vmem [shape: bf16[16,768], index: 0, kind: input, shape index: {}]
  %s1 = inlined_call_operand.vmem [shape: bf16[768,512], index: 1, kind: input, shape index: {}]
  %s2 = inlined_call_operand.vmem [shape: bf16[16,512], index: 2, kind: output, shape index: {}]
  %s3 = sld [smem:[#allocation0]]
  $region147: #{resnet_forward.26} parent=0
    _
  %s5 = ssub.s32 1, %s3
  %s6 = scalar_select 0, %s5, %s3
  $region1: #{resnet_forward.26} parent=0
    #allocation3 [shape = 'u8[24576]{0}', space=vmem, size = 0x6000, scoped, tag = 'input window, operand 0']
    #allocation4 [shape = 'u8[393216]{0}', space=vmem, size = 0x60000, scoped, tag = 'input window, operand 1']
    #allocation5 [shape = 'u8[16384]{0}', space=vmem, size = 0x4000, scoped, tag = 'output window, operand 0']
    loop: start=0, step=1, limit=6
    $region2: #{resnet_forward.26} parent=1 // loop_pre_header
      _
    $region3: #{resnet_forward.26} parent=1 // loop_header
      %s8 = sphi 0, %s12
      %p9 = scmp.ge.s32.totalorder %s8, 6
      %s15 = sphi 0, %s34
      %s16 = sphi 0, %s30
      %s17 = sphi 0, %s26
      %s18 = sphi 0, %s15
      %s19 = sphi 0, %s16
      %s20 = sphi 0, %s17
      %s21 = sphi 0, %s18
      %s22 = sphi 0, %s19
      %s23 = sphi 0, %s20
      %s39 = sphi 0, %s41
      %s42 = sphi 0, %s39
      %s43 = sphi 0, %s42
      %s59 = sphi 0, %s43
      %s67 = sphi 0, %s69
      %s70 = sphi 0, %s67
      %s71 = sphi 0, %s70
      %s87 = sphi 0, %s71
      %s95 = sphi 0, %s97
      %s98 = sphi 0, %s95
      %s99 = sphi 0, %s98
      %s115 = sphi 0, %s99
    $region4: #{resnet_forward.26} parent=1 // loop_header_branch
      %11 = sbr.rel (%p9) target = $region8
    $region5: #{resnet_forward.26} parent=1 // loop_body
      %s13 = ssub.s32 %s8, 1
      %s14 = ssub.s32 %s8, 2
      %s24 = sadd.s32 1, %s17
      %p25 = scmp.ge.s32.totalorder %s24, 2
      %s26 = scalar_select %p25, 0, %s24
      %s27 = sadd.s32 1, %s16
      %s28 = scalar_select %p25, %s27, %s16
      %p29 = scmp.ge.s32.totalorder %s28, 2
      %s30 = scalar_select %p29, 0, %s28
      %s31 = sadd.s32 1, %s15
      %s32 = scalar_select %p29, %s31, %s15
      %p33 = scmp.ge.s32.totalorder %s32, 1
      %s34 = scalar_select %p33, 0, %s32
      %s35 = ssub.s32 %s15, %s34
      %s36 = ssub.s32 %s17, %s26
      %s37 = sor.u32 %s35, %s36
      %p38 = scmp.eq.s32.totalorder %s37, 0
      %s40 = sadd.s32 %s39, 1
      %s41 = scalar_select %p38, %s39, %s40
      %p44 = pneg %p38
      %p45 = scmp.eq.s32.totalorder %s8, 3
      %p46 = por %p44, %p45
      %p47 = scmp.ne.s32.totalorder %s39, %s42
      %p48 = scmp.eq.s32.totalorder %s8, 0
      %p49 = por %p47, %p48
      %p50 = scmp.ne.s32.totalorder %s39, %s42
      %p51 = scmp.eq.s32.totalorder %s13, 3
      %p52 = por %p50, %p51
      %p53 = scmp.ne.s32.totalorder %s42, %s43
      %p54 = scmp.eq.s32.totalorder %s13, 0
      %p55 = por %p53, %p54
      %p56 = scmp.ne.s32.totalorder %s42, %s43
      %p57 = scmp.eq.s32.totalorder %s14, 3
      %p58 = por %p56, %p57
      %p60 = scmp.ne.s32.totalorder %s43, %s59
      %p61 = scmp.eq.s32.totalorder %s14, 0
      %p62 = por %p60, %p61
      %s63 = ssub.s32 %s17, %s26
      %s64 = ssub.s32 %s16, %s30
      %s65 = sor.u32 %s63, %s64
      %p66 = scmp.eq.s32.totalorder %s65, 0
      %s68 = sadd.s32 %s67, 1
      %s69 = scalar_select %p66, %s67, %s68
      %p72 = pneg %p66
      %p73 = scmp.eq.s32.totalorder %s8, 3
      %p74 = por %p72, %p73
      %p75 = scmp.ne.s32.totalorder %s67, %s70
      %p76 = scmp.eq.s32.totalorder %s8, 0
      %p77 = por %p75, %p76
      %p78 = scmp.ne.s32.totalorder %s67, %s70
      %p79 = scmp.eq.s32.totalorder %s13, 3
      %p80 = por %p78, %p79
      %p81 = scmp.ne.s32.totalorder %s70, %s71
      %p82 = scmp.eq.s32.totalorder %s13, 0
      %p83 = por %p81, %p82
      %p84 = scmp.ne.s32.totalorder %s70, %s71
      %p85 = scmp.eq.s32.totalorder %s14, 3
      %p86 = por %p84, %p85
      %p88 = scmp.ne.s32.totalorder %s71, %s87
      %p89 = scmp.eq.s32.totalorder %s14, 0
      %p90 = por %p88, %p89
      %s91 = ssub.s32 %s15, %s34
      %s92 = ssub.s32 %s16, %s30
      %s93 = sor.u32 %s91, %s92
      %p94 = scmp.eq.s32.totalorder %s93, 0
      %s96 = sadd.s32 %s95, 1
      %s97 = scalar_select %p94, %s95, %s96
      %p100 = pneg %p94
      %p101 = scmp.eq.s32.totalorder %s8, 3
      %p102 = por %p100, %p101
      %p103 = scmp.ne.s32.totalorder %s95, %s98
      %p104 = scmp.eq.s32.totalorder %s8, 0
      %p105 = por %p103, %p104
      %p106 = scmp.ne.s32.totalorder %s95, %s98
      %p107 = scmp.eq.s32.totalorder %s13, 3
      %p108 = por %p106, %p107
      %p109 = scmp.ne.s32.totalorder %s98, %s99
      %p110 = scmp.eq.s32.totalorder %s13, 0
      %p111 = por %p109, %p110
      %p112 = scmp.ne.s32.totalorder %s98, %s99
      %p113 = scmp.eq.s32.totalorder %s14, 3
      %p114 = por %p112, %p113
      %p116 = scmp.ne.s32.totalorder %s99, %s115
      %p117 = scmp.eq.s32.totalorder %s14, 0
      %p118 = por %p116, %p117
      %p119 = scmp.le.s32.totalorder 1, %s8
      %p120 = scmp.lt.s32.totalorder %s8, 5
      %p121 = pnand %p119, %p120
      %p122 = pneg %p121
      // Predicated region
      $region9: #{resnet_forward.26} parent=5 // pred_check
        _
      $region10: #{resnet_forward.26} parent=5 // pred_check_branch
        %124 = sbr.rel (%p121) target = $region12
      $region11: #{resnet_forward.26} parent=5 // pred_region
        %s125 = ssub.s32 %s8, 1
      $region12: #{resnet_forward.26} parent=5 // pred_fallthru
        _
      %p126 = scmp.lt.s32.totalorder %s8, 4
      // Predicated region
      $region13: #{resnet_forward.26} parent=5 // pred_check
        %p127 = pneg %p126
      $region14: #{resnet_forward.26} parent=5 // pred_check_branch
        %129 = sbr.rel (%p127) target = $region16
      $region15: #{resnet_forward.26} parent=5 // pred_region
        // Predicated region
        $region17: #{resnet_forward.26} parent=15 // pred_check
          %p130 = pneg %p49
        $region18: #{resnet_forward.26} parent=15 // pred_check_branch
          %132 = sbr.rel (%p130) target = $region20
        $region19: #{resnet_forward.26} parent=15 // pred_region
          %s133 = sand.u32 %s39, 1
          %s134 = sand.u32 %s39, 1
          %s135 = smul.addr %s134, 24
          %s136 = scalar_lea.vmem [#allocation3], %s135
          %s137 = smul.u32 2, %s15
          %s138 = smul.u32 3, %s17
          %s139 = smul.addr %s137, 6
          %s140 = sadd.s32 %s138, %s139
          %s141 = smul.addr %s140, 4
          %s142 = scalar_lea.vmem %s0, %s141
          // Predicated region
          $region21: #{resnet_forward.26} parent=19 // pred_check
            _
          $region22: #{resnet_forward.26} parent=19 // pred_check_branch
            %144 = sbr.rel (0) target = $region24
          $region23: #{resnet_forward.26} parent=19 // pred_region
            // Predicated region
            $region25: #{resnet_forward.26} parent=23 // pred_check
              _
            $region26: #{resnet_forward.26} parent=23 // pred_check_branch
              %146 = sbr.rel (0) target = $region28
            $region27: #{resnet_forward.26} parent=23 // pred_region
              %s147 = scalar_lea.vmem %s142, 8
              %s148 = scalar_lea.vmem %s136, 8 [#allocation3]
              loop: start=0, step=1, limit=1
              $region29: #{resnet_forward.26} parent=27 // loop_pre_header
                _
              $region30: #{resnet_forward.26} parent=27 // loop_header
                %s150 = sphi 0, %s154
                %p151 = scmp.ge.s32.totalorder %s150, 1
                %s155 = sphi %s142, %s142
                %s156 = sphi %s136, %s136
              $region31: #{resnet_forward.26} parent=27 // loop_header_branch
                %153 = sbr.rel (%p151) target = $region35
              $region32: #{resnet_forward.26} parent=27 // loop_body
                %v157 = vld [vmem:[%s155] sm:$0xff]
                %158 = vst [vmem:[%s156] sm:$0xff] %v157
                %v159 = vld [vmem:[%s155 + $0x18] sm:$0xff]
                %160 = vst [vmem:[%s156 + $0xc] sm:$0xff] %v159
              $region33: #{resnet_forward.26} parent=27 // loop_footer
                %s154 = sadd.s32 1, %s150
              $region34: #{resnet_forward.26} parent=27 // loop_footer_branch
                %149 = sbr.rel target = $region30
              $region35: #{resnet_forward.26} parent=27 // loop_exit
                _
              loop: start=0, step=1, limit=1
              $region36: #{resnet_forward.26} parent=27 // loop_pre_header
                _
              $region37: #{resnet_forward.26} parent=27 // loop_header
                %s163 = sphi 0, %s167
                %p164 = scmp.ge.s32.totalorder %s163, 1
                %s168 = sphi %s147, %s147
                %s169 = sphi %s148, %s148
              $region38: #{resnet_forward.26} parent=27 // loop_header_branch
                %166 = sbr.rel (%p164) target = $region42
              $region39: #{resnet_forward.26} parent=27 // loop_body
                %v170 = vld [vmem:[%s168] sm:$0xf]
                %171 = vst [vmem:[%s169] sm:$0xf] %v170
                %v172 = vld [vmem:[%s168 + $0x18] sm:$0xf]
                %173 = vst [vmem:[%s169 + $0xc] sm:$0xf] %v172
              $region40: #{resnet_forward.26} parent=27 // loop_footer
                %s167 = sadd.s32 1, %s163
              $region41: #{resnet_forward.26} parent=27 // loop_footer_branch
                %162 = sbr.rel target = $region37
              $region42: #{resnet_forward.26} parent=27 // loop_exit
                _
            $region28: #{resnet_forward.26} parent=23 // pred_fallthru
              _
          $region24: #{resnet_forward.26} parent=19 // pred_fallthru
            _
          %174 = vnop
        $region20: #{resnet_forward.26} parent=15 // pred_fallthru
          _
        // Predicated region
        $region43: #{resnet_forward.26} parent=15 // pred_check
          %p175 = pneg %p77
        $region44: #{resnet_forward.26} parent=15 // pred_check_branch
          %177 = sbr.rel (%p175) target = $region46
        $region45: #{resnet_forward.26} parent=15 // pred_region
          %s178 = sand.u32 %s67, 1
          %s179 = sand.u32 %s67, 1
          %s180 = smul.addr %s179, 384
          %s181 = scalar_lea.vmem [#allocation4], %s180
          %s182 = smul.u32 48, %s17
          %s183 = smul.u32 2, %s16
          %s184 = smul.addr %s182, 4
          %s185 = sadd.s32 %s183, %s184
          %s186 = smul.addr %s185, 4
          %s187 = scalar_lea.vmem %s1, %s186
          // Predicated region
          $region47: #{resnet_forward.26} parent=45 // pred_check
            _
          $region48: #{resnet_forward.26} parent=45 // pred_check_branch
            %189 = sbr.rel (0) target = $region50
          $region49: #{resnet_forward.26} parent=45 // pred_region
            // Predicated region
            $region51: #{resnet_forward.26} parent=49 // pred_check
              _
            $region52: #{resnet_forward.26} parent=49 // pred_check_branch
              %191 = sbr.rel (0) target = $region54
            $region53: #{resnet_forward.26} parent=49 // pred_region
              // Predicated region
              $region66: #{resnet_forward.26} parent=53 // pred_check
                _
              $region67: #{resnet_forward.26} parent=53 // pred_check_branch
                %300 = sbr.rel (0) target = $region69
              $region68: #{resnet_forward.26} parent=53 // pred_region
                loop: start=0, step=1, limit=1
                $region70: #{resnet_forward.26} parent=68 // loop_pre_header
                  _
                $region71: #{resnet_forward.26} parent=68 // loop_header
                  %s302 = sphi 0, %s306
                  %p303 = scmp.ge.s32.totalorder %s302, 1
                  %s307 = sphi %s187, %s187
                  %s308 = sphi %s181, %s181
                $region72: #{resnet_forward.26} parent=68 // loop_header_branch
                  %305 = sbr.rel (%p303) target = $region76
                $region73: #{resnet_forward.26} parent=68 // loop_body
                  %v309 = vld [vmem:[%s307] sm:$0xff]
                  %310 = vst [vmem:[%s308] sm:$0xff] %v309
                  %v311 = vld [vmem:[%s307 + $0x10] sm:$0xff]
                  %312 = vst [vmem:[%s308 + $0x8] sm:$0xff] %v311
                  %v313 = vld [vmem:[%s307 + $0x20] sm:$0xff]
                  %314 = vst [vmem:[%s308 + $0x10] sm:$0xff] %v313
                  %v315 = vld [vmem:[%s307 + $0x30] sm:$0xff]
                  %316 = vst [vmem:[%s308 + $0x18] sm:$0xff] %v315
                  %v317 = vld [vmem:[%s307 + $0x40] sm:$0xff]
                  %318 = vst [vmem:[%s308 + $0x20] sm:$0xff] %v317
                  %v319 = vld [vmem:[%s307 + $0x50] sm:$0xff]
                  %320 = vst [vmem:[%s308 + $0x28] sm:$0xff] %v319
                  %v321 = vld [vmem:[%s307 + $0x60] sm:$0xff]
                  %322 = vst [vmem:[%s308 + $0x30] sm:$0xff] %v321
                  %v323 = vld [vmem:[%s307 + $0x70] sm:$0xff]
                  %324 = vst [vmem:[%s308 + $0x38] sm:$0xff] %v323
                  %v325 = vld [vmem:[%s307 + $0x80] sm:$0xff]
                  %326 = vst [vmem:[%s308 + $0x40] sm:$0xff] %v325
                  %v327 = vld [vmem:[%s307 + $0x90] sm:$0xff]
                  %328 = vst [vmem:[%s308 + $0x48] sm:$0xff] %v327
                  %v329 = vld [vmem:[%s307 + $0xa0] sm:$0xff]
                  %330 = vst [vmem:[%s308 + $0x50] sm:$0xff] %v329
                  %v331 = vld [vmem:[%s307 + $0xb0] sm:$0xff]
                  %332 = vst [vmem:[%s308 + $0x58] sm:$0xff] %v331
                  %v333 = vld [vmem:[%s307 + $0xc0] sm:$0xff]
                  %334 = vst [vmem:[%s308 + $0x60] sm:$0xff] %v333
                  %v335 = vld [vmem:[%s307 + $0xd0] sm:$0xff]
                  %336 = vst [vmem:[%s308 + $0x68] sm:$0xff] %v335
                  %v337 = vld [vmem:[%s307 + $0xe0] sm:$0xff]
                  %338 = vst [vmem:[%s308 + $0x70] sm:$0xff] %v337
                  %v339 = vld [vmem:[%s307 + $0xf0] sm:$0xff]
                  %340 = vst [vmem:[%s308 + $0x78] sm:$0xff] %v339
                  %v341 = vld [vmem:[%s307 + $0x100] sm:$0xff]
                  %342 = vst [vmem:[%s308 + $0x80] sm:$0xff] %v341
                  %v343 = vld [vmem:[%s307 + $0x110] sm:$0xff]
                  %344 = vst [vmem:[%s308 + $0x88] sm:$0xff] %v343
                  %v345 = vld [vmem:[%s307 + $0x120] sm:$0xff]
                  %346 = vst [vmem:[%s308 + $0x90] sm:$0xff] %v345
                  %v347 = vld [vmem:[%s307 + $0x130] sm:$0xff]
                  %348 = vst [vmem:[%s308 + $0x98] sm:$0xff] %v347
                  %v349 = vld [vmem:[%s307 + $0x140] sm:$0xff]
                  %350 = vst [vmem:[%s308 + $0xa0] sm:$0xff] %v349
                  %v351 = vld [vmem:[%s307 + $0x150] sm:$0xff]
                  %352 = vst [vmem:[%s308 + $0xa8] sm:$0xff] %v351
                  %v353 = vld [vmem:[%s307 + $0x160] sm:$0xff]
                  %354 = vst [vmem:[%s308 + $0xb0] sm:$0xff] %v353
                  %v355 = vld [vmem:[%s307 + $0x170] sm:$0xff]
                  %356 = vst [vmem:[%s308 + $0xb8] sm:$0xff] %v355
                  %v357 = vld [vmem:[%s307 + $0x180] sm:$0xff]
                  %358 = vst [vmem:[%s308 + $0xc0] sm:$0xff] %v357
                  %v359 = vld [vmem:[%s307 + $0x190] sm:$0xff]
                  %360 = vst [vmem:[%s308 + $0xc8] sm:$0xff] %v359
                  %v361 = vld [vmem:[%s307 + $0x1a0] sm:$0xff]
                  %362 = vst [vmem:[%s308 + $0xd0] sm:$0xff] %v361
                  %v363 = vld [vmem:[%s307 + $0x1b0] sm:$0xff]
                  %364 = vst [vmem:[%s308 + $0xd8] sm:$0xff] %v363
                  %v365 = vld [vmem:[%s307 + $0x1c0] sm:$0xff]
                  %366 = vst [vmem:[%s308 + $0xe0] sm:$0xff] %v365
                  %v367 = vld [vmem:[%s307 + $0x1d0] sm:$0xff]
                  %368 = vst [vmem:[%s308 + $0xe8] sm:$0xff] %v367
                  %v369 = vld [vmem:[%s307 + $0x1e0] sm:$0xff]
                  %370 = vst [vmem:[%s308 + $0xf0] sm:$0xff] %v369
                  %v371 = vld [vmem:[%s307 + $0x1f0] sm:$0xff]
                  %372 = vst [vmem:[%s308 + $0xf8] sm:$0xff] %v371
                  %v373 = vld [vmem:[%s307 + $0x200] sm:$0xff]
                  %374 = vst [vmem:[%s308 + $0x100] sm:$0xff] %v373
                  %v375 = vld [vmem:[%s307 + $0x210] sm:$0xff]
                  %376 = vst [vmem:[%s308 + $0x108] sm:$0xff] %v375
                  %v377 = vld [vmem:[%s307 + $0x220] sm:$0xff]
                  %378 = vst [vmem:[%s308 + $0x110] sm:$0xff] %v377
                  %v379 = vld [vmem:[%s307 + $0x230] sm:$0xff]
                  %380 = vst [vmem:[%s308 + $0x118] sm:$0xff] %v379
                  %v381 = vld [vmem:[%s307 + $0x240] sm:$0xff]
                  %382 = vst [vmem:[%s308 + $0x120] sm:$0xff] %v381
                  %v383 = vld [vmem:[%s307 + $0x250] sm:$0xff]
                  %384 = vst [vmem:[%s308 + $0x128] sm:$0xff] %v383
                  %v385 = vld [vmem:[%s307 + $0x260] sm:$0xff]
                  %386 = vst [vmem:[%s308 + $0x130] sm:$0xff] %v385
                  %v387 = vld [vmem:[%s307 + $0x270] sm:$0xff]
                  %388 = vst [vmem:[%s308 + $0x138] sm:$0xff] %v387
                  %v389 = vld [vmem:[%s307 + $0x280] sm:$0xff]
                  %390 = vst [vmem:[%s308 + $0x140] sm:$0xff] %v389
                  %v391 = vld [vmem:[%s307 + $0x290] sm:$0xff]
                  %392 = vst [vmem:[%s308 + $0x148] sm:$0xff] %v391
                  %v393 = vld [vmem:[%s307 + $0x2a0] sm:$0xff]
                  %394 = vst [vmem:[%s308 + $0x150] sm:$0xff] %v393
                  %v395 = vld [vmem:[%s307 + $0x2b0] sm:$0xff]
                  %396 = vst [vmem:[%s308 + $0x158] sm:$0xff] %v395
                  %v397 = vld [vmem:[%s307 + $0x2c0] sm:$0xff]
                  %398 = vst [vmem:[%s308 + $0x160] sm:$0xff] %v397
                  %v399 = vld [vmem:[%s307 + $0x2d0] sm:$0xff]
                  %400 = vst [vmem:[%s308 + $0x168] sm:$0xff] %v399
                  %v401 = vld [vmem:[%s307 + $0x2e0] sm:$0xff]
                  %402 = vst [vmem:[%s308 + $0x170] sm:$0xff] %v401
                  %v403 = vld [vmem:[%s307 + $0x2f0] sm:$0xff]
                  %404 = vst [vmem:[%s308 + $0x178] sm:$0xff] %v403
                $region74: #{resnet_forward.26} parent=68 // loop_footer
                  %s306 = sadd.s32 1, %s302
                $region75: #{resnet_forward.26} parent=68 // loop_footer_branch
                  %301 = sbr.rel target = $region71
                $region76: #{resnet_forward.26} parent=68 // loop_exit
                  _
              $region69: #{resnet_forward.26} parent=53 // pred_fallthru
                _
              // Predicated region
              $region77: #{resnet_forward.26} parent=53 // pred_check
                _
              $region78: #{resnet_forward.26} parent=53 // pred_check_branch
                %406 = sbr.rel target = $region80
              $region79: #{resnet_forward.26} parent=53 // pred_region
                _
              $region80: #{resnet_forward.26} parent=53 // pred_fallthru
                _
            $region54: #{resnet_forward.26} parent=49 // pred_fallthru
              _
            // Predicated region
            $region55: #{resnet_forward.26} parent=49 // pred_check
              _
            $region56: #{resnet_forward.26} parent=49 // pred_check_branch
              %193 = sbr.rel target = $region58
            $region57: #{resnet_forward.26} parent=49 // pred_region
              loop: start=0, step=1, limit=1
              $region59: #{resnet_forward.26} parent=57 // loop_pre_header
                _
              $region60: #{resnet_forward.26} parent=57 // loop_header
                %s196 = sphi 0, %s200
                %p197 = scmp.ge.s32.totalorder %s196, 1
                %s201 = sphi %s187, %s187
                %s202 = sphi %s181, %s181
              $region61: #{resnet_forward.26} parent=57 // loop_header_branch
                %199 = sbr.rel (%p197) target = $region65
              $region62: #{resnet_forward.26} parent=57 // loop_body
                %v203 = vld [vmem:[%s201] sm:$0xff]
                %204 = vst [vmem:[%s202] sm:$0xff] %v203
                %v205 = vld [vmem:[%s201 + $0x10] sm:$0xff]
                %206 = vst [vmem:[%s202 + $0x8] sm:$0xff] %v205
                %v207 = vld [vmem:[%s201 + $0x20] sm:$0xff]
                %208 = vst [vmem:[%s202 + $0x10] sm:$0xff] %v207
                %v209 = vld [vmem:[%s201 + $0x30] sm:$0xff]
                %210 = vst [vmem:[%s202 + $0x18] sm:$0xff] %v209
                %v211 = vld [vmem:[%s201 + $0x40] sm:$0xff]
                %212 = vst [vmem:[%s202 + $0x20] sm:$0xff] %v211
                %v213 = vld [vmem:[%s201 + $0x50] sm:$0xff]
                %214 = vst [vmem:[%s202 + $0x28] sm:$0xff] %v213
                %v215 = vld [vmem:[%s201 + $0x60] sm:$0xff]
                %216 = vst [vmem:[%s202 + $0x30] sm:$0xff] %v215
                %v217 = vld [vmem:[%s201 + $0x70] sm:$0xff]
                %218 = vst [vmem:[%s202 + $0x38] sm:$0xff] %v217
                %v219 = vld [vmem:[%s201 + $0x80] sm:$0xff]
                %220 = vst [vmem:[%s202 + $0x40] sm:$0xff] %v219
                %v221 = vld [vmem:[%s201 + $0x90] sm:$0xff]
                %222 = vst [vmem:[%s202 + $0x48] sm:$0xff] %v221
                %v223 = vld [vmem:[%s201 + $0xa0] sm:$0xff]
                %224 = vst [vmem:[%s202 + $0x50] sm:$0xff] %v223
                %v225 = vld [vmem:[%s201 + $0xb0] sm:$0xff]
                %226 = vst [vmem:[%s202 + $0x58] sm:$0xff] %v225
                %v227 = vld [vmem:[%s201 + $0xc0] sm:$0xff]
                %228 = vst [vmem:[%s202 + $0x60] sm:$0xff] %v227
                %v229 = vld [vmem:[%s201 + $0xd0] sm:$0xff]
                %230 = vst [vmem:[%s202 + $0x68] sm:$0xff] %v229
                %v231 = vld [vmem:[%s201 + $0xe0] sm:$0xff]
                %232 = vst [vmem:[%s202 + $0x70] sm:$0xff] %v231
                %v233 = vld [vmem:[%s201 + $0xf0] sm:$0xff]
                %234 = vst [vmem:[%s202 + $0x78] sm:$0xff] %v233
                %v235 = vld [vmem:[%s201 + $0x100] sm:$0xff]
                %236 = vst [vmem:[%s202 + $0x80] sm:$0xff] %v235
                %v237 = vld [vmem:[%s201 + $0x110] sm:$0xff]
                %238 = vst [vmem:[%s202 + $0x88] sm:$0xff] %v237
                %v239 = vld [vmem:[%s201 + $0x120] sm:$0xff]
                %240 = vst [vmem:[%s202 + $0x90] sm:$0xff] %v239
                %v241 = vld [vmem:[%s201 + $0x130] sm:$0xff]
                %242 = vst [vmem:[%s202 + $0x98] sm:$0xff] %v241
                %v243 = vld [vmem:[%s201 + $0x140] sm:$0xff]
                %244 = vst [vmem:[%s202 + $0xa0] sm:$0xff] %v243
                %v245 = vld [vmem:[%s201 + $0x150] sm:$0xff]
                %246 = vst [vmem:[%s202 + $0xa8] sm:$0xff] %v245
                %v247 = vld [vmem:[%s201 + $0x160] sm:$0xff]
                %248 = vst [vmem:[%s202 + $0xb0] sm:$0xff] %v247
                %v249 = vld [vmem:[%s201 + $0x170] sm:$0xff]
                %250 = vst [vmem:[%s202 + $0xb8] sm:$0xff] %v249
                %v251 = vld [vmem:[%s201 + $0x180] sm:$0xff]
                %252 = vst [vmem:[%s202 + $0xc0] sm:$0xff] %v251
                %v253 = vld [vmem:[%s201 + $0x190] sm:$0xff]
                %254 = vst [vmem:[%s202 + $0xc8] sm:$0xff] %v253
                %v255 = vld [vmem:[%s201 + $0x1a0] sm:$0xff]
                %256 = vst [vmem:[%s202 + $0xd0] sm:$0xff] %v255
                %v257 = vld [vmem:[%s201 + $0x1b0] sm:$0xff]
                %258 = vst [vmem:[%s202 + $0xd8] sm:$0xff] %v257
                %v259 = vld [vmem:[%s201 + $0x1c0] sm:$0xff]
                %260 = vst [vmem:[%s202 + $0xe0] sm:$0xff] %v259
                %v261 = vld [vmem:[%s201 + $0x1d0] sm:$0xff]
                %262 = vst [vmem:[%s202 + $0xe8] sm:$0xff] %v261
                %v263 = vld [vmem:[%s201 + $0x1e0] sm:$0xff]
                %264 = vst [vmem:[%s202 + $0xf0] sm:$0xff] %v263
                %v265 = vld [vmem:[%s201 + $0x1f0] sm:$0xff]
                %266 = vst [vmem:[%s202 + $0xf8] sm:$0xff] %v265
                %v267 = vld [vmem:[%s201 + $0x200] sm:$0xff]
                %268 = vst [vmem:[%s202 + $0x100] sm:$0xff] %v267
                %v269 = vld [vmem:[%s201 + $0x210] sm:$0xff]
                %270 = vst [vmem:[%s202 + $0x108] sm:$0xff] %v269
                %v271 = vld [vmem:[%s201 + $0x220] sm:$0xff]
                %272 = vst [vmem:[%s202 + $0x110] sm:$0xff] %v271
                %v273 = vld [vmem:[%s201 + $0x230] sm:$0xff]
                %274 = vst [vmem:[%s202 + $0x118] sm:$0xff] %v273
                %v275 = vld [vmem:[%s201 + $0x240] sm:$0xff]
                %276 = vst [vmem:[%s202 + $0x120] sm:$0xff] %v275
                %v277 = vld [vmem:[%s201 + $0x250] sm:$0xff]
                %278 = vst [vmem:[%s202 + $0x128] sm:$0xff] %v277
                %v279 = vld [vmem:[%s201 + $0x260] sm:$0xff]
                %280 = vst [vmem:[%s202 + $0x130] sm:$0xff] %v279
                %v281 = vld [vmem:[%s201 + $0x270] sm:$0xff]
                %282 = vst [vmem:[%s202 + $0x138] sm:$0xff] %v281
                %v283 = vld [vmem:[%s201 + $0x280] sm:$0xff]
                %284 = vst [vmem:[%s202 + $0x140] sm:$0xff] %v283
                %v285 = vld [vmem:[%s201 + $0x290] sm:$0xff]
                %286 = vst [vmem:[%s202 + $0x148] sm:$0xff] %v285
                %v287 = vld [vmem:[%s201 + $0x2a0] sm:$0xff]
                %288 = vst [vmem:[%s202 + $0x150] sm:$0xff] %v287
                %v289 = vld [vmem:[%s201 + $0x2b0] sm:$0xff]
                %290 = vst [vmem:[%s202 + $0x158] sm:$0xff] %v289
                %v291 = vld [vmem:[%s201 + $0x2c0] sm:$0xff]
                %292 = vst [vmem:[%s202 + $0x160] sm:$0xff] %v291
                %v293 = vld [vmem:[%s201 + $0x2d0] sm:$0xff]
                %294 = vst [vmem:[%s202 + $0x168] sm:$0xff] %v293
                %v295 = vld [vmem:[%s201 + $0x2e0] sm:$0xff]
                %296 = vst [vmem:[%s202 + $0x170] sm:$0xff] %v295
                %v297 = vld [vmem:[%s201 + $0x2f0] sm:$0xff]
                %298 = vst [vmem:[%s202 + $0x178] sm:$0xff] %v297
              $region63: #{resnet_forward.26} parent=57 // loop_footer
                %s200 = sadd.s32 1, %s196
              $region64: #{resnet_forward.26} parent=57 // loop_footer_branch
                %195 = sbr.rel target = $region60
              $region65: #{resnet_forward.26} parent=57 // loop_exit
                _
            $region58: #{resnet_forward.26} parent=49 // pred_fallthru
              _
          $region50: #{resnet_forward.26} parent=45 // pred_fallthru
            _
          %407 = vnop
        $region46: #{resnet_forward.26} parent=15 // pred_fallthru
          _
      $region16: #{resnet_forward.26} parent=5 // pred_fallthru
        _
      %p408 = scmp.le.s32.totalorder 1, %s8
      %p409 = scmp.lt.s32.totalorder %s8, 5
      %p410 = pnand %p408, %p409
      %p411 = pneg %p410
      // Predicated region
      $region81: #{resnet_forward.26} parent=5 // pred_check
        _
      $region82: #{resnet_forward.26} parent=5 // pred_check_branch
        %413 = sbr.rel (%p410) target = $region84
      $region83: #{resnet_forward.26} parent=5 // pred_region
        %s414 = ssub.s32 %s8, 1
        %s415 = sand.u32 %s42, 1
        %s416 = sand.u32 %s42, 1
        %s417 = smul.addr %s416, 24
        %s418 = scalar_lea.vmem [#allocation3], %s417
        // Predicated region
        $region85: #{resnet_forward.26} parent=83 // pred_check
          %p419 = pneg %p55
        $region86: #{resnet_forward.26} parent=83 // pred_check_branch
          %421 = sbr.rel (%p419) target = $region88
        $region87: #{resnet_forward.26} parent=83 // pred_region
          _
        $region88: #{resnet_forward.26} parent=83 // pred_fallthru
          _
        %s422 = sand.u32 %s70, 1
        %s423 = sand.u32 %s70, 1
        %s424 = smul.addr %s423, 384
        %s425 = scalar_lea.vmem [#allocation4], %s424
        // Predicated region
        $region89: #{resnet_forward.26} parent=83 // pred_check
          %p426 = pneg %p83
        $region90: #{resnet_forward.26} parent=83 // pred_check_branch
          %428 = sbr.rel (%p426) target = $region92
        $region91: #{resnet_forward.26} parent=83 // pred_region
          _
        $region92: #{resnet_forward.26} parent=83 // pred_fallthru
          _
        %s429 = sand.u32 %s42, 1
        %s430 = sand.u32 %s42, 1
        %s431 = smul.addr %s430, 24
        %s432 = scalar_lea.vmem [#allocation3], %s431
        %p433 = pneg %p55
        %p434 = pneg %p52
        %s435 = sand.u32 %s70, 1
        %s436 = sand.u32 %s70, 1
        %s437 = smul.addr %s436, 384
        %s438 = scalar_lea.vmem [#allocation4], %s437
        %p439 = pneg %p83
        %p440 = pneg %p80
        %p441 = pneg %p111
        %p442 = pneg %p108
        %s443 = sand.u32 %s98, 1
        %s444 = sand.u32 %s98, 1
        %s445 = smul.addr %s444, 16
        %s446 = scalar_lea.vmem [#allocation5], %s445
        %s447 = smul.u32 2, %s18
        %s448 = smul.u32 3, %s20
        %s449 = smul.u32 48, %s20
        %s450 = smul.u32 2, %s19
        %s451 = smul.u32 2, %s18
        %s452 = smul.u32 2, %s19
        %p454 = scmp.eq.s32.totalorder %s20, 0
        // Predicated region
        $region93: #{resnet_forward.26} parent=83 // pred_check
          %p455 = pneg %p454
        $region94: #{resnet_forward.26} parent=83 // pred_check_branch
          %457 = sbr.rel (%p455) target = $region96
        $region95: #{resnet_forward.26} parent=83 // pred_region
          %458 = vst [vmem:[#allocation2] sm:$0xff] 0.0
          %459 = vst [vmem:[#allocation2 + $0x8] sm:$0xff] 0.0
          %460 = vst [vmem:[#allocation2 + $0x10] sm:$0xff] 0.0
          %461 = vst [vmem:[#allocation2 + $0x18] sm:$0xff] 0.0
        $region96: #{resnet_forward.26} parent=83 // pred_fallthru
          _
        %v462 = vld [vmem:[#allocation2] sm:$0xff]
        %v463 = vld [vmem:[#allocation2 + $0x8] sm:$0xff]
        %v464 = vld [vmem:[#allocation2 + $0x10] sm:$0xff]
        %v465 = vld [vmem:[#allocation2 + $0x18] sm:$0xff]
        %v466 = vld [vmem:[%s418] sm:$0xff]
        %v467 = vld [vmem:[%s418 + $0x8] sm:$0xf]
        %v468 = vld [vmem:[%s418 + $0xc] sm:$0xff]
        %v469 = vld [vmem:[%s418 + $0x14] sm:$0xf]
        %v470 = vld [vmem:[%s425] sm:$0xff]
        %v471 = vld [vmem:[%s425 + $0x8] sm:$0xff]
        %v472 = vld [vmem:[%s425 + $0x10] sm:$0xff]
        %v473 = vld [vmem:[%s425 + $0x18] sm:$0xff]
        %v474 = vld [vmem:[%s425 + $0x20] sm:$0xff]
        %v475 = vld [vmem:[%s425 + $0x28] sm:$0xff]
        %v476 = vld [vmem:[%s425 + $0x30] sm:$0xff]
        %v477 = vld [vmem:[%s425 + $0x38] sm:$0xff]
        %v478 = vld [vmem:[%s425 + $0x40] sm:$0xff]
        %v479 = vld [vmem:[%s425 + $0x48] sm:$0xff]
        %v480 = vld [vmem:[%s425 + $0x50] sm:$0xff]
        %v481 = vld [vmem:[%s425 + $0x58] sm:$0xff]
        %v482 = vld [vmem:[%s425 + $0x60] sm:$0xff]
        %v483 = vld [vmem:[%s425 + $0x68] sm:$0xff]
        %v484 = vld [vmem:[%s425 + $0x70] sm:$0xff]
        %v485 = vld [vmem:[%s425 + $0x78] sm:$0xff]
        %v486 = vld [vmem:[%s425 + $0x80] sm:$0xff]
        %v487 = vld [vmem:[%s425 + $0x88] sm:$0xff]
        %v488 = vld [vmem:[%s425 + $0x90] sm:$0xff]
        %v489 = vld [vmem:[%s425 + $0x98] sm:$0xff]
        %v490 = vld [vmem:[%s425 + $0xa0] sm:$0xff]
        %v491 = vld [vmem:[%s425 + $0xa8] sm:$0xff]
        %v492 = vld [vmem:[%s425 + $0xb0] sm:$0xff]
        %v493 = vld [vmem:[%s425 + $0xb8] sm:$0xff]
        %v494 = vld [vmem:[%s425 + $0xc0] sm:$0xff]
        %v495 = vld [vmem:[%s425 + $0xc8] sm:$0xff]
        %v496 = vld [vmem:[%s425 + $0xd0] sm:$0xff]
        %v497 = vld [vmem:[%s425 + $0xd8] sm:$0xff]
        %v498 = vld [vmem:[%s425 + $0xe0] sm:$0xff]
        %v499 = vld [vmem:[%s425 + $0xe8] sm:$0xff]
        %v500 = vld [vmem:[%s425 + $0xf0] sm:$0xff]
        %v501 = vld [vmem:[%s425 + $0xf8] sm:$0xff]
        %v502 = vld [vmem:[%s425 + $0x100] sm:$0xff]
        %v503 = vld [vmem:[%s425 + $0x108] sm:$0xff]
        %v504 = vld [vmem:[%s425 + $0x110] sm:$0xff]
        %v505 = vld [vmem:[%s425 + $0x118] sm:$0xff]
        %v506 = vld [vmem:[%s425 + $0x120] sm:$0xff]
        %v507 = vld [vmem:[%s425 + $0x128] sm:$0xff]
        %v508 = vld [vmem:[%s425 + $0x130] sm:$0xff]
        %v509 = vld [vmem:[%s425 + $0x138] sm:$0xff]
        %v510 = vld [vmem:[%s425 + $0x140] sm:$0xff]
        %v511 = vld [vmem:[%s425 + $0x148] sm:$0xff]
        %v512 = vld [vmem:[%s425 + $0x150] sm:$0xff]
        %v513 = vld [vmem:[%s425 + $0x158] sm:$0xff]
        %v514 = vld [vmem:[%s425 + $0x160] sm:$0xff]
        %v515 = vld [vmem:[%s425 + $0x168] sm:$0xff]
        %v516 = vld [vmem:[%s425 + $0x170] sm:$0xff]
        %v517 = vld [vmem:[%s425 + $0x178] sm:$0xff]
        %v522 = vunpack.c.l.b16 %v466
        %v523 = vunpack.c.h.b16 %v466
        %v524 = vunpack.c.l.b16 %v467
        %v525 = vunpack.c.l.b16 %v468
        %v526 = vunpack.c.h.b16 %v468
        %v527 = vunpack.c.l.b16 %v469
        %v528 = vpack.c.b16 %v525, %v522
        %v529 = vpack.c.b16 %v526, %v523
        %v530 = vpack.c.b16 %v527, %v524
        %v582 = vunpack.c.l.b16 %v470
        %v583 = vunpack.c.h.b16 %v470
        %v584 = vunpack.c.l.b16 %v471
        %v585 = vunpack.c.h.b16 %v471
        %v586 = vunpack.c.l.b16 %v472
        %v587 = vunpack.c.h.b16 %v472
        %v588 = vunpack.c.l.b16 %v473
        %v589 = vunpack.c.h.b16 %v473
        %v590 = vunpack.c.l.b16 %v474
        %v591 = vunpack.c.h.b16 %v474
        %v592 = vunpack.c.l.b16 %v475
        %v593 = vunpack.c.h.b16 %v475
        %v594 = vunpack.c.l.b16 %v476
        %v595 = vunpack.c.h.b16 %v476
        %v596 = vunpack.c.l.b16 %v477
        %v597 = vunpack.c.h.b16 %v477
        %v598 = vunpack.c.l.b16 %v478
        %v599 = vunpack.c.h.b16 %v478
        %v600 = vunpack.c.l.b16 %v479
        %v601 = vunpack.c.h.b16 %v479
        %v602 = vunpack.c.l.b16 %v480
        %v603 = vunpack.c.h.b16 %v480
        %v604 = vunpack.c.l.b16 %v481
        %v605 = vunpack.c.h.b16 %v481
        %v606 = vunpack.c.l.b16 %v482
        %v607 = vunpack.c.h.b16 %v482
        %v608 = vunpack.c.l.b16 %v483
        %v609 = vunpack.c.h.b16 %v483
        %v610 = vunpack.c.l.b16 %v484
        %v611 = vunpack.c.h.b16 %v484
        %v612 = vunpack.c.l.b16 %v485
        %v613 = vunpack.c.h.b16 %v485
        %v614 = vunpack.c.l.b16 %v486
        %v615 = vunpack.c.h.b16 %v486
        %v616 = vunpack.c.l.b16 %v487
        %v617 = vunpack.c.h.b16 %v487
        %v618 = vunpack.c.l.b16 %v488
        %v619 = vunpack.c.h.b16 %v488
        %v620 = vunpack.c.l.b16 %v489
        %v621 = vunpack.c.h.b16 %v489
        %v622 = vunpack.c.l.b16 %v490
        %v623 = vunpack.c.h.b16 %v490
        %v624 = vunpack.c.l.b16 %v491
        %v625 = vunpack.c.h.b16 %v491
        %v626 = vunpack.c.l.b16 %v492
        %v627 = vunpack.c.h.b16 %v492
        %v628 = vunpack.c.l.b16 %v493
        %v629 = vunpack.c.h.b16 %v493
        %v630 = vunpack.c.l.b16 %v494
        %v631 = vunpack.c.h.b16 %v494
        %v632 = vunpack.c.l.b16 %v495
        %v633 = vunpack.c.h.b16 %v495
        %v634 = vunpack.c.l.b16 %v496
        %v635 = vunpack.c.h.b16 %v496
        %v636 = vunpack.c.l.b16 %v497
        %v637 = vunpack.c.h.b16 %v497
        %v638 = vunpack.c.l.b16 %v498
        %v639 = vunpack.c.h.b16 %v498
        %v640 = vunpack.c.l.b16 %v499
        %v641 = vunpack.c.h.b16 %v499
        %v642 = vunpack.c.l.b16 %v500
        %v643 = vunpack.c.h.b16 %v500
        %v644 = vunpack.c.l.b16 %v501
        %v645 = vunpack.c.h.b16 %v501
        %v646 = vunpack.c.l.b16 %v502
        %v647 = vunpack.c.h.b16 %v502
        %v648 = vunpack.c.l.b16 %v503
        %v649 = vunpack.c.h.b16 %v503
        %v650 = vunpack.c.l.b16 %v504
        %v651 = vunpack.c.h.b16 %v504
        %v652 = vunpack.c.l.b16 %v505
        %v653 = vunpack.c.h.b16 %v505
        %v654 = vunpack.c.l.b16 %v506
        %v655 = vunpack.c.h.b16 %v506
        %v656 = vunpack.c.l.b16 %v507
        %v657 = vunpack.c.h.b16 %v507
        %v658 = vunpack.c.l.b16 %v508
        %v659 = vunpack.c.h.b16 %v508
        %v660 = vunpack.c.l.b16 %v509
        %v661 = vunpack.c.h.b16 %v509
        %v662 = vunpack.c.l.b16 %v510
        %v663 = vunpack.c.h.b16 %v510
        %v664 = vunpack.c.l.b16 %v511
        %v665 = vunpack.c.h.b16 %v511
        %v666 = vunpack.c.l.b16 %v512
        %v667 = vunpack.c.h.b16 %v512
        %v668 = vunpack.c.l.b16 %v513
        %v669 = vunpack.c.h.b16 %v513
        %v670 = vunpack.c.l.b16 %v514
        %v671 = vunpack.c.h.b16 %v514
        %v672 = vunpack.c.l.b16 %v515
        %v673 = vunpack.c.h.b16 %v515
        %v674 = vunpack.c.l.b16 %v516
        %v675 = vunpack.c.h.b16 %v516
        %v676 = vunpack.c.l.b16 %v517
        %v677 = vunpack.c.h.b16 %v517
        %v678 = vpack.c.b16 %v584, %v582
        %v679 = vpack.c.b16 %v585, %v583
        %v680 = vpack.c.b16 %v588, %v586
        %v681 = vpack.c.b16 %v589, %v587
        %v682 = vpack.c.b16 %v592, %v590
        %v683 = vpack.c.b16 %v593, %v591
        %v684 = vpack.c.b16 %v596, %v594
        %v685 = vpack.c.b16 %v597, %v595
        %v686 = vpack.c.b16 %v600, %v598
        %v687 = vpack.c.b16 %v601, %v599
        %v688 = vpack.c.b16 %v604, %v602
        %v689 = vpack.c.b16 %v605, %v603
        %v690 = vpack.c.b16 %v608, %v606
        %v691 = vpack.c.b16 %v609, %v607
        %v692 = vpack.c.b16 %v612, %v610
        %v693 = vpack.c.b16 %v613, %v611
        %v694 = vpack.c.b16 %v616, %v614
        %v695 = vpack.c.b16 %v617, %v615
        %v696 = vpack.c.b16 %v620, %v618
        %v697 = vpack.c.b16 %v621, %v619
        %v698 = vpack.c.b16 %v624, %v622
        %v699 = vpack.c.b16 %v625, %v623
        %v700 = vpack.c.b16 %v628, %v626
        %v701 = vpack.c.b16 %v629, %v627
        %v702 = vpack.c.b16 %v632, %v630
        %v703 = vpack.c.b16 %v633, %v631
        %v704 = vpack.c.b16 %v636, %v634
        %v705 = vpack.c.b16 %v637, %v635
        %v706 = vpack.c.b16 %v640, %v638
        %v707 = vpack.c.b16 %v641, %v639
        %v708 = vpack.c.b16 %v644, %v642
        %v709 = vpack.c.b16 %v645, %v643
        %v710 = vpack.c.b16 %v648, %v646
        %v711 = vpack.c.b16 %v649, %v647
        %v712 = vpack.c.b16 %v652, %v650
        %v713 = vpack.c.b16 %v653, %v651
        %v714 = vpack.c.b16 %v656, %v654
        %v715 = vpack.c.b16 %v657, %v655
        %v716 = vpack.c.b16 %v660, %v658
        %v717 = vpack.c.b16 %v661, %v659
        %v718 = vpack.c.b16 %v664, %v662
        %v719 = vpack.c.b16 %v665, %v663
        %v720 = vpack.c.b16 %v668, %v666
        %v721 = vpack.c.b16 %v669, %v667
        %v722 = vpack.c.b16 %v672, %v670
        %v723 = vpack.c.b16 %v673, %v671
        %v724 = vpack.c.b16 %v676, %v674
        %v725 = vpack.c.b16 %v677, %v675
        %774 = vmatprep.subr.bf16.mxu0 %v679
        %775 = vmatpush1.bf16.msra.mxu0 %v678
        %776 = vmatprep.subr.bf16.mxu0 %v681
        %777 = vmatpush1.bf16.msra.mxu0 %v680
        %778 = vmatprep.subr.bf16.mxu0 %v683
        %779 = vmatpush1.bf16.msra.mxu0 %v682
        %780 = vmatprep.subr.bf16.mxu0 %v685
        %781 = vmatpush1.bf16.msra.mxu0 %v684
        %782 = vmatprep.subr.bf16.mxu0 %v687
        %783 = vmatpush1.bf16.msra.mxu0 %v686
        %784 = vmatprep.subr.bf16.mxu0 %v689
        %785 = vmatpush1.bf16.msra.mxu0 %v688
        %786 = vmatprep.subr.bf16.mxu0 %v691
        %787 = vmatpush1.bf16.msra.mxu0 %v690
        %788 = vmatprep.subr.bf16.mxu0 %v693
        %789 = vmatpush1.bf16.msra.mxu0 %v692
        %790 = vmatprep.subr.bf16.mxu0 %v695
        %791 = vmatpush1.bf16.msra.mxu0 %v694
        %792 = vmatprep.subr.bf16.mxu0 %v697
        %793 = vmatpush1.bf16.msra.mxu0 %v696
        %794 = vmatprep.subr.bf16.mxu0 %v699
        %795 = vmatpush1.bf16.msra.mxu0 %v698
        %796 = vmatprep.subr.bf16.mxu0 %v701
        %797 = vmatpush1.bf16.msra.mxu0 %v700
        %798 = vmatprep.subr.bf16.mxu0 %v703
        %799 = vmatpush1.bf16.msra.mxu0 %v702
        %800 = vmatprep.subr.bf16.mxu0 %v705
        %801 = vmatpush1.bf16.msra.mxu0 %v704
        %802 = vmatprep.subr.bf16.mxu0 %v707
        %803 = vmatpush1.bf16.msra.mxu0 %v706
        %804 = vmatprep.subr.bf16.mxu0 %v709
        %805 = vmatpush1.bf16.msra.mxu0 %v708
        %806 = vmatprep.mubr.bf16.mxu0 %v529
        %807 = vmatmul.mubr.bf16.gmra.mrb[0].mxu0 %v528
        %v808 = vpop.f32.mrb[0].mxu0
        %v809 = vadd.f32 0.0, %v808
        %v810 = vpop.f32.mrb[0].mxu0
        %v811 = vadd.f32 0.0, %v810
        %v812 = vpop.f32.mrb[0].mxu0
        %v813 = vadd.f32 0.0, %v812
        %v814 = vpop.f32.mrb[0].mxu0
        %v815 = vadd.f32 0.0, %v814
        %816 = vdwg.mxu0
        %817 = vmatprep.subr.bf16.mxu0 %v711
        %818 = vmatpush1.bf16.msra.mxu0 %v710
        %819 = vmatprep.subr.bf16.mxu0 %v713
        %820 = vmatpush1.bf16.msra.mxu0 %v712
        %821 = vmatprep.subr.bf16.mxu0 %v715
        %822 = vmatpush1.bf16.msra.mxu0 %v714
        %823 = vmatprep.subr.bf16.mxu0 %v717
        %824 = vmatpush1.bf16.msra.mxu0 %v716
        %825 = vmatprep.subr.bf16.mxu0 %v719
        %826 = vmatpush1.bf16.msra.mxu0 %v718
        %827 = vmatprep.subr.bf16.mxu0 %v721
        %828 = vmatpush1.bf16.msra.mxu0 %v720
        %829 = vmatprep.subr.bf16.mxu0 %v723
        %830 = vmatpush1.bf16.msra.mxu0 %v722
        %831 = vmatprep.subr.bf16.mxu0 %v725
        %832 = vmatpush1.bf16.msra.mxu0 %v724
        %833 = vmatprep.subr.bf16.mxu0 0
        %834 = vmatpush1.bf16.msra.mxu0 0
        %835 = vmatprep.subr.bf16.mxu0 0
        %836 = vmatpush1.bf16.msra.mxu0 0
        %837 = vmatprep.subr.bf16.mxu0 0
        %838 = vmatpush1.bf16.msra.mxu0 0
        %839 = vmatprep.subr.bf16.mxu0 0
        %840 = vmatpush1.bf16.msra.mxu0 0
        %841 = vmatprep.subr.bf16.mxu0 0
        %842 = vmatpush1.bf16.msra.mxu0 0
        %843 = vmatprep.subr.bf16.mxu0 0
        %844 = vmatpush1.bf16.msra.mxu0 0
        %845 = vmatprep.subr.bf16.mxu0 0
        %846 = vmatpush1.bf16.msra.mxu0 0
        %847 = vmatprep.subr.bf16.mxu0 0
        %848 = vmatpush1.bf16.msra.mxu0 0
        %849 = vmatprep.mubr.bf16.mxu0 0
        %850 = vmatmul.mubr.bf16.gmra.mrb[0].mxu0 %v530
        %v851 = vpop.f32.mrb[0].mxu0
        %v852 = vadd.f32 %v809, %v851
        %v853 = vpop.f32.mrb[0].mxu0
        %v854 = vadd.f32 %v811, %v853
        %v855 = vpop.f32.mrb[0].mxu0
        %v856 = vadd.f32 %v813, %v855
        %v857 = vpop.f32.mrb[0].mxu0
        %v858 = vadd.f32 %v815, %v857
        %859 = vdwg.mxu0
        %v860 = vadd.f32 %v462, %v852
        %v861 = vadd.f32 %v463, %v854
        %v862 = vadd.f32 %v464, %v856
        %v863 = vadd.f32 %v465, %v858
        %864 = vst [vmem:[#allocation2] sm:$0xff] %v860
        %865 = vst [vmem:[#allocation2 + $0x8] sm:$0xff] %v861
        %866 = vst [vmem:[#allocation2 + $0x10] sm:$0xff] %v862
        %867 = vst [vmem:[#allocation2 + $0x18] sm:$0xff] %v863
        %p868 = scmp.eq.s32.totalorder %s20, 1
        // Predicated region
        $region97: #{resnet_forward.26} parent=83 // pred_check
          %p869 = pneg %p868
        $region98: #{resnet_forward.26} parent=83 // pred_check_branch
          %871 = sbr.rel (%p869) target = $region100
        $region99: #{resnet_forward.26} parent=83 // pred_region
          %v872 = vld [vmem:[#allocation2] sm:$0xff]
          %v873 = vld [vmem:[#allocation2 + $0x8] sm:$0xff]
          %v874 = vld [vmem:[#allocation2 + $0x10] sm:$0xff]
          %v875 = vld [vmem:[#allocation2 + $0x18] sm:$0xff]
          %v876 = vmax.f32 %v872, 0.0
          %v877 = vmax.f32 %v873, 0.0
          %v878 = vmax.f32 %v874, 0.0
          %v879 = vmax.f32 %v875, 0.0
          %v880 = vpack.c.bf16 %v878, %v876
          %v881 = vpack.c.bf16 %v879, %v877
          %v884 = vunpack.c.l.b16 %v880
          %v885 = vunpack.c.l.b16 %v881
          %v886 = vunpack.c.h.b16 %v880
          %v887 = vunpack.c.h.b16 %v881
          %v888 = vpack.c.b16 %v885, %v884
          %v889 = vpack.c.b16 %v887, %v886
          %892 = vst [vmem:[%s446] sm:$0xff] %v888
          %893 = vst [vmem:[%s446 + $0x8] sm:$0xff] %v889
        $region100: #{resnet_forward.26} parent=83 // pred_fallthru
          _
        %s894 = sand.u32 %s98, 1
        %s895 = sand.u32 %s98, 1
        %s896 = smul.addr %s895, 16
        %s897 = scalar_lea.vmem [#allocation5], %s896
        // Predicated region
        $region101: #{resnet_forward.26} parent=83 // pred_check
          %p898 = pneg %p108
        $region102: #{resnet_forward.26} parent=83 // pred_check_branch
          %900 = sbr.rel (%p898) target = $region104
        $region103: #{resnet_forward.26} parent=83 // pred_region
          %s901 = smul.u32 2, %s18
          %s902 = smul.u32 2, %s19
          %s903 = smul.addr %s901, 4
          %s904 = sadd.s32 %s902, %s903
          %s905 = smul.addr %s904, 4
          %s906 = scalar_lea.vmem %s2, %s905
          // Predicated region
          $region105: #{resnet_forward.26} parent=103 // pred_check
            _
          $region106: #{resnet_forward.26} parent=103 // pred_check_branch
            %908 = sbr.rel (0) target = $region108
          $region107: #{resnet_forward.26} parent=103 // pred_region
            // Predicated region
            $region109: #{resnet_forward.26} parent=107 // pred_check
              _
            $region110: #{resnet_forward.26} parent=107 // pred_check_branch
              %910 = sbr.rel (0) target = $region112
            $region111: #{resnet_forward.26} parent=107 // pred_region
              // Predicated region
              $region124: #{resnet_forward.26} parent=111 // pred_check
                _
              $region125: #{resnet_forward.26} parent=111 // pred_check_branch
                %927 = sbr.rel (0) target = $region127
              $region126: #{resnet_forward.26} parent=111 // pred_region
                loop: start=0, step=1, limit=1
                $region128: #{resnet_forward.26} parent=126 // loop_pre_header
                  _
                $region129: #{resnet_forward.26} parent=126 // loop_header
                  %s929 = sphi 0, %s933
                  %p930 = scmp.ge.s32.totalorder %s929, 1
                  %s934 = sphi %s897, %s897
                  %s935 = sphi %s906, %s906
                $region130: #{resnet_forward.26} parent=126 // loop_header_branch
                  %932 = sbr.rel (%p930) target = $region134
                $region131: #{resnet_forward.26} parent=126 // loop_body
                  %v936 = vld [vmem:[%s934] sm:$0xff]
                  %937 = vst [vmem:[%s935] sm:$0xff] %v936
                  %v938 = vld [vmem:[%s934 + $0x8] sm:$0xff]
                  %939 = vst [vmem:[%s935 + $0x10] sm:$0xff] %v938
                $region132: #{resnet_forward.26} parent=126 // loop_footer
                  %s933 = sadd.s32 1, %s929
                $region133: #{resnet_forward.26} parent=126 // loop_footer_branch
                  %928 = sbr.rel target = $region129
                $region134: #{resnet_forward.26} parent=126 // loop_exit
                  _
              $region127: #{resnet_forward.26} parent=111 // pred_fallthru
                _
              // Predicated region
              $region135: #{resnet_forward.26} parent=111 // pred_check
                _
              $region136: #{resnet_forward.26} parent=111 // pred_check_branch
                %941 = sbr.rel target = $region138
              $region137: #{resnet_forward.26} parent=111 // pred_region
                _
              $region138: #{resnet_forward.26} parent=111 // pred_fallthru
                _
            $region112: #{resnet_forward.26} parent=107 // pred_fallthru
              _
            // Predicated region
            $region113: #{resnet_forward.26} parent=107 // pred_check
              _
            $region114: #{resnet_forward.26} parent=107 // pred_check_branch
              %912 = sbr.rel target = $region116
            $region115: #{resnet_forward.26} parent=107 // pred_region
              loop: start=0, step=1, limit=1
              $region117: #{resnet_forward.26} parent=115 // loop_pre_header
                _
              $region118: #{resnet_forward.26} parent=115 // loop_header
                %s915 = sphi 0, %s919
                %p916 = scmp.ge.s32.totalorder %s915, 1
                %s920 = sphi %s897, %s897
                %s921 = sphi %s906, %s906
              $region119: #{resnet_forward.26} parent=115 // loop_header_branch
                %918 = sbr.rel (%p916) target = $region123
              $region120: #{resnet_forward.26} parent=115 // loop_body
                %v922 = vld [vmem:[%s920] sm:$0xff]
                %923 = vst [vmem:[%s921] sm:$0xff] %v922
                %v924 = vld [vmem:[%s920 + $0x8] sm:$0xff]
                %925 = vst [vmem:[%s921 + $0x10] sm:$0xff] %v924
              $region121: #{resnet_forward.26} parent=115 // loop_footer
                %s919 = sadd.s32 1, %s915
              $region122: #{resnet_forward.26} parent=115 // loop_footer_branch
                %914 = sbr.rel target = $region118
              $region123: #{resnet_forward.26} parent=115 // loop_exit
                _
            $region116: #{resnet_forward.26} parent=107 // pred_fallthru
              _
          $region108: #{resnet_forward.26} parent=103 // pred_fallthru
            _
          %942 = vnop
        $region104: #{resnet_forward.26} parent=83 // pred_fallthru
          _
      $region84: #{resnet_forward.26} parent=5 // pred_fallthru
        _
      %p943 = scmp.le.s32.totalorder 2, %s8
      // Predicated region
      $region139: #{resnet_forward.26} parent=5 // pred_check
        %p944 = pneg %p943
      $region140: #{resnet_forward.26} parent=5 // pred_check_branch
        %946 = sbr.rel (%p944) target = $region142
      $region141: #{resnet_forward.26} parent=5 // pred_region
        %s947 = ssub.s32 %s8, 2
        // Predicated region
        $region143: #{resnet_forward.26} parent=141 // pred_check
          %p948 = pneg %p114
        $region144: #{resnet_forward.26} parent=141 // pred_check_branch
          %950 = sbr.rel (%p948) target = $region146
        $region145: #{resnet_forward.26} parent=141 // pred_region
          %s951 = sand.u32 %s99, 1
          %s952 = sand.u32 %s99, 1
          %s953 = smul.addr %s952, 16
          %s954 = scalar_lea.vmem [#allocation5], %s953
        $region146: #{resnet_forward.26} parent=141 // pred_fallthru
          _
      $region142: #{resnet_forward.26} parent=5 // pred_fallthru
        _
    $region6: #{resnet_forward.26} parent=1 // loop_footer
      %s12 = sadd.s32 1, %s8
    $region7: #{resnet_forward.26} parent=1 // loop_footer_branch
      %7 = sbr.rel target = $region3
    $region8: #{resnet_forward.26} parent=1 // loop_exit
      _

// kernel: resnet_forward.25
$region0: #{resnet_forward.25}
  #allocation0 [shape = 'u32[]', space=smem, size = 0x4, offset = 0x4, fixed_abs, tag = 'smem constant byte address 0x4 - core index']
  #allocation1 [shape = 'u32[144,128]{1,0:T(1,128)}', space=vmem, size = 0x12000, scoped, tag = 'internal scratch']
  #allocation2 [shape = 'f32[16,256]{1,0:T(8,128)}', space=vmem, size = 0x4000, scoped, tag = 'scratch operand']
  %s0 = inlined_call_operand.vmem [shape: bf16[16,256], index: 0, kind: input, shape index: {}]
  %s1 = inlined_call_operand.vmem [shape: bf16[256,512], index: 1, kind: input, shape index: {}]
  %s2 = inlined_call_operand.vmem [shape: bf16[16,512], index: 2, kind: output, shape index: {}]
  %s3 = sld [smem:[#allocation0]]
  $region121: #{resnet_forward.25} parent=0
    _
  %s5 = ssub.s32 1, %s3
  %s6 = scalar_select 0, %s5, %s3
  $region1: #{resnet_forward.25} parent=0
    #allocation3 [shape = 'u8[262144]{0}', space=vmem, size = 0x40000, scoped, tag = 'input window, operand 1']
    #allocation4 [shape = 'u8[16384]{0}', space=vmem, size = 0x4000, scoped, tag = 'output window, operand 0']
    loop: start=0, step=1, limit=4
    $region2: #{resnet_forward.25} parent=1 // loop_pre_header
      _
    $region3: #{resnet_forward.25} parent=1 // loop_header
      %s8 = sphi 0, %s12
      %p9 = scmp.ge.s32.totalorder %s8, 4
      %s15 = sphi 0, %s34
      %s16 = sphi 0, %s30
      %s17 = sphi 0, %s26
      %s18 = sphi 0, %s15
      %s19 = sphi 0, %s16
      %s20 = sphi 0, %s17
      %s21 = sphi 0, %s18
      %s22 = sphi 0, %s19
      %s23 = sphi 0, %s20
      %s39 = sphi 0, %s41
      %s42 = sphi 0, %s39
      %s43 = sphi 0, %s42
      %s59 = sphi 0, %s43
      %s67 = sphi 0, %s69
      %s70 = sphi 0, %s67
      %s71 = sphi 0, %s70
      %s87 = sphi 0, %s71
      %s95 = sphi 0, %s97
      %s98 = sphi 0, %s95
      %s99 = sphi 0, %s98
      %s115 = sphi 0, %s99
    $region4: #{resnet_forward.25} parent=1 // loop_header_branch
      %11 = sbr.rel (%p9) target = $region8
    $region5: #{resnet_forward.25} parent=1 // loop_body
      %s13 = ssub.s32 %s8, 1
      %s14 = ssub.s32 %s8, 2
      %s24 = sadd.s32 1, %s17
      %p25 = scmp.ge.s32.totalorder %s24, 1
      %s26 = scalar_select %p25, 0, %s24
      %s27 = sadd.s32 1, %s16
      %s28 = scalar_select %p25, %s27, %s16
      %p29 = scmp.ge.s32.totalorder %s28, 2
      %s30 = scalar_select %p29, 0, %s28
      %s31 = sadd.s32 1, %s15
      %s32 = scalar_select %p29, %s31, %s15
      %p33 = scmp.ge.s32.totalorder %s32, 1
      %s34 = scalar_select %p33, 0, %s32
      %s35 = ssub.s32 %s15, %s34
      %s36 = ssub.s32 %s17, %s26
      %s37 = sor.u32 %s35, %s36
      %p38 = scmp.eq.s32.totalorder %s37, 0
      %s40 = sadd.s32 %s39, 1
      %s41 = scalar_select %p38, %s39, %s40
      %p44 = pneg %p38
      %p45 = scmp.eq.s32.totalorder %s8, 1
      %p46 = por %p44, %p45
      %p47 = scmp.ne.s32.totalorder %s39, %s42
      %p48 = scmp.eq.s32.totalorder %s8, 0
      %p49 = por %p47, %p48
      %p50 = scmp.ne.s32.totalorder %s39, %s42
      %p51 = scmp.eq.s32.totalorder %s13, 1
      %p52 = por %p50, %p51
      %p53 = scmp.ne.s32.totalorder %s42, %s43
      %p54 = scmp.eq.s32.totalorder %s13, 0
      %p55 = por %p53, %p54
      %p56 = scmp.ne.s32.totalorder %s42, %s43
      %p57 = scmp.eq.s32.totalorder %s14, 1
      %p58 = por %p56, %p57
      %p60 = scmp.ne.s32.totalorder %s43, %s59
      %p61 = scmp.eq.s32.totalorder %s14, 0
      %p62 = por %p60, %p61
      %s63 = ssub.s32 %s17, %s26
      %s64 = ssub.s32 %s16, %s30
      %s65 = sor.u32 %s63, %s64
      %p66 = scmp.eq.s32.totalorder %s65, 0
      %s68 = sadd.s32 %s67, 1
      %s69 = scalar_select %p66, %s67, %s68
      %p72 = pneg %p66
      %p73 = scmp.eq.s32.totalorder %s8, 1
      %p74 = por %p72, %p73
      %p75 = scmp.ne.s32.totalorder %s67, %s70
      %p76 = scmp.eq.s32.totalorder %s8, 0
      %p77 = por %p75, %p76
      %p78 = scmp.ne.s32.totalorder %s67, %s70
      %p79 = scmp.eq.s32.totalorder %s13, 1
      %p80 = por %p78, %p79
      %p81 = scmp.ne.s32.totalorder %s70, %s71
      %p82 = scmp.eq.s32.totalorder %s13, 0
      %p83 = por %p81, %p82
      %p84 = scmp.ne.s32.totalorder %s70, %s71
      %p85 = scmp.eq.s32.totalorder %s14, 1
      %p86 = por %p84, %p85
      %p88 = scmp.ne.s32.totalorder %s71, %s87
      %p89 = scmp.eq.s32.totalorder %s14, 0
      %p90 = por %p88, %p89
      %s91 = ssub.s32 %s15, %s34
      %s92 = ssub.s32 %s16, %s30
      %s93 = sor.u32 %s91, %s92
      %p94 = scmp.eq.s32.totalorder %s93, 0
      %s96 = sadd.s32 %s95, 1
      %s97 = scalar_select %p94, %s95, %s96
      %p100 = pneg %p94
      %p101 = scmp.eq.s32.totalorder %s8, 1
      %p102 = por %p100, %p101
      %p103 = scmp.ne.s32.totalorder %s95, %s98
      %p104 = scmp.eq.s32.totalorder %s8, 0
      %p105 = por %p103, %p104
      %p106 = scmp.ne.s32.totalorder %s95, %s98
      %p107 = scmp.eq.s32.totalorder %s13, 1
      %p108 = por %p106, %p107
      %p109 = scmp.ne.s32.totalorder %s98, %s99
      %p110 = scmp.eq.s32.totalorder %s13, 0
      %p111 = por %p109, %p110
      %p112 = scmp.ne.s32.totalorder %s98, %s99
      %p113 = scmp.eq.s32.totalorder %s14, 1
      %p114 = por %p112, %p113
      %p116 = scmp.ne.s32.totalorder %s99, %s115
      %p117 = scmp.eq.s32.totalorder %s14, 0
      %p118 = por %p116, %p117
      %p119 = scmp.le.s32.totalorder 1, %s8
      %p120 = scmp.lt.s32.totalorder %s8, 3
      %p121 = pnand %p119, %p120
      %p122 = pneg %p121
      // Predicated region
      $region9: #{resnet_forward.25} parent=5 // pred_check
        _
      $region10: #{resnet_forward.25} parent=5 // pred_check_branch
        %124 = sbr.rel (%p121) target = $region12
      $region11: #{resnet_forward.25} parent=5 // pred_region
        %s125 = ssub.s32 %s8, 1
        // Predicated region
        $region13: #{resnet_forward.25} parent=11 // pred_check
          %p126 = pneg %p55
        $region14: #{resnet_forward.25} parent=11 // pred_check_branch
          %128 = sbr.rel (%p126) target = $region16
        $region15: #{resnet_forward.25} parent=11 // pred_region
          %s129 = smul.u32 2, %s18
          %s130 = smul.u32 2, %s20
          %p131 = scmp.lt.s32.totalorder %s129, 1
          %s132 = scalar_select %p131, %s129, 1
          %p133 = scmp.lt.s32.totalorder %s130, 1
          %s134 = scalar_select %p133, %s130, 1
          %s135 = smul.addr %s132, 2
          %s136 = sadd.s32 %s134, %s135
          %s137 = smul.addr %s136, 4
          %s138 = scalar_lea.vmem %s0, %s137
          %s139 = smul.u32 2, %s18
          %s140 = smul.u32 2, %s20
        $region16: #{resnet_forward.25} parent=11 // pred_fallthru
          _
      $region12: #{resnet_forward.25} parent=5 // pred_fallthru
        _
      %p141 = scmp.lt.s32.totalorder %s8, 2
      // Predicated region
      $region17: #{resnet_forward.25} parent=5 // pred_check
        %p142 = pneg %p141
      $region18: #{resnet_forward.25} parent=5 // pred_check_branch
        %144 = sbr.rel (%p142) target = $region20
      $region19: #{resnet_forward.25} parent=5 // pred_region
        // Predicated region
        $region21: #{resnet_forward.25} parent=19 // pred_check
          %p145 = pneg %p77
        $region22: #{resnet_forward.25} parent=19 // pred_check_branch
          %147 = sbr.rel (%p145) target = $region24
        $region23: #{resnet_forward.25} parent=19 // pred_region
          %s148 = sand.u32 %s67, 1
          %s149 = sand.u32 %s67, 1
          %s150 = smul.addr %s149, 256
          %s151 = scalar_lea.vmem [#allocation3], %s150
          %s152 = smul.u32 32, %s17
          %s153 = smul.u32 2, %s16
          %s154 = smul.addr %s152, 4
          %s155 = sadd.s32 %s153, %s154
          %s156 = smul.addr %s155, 4
          %s157 = scalar_lea.vmem %s1, %s156
          // Predicated region
          $region25: #{resnet_forward.25} parent=23 // pred_check
            _
          $region26: #{resnet_forward.25} parent=23 // pred_check_branch
            %159 = sbr.rel (0) target = $region28
          $region27: #{resnet_forward.25} parent=23 // pred_region
            // Predicated region
            $region29: #{resnet_forward.25} parent=27 // pred_check
              _
            $region30: #{resnet_forward.25} parent=27 // pred_check_branch
              %161 = sbr.rel (0) target = $region32
            $region31: #{resnet_forward.25} parent=27 // pred_region
              // Predicated region
              $region44: #{resnet_forward.25} parent=31 // pred_check
                _
              $region45: #{resnet_forward.25} parent=31 // pred_check_branch
                %238 = sbr.rel (0) target = $region47
              $region46: #{resnet_forward.25} parent=31 // pred_region
                loop: start=0, step=1, limit=1
                $region48: #{resnet_forward.25} parent=46 // loop_pre_header
                  _
                $region49: #{resnet_forward.25} parent=46 // loop_header
                  %s240 = sphi 0, %s244
                  %p241 = scmp.ge.s32.totalorder %s240, 1
                  %s245 = sphi %s157, %s157
                  %s246 = sphi %s151, %s151
                $region50: #{resnet_forward.25} parent=46 // loop_header_branch
                  %243 = sbr.rel (%p241) target = $region54
                $region51: #{resnet_forward.25} parent=46 // loop_body
                  %v247 = vld [vmem:[%s245] sm:$0xff]
                  %248 = vst [vmem:[%s246] sm:$0xff] %v247
                  %v249 = vld [vmem:[%s245 + $0x10] sm:$0xff]
                  %250 = vst [vmem:[%s246 + $0x8] sm:$0xff] %v249
                  %v251 = vld [vmem:[%s245 + $0x20] sm:$0xff]
                  %252 = vst [vmem:[%s246 + $0x10] sm:$0xff] %v251
                  %v253 = vld [vmem:[%s245 + $0x30] sm:$0xff]
                  %254 = vst [vmem:[%s246 + $0x18] sm:$0xff] %v253
                  %v255 = vld [vmem:[%s245 + $0x40] sm:$0xff]
                  %256 = vst [vmem:[%s246 + $0x20] sm:$0xff] %v255
                  %v257 = vld [vmem:[%s245 + $0x50] sm:$0xff]
                  %258 = vst [vmem:[%s246 + $0x28] sm:$0xff] %v257
                  %v259 = vld [vmem:[%s245 + $0x60] sm:$0xff]
                  %260 = vst [vmem:[%s246 + $0x30] sm:$0xff] %v259
                  %v261 = vld [vmem:[%s245 + $0x70] sm:$0xff]
                  %262 = vst [vmem:[%s246 + $0x38] sm:$0xff] %v261
                  %v263 = vld [vmem:[%s245 + $0x80] sm:$0xff]
                  %264 = vst [vmem:[%s246 + $0x40] sm:$0xff] %v263
                  %v265 = vld [vmem:[%s245 + $0x90] sm:$0xff]
                  %266 = vst [vmem:[%s246 + $0x48] sm:$0xff] %v265
                  %v267 = vld [vmem:[%s245 + $0xa0] sm:$0xff]
                  %268 = vst [vmem:[%s246 + $0x50] sm:$0xff] %v267
                  %v269 = vld [vmem:[%s245 + $0xb0] sm:$0xff]
                  %270 = vst [vmem:[%s246 + $0x58] sm:$0xff] %v269
                  %v271 = vld [vmem:[%s245 + $0xc0] sm:$0xff]
                  %272 = vst [vmem:[%s246 + $0x60] sm:$0xff] %v271
                  %v273 = vld [vmem:[%s245 + $0xd0] sm:$0xff]
                  %274 = vst [vmem:[%s246 + $0x68] sm:$0xff] %v273
                  %v275 = vld [vmem:[%s245 + $0xe0] sm:$0xff]
                  %276 = vst [vmem:[%s246 + $0x70] sm:$0xff] %v275
                  %v277 = vld [vmem:[%s245 + $0xf0] sm:$0xff]
                  %278 = vst [vmem:[%s246 + $0x78] sm:$0xff] %v277
                  %v279 = vld [vmem:[%s245 + $0x100] sm:$0xff]
                  %280 = vst [vmem:[%s246 + $0x80] sm:$0xff] %v279
                  %v281 = vld [vmem:[%s245 + $0x110] sm:$0xff]
                  %282 = vst [vmem:[%s246 + $0x88] sm:$0xff] %v281
                  %v283 = vld [vmem:[%s245 + $0x120] sm:$0xff]
                  %284 = vst [vmem:[%s246 + $0x90] sm:$0xff] %v283
                  %v285 = vld [vmem:[%s245 + $0x130] sm:$0xff]
                  %286 = vst [vmem:[%s246 + $0x98] sm:$0xff] %v285
                  %v287 = vld [vmem:[%s245 + $0x140] sm:$0xff]
                  %288 = vst [vmem:[%s246 + $0xa0] sm:$0xff] %v287
                  %v289 = vld [vmem:[%s245 + $0x150] sm:$0xff]
                  %290 = vst [vmem:[%s246 + $0xa8] sm:$0xff] %v289
                  %v291 = vld [vmem:[%s245 + $0x160] sm:$0xff]
                  %292 = vst [vmem:[%s246 + $0xb0] sm:$0xff] %v291
                  %v293 = vld [vmem:[%s245 + $0x170] sm:$0xff]
                  %294 = vst [vmem:[%s246 + $0xb8] sm:$0xff] %v293
                  %v295 = vld [vmem:[%s245 + $0x180] sm:$0xff]
                  %296 = vst [vmem:[%s246 + $0xc0] sm:$0xff] %v295
                  %v297 = vld [vmem:[%s245 + $0x190] sm:$0xff]
                  %298 = vst [vmem:[%s246 + $0xc8] sm:$0xff] %v297
                  %v299 = vld [vmem:[%s245 + $0x1a0] sm:$0xff]
                  %300 = vst [vmem:[%s246 + $0xd0] sm:$0xff] %v299
                  %v301 = vld [vmem:[%s245 + $0x1b0] sm:$0xff]
                  %302 = vst [vmem:[%s246 + $0xd8] sm:$0xff] %v301
                  %v303 = vld [vmem:[%s245 + $0x1c0] sm:$0xff]
                  %304 = vst [vmem:[%s246 + $0xe0] sm:$0xff] %v303
                  %v305 = vld [vmem:[%s245 + $0x1d0] sm:$0xff]
                  %306 = vst [vmem:[%s246 + $0xe8] sm:$0xff] %v305
                  %v307 = vld [vmem:[%s245 + $0x1e0] sm:$0xff]
                  %308 = vst [vmem:[%s246 + $0xf0] sm:$0xff] %v307
                  %v309 = vld [vmem:[%s245 + $0x1f0] sm:$0xff]
                  %310 = vst [vmem:[%s246 + $0xf8] sm:$0xff] %v309
                $region52: #{resnet_forward.25} parent=46 // loop_footer
                  %s244 = sadd.s32 1, %s240
                $region53: #{resnet_forward.25} parent=46 // loop_footer_branch
                  %239 = sbr.rel target = $region49
                $region54: #{resnet_forward.25} parent=46 // loop_exit
                  _
              $region47: #{resnet_forward.25} parent=31 // pred_fallthru
                _
              // Predicated region
              $region55: #{resnet_forward.25} parent=31 // pred_check
                _
              $region56: #{resnet_forward.25} parent=31 // pred_check_branch
                %312 = sbr.rel target = $region58
              $region57: #{resnet_forward.25} parent=31 // pred_region
                _
              $region58: #{resnet_forward.25} parent=31 // pred_fallthru
                _
            $region32: #{resnet_forward.25} parent=27 // pred_fallthru
              _
            // Predicated region
            $region33: #{resnet_forward.25} parent=27 // pred_check
              _
            $region34: #{resnet_forward.25} parent=27 // pred_check_branch
              %163 = sbr.rel target = $region36
            $region35: #{resnet_forward.25} parent=27 // pred_region
              loop: start=0, step=1, limit=1
              $region37: #{resnet_forward.25} parent=35 // loop_pre_header
                _
              $region38: #{resnet_forward.25} parent=35 // loop_header
                %s166 = sphi 0, %s170
                %p167 = scmp.ge.s32.totalorder %s166, 1
                %s171 = sphi %s157, %s157
                %s172 = sphi %s151, %s151
              $region39: #{resnet_forward.25} parent=35 // loop_header_branch
                %169 = sbr.rel (%p167) target = $region43
              $region40: #{resnet_forward.25} parent=35 // loop_body
                %v173 = vld [vmem:[%s171] sm:$0xff]
                %174 = vst [vmem:[%s172] sm:$0xff] %v173
                %v175 = vld [vmem:[%s171 + $0x10] sm:$0xff]
                %176 = vst [vmem:[%s172 + $0x8] sm:$0xff] %v175
                %v177 = vld [vmem:[%s171 + $0x20] sm:$0xff]
                %178 = vst [vmem:[%s172 + $0x10] sm:$0xff] %v177
                %v179 = vld [vmem:[%s171 + $0x30] sm:$0xff]
                %180 = vst [vmem:[%s172 + $0x18] sm:$0xff] %v179
                %v181 = vld [vmem:[%s171 + $0x40] sm:$0xff]
                %182 = vst [vmem:[%s172 + $0x20] sm:$0xff] %v181
                %v183 = vld [vmem:[%s171 + $0x50] sm:$0xff]
                %184 = vst [vmem:[%s172 + $0x28] sm:$0xff] %v183
                %v185 = vld [vmem:[%s171 + $0x60] sm:$0xff]
                %186 = vst [vmem:[%s172 + $0x30] sm:$0xff] %v185
                %v187 = vld [vmem:[%s171 + $0x70] sm:$0xff]
                %188 = vst [vmem:[%s172 + $0x38] sm:$0xff] %v187
                %v189 = vld [vmem:[%s171 + $0x80] sm:$0xff]
                %190 = vst [vmem:[%s172 + $0x40] sm:$0xff] %v189
                %v191 = vld [vmem:[%s171 + $0x90] sm:$0xff]
                %192 = vst [vmem:[%s172 + $0x48] sm:$0xff] %v191
                %v193 = vld [vmem:[%s171 + $0xa0] sm:$0xff]
                %194 = vst [vmem:[%s172 + $0x50] sm:$0xff] %v193
                %v195 = vld [vmem:[%s171 + $0xb0] sm:$0xff]
                %196 = vst [vmem:[%s172 + $0x58] sm:$0xff] %v195
                %v197 = vld [vmem:[%s171 + $0xc0] sm:$0xff]
                %198 = vst [vmem:[%s172 + $0x60] sm:$0xff] %v197
                %v199 = vld [vmem:[%s171 + $0xd0] sm:$0xff]
                %200 = vst [vmem:[%s172 + $0x68] sm:$0xff] %v199
                %v201 = vld [vmem:[%s171 + $0xe0] sm:$0xff]
                %202 = vst [vmem:[%s172 + $0x70] sm:$0xff] %v201
                %v203 = vld [vmem:[%s171 + $0xf0] sm:$0xff]
                %204 = vst [vmem:[%s172 + $0x78] sm:$0xff] %v203
                %v205 = vld [vmem:[%s171 + $0x100] sm:$0xff]
                %206 = vst [vmem:[%s172 + $0x80] sm:$0xff] %v205
                %v207 = vld [vmem:[%s171 + $0x110] sm:$0xff]
                %208 = vst [vmem:[%s172 + $0x88] sm:$0xff] %v207
                %v209 = vld [vmem:[%s171 + $0x120] sm:$0xff]
                %210 = vst [vmem:[%s172 + $0x90] sm:$0xff] %v209
                %v211 = vld [vmem:[%s171 + $0x130] sm:$0xff]
                %212 = vst [vmem:[%s172 + $0x98] sm:$0xff] %v211
                %v213 = vld [vmem:[%s171 + $0x140] sm:$0xff]
                %214 = vst [vmem:[%s172 + $0xa0] sm:$0xff] %v213
                %v215 = vld [vmem:[%s171 + $0x150] sm:$0xff]
                %216 = vst [vmem:[%s172 + $0xa8] sm:$0xff] %v215
                %v217 = vld [vmem:[%s171 + $0x160] sm:$0xff]
                %218 = vst [vmem:[%s172 + $0xb0] sm:$0xff] %v217
                %v219 = vld [vmem:[%s171 + $0x170] sm:$0xff]
                %220 = vst [vmem:[%s172 + $0xb8] sm:$0xff] %v219
                %v221 = vld [vmem:[%s171 + $0x180] sm:$0xff]
                %222 = vst [vmem:[%s172 + $0xc0] sm:$0xff] %v221
                %v223 = vld [vmem:[%s171 + $0x190] sm:$0xff]
                %224 = vst [vmem:[%s172 + $0xc8] sm:$0xff] %v223
                %v225 = vld [vmem:[%s171 + $0x1a0] sm:$0xff]
                %226 = vst [vmem:[%s172 + $0xd0] sm:$0xff] %v225
                %v227 = vld [vmem:[%s171 + $0x1b0] sm:$0xff]
                %228 = vst [vmem:[%s172 + $0xd8] sm:$0xff] %v227
                %v229 = vld [vmem:[%s171 + $0x1c0] sm:$0xff]
                %230 = vst [vmem:[%s172 + $0xe0] sm:$0xff] %v229
                %v231 = vld [vmem:[%s171 + $0x1d0] sm:$0xff]
                %232 = vst [vmem:[%s172 + $0xe8] sm:$0xff] %v231
                %v233 = vld [vmem:[%s171 + $0x1e0] sm:$0xff]
                %234 = vst [vmem:[%s172 + $0xf0] sm:$0xff] %v233
                %v235 = vld [vmem:[%s171 + $0x1f0] sm:$0xff]
                %236 = vst [vmem:[%s172 + $0xf8] sm:$0xff] %v235
              $region41: #{resnet_forward.25} parent=35 // loop_footer
                %s170 = sadd.s32 1, %s166
              $region42: #{resnet_forward.25} parent=35 // loop_footer_branch
                %165 = sbr.rel target = $region38
              $region43: #{resnet_forward.25} parent=35 // loop_exit
                _
            $region36: #{resnet_forward.25} parent=27 // pred_fallthru
              _
          $region28: #{resnet_forward.25} parent=23 // pred_fallthru
            _
          %313 = vnop
        $region24: #{resnet_forward.25} parent=19 // pred_fallthru
          _
      $region20: #{resnet_forward.25} parent=5 // pred_fallthru
        _
      %p314 = scmp.le.s32.totalorder 1, %s8
      %p315 = scmp.lt.s32.totalorder %s8, 3
      %p316 = pnand %p314, %p315
      %p317 = pneg %p316
      // Predicated region
      $region59: #{resnet_forward.25} parent=5 // pred_check
        _
      $region60: #{resnet_forward.25} parent=5 // pred_check_branch
        %319 = sbr.rel (%p316) target = $region62
      $region61: #{resnet_forward.25} parent=5 // pred_region
        %s320 = ssub.s32 %s8, 1
        %s321 = sand.u32 %s70, 1
        %s322 = sand.u32 %s70, 1
        %s323 = smul.addr %s322, 256
        %s324 = scalar_lea.vmem [#allocation3], %s323
        // Predicated region
        $region63: #{resnet_forward.25} parent=61 // pred_check
          %p325 = pneg %p83
        $region64: #{resnet_forward.25} parent=61 // pred_check_branch
          %327 = sbr.rel (%p325) target = $region66
        $region65: #{resnet_forward.25} parent=61 // pred_region
          _
        $region66: #{resnet_forward.25} parent=61 // pred_fallthru
          _
        %s328 = smul.u32 2, %s18
        %s329 = smul.u32 2, %s20
        %p330 = scmp.lt.s32.totalorder %s328, 1
        %s331 = scalar_select %p330, %s328, 1
        %p332 = scmp.lt.s32.totalorder %s329, 1
        %s333 = scalar_select %p332, %s329, 1
        %s334 = smul.addr %s331, 2
        %s335 = sadd.s32 %s333, %s334
        %s336 = smul.addr %s335, 4
        %s337 = scalar_lea.vmem %s0, %s336
        %p338 = pneg %p55
        %p339 = pneg %p52
        %s340 = sand.u32 %s70, 1
        %s341 = sand.u32 %s70, 1
        %s342 = smul.addr %s341, 256
        %s343 = scalar_lea.vmem [#allocation3], %s342
        %p344 = pneg %p83
        %p345 = pneg %p80
        %p346 = pneg %p111
        %p347 = pneg %p108
        %s348 = sand.u32 %s98, 1
        %s349 = sand.u32 %s98, 1
        %s350 = smul.addr %s349, 16
        %s351 = scalar_lea.vmem [#allocation4], %s350
        %s352 = smul.u32 2, %s18
        %s353 = smul.u32 2, %s20
        %p354 = scmp.lt.s32.totalorder %s352, 1
        %s355 = scalar_select %p354, %s352, 1
        %p356 = scmp.lt.s32.totalorder %s353, 1
        %s357 = scalar_select %p356, %s353, 1
        %s358 = smul.addr %s355, 2
        %s359 = sadd.s32 %s357, %s358
        %s360 = smul.addr %s359, 4
        %s361 = scalar_lea.vmem %s0, %s360
        %s362 = smul.u32 2, %s18
        %s363 = smul.u32 2, %s20
        %s364 = smul.u32 32, %s20
        %s365 = smul.u32 2, %s19
        %s366 = smul.u32 2, %s18
        %s367 = smul.u32 2, %s19
        %p368 = scmp.eq.s32.totalorder %s20, 0
        // Predicated region
        $region67: #{resnet_forward.25} parent=61 // pred_check
          %p369 = pneg %p368
        $region68: #{resnet_forward.25} parent=61 // pred_check_branch
          %371 = sbr.rel (%p369) target = $region70
        $region69: #{resnet_forward.25} parent=61 // pred_region
          %372 = vst [vmem:[#allocation2] sm:$0xff] 0.0
          %373 = vst [vmem:[#allocation2 + $0x8] sm:$0xff] 0.0
          %374 = vst [vmem:[#allocation2 + $0x10] sm:$0xff] 0.0
          %375 = vst [vmem:[#allocation2 + $0x18] sm:$0xff] 0.0
        $region70: #{resnet_forward.25} parent=61 // pred_fallthru
          _
        %v376 = vld [vmem:[#allocation2] sm:$0xff]
        %v377 = vld [vmem:[#allocation2 + $0x8] sm:$0xff]
        %v378 = vld [vmem:[#allocation2 + $0x10] sm:$0xff]
        %v379 = vld [vmem:[#allocation2 + $0x18] sm:$0xff]
        %v380 = vld [vmem:[%s361] sm:$0xff]
        %v381 = vld [vmem:[%s361 + $0x8] sm:$0xff]
        %v382 = vld [vmem:[%s324] sm:$0xff]
        %v383 = vld [vmem:[%s324 + $0x8] sm:$0xff]
        %v384 = vld [vmem:[%s324 + $0x10] sm:$0xff]
        %v385 = vld [vmem:[%s324 + $0x18] sm:$0xff]
        %v386 = vld [vmem:[%s324 + $0x20] sm:$0xff]
        %v387 = vld [vmem:[%s324 + $0x28] sm:$0xff]
        %v388 = vld [vmem:[%s324 + $0x30] sm:$0xff]
        %v389 = vld [vmem:[%s324 + $0x38] sm:$0xff]
        %v390 = vld [vmem:[%s324 + $0x40] sm:$0xff]
        %v391 = vld [vmem:[%s324 + $0x48] sm:$0xff]
        %v392 = vld [vmem:[%s324 + $0x50] sm:$0xff]
        %v393 = vld [vmem:[%s324 + $0x58] sm:$0xff]
        %v394 = vld [vmem:[%s324 + $0x60] sm:$0xff]
        %v395 = vld [vmem:[%s324 + $0x68] sm:$0xff]
        %v396 = vld [vmem:[%s324 + $0x70] sm:$0xff]
        %v397 = vld [vmem:[%s324 + $0x78] sm:$0xff]
        %v398 = vld [vmem:[%s324 + $0x80] sm:$0xff]
        %v399 = vld [vmem:[%s324 + $0x88] sm:$0xff]
        %v400 = vld [vmem:[%s324 + $0x90] sm:$0xff]
        %v401 = vld [vmem:[%s324 + $0x98] sm:$0xff]
        %v402 = vld [vmem:[%s324 + $0xa0] sm:$0xff]
        %v403 = vld [vmem:[%s324 + $0xa8] sm:$0xff]
        %v404 = vld [vmem:[%s324 + $0xb0] sm:$0xff]
        %v405 = vld [vmem:[%s324 + $0xb8] sm:$0xff]
        %v406 = vld [vmem:[%s324 + $0xc0] sm:$0xff]
        %v407 = vld [vmem:[%s324 + $0xc8] sm:$0xff]
        %v408 = vld [vmem:[%s324 + $0xd0] sm:$0xff]
        %v409 = vld [vmem:[%s324 + $0xd8] sm:$0xff]
        %v410 = vld [vmem:[%s324 + $0xe0] sm:$0xff]
        %v411 = vld [vmem:[%s324 + $0xe8] sm:$0xff]
        %v412 = vld [vmem:[%s324 + $0xf0] sm:$0xff]
        %v413 = vld [vmem:[%s324 + $0xf8] sm:$0xff]
        %v416 = vunpack.c.l.b16 %v380
        %v417 = vunpack.c.h.b16 %v380
        %v418 = vunpack.c.l.b16 %v381
        %v419 = vunpack.c.h.b16 %v381
        %v420 = vpack.c.b16 %v418, %v416
        %v421 = vpack.c.b16 %v419, %v417
        %v456 = vunpack.c.l.b16 %v382
        %v457 = vunpack.c.h.b16 %v382
        %v458 = vunpack.c.l.b16 %v383
        %v459 = vunpack.c.h.b16 %v383
        %v460 = vunpack.c.l.b16 %v384
        %v461 = vunpack.c.h.b16 %v384
        %v462 = vunpack.c.l.b16 %v385
        %v463 = vunpack.c.h.b16 %v385
        %v464 = vunpack.c.l.b16 %v386
        %v465 = vunpack.c.h.b16 %v386
        %v466 = vunpack.c.l.b16 %v387
        %v467 = vunpack.c.h.b16 %v387
        %v468 = vunpack.c.l.b16 %v388
        %v469 = vunpack.c.h.b16 %v388
        %v470 = vunpack.c.l.b16 %v389
        %v471 = vunpack.c.h.b16 %v389
        %v472 = vunpack.c.l.b16 %v390
        %v473 = vunpack.c.h.b16 %v390
        %v474 = vunpack.c.l.b16 %v391
        %v475 = vunpack.c.h.b16 %v391
        %v476 = vunpack.c.l.b16 %v392
        %v477 = vunpack.c.h.b16 %v392
        %v478 = vunpack.c.l.b16 %v393
        %v479 = vunpack.c.h.b16 %v393
        %v480 = vunpack.c.l.b16 %v394
        %v481 = vunpack.c.h.b16 %v394
        %v482 = vunpack.c.l.b16 %v395
        %v483 = vunpack.c.h.b16 %v395
        %v484 = vunpack.c.l.b16 %v396
        %v485 = vunpack.c.h.b16 %v396
        %v486 = vunpack.c.l.b16 %v397
        %v487 = vunpack.c.h.b16 %v397
        %v488 = vunpack.c.l.b16 %v398
        %v489 = vunpack.c.h.b16 %v398
        %v490 = vunpack.c.l.b16 %v399
        %v491 = vunpack.c.h.b16 %v399
        %v492 = vunpack.c.l.b16 %v400
        %v493 = vunpack.c.h.b16 %v400
        %v494 = vunpack.c.l.b16 %v401
        %v495 = vunpack.c.h.b16 %v401
        %v496 = vunpack.c.l.b16 %v402
        %v497 = vunpack.c.h.b16 %v402
        %v498 = vunpack.c.l.b16 %v403
        %v499 = vunpack.c.h.b16 %v403
        %v500 = vunpack.c.l.b16 %v404
        %v501 = vunpack.c.h.b16 %v404
        %v502 = vunpack.c.l.b16 %v405
        %v503 = vunpack.c.h.b16 %v405
        %v504 = vunpack.c.l.b16 %v406
        %v505 = vunpack.c.h.b16 %v406
        %v506 = vunpack.c.l.b16 %v407
        %v507 = vunpack.c.h.b16 %v407
        %v508 = vunpack.c.l.b16 %v408
        %v509 = vunpack.c.h.b16 %v408
        %v510 = vunpack.c.l.b16 %v409
        %v511 = vunpack.c.h.b16 %v409
        %v512 = vunpack.c.l.b16 %v410
        %v513 = vunpack.c.h.b16 %v410
        %v514 = vunpack.c.l.b16 %v411
        %v515 = vunpack.c.h.b16 %v411
        %v516 = vunpack.c.l.b16 %v412
        %v517 = vunpack.c.h.b16 %v412
        %v518 = vunpack.c.l.b16 %v413
        %v519 = vunpack.c.h.b16 %v413
        %v520 = vpack.c.b16 %v458, %v456
        %v521 = vpack.c.b16 %v459, %v457
        %v522 = vpack.c.b16 %v462, %v460
        %v523 = vpack.c.b16 %v463, %v461
        %v524 = vpack.c.b16 %v466, %v464
        %v525 = vpack.c.b16 %v467, %v465
        %v526 = vpack.c.b16 %v470, %v468
        %v527 = vpack.c.b16 %v471, %v469
        %v528 = vpack.c.b16 %v474, %v472
        %v529 = vpack.c.b16 %v475, %v473
        %v530 = vpack.c.b16 %v478, %v476
        %v531 = vpack.c.b16 %v479, %v477
        %v532 = vpack.c.b16 %v482, %v480
        %v533 = vpack.c.b16 %v483, %v481
        %v534 = vpack.c.b16 %v486, %v484
        %v535 = vpack.c.b16 %v487, %v485
        %v536 = vpack.c.b16 %v490, %v488
        %v537 = vpack.c.b16 %v491, %v489
        %v538 = vpack.c.b16 %v494, %v492
        %v539 = vpack.c.b16 %v495, %v493
        %v540 = vpack.c.b16 %v498, %v496
        %v541 = vpack.c.b16 %v499, %v497
        %v542 = vpack.c.b16 %v502, %v500
        %v543 = vpack.c.b16 %v503, %v501
        %v544 = vpack.c.b16 %v506, %v504
        %v545 = vpack.c.b16 %v507, %v505
        %v546 = vpack.c.b16 %v510, %v508
        %v547 = vpack.c.b16 %v511, %v509
        %v548 = vpack.c.b16 %v514, %v512
        %v549 = vpack.c.b16 %v515, %v513
        %v550 = vpack.c.b16 %v518, %v516
        %v551 = vpack.c.b16 %v519, %v517
        %584 = vmatprep.subr.bf16.mxu0 %v521
        %585 = vmatpush1.bf16.msra.mxu0 %v520
        %586 = vmatprep.subr.bf16.mxu0 %v523
        %587 = vmatpush1.bf16.msra.mxu0 %v522
        %588 = vmatprep.subr.bf16.mxu0 %v525
        %589 = vmatpush1.bf16.msra.mxu0 %v524
        %590 = vmatprep.subr.bf16.mxu0 %v527
        %591 = vmatpush1.bf16.msra.mxu0 %v526
        %592 = vmatprep.subr.bf16.mxu0 %v529
        %593 = vmatpush1.bf16.msra.mxu0 %v528
        %594 = vmatprep.subr.bf16.mxu0 %v531
        %595 = vmatpush1.bf16.msra.mxu0 %v530
        %596 = vmatprep.subr.bf16.mxu0 %v533
        %597 = vmatpush1.bf16.msra.mxu0 %v532
        %598 = vmatprep.subr.bf16.mxu0 %v535
        %599 = vmatpush1.bf16.msra.mxu0 %v534
        %600 = vmatprep.subr.bf16.mxu0 %v537
        %601 = vmatpush1.bf16.msra.mxu0 %v536
        %602 = vmatprep.subr.bf16.mxu0 %v539
        %603 = vmatpush1.bf16.msra.mxu0 %v538
        %604 = vmatprep.subr.bf16.mxu0 %v541
        %605 = vmatpush1.bf16.msra.mxu0 %v540
        %606 = vmatprep.subr.bf16.mxu0 %v543
        %607 = vmatpush1.bf16.msra.mxu0 %v542
        %608 = vmatprep.subr.bf16.mxu0 %v545
        %609 = vmatpush1.bf16.msra.mxu0 %v544
        %610 = vmatprep.subr.bf16.mxu0 %v547
        %611 = vmatpush1.bf16.msra.mxu0 %v546
        %612 = vmatprep.subr.bf16.mxu0 %v549
        %613 = vmatpush1.bf16.msra.mxu0 %v548
        %614 = vmatprep.subr.bf16.mxu0 %v551
        %615 = vmatpush1.bf16.msra.mxu0 %v550
        %616 = vmatprep.mubr.bf16.mxu0 %v421
        %617 = vmatmul.mubr.bf16.gmra.mrb[0].mxu0 %v420
        %v618 = vpop.f32.mrb[0].mxu0
        %v619 = vadd.f32 0.0, %v618
        %v620 = vpop.f32.mrb[0].mxu0
        %v621 = vadd.f32 0.0, %v620
        %v622 = vpop.f32.mrb[0].mxu0
        %v623 = vadd.f32 0.0, %v622
        %v624 = vpop.f32.mrb[0].mxu0
        %v625 = vadd.f32 0.0, %v624
        %626 = vdwg.mxu0
        %v627 = vadd.f32 %v376, %v619
        %v628 = vadd.f32 %v377, %v621
        %v629 = vadd.f32 %v378, %v623
        %v630 = vadd.f32 %v379, %v625
        %631 = vst [vmem:[#allocation2] sm:$0xff] %v627
        %632 = vst [vmem:[#allocation2 + $0x8] sm:$0xff] %v628
        %633 = vst [vmem:[#allocation2 + $0x10] sm:$0xff] %v629
        %634 = vst [vmem:[#allocation2 + $0x18] sm:$0xff] %v630
        // Predicated region
        $region71: #{resnet_forward.25} parent=61 // pred_check
          %p635 = pneg %p368
        $region72: #{resnet_forward.25} parent=61 // pred_check_branch
          %637 = sbr.rel (%p635) target = $region74
        $region73: #{resnet_forward.25} parent=61 // pred_region
          %v638 = vld [vmem:[#allocation2] sm:$0xff]
          %v639 = vld [vmem:[#allocation2 + $0x8] sm:$0xff]
          %v640 = vld [vmem:[#allocation2 + $0x10] sm:$0xff]
          %v641 = vld [vmem:[#allocation2 + $0x18] sm:$0xff]
          %v642 = vpack.c.bf16 %v640, %v638
          %v643 = vpack.c.bf16 %v641, %v639
          %v646 = vunpack.c.l.b16 %v642
          %v647 = vunpack.c.l.b16 %v643
          %v648 = vunpack.c.h.b16 %v642
          %v649 = vunpack.c.h.b16 %v643
          %v650 = vpack.c.b16 %v647, %v646
          %v651 = vpack.c.b16 %v649, %v648
          %654 = vst [vmem:[%s351] sm:$0xff] %v650
          %655 = vst [vmem:[%s351 + $0x8] sm:$0xff] %v651
        $region74: #{resnet_forward.25} parent=61 // pred_fallthru
          _
        %s656 = sand.u32 %s98, 1
        %s657 = sand.u32 %s98, 1
        %s658 = smul.addr %s657, 16
        %s659 = scalar_lea.vmem [#allocation4], %s658
        // Predicated region
        $region75: #{resnet_forward.25} parent=61 // pred_check
          %p660 = pneg %p108
        $region76: #{resnet_forward.25} parent=61 // pred_check_branch
          %662 = sbr.rel (%p660) target = $region78
        $region77: #{resnet_forward.25} parent=61 // pred_region
          %s663 = smul.u32 2, %s18
          %s664 = smul.u32 2, %s19
          %s665 = smul.addr %s663, 4
          %s666 = sadd.s32 %s664, %s665
          %s667 = smul.addr %s666, 4
          %s668 = scalar_lea.vmem %s2, %s667
          // Predicated region
          $region79: #{resnet_forward.25} parent=77 // pred_check
            _
          $region80: #{resnet_forward.25} parent=77 // pred_check_branch
            %670 = sbr.rel (0) target = $region82
          $region81: #{resnet_forward.25} parent=77 // pred_region
            // Predicated region
            $region83: #{resnet_forward.25} parent=81 // pred_check
              _
            $region84: #{resnet_forward.25} parent=81 // pred_check_branch
              %672 = sbr.rel (0) target = $region86
            $region85: #{resnet_forward.25} parent=81 // pred_region
              // Predicated region
              $region98: #{resnet_forward.25} parent=85 // pred_check
                _
              $region99: #{resnet_forward.25} parent=85 // pred_check_branch
                %689 = sbr.rel (0) target = $region101
              $region100: #{resnet_forward.25} parent=85 // pred_region
                loop: start=0, step=1, limit=1
                $region102: #{resnet_forward.25} parent=100 // loop_pre_header
                  _
                $region103: #{resnet_forward.25} parent=100 // loop_header
                  %s691 = sphi 0, %s695
                  %p692 = scmp.ge.s32.totalorder %s691, 1
                  %s696 = sphi %s659, %s659
                  %s697 = sphi %s668, %s668
                $region104: #{resnet_forward.25} parent=100 // loop_header_branch
                  %694 = sbr.rel (%p692) target = $region108
                $region105: #{resnet_forward.25} parent=100 // loop_body
                  %v698 = vld [vmem:[%s696] sm:$0xff]
                  %699 = vst [vmem:[%s697] sm:$0xff] %v698
                  %v700 = vld [vmem:[%s696 + $0x8] sm:$0xff]
                  %701 = vst [vmem:[%s697 + $0x10] sm:$0xff] %v700
                $region106: #{resnet_forward.25} parent=100 // loop_footer
                  %s695 = sadd.s32 1, %s691
                $region107: #{resnet_forward.25} parent=100 // loop_footer_branch
                  %690 = sbr.rel target = $region103
                $region108: #{resnet_forward.25} parent=100 // loop_exit
                  _
              $region101: #{resnet_forward.25} parent=85 // pred_fallthru
                _
              // Predicated region
              $region109: #{resnet_forward.25} parent=85 // pred_check
                _
              $region110: #{resnet_forward.25} parent=85 // pred_check_branch
                %703 = sbr.rel target = $region112
              $region111: #{resnet_forward.25} parent=85 // pred_region
                _
              $region112: #{resnet_forward.25} parent=85 // pred_fallthru
                _
            $region86: #{resnet_forward.25} parent=81 // pred_fallthru
              _
            // Predicated region
            $region87: #{resnet_forward.25} parent=81 // pred_check
              _
            $region88: #{resnet_forward.25} parent=81 // pred_check_branch
              %674 = sbr.rel target = $region90
            $region89: #{resnet_forward.25} parent=81 // pred_region
              loop: start=0, step=1, limit=1
              $region91: #{resnet_forward.25} parent=89 // loop_pre_header
                _
              $region92: #{resnet_forward.25} parent=89 // loop_header
                %s677 = sphi 0, %s681
                %p678 = scmp.ge.s32.totalorder %s677, 1
                %s682 = sphi %s659, %s659
                %s683 = sphi %s668, %s668
              $region93: #{resnet_forward.25} parent=89 // loop_header_branch
                %680 = sbr.rel (%p678) target = $region97
              $region94: #{resnet_forward.25} parent=89 // loop_body
                %v684 = vld [vmem:[%s682] sm:$0xff]
                %685 = vst [vmem:[%s683] sm:$0xff] %v684
                %v686 = vld [vmem:[%s682 + $0x8] sm:$0xff]
                %687 = vst [vmem:[%s683 + $0x10] sm:$0xff] %v686
              $region95: #{resnet_forward.25} parent=89 // loop_footer
                %s681 = sadd.s32 1, %s677
              $region96: #{resnet_forward.25} parent=89 // loop_footer_branch
                %676 = sbr.rel target = $region92
              $region97: #{resnet_forward.25} parent=89 // loop_exit
                _
            $region90: #{resnet_forward.25} parent=81 // pred_fallthru
              _
          $region82: #{resnet_forward.25} parent=77 // pred_fallthru
            _
          %704 = vnop
        $region78: #{resnet_forward.25} parent=61 // pred_fallthru
          _
      $region62: #{resnet_forward.25} parent=5 // pred_fallthru
        _
      %p705 = scmp.le.s32.totalorder 2, %s8
      // Predicated region
      $region113: #{resnet_forward.25} parent=5 // pred_check
        %p706 = pneg %p705
      $region114: #{resnet_forward.25} parent=5 // pred_check_branch
        %708 = sbr.rel (%p706) target = $region116
      $region115: #{resnet_forward.25} parent=5 // pred_region
        %s709 = ssub.s32 %s8, 2
        // Predicated region
        $region117: #{resnet_forward.25} parent=115 // pred_check
          %p710 = pneg %p114
        $region118: #{resnet_forward.25} parent=115 // pred_check_branch
          %712 = sbr.rel (%p710) target = $region120
        $region119: #{resnet_forward.25} parent=115 // pred_region
          %s713 = sand.u32 %s99, 1
          %s714 = sand.u32 %s99, 1
          %s715 = smul.addr %s714, 16
          %s716 = scalar_lea.vmem [#allocation4], %s715
        $region120: #{resnet_forward.25} parent=115 // pred_fallthru
          _
      $region116: #{resnet_forward.25} parent=5 // pred_fallthru
        _
    $region6: #{resnet_forward.25} parent=1 // loop_footer
      %s12 = sadd.s32 1, %s8
    $region7: #{resnet_forward.25} parent=1 // loop_footer_branch
      %7 = sbr.rel target = $region3
    $region8: #{resnet_forward.25} parent=1 // loop_exit
      _

// kernel: resnet_forward.27
$region0: #{resnet_forward.27}
  #allocation0 [shape = 'u32[]', space=smem, size = 0x4, offset = 0x4, fixed_abs, tag = 'smem constant byte address 0x4 - core index']
  #allocation1 [shape = 'u32[144,128]{1,0:T(1,128)}', space=vmem, size = 0x12000, scoped, tag = 'internal scratch']
  #allocation2 [shape = 'f32[16,256]{1,0:T(8,128)}', space=vmem, size = 0x4000, scoped, tag = 'scratch operand']
  %s0 = inlined_call_operand.vmem [shape: bf16[16,1536], index: 0, kind: input, shape index: {}]
  %s1 = inlined_call_operand.vmem [shape: bf16[1536,512], index: 1, kind: input, shape index: {}]
  %s2 = inlined_call_operand.vmem [shape: bf16[16,512], index: 2, kind: input, shape index: {}]
  %s3 = inlined_call_operand.vmem [shape: bf16[16,512], index: 3, kind: output, shape index: {}]
  %s4 = sld [smem:[#allocation0]]
  $region186: #{resnet_forward.27} parent=0
    _
  %s6 = ssub.s32 1, %s4
  %s7 = scalar_select 0, %s6, %s4
  $region1: #{resnet_forward.27} parent=0
    #allocation3 [shape = 'u8[32768]{0}', space=vmem, size = 0x8000, scoped, tag = 'input window, operand 0']
    #allocation4 [shape = 'u8[524288]{0}', space=vmem, size = 0x80000, scoped, tag = 'input window, operand 1']
    #allocation5 [shape = 'u8[16384]{0}', space=vmem, size = 0x4000, scoped, tag = 'input window, operand 2']
    #allocation6 [shape = 'u8[16384]{0}', space=vmem, size = 0x4000, scoped, tag = 'output window, operand 0']
    loop: start=0, step=1, limit=8
    $region2: #{resnet_forward.27} parent=1 // loop_pre_header
      _
    $region3: #{resnet_forward.27} parent=1 // loop_header
      %s9 = sphi 0, %s13
      %p10 = scmp.ge.s32.totalorder %s9, 8
      %s16 = sphi 0, %s35
      %s17 = sphi 0, %s31
      %s18 = sphi 0, %s27
      %s19 = sphi 0, %s16
      %s20 = sphi 0, %s17
      %s21 = sphi 0, %s18
      %s22 = sphi 0, %s19
      %s23 = sphi 0, %s20
      %s24 = sphi 0, %s21
      %s40 = sphi 0, %s42
      %s43 = sphi 0, %s40
      %s44 = sphi 0, %s43
      %s60 = sphi 0, %s44
      %s68 = sphi 0, %s70
      %s71 = sphi 0, %s68
      %s72 = sphi 0, %s71
      %s88 = sphi 0, %s72
      %s96 = sphi 0, %s98
      %s99 = sphi 0, %s96
      %s100 = sphi 0, %s99
      %s116 = sphi 0, %s100
      %s124 = sphi 0, %s126
      %s127 = sphi 0, %s124
      %s128 = sphi 0, %s127
      %s144 = sphi 0, %s128
    $region4: #{resnet_forward.27} parent=1 // loop_header_branch
      %12 = sbr.rel (%p10) target = $region8
    $region5: #{resnet_forward.27} parent=1 // loop_body
      %s14 = ssub.s32 %s9, 1
      %s15 = ssub.s32 %s9, 2
      %s25 = sadd.s32 1, %s18
      %p26 = scmp.ge.s32.totalorder %s25, 3
      %s27 = scalar_select %p26, 0, %s25
      %s28 = sadd.s32 1, %s17
      %s29 = scalar_select %p26, %s28, %s17
      %p30 = scmp.ge.s32.totalorder %s29, 2
      %s31 = scalar_select %p30, 0, %s29
      %s32 = sadd.s32 1, %s16
      %s33 = scalar_select %p30, %s32, %s16
      %p34 = scmp.ge.s32.totalorder %s33, 1
      %s35 = scalar_select %p34, 0, %s33
      %s36 = ssub.s32 %s16, %s35
      %s37 = ssub.s32 %s18, %s27
      %s38 = sor.u32 %s36, %s37
      %p39 = scmp.eq.s32.totalorder %s38, 0
      %s41 = sadd.s32 %s40, 1
      %s42 = scalar_select %p39, %s40, %s41
      %p45 = pneg %p39
      %p46 = scmp.eq.s32.totalorder %s9, 5
      %p47 = por %p45, %p46
      %p48 = scmp.ne.s32.totalorder %s40, %s43
      %p49 = scmp.eq.s32.totalorder %s9, 0
      %p50 = por %p48, %p49
      %p51 = scmp.ne.s32.totalorder %s40, %s43
      %p52 = scmp.eq.s32.totalorder %s14, 5
      %p53 = por %p51, %p52
      %p54 = scmp.ne.s32.totalorder %s43, %s44
      %p55 = scmp.eq.s32.totalorder %s14, 0
      %p56 = por %p54, %p55
      %p57 = scmp.ne.s32.totalorder %s43, %s44
      %p58 = scmp.eq.s32.totalorder %s15, 5
      %p59 = por %p57, %p58
      %p61 = scmp.ne.s32.totalorder %s44, %s60
      %p62 = scmp.eq.s32.totalorder %s15, 0
      %p63 = por %p61, %p62
      %s64 = ssub.s32 %s18, %s27
      %s65 = ssub.s32 %s17, %s31
      %s66 = sor.u32 %s64, %s65
      %p67 = scmp.eq.s32.totalorder %s66, 0
      %s69 = sadd.s32 %s68, 1
      %s70 = scalar_select %p67, %s68, %s69
      %p73 = pneg %p67
      %p74 = scmp.eq.s32.totalorder %s9, 5
      %p75 = por %p73, %p74
      %p76 = scmp.ne.s32.totalorder %s68, %s71
      %p77 = scmp.eq.s32.totalorder %s9, 0
      %p78 = por %p76, %p77
      %p79 = scmp.ne.s32.totalorder %s68, %s71
      %p80 = scmp.eq.s32.totalorder %s14, 5
      %p81 = por %p79, %p80
      %p82 = scmp.ne.s32.totalorder %s71, %s72
      %p83 = scmp.eq.s32.totalorder %s14, 0
      %p84 = por %p82, %p83
      %p85 = scmp.ne.s32.totalorder %s71, %s72
      %p86 = scmp.eq.s32.totalorder %s15, 5
      %p87 = por %p85, %p86
      %p89 = scmp.ne.s32.totalorder %s72, %s88
      %p90 = scmp.eq.s32.totalorder %s15, 0
      %p91 = por %p89, %p90
      %s92 = ssub.s32 %s16, %s35
      %s93 = ssub.s32 %s17, %s31
      %s94 = sor.u32 %s92, %s93
      %p95 = scmp.eq.s32.totalorder %s94, 0
      %s97 = sadd.s32 %s96, 1
      %s98 = scalar_select %p95, %s96, %s97
      %p101 = pneg %p95
      %p102 = scmp.eq.s32.totalorder %s9, 5
      %p103 = por %p101, %p102
      %p104 = scmp.ne.s32.totalorder %s96, %s99
      %p105 = scmp.eq.s32.totalorder %s9, 0
      %p106 = por %p104, %p105
      %p107 = scmp.ne.s32.totalorder %s96, %s99
      %p108 = scmp.eq.s32.totalorder %s14, 5
      %p109 = por %p107, %p108
      %p110 = scmp.ne.s32.totalorder %s99, %s100
      %p111 = scmp.eq.s32.totalorder %s14, 0
      %p112 = por %p110, %p111
      %p113 = scmp.ne.s32.totalorder %s99, %s100
      %p114 = scmp.eq.s32.totalorder %s15, 5
      %p115 = por %p113, %p114
      %p117 = scmp.ne.s32.totalorder %s100, %s116
      %p118 = scmp.eq.s32.totalorder %s15, 0
      %p119 = por %p117, %p118
      %s120 = ssub.s32 %s16, %s35
      %s121 = ssub.s32 %s17, %s31
      %s122 = sor.u32 %s120, %s121
      %p123 = scmp.eq.s32.totalorder %s122, 0
      %s125 = sadd.s32 %s124, 1
      %s126 = scalar_select %p123, %s124, %s125
      %p129 = pneg %p123
      %p130 = scmp.eq.s32.totalorder %s9, 5
      %p131 = por %p129, %p130
      %p132 = scmp.ne.s32.totalorder %s124, %s127
      %p133 = scmp.eq.s32.totalorder %s9, 0
      %p134 = por %p132, %p133
      %p135 = scmp.ne.s32.totalorder %s124, %s127
      %p136 = scmp.eq.s32.totalorder %s14, 5
      %p137 = por %p135, %p136
      %p138 = scmp.ne.s32.totalorder %s127, %s128
      %p139 = scmp.eq.s32.totalorder %s14, 0
      %p140 = por %p138, %p139
      %p141 = scmp.ne.s32.totalorder %s127, %s128
      %p142 = scmp.eq.s32.totalorder %s15, 5
      %p143 = por %p141, %p142
      %p145 = scmp.ne.s32.totalorder %s128, %s144
      %p146 = scmp.eq.s32.totalorder %s15, 0
      %p147 = por %p145, %p146
      %p148 = scmp.le.s32.totalorder 1, %s9
      %p149 = scmp.lt.s32.totalorder %s9, 7
      %p150 = pnand %p148, %p149
      %p151 = pneg %p150
      // Predicated region
      $region9: #{resnet_forward.27} parent=5 // pred_check
        _
      $region10: #{resnet_forward.27} parent=5 // pred_check_branch
        %153 = sbr.rel (%p150) target = $region12
      $region11: #{resnet_forward.27} parent=5 // pred_region
        %s154 = ssub.s32 %s9, 1
      $region12: #{resnet_forward.27} parent=5 // pred_fallthru
        _
      %p155 = scmp.lt.s32.totalorder %s9, 6
      // Predicated region
      $region13: #{resnet_forward.27} parent=5 // pred_check
        %p156 = pneg %p155
      $region14: #{resnet_forward.27} parent=5 // pred_check_branch
        %158 = sbr.rel (%p156) target = $region16
      $region15: #{resnet_forward.27} parent=5 // pred_region
        // Predicated region
        $region17: #{resnet_forward.27} parent=15 // pred_check
          %p159 = pneg %p50
        $region18: #{resnet_forward.27} parent=15 // pred_check_branch
          %161 = sbr.rel (%p159) target = $region20
        $region19: #{resnet_forward.27} parent=15 // pred_region
          %s162 = sand.u32 %s40, 1
          %s163 = sand.u32 %s40, 1
          %s164 = smul.addr %s163, 32
          %s165 = scalar_lea.vmem [#allocation3], %s164
          %s166 = smul.u32 2, %s16
          %s167 = smul.u32 4, %s18
          %s168 = smul.addr %s166, 12
          %s169 = sadd.s32 %s167, %s168
          %s170 = smul.addr %s169, 4
          %s171 = scalar_lea.vmem %s0, %s170
          // Predicated region
          $region21: #{resnet_forward.27} parent=19 // pred_check
            _
          $region22: #{resnet_forward.27} parent=19 // pred_check_branch
            %173 = sbr.rel (0) target = $region24
          $region23: #{resnet_forward.27} parent=19 // pred_region
            // Predicated region
            $region25: #{resnet_forward.27} parent=23 // pred_check
              _
            $region26: #{resnet_forward.27} parent=23 // pred_check_branch
              %175 = sbr.rel (0) target = $region28
            $region27: #{resnet_forward.27} parent=23 // pred_region
              loop: start=0, step=1, limit=1
              $region29: #{resnet_forward.27} parent=27 // loop_pre_header
                _
              $region30: #{resnet_forward.27} parent=27 // loop_header
                %s177 = sphi 0, %s181
                %p178 = scmp.ge.s32.totalorder %s177, 1
                %s182 = sphi %s171, %s171
                %s183 = sphi %s165, %s165
              $region31: #{resnet_forward.27} parent=27 // loop_header_branch
                %180 = sbr.rel (%p178) target = $region35
              $region32: #{resnet_forward.27} parent=27 // loop_body
                %v184 = vld [vmem:[%s182] sm:$0xff]
                %185 = vst [vmem:[%s183] sm:$0xff] %v184
                %v186 = vld [vmem:[%s182 + $0x8] sm:$0xff]
                %187 = vst [vmem:[%s183 + $0x8] sm:$0xff] %v186
                %v188 = vld [vmem:[%s182 + $0x30] sm:$0xff]
                %189 = vst [vmem:[%s183 + $0x10] sm:$0xff] %v188
                %v190 = vld [vmem:[%s182 + $0x38] sm:$0xff]
                %191 = vst [vmem:[%s183 + $0x18] sm:$0xff] %v190
              $region33: #{resnet_forward.27} parent=27 // loop_footer
                %s181 = sadd.s32 1, %s177
              $region34: #{resnet_forward.27} parent=27 // loop_footer_branch
                %176 = sbr.rel target = $region30
              $region35: #{resnet_forward.27} parent=27 // loop_exit
                _
            $region28: #{resnet_forward.27} parent=23 // pred_fallthru
              _
            // Predicated region
            $region36: #{resnet_forward.27} parent=23 // pred_check
              _
            $region37: #{resnet_forward.27} parent=23 // pred_check_branch
              %193 = sbr.rel target = $region39
            $region38: #{resnet_forward.27} parent=23 // pred_region
              _
            $region39: #{resnet_forward.27} parent=23 // pred_fallthru
              _
          $region24: #{resnet_forward.27} parent=19 // pred_fallthru
            _
          %194 = vnop
        $region20: #{resnet_forward.27} parent=15 // pred_fallthru
          _
        // Predicated region
        $region40: #{resnet_forward.27} parent=15 // pred_check
          %p195 = pneg %p78
        $region41: #{resnet_forward.27} parent=15 // pred_check_branch
          %197 = sbr.rel (%p195) target = $region43
        $region42: #{resnet_forward.27} parent=15 // pred_region
          %s198 = sand.u32 %s68, 1
          %s199 = sand.u32 %s68, 1
          %s200 = smul.addr %s199, 512
          %s201 = scalar_lea.vmem [#allocation4], %s200
          %s202 = smul.u32 64, %s18
          %s203 = smul.u32 2, %s17
          %s204 = smul.addr %s202, 4
          %s205 = sadd.s32 %s203, %s204
          %s206 = smul.addr %s205, 4
          %s207 = scalar_lea.vmem %s1, %s206
          // Predicated region
          $region44: #{resnet_forward.27} parent=42 // pred_check
            _
          $region45: #{resnet_forward.27} parent=42 // pred_check_branch
            %209 = sbr.rel (0) target = $region47
          $region46: #{resnet_forward.27} parent=42 // pred_region
            // Predicated region
            $region48: #{resnet_forward.27} parent=46 // pred_check
              _
            $region49: #{resnet_forward.27} parent=46 // pred_check_branch
              %211 = sbr.rel (0) target = $region51
            $region50: #{resnet_forward.27} parent=46 // pred_region
              // Predicated region
              $region63: #{resnet_forward.27} parent=50 // pred_check
                _
              $region64: #{resnet_forward.27} parent=50 // pred_check_branch
                %352 = sbr.rel (0) target = $region66
              $region65: #{resnet_forward.27} parent=50 // pred_region
                loop: start=0, step=1, limit=1
                $region67: #{resnet_forward.27} parent=65 // loop_pre_header
                  _
                $region68: #{resnet_forward.27} parent=65 // loop_header
                  %s354 = sphi 0, %s358
                  %p355 = scmp.ge.s32.totalorder %s354, 1
                  %s359 = sphi %s207, %s207
                  %s360 = sphi %s201, %s201
                $region69: #{resnet_forward.27} parent=65 // loop_header_branch
                  %357 = sbr.rel (%p355) target = $region73
                $region70: #{resnet_forward.27} parent=65 // loop_body
                  %v361 = vld [vmem:[%s359] sm:$0xff]
                  %362 = vst [vmem:[%s360] sm:$0xff] %v361
                  %v363 = vld [vmem:[%s359 + $0x10] sm:$0xff]
                  %364 = vst [vmem:[%s360 + $0x8] sm:$0xff] %v363
                  %v365 = vld [vmem:[%s359 + $0x20] sm:$0xff]
                  %366 = vst [vmem:[%s360 + $0x10] sm:$0xff] %v365
                  %v367 = vld [vmem:[%s359 + $0x30] sm:$0xff]
                  %368 = vst [vmem:[%s360 + $0x18] sm:$0xff] %v367
                  %v369 = vld [vmem:[%s359 + $0x40] sm:$0xff]
                  %370 = vst [vmem:[%s360 + $0x20] sm:$0xff] %v369
                  %v371 = vld [vmem:[%s359 + $0x50] sm:$0xff]
                  %372 = vst [vmem:[%s360 + $0x28] sm:$0xff] %v371
                  %v373 = vld [vmem:[%s359 + $0x60] sm:$0xff]
                  %374 = vst [vmem:[%s360 + $0x30] sm:$0xff] %v373
                  %v375 = vld [vmem:[%s359 + $0x70] sm:$0xff]
                  %376 = vst [vmem:[%s360 + $0x38] sm:$0xff] %v375
                  %v377 = vld [vmem:[%s359 + $0x80] sm:$0xff]
                  %378 = vst [vmem:[%s360 + $0x40] sm:$0xff] %v377
                  %v379 = vld [vmem:[%s359 + $0x90] sm:$0xff]
                  %380 = vst [vmem:[%s360 + $0x48] sm:$0xff] %v379
                  %v381 = vld [vmem:[%s359 + $0xa0] sm:$0xff]
                  %382 = vst [vmem:[%s360 + $0x50] sm:$0xff] %v381
                  %v383 = vld [vmem:[%s359 + $0xb0] sm:$0xff]
                  %384 = vst [vmem:[%s360 + $0x58] sm:$0xff] %v383
                  %v385 = vld [vmem:[%s359 + $0xc0] sm:$0xff]
                  %386 = vst [vmem:[%s360 + $0x60] sm:$0xff] %v385
                  %v387 = vld [vmem:[%s359 + $0xd0] sm:$0xff]
                  %388 = vst [vmem:[%s360 + $0x68] sm:$0xff] %v387
                  %v389 = vld [vmem:[%s359 + $0xe0] sm:$0xff]
                  %390 = vst [vmem:[%s360 + $0x70] sm:$0xff] %v389
                  %v391 = vld [vmem:[%s359 + $0xf0] sm:$0xff]
                  %392 = vst [vmem:[%s360 + $0x78] sm:$0xff] %v391
                  %v393 = vld [vmem:[%s359 + $0x100] sm:$0xff]
                  %394 = vst [vmem:[%s360 + $0x80] sm:$0xff] %v393
                  %v395 = vld [vmem:[%s359 + $0x110] sm:$0xff]
                  %396 = vst [vmem:[%s360 + $0x88] sm:$0xff] %v395
                  %v397 = vld [vmem:[%s359 + $0x120] sm:$0xff]
                  %398 = vst [vmem:[%s360 + $0x90] sm:$0xff] %v397
                  %v399 = vld [vmem:[%s359 + $0x130] sm:$0xff]
                  %400 = vst [vmem:[%s360 + $0x98] sm:$0xff] %v399
                  %v401 = vld [vmem:[%s359 + $0x140] sm:$0xff]
                  %402 = vst [vmem:[%s360 + $0xa0] sm:$0xff] %v401
                  %v403 = vld [vmem:[%s359 + $0x150] sm:$0xff]
                  %404 = vst [vmem:[%s360 + $0xa8] sm:$0xff] %v403
                  %v405 = vld [vmem:[%s359 + $0x160] sm:$0xff]
                  %406 = vst [vmem:[%s360 + $0xb0] sm:$0xff] %v405
                  %v407 = vld [vmem:[%s359 + $0x170] sm:$0xff]
                  %408 = vst [vmem:[%s360 + $0xb8] sm:$0xff] %v407
                  %v409 = vld [vmem:[%s359 + $0x180] sm:$0xff]
                  %410 = vst [vmem:[%s360 + $0xc0] sm:$0xff] %v409
                  %v411 = vld [vmem:[%s359 + $0x190] sm:$0xff]
                  %412 = vst [vmem:[%s360 + $0xc8] sm:$0xff] %v411
                  %v413 = vld [vmem:[%s359 + $0x1a0] sm:$0xff]
                  %414 = vst [vmem:[%s360 + $0xd0] sm:$0xff] %v413
                  %v415 = vld [vmem:[%s359 + $0x1b0] sm:$0xff]
                  %416 = vst [vmem:[%s360 + $0xd8] sm:$0xff] %v415
                  %v417 = vld [vmem:[%s359 + $0x1c0] sm:$0xff]
                  %418 = vst [vmem:[%s360 + $0xe0] sm:$0xff] %v417
                  %v419 = vld [vmem:[%s359 + $0x1d0] sm:$0xff]
                  %420 = vst [vmem:[%s360 + $0xe8] sm:$0xff] %v419
                  %v421 = vld [vmem:[%s359 + $0x1e0] sm:$0xff]
                  %422 = vst [vmem:[%s360 + $0xf0] sm:$0xff] %v421
                  %v423 = vld [vmem:[%s359 + $0x1f0] sm:$0xff]
                  %424 = vst [vmem:[%s360 + $0xf8] sm:$0xff] %v423
                  %v425 = vld [vmem:[%s359 + $0x200] sm:$0xff]
                  %426 = vst [vmem:[%s360 + $0x100] sm:$0xff] %v425
                  %v427 = vld [vmem:[%s359 + $0x210] sm:$0xff]
                  %428 = vst [vmem:[%s360 + $0x108] sm:$0xff] %v427
                  %v429 = vld [vmem:[%s359 + $0x220] sm:$0xff]
                  %430 = vst [vmem:[%s360 + $0x110] sm:$0xff] %v429
                  %v431 = vld [vmem:[%s359 + $0x230] sm:$0xff]
                  %432 = vst [vmem:[%s360 + $0x118] sm:$0xff] %v431
                  %v433 = vld [vmem:[%s359 + $0x240] sm:$0xff]
                  %434 = vst [vmem:[%s360 + $0x120] sm:$0xff] %v433
                  %v435 = vld [vmem:[%s359 + $0x250] sm:$0xff]
                  %436 = vst [vmem:[%s360 + $0x128] sm:$0xff] %v435
                  %v437 = vld [vmem:[%s359 + $0x260] sm:$0xff]
                  %438 = vst [vmem:[%s360 + $0x130] sm:$0xff] %v437
                  %v439 = vld [vmem:[%s359 + $0x270] sm:$0xff]
                  %440 = vst [vmem:[%s360 + $0x138] sm:$0xff] %v439
                  %v441 = vld [vmem:[%s359 + $0x280] sm:$0xff]
                  %442 = vst [vmem:[%s360 + $0x140] sm:$0xff] %v441
                  %v443 = vld [vmem:[%s359 + $0x290] sm:$0xff]
                  %444 = vst [vmem:[%s360 + $0x148] sm:$0xff] %v443
                  %v445 = vld [vmem:[%s359 + $0x2a0] sm:$0xff]
                  %446 = vst [vmem:[%s360 + $0x150] sm:$0xff] %v445
                  %v447 = vld [vmem:[%s359 + $0x2b0] sm:$0xff]
                  %448 = vst [vmem:[%s360 + $0x158] sm:$0xff] %v447
                  %v449 = vld [vmem:[%s359 + $0x2c0] sm:$0xff]
                  %450 = vst [vmem:[%s360 + $0x160] sm:$0xff] %v449
                  %v451 = vld [vmem:[%s359 + $0x2d0] sm:$0xff]
                  %452 = vst [vmem:[%s360 + $0x168] sm:$0xff] %v451
                  %v453 = vld [vmem:[%s359 + $0x2e0] sm:$0xff]
                  %454 = vst [vmem:[%s360 + $0x170] sm:$0xff] %v453
                  %v455 = vld [vmem:[%s359 + $0x2f0] sm:$0xff]
                  %456 = vst [vmem:[%s360 + $0x178] sm:$0xff] %v455
                  %v457 = vld [vmem:[%s359 + $0x300] sm:$0xff]
                  %458 = vst [vmem:[%s360 + $0x180] sm:$0xff] %v457
                  %v459 = vld [vmem:[%s359 + $0x310] sm:$0xff]
                  %460 = vst [vmem:[%s360 + $0x188] sm:$0xff] %v459
                  %v461 = vld [vmem:[%s359 + $0x320] sm:$0xff]
                  %462 = vst [vmem:[%s360 + $0x190] sm:$0xff] %v461
                  %v463 = vld [vmem:[%s359 + $0x330] sm:$0xff]
                  %464 = vst [vmem:[%s360 + $0x198] sm:$0xff] %v463
                  %v465 = vld [vmem:[%s359 + $0x340] sm:$0xff]
                  %466 = vst [vmem:[%s360 + $0x1a0] sm:$0xff] %v465
                  %v467 = vld [vmem:[%s359 + $0x350] sm:$0xff]
                  %468 = vst [vmem:[%s360 + $0x1a8] sm:$0xff] %v467
                  %v469 = vld [vmem:[%s359 + $0x360] sm:$0xff]
                  %470 = vst [vmem:[%s360 + $0x1b0] sm:$0xff] %v469
                  %v471 = vld [vmem:[%s359 + $0x370] sm:$0xff]
                  %472 = vst [vmem:[%s360 + $0x1b8] sm:$0xff] %v471
                  %v473 = vld [vmem:[%s359 + $0x380] sm:$0xff]
                  %474 = vst [vmem:[%s360 + $0x1c0] sm:$0xff] %v473
                  %v475 = vld [vmem:[%s359 + $0x390] sm:$0xff]
                  %476 = vst [vmem:[%s360 + $0x1c8] sm:$0xff] %v475
                  %v477 = vld [vmem:[%s359 + $0x3a0] sm:$0xff]
                  %478 = vst [vmem:[%s360 + $0x1d0] sm:$0xff] %v477
                  %v479 = vld [vmem:[%s359 + $0x3b0] sm:$0xff]
                  %480 = vst [vmem:[%s360 + $0x1d8] sm:$0xff] %v479
                  %v481 = vld [vmem:[%s359 + $0x3c0] sm:$0xff]
                  %482 = vst [vmem:[%s360 + $0x1e0] sm:$0xff] %v481
                  %v483 = vld [vmem:[%s359 + $0x3d0] sm:$0xff]
                  %484 = vst [vmem:[%s360 + $0x1e8] sm:$0xff] %v483
                  %v485 = vld [vmem:[%s359 + $0x3e0] sm:$0xff]
                  %486 = vst [vmem:[%s360 + $0x1f0] sm:$0xff] %v485
                  %v487 = vld [vmem:[%s359 + $0x3f0] sm:$0xff]
                  %488 = vst [vmem:[%s360 + $0x1f8] sm:$0xff] %v487
                $region71: #{resnet_forward.27} parent=65 // loop_footer
                  %s358 = sadd.s32 1, %s354
                $region72: #{resnet_forward.27} parent=65 // loop_footer_branch
                  %353 = sbr.rel target = $region68
                $region73: #{resnet_forward.27} parent=65 // loop_exit
                  _
              $region66: #{resnet_forward.27} parent=50 // pred_fallthru
                _
              // Predicated region
              $region74: #{resnet_forward.27} parent=50 // pred_check
                _
              $region75: #{resnet_forward.27} parent=50 // pred_check_branch
                %490 = sbr.rel target = $region77
              $region76: #{resnet_forward.27} parent=50 // pred_region
                _
              $region77: #{resnet_forward.27} parent=50 // pred_fallthru
                _
            $region51: #{resnet_forward.27} parent=46 // pred_fallthru
              _
            // Predicated region
            $region52: #{resnet_forward.27} parent=46 // pred_check
              _
            $region53: #{resnet_forward.27} parent=46 // pred_check_branch
              %213 = sbr.rel target = $region55
            $region54: #{resnet_forward.27} parent=46 // pred_region
              loop: start=0, step=1, limit=1
              $region56: #{resnet_forward.27} parent=54 // loop_pre_header
                _
              $region57: #{resnet_forward.27} parent=54 // loop_header
                %s216 = sphi 0, %s220
                %p217 = scmp.ge.s32.totalorder %s216, 1
                %s221 = sphi %s207, %s207
                %s222 = sphi %s201, %s201
              $region58: #{resnet_forward.27} parent=54 // loop_header_branch
                %219 = sbr.rel (%p217) target = $region62
              $region59: #{resnet_forward.27} parent=54 // loop_body
                %v223 = vld [vmem:[%s221] sm:$0xff]
                %224 = vst [vmem:[%s222] sm:$0xff] %v223
                %v225 = vld [vmem:[%s221 + $0x10] sm:$0xff]
                %226 = vst [vmem:[%s222 + $0x8] sm:$0xff] %v225
                %v227 = vld [vmem:[%s221 + $0x20] sm:$0xff]
                %228 = vst [vmem:[%s222 + $0x10] sm:$0xff] %v227
                %v229 = vld [vmem:[%s221 + $0x30] sm:$0xff]
                %230 = vst [vmem:[%s222 + $0x18] sm:$0xff] %v229
                %v231 = vld [vmem:[%s221 + $0x40] sm:$0xff]
                %232 = vst [vmem:[%s222 + $0x20] sm:$0xff] %v231
                %v233 = vld [vmem:[%s221 + $0x50] sm:$0xff]
                %234 = vst [vmem:[%s222 + $0x28] sm:$0xff] %v233
                %v235 = vld [vmem:[%s221 + $0x60] sm:$0xff]
                %236 = vst [vmem:[%s222 + $0x30] sm:$0xff] %v235
                %v237 = vld [vmem:[%s221 + $0x70] sm:$0xff]
                %238 = vst [vmem:[%s222 + $0x38] sm:$0xff] %v237
                %v239 = vld [vmem:[%s221 + $0x80] sm:$0xff]
                %240 = vst [vmem:[%s222 + $0x40] sm:$0xff] %v239
                %v241 = vld [vmem:[%s221 + $0x90] sm:$0xff]
                %242 = vst [vmem:[%s222 + $0x48] sm:$0xff] %v241
                %v243 = vld [vmem:[%s221 + $0xa0] sm:$0xff]
                %244 = vst [vmem:[%s222 + $0x50] sm:$0xff] %v243
                %v245 = vld [vmem:[%s221 + $0xb0] sm:$0xff]
                %246 = vst [vmem:[%s222 + $0x58] sm:$0xff] %v245
                %v247 = vld [vmem:[%s221 + $0xc0] sm:$0xff]
                %248 = vst [vmem:[%s222 + $0x60] sm:$0xff] %v247
                %v249 = vld [vmem:[%s221 + $0xd0] sm:$0xff]
                %250 = vst [vmem:[%s222 + $0x68] sm:$0xff] %v249
                %v251 = vld [vmem:[%s221 + $0xe0] sm:$0xff]
                %252 = vst [vmem:[%s222 + $0x70] sm:$0xff] %v251
                %v253 = vld [vmem:[%s221 + $0xf0] sm:$0xff]
                %254 = vst [vmem:[%s222 + $0x78] sm:$0xff] %v253
                %v255 = vld [vmem:[%s221 + $0x100] sm:$0xff]
                %256 = vst [vmem:[%s222 + $0x80] sm:$0xff] %v255
                %v257 = vld [vmem:[%s221 + $0x110] sm:$0xff]
                %258 = vst [vmem:[%s222 + $0x88] sm:$0xff] %v257
                %v259 = vld [vmem:[%s221 + $0x120] sm:$0xff]
                %260 = vst [vmem:[%s222 + $0x90] sm:$0xff] %v259
                %v261 = vld [vmem:[%s221 + $0x130] sm:$0xff]
                %262 = vst [vmem:[%s222 + $0x98] sm:$0xff] %v261
                %v263 = vld [vmem:[%s221 + $0x140] sm:$0xff]
                %264 = vst [vmem:[%s222 + $0xa0] sm:$0xff] %v263
                %v265 = vld [vmem:[%s221 + $0x150] sm:$0xff]
                %266 = vst [vmem:[%s222 + $0xa8] sm:$0xff] %v265
                %v267 = vld [vmem:[%s221 + $0x160] sm:$0xff]
                %268 = vst [vmem:[%s222 + $0xb0] sm:$0xff] %v267
                %v269 = vld [vmem:[%s221 + $0x170] sm:$0xff]
                %270 = vst [vmem:[%s222 + $0xb8] sm:$0xff] %v269
                %v271 = vld [vmem:[%s221 + $0x180] sm:$0xff]
                %272 = vst [vmem:[%s222 + $0xc0] sm:$0xff] %v271
                %v273 = vld [vmem:[%s221 + $0x190] sm:$0xff]
                %274 = vst [vmem:[%s222 + $0xc8] sm:$0xff] %v273
                %v275 = vld [vmem:[%s221 + $0x1a0] sm:$0xff]
                %276 = vst [vmem:[%s222 + $0xd0] sm:$0xff] %v275
                %v277 = vld [vmem:[%s221 + $0x1b0] sm:$0xff]
                %278 = vst [vmem:[%s222 + $0xd8] sm:$0xff] %v277
                %v279 = vld [vmem:[%s221 + $0x1c0] sm:$0xff]
                %280 = vst [vmem:[%s222 + $0xe0] sm:$0xff] %v279
                %v281 = vld [vmem:[%s221 + $0x1d0] sm:$0xff]
                %282 = vst [vmem:[%s222 + $0xe8] sm:$0xff] %v281
                %v283 = vld [vmem:[%s221 + $0x1e0] sm:$0xff]
                %284 = vst [vmem:[%s222 + $0xf0] sm:$0xff] %v283
                %v285 = vld [vmem:[%s221 + $0x1f0] sm:$0xff]
                %286 = vst [vmem:[%s222 + $0xf8] sm:$0xff] %v285
                %v287 = vld [vmem:[%s221 + $0x200] sm:$0xff]
                %288 = vst [vmem:[%s222 + $0x100] sm:$0xff] %v287
                %v289 = vld [vmem:[%s221 + $0x210] sm:$0xff]
                %290 = vst [vmem:[%s222 + $0x108] sm:$0xff] %v289
                %v291 = vld [vmem:[%s221 + $0x220] sm:$0xff]
                %292 = vst [vmem:[%s222 + $0x110] sm:$0xff] %v291
                %v293 = vld [vmem:[%s221 + $0x230] sm:$0xff]
                %294 = vst [vmem:[%s222 + $0x118] sm:$0xff] %v293
                %v295 = vld [vmem:[%s221 + $0x240] sm:$0xff]
                %296 = vst [vmem:[%s222 + $0x120] sm:$0xff] %v295
                %v297 = vld [vmem:[%s221 + $0x250] sm:$0xff]
                %298 = vst [vmem:[%s222 + $0x128] sm:$0xff] %v297
                %v299 = vld [vmem:[%s221 + $0x260] sm:$0xff]
                %300 = vst [vmem:[%s222 + $0x130] sm:$0xff] %v299
                %v301 = vld [vmem:[%s221 + $0x270] sm:$0xff]
                %302 = vst [vmem:[%s222 + $0x138] sm:$0xff] %v301
                %v303 = vld [vmem:[%s221 + $0x280] sm:$0xff]
                %304 = vst [vmem:[%s222 + $0x140] sm:$0xff] %v303
                %v305 = vld [vmem:[%s221 + $0x290] sm:$0xff]
                %306 = vst [vmem:[%s222 + $0x148] sm:$0xff] %v305
                %v307 = vld [vmem:[%s221 + $0x2a0] sm:$0xff]
                %308 = vst [vmem:[%s222 + $0x150] sm:$0xff] %v307
                %v309 = vld [vmem:[%s221 + $0x2b0] sm:$0xff]
                %310 = vst [vmem:[%s222 + $0x158] sm:$0xff] %v309
                %v311 = vld [vmem:[%s221 + $0x2c0] sm:$0xff]
                %312 = vst [vmem:[%s222 + $0x160] sm:$0xff] %v311
                %v313 = vld [vmem:[%s221 + $0x2d0] sm:$0xff]
                %314 = vst [vmem:[%s222 + $0x168] sm:$0xff] %v313
                %v315 = vld [vmem:[%s221 + $0x2e0] sm:$0xff]
                %316 = vst [vmem:[%s222 + $0x170] sm:$0xff] %v315
                %v317 = vld [vmem:[%s221 + $0x2f0] sm:$0xff]
                %318 = vst [vmem:[%s222 + $0x178] sm:$0xff] %v317
                %v319 = vld [vmem:[%s221 + $0x300] sm:$0xff]
                %320 = vst [vmem:[%s222 + $0x180] sm:$0xff] %v319
                %v321 = vld [vmem:[%s221 + $0x310] sm:$0xff]
                %322 = vst [vmem:[%s222 + $0x188] sm:$0xff] %v321
                %v323 = vld [vmem:[%s221 + $0x320] sm:$0xff]
                %324 = vst [vmem:[%s222 + $0x190] sm:$0xff] %v323
                %v325 = vld [vmem:[%s221 + $0x330] sm:$0xff]
                %326 = vst [vmem:[%s222 + $0x198] sm:$0xff] %v325
                %v327 = vld [vmem:[%s221 + $0x340] sm:$0xff]
                %328 = vst [vmem:[%s222 + $0x1a0] sm:$0xff] %v327
                %v329 = vld [vmem:[%s221 + $0x350] sm:$0xff]
                %330 = vst [vmem:[%s222 + $0x1a8] sm:$0xff] %v329
                %v331 = vld [vmem:[%s221 + $0x360] sm:$0xff]
                %332 = vst [vmem:[%s222 + $0x1b0] sm:$0xff] %v331
                %v333 = vld [vmem:[%s221 + $0x370] sm:$0xff]
                %334 = vst [vmem:[%s222 + $0x1b8] sm:$0xff] %v333
                %v335 = vld [vmem:[%s221 + $0x380] sm:$0xff]
                %336 = vst [vmem:[%s222 + $0x1c0] sm:$0xff] %v335
                %v337 = vld [vmem:[%s221 + $0x390] sm:$0xff]
                %338 = vst [vmem:[%s222 + $0x1c8] sm:$0xff] %v337
                %v339 = vld [vmem:[%s221 + $0x3a0] sm:$0xff]
                %340 = vst [vmem:[%s222 + $0x1d0] sm:$0xff] %v339
                %v341 = vld [vmem:[%s221 + $0x3b0] sm:$0xff]
                %342 = vst [vmem:[%s222 + $0x1d8] sm:$0xff] %v341
                %v343 = vld [vmem:[%s221 + $0x3c0] sm:$0xff]
                %344 = vst [vmem:[%s222 + $0x1e0] sm:$0xff] %v343
                %v345 = vld [vmem:[%s221 + $0x3d0] sm:$0xff]
                %346 = vst [vmem:[%s222 + $0x1e8] sm:$0xff] %v345
                %v347 = vld [vmem:[%s221 + $0x3e0] sm:$0xff]
                %348 = vst [vmem:[%s222 + $0x1f0] sm:$0xff] %v347
                %v349 = vld [vmem:[%s221 + $0x3f0] sm:$0xff]
                %350 = vst [vmem:[%s222 + $0x1f8] sm:$0xff] %v349
              $region60: #{resnet_forward.27} parent=54 // loop_footer
                %s220 = sadd.s32 1, %s216
              $region61: #{resnet_forward.27} parent=54 // loop_footer_branch
                %215 = sbr.rel target = $region57
              $region62: #{resnet_forward.27} parent=54 // loop_exit
                _
            $region55: #{resnet_forward.27} parent=46 // pred_fallthru
              _
          $region47: #{resnet_forward.27} parent=42 // pred_fallthru
            _
          %491 = vnop
        $region43: #{resnet_forward.27} parent=15 // pred_fallthru
          _
        // Predicated region
        $region78: #{resnet_forward.27} parent=15 // pred_check
          %p492 = pneg %p106
        $region79: #{resnet_forward.27} parent=15 // pred_check_branch
          %494 = sbr.rel (%p492) target = $region81
        $region80: #{resnet_forward.27} parent=15 // pred_region
          %s495 = sand.u32 %s96, 1
          %s496 = sand.u32 %s96, 1
          %s497 = smul.addr %s496, 16
          %s498 = scalar_lea.vmem [#allocation5], %s497
          %s499 = smul.u32 2, %s16
          %s500 = smul.u32 2, %s17
          %s501 = smul.addr %s499, 4
          %s502 = sadd.s32 %s500, %s501
          %s503 = smul.addr %s502, 4
          %s504 = scalar_lea.vmem %s2, %s503
          // Predicated region
          $region82: #{resnet_forward.27} parent=80 // pred_check
            _
          $region83: #{resnet_forward.27} parent=80 // pred_check_branch
            %506 = sbr.rel (0) target = $region85
          $region84: #{resnet_forward.27} parent=80 // pred_region
            // Predicated region
            $region86: #{resnet_forward.27} parent=84 // pred_check
              _
            $region87: #{resnet_forward.27} parent=84 // pred_check_branch
              %508 = sbr.rel (0) target = $region89
            $region88: #{resnet_forward.27} parent=84 // pred_region
              // Predicated region
              $region101: #{resnet_forward.27} parent=88 // pred_check
                _
              $region102: #{resnet_forward.27} parent=88 // pred_check_branch
                %525 = sbr.rel (0) target = $region104
              $region103: #{resnet_forward.27} parent=88 // pred_region
                loop: start=0, step=1, limit=1
                $region105: #{resnet_forward.27} parent=103 // loop_pre_header
                  _
                $region106: #{resnet_forward.27} parent=103 // loop_header
                  %s527 = sphi 0, %s531
                  %p528 = scmp.ge.s32.totalorder %s527, 1
                  %s532 = sphi %s504, %s504
                  %s533 = sphi %s498, %s498
                $region107: #{resnet_forward.27} parent=103 // loop_header_branch
                  %530 = sbr.rel (%p528) target = $region111
                $region108: #{resnet_forward.27} parent=103 // loop_body
                  %v534 = vld [vmem:[%s532] sm:$0xff]
                  %535 = vst [vmem:[%s533] sm:$0xff] %v534
                  %v536 = vld [vmem:[%s532 + $0x10] sm:$0xff]
                  %537 = vst [vmem:[%s533 + $0x8] sm:$0xff] %v536
                $region109: #{resnet_forward.27} parent=103 // loop_footer
                  %s531 = sadd.s32 1, %s527
                $region110: #{resnet_forward.27} parent=103 // loop_footer_branch
                  %526 = sbr.rel target = $region106
                $region111: #{resnet_forward.27} parent=103 // loop_exit
                  _
              $region104: #{resnet_forward.27} parent=88 // pred_fallthru
                _
              // Predicated region
              $region112: #{resnet_forward.27} parent=88 // pred_check
                _
              $region113: #{resnet_forward.27} parent=88 // pred_check_branch
                %539 = sbr.rel target = $region115
              $region114: #{resnet_forward.27} parent=88 // pred_region
                _
              $region115: #{resnet_forward.27} parent=88 // pred_fallthru
                _
            $region89: #{resnet_forward.27} parent=84 // pred_fallthru
              _
            // Predicated region
            $region90: #{resnet_forward.27} parent=84 // pred_check
              _
            $region91: #{resnet_forward.27} parent=84 // pred_check_branch
              %510 = sbr.rel target = $region93
            $region92: #{resnet_forward.27} parent=84 // pred_region
              loop: start=0, step=1, limit=1
              $region94: #{resnet_forward.27} parent=92 // loop_pre_header
                _
              $region95: #{resnet_forward.27} parent=92 // loop_header
                %s513 = sphi 0, %s517
                %p514 = scmp.ge.s32.totalorder %s513, 1
                %s518 = sphi %s504, %s504
                %s519 = sphi %s498, %s498
              $region96: #{resnet_forward.27} parent=92 // loop_header_branch
                %516 = sbr.rel (%p514) target = $region100
              $region97: #{resnet_forward.27} parent=92 // loop_body
                %v520 = vld [vmem:[%s518] sm:$0xff]
                %521 = vst [vmem:[%s519] sm:$0xff] %v520
                %v522 = vld [vmem:[%s518 + $0x10] sm:$0xff]
                %523 = vst [vmem:[%s519 + $0x8] sm:$0xff] %v522
              $region98: #{resnet_forward.27} parent=92 // loop_footer
                %s517 = sadd.s32 1, %s513
              $region99: #{resnet_forward.27} parent=92 // loop_footer_branch
                %512 = sbr.rel target = $region95
              $region100: #{resnet_forward.27} parent=92 // loop_exit
                _
            $region93: #{resnet_forward.27} parent=84 // pred_fallthru
              _
          $region85: #{resnet_forward.27} parent=80 // pred_fallthru
            _
          %540 = vnop
        $region81: #{resnet_forward.27} parent=15 // pred_fallthru
          _
      $region16: #{resnet_forward.27} parent=5 // pred_fallthru
        _
      %p541 = scmp.le.s32.totalorder 1, %s9
      %p542 = scmp.lt.s32.totalorder %s9, 7
      %p543 = pnand %p541, %p542
      %p544 = pneg %p543
      // Predicated region
      $region116: #{resnet_forward.27} parent=5 // pred_check
        _
      $region117: #{resnet_forward.27} parent=5 // pred_check_branch
        %546 = sbr.rel (%p543) target = $region119
      $region118: #{resnet_forward.27} parent=5 // pred_region
        %s547 = ssub.s32 %s9, 1
        %s548 = sand.u32 %s43, 1
        %s549 = sand.u32 %s43, 1
        %s550 = smul.addr %s549, 32
        %s551 = scalar_lea.vmem [#allocation3], %s550
        // Predicated region
        $region120: #{resnet_forward.27} parent=118 // pred_check
          %p552 = pneg %p56
        $region121: #{resnet_forward.27} parent=118 // pred_check_branch
          %554 = sbr.rel (%p552) target = $region123
        $region122: #{resnet_forward.27} parent=118 // pred_region
          _
        $region123: #{resnet_forward.27} parent=118 // pred_fallthru
          _
        %s555 = sand.u32 %s71, 1
        %s556 = sand.u32 %s71, 1
        %s557 = smul.addr %s556, 512
        %s558 = scalar_lea.vmem [#allocation4], %s557
        // Predicated region
        $region124: #{resnet_forward.27} parent=118 // pred_check
          %p559 = pneg %p84
        $region125: #{resnet_forward.27} parent=118 // pred_check_branch
          %561 = sbr.rel (%p559) target = $region127
        $region126: #{resnet_forward.27} parent=118 // pred_region
          _
        $region127: #{resnet_forward.27} parent=118 // pred_fallthru
          _
        %s562 = sand.u32 %s99, 1
        %s563 = sand.u32 %s99, 1
        %s564 = smul.addr %s563, 16
        %s565 = scalar_lea.vmem [#allocation5], %s564
        // Predicated region
        $region128: #{resnet_forward.27} parent=118 // pred_check
          %p566 = pneg %p112
        $region129: #{resnet_forward.27} parent=118 // pred_check_branch
          %568 = sbr.rel (%p566) target = $region131
        $region130: #{resnet_forward.27} parent=118 // pred_region
          _
        $region131: #{resnet_forward.27} parent=118 // pred_fallthru
          _
        %s569 = sand.u32 %s43, 1
        %s570 = sand.u32 %s43, 1
        %s571 = smul.addr %s570, 32
        %s572 = scalar_lea.vmem [#allocation3], %s571
        %p573 = pneg %p56
        %p574 = pneg %p53
        %s575 = sand.u32 %s71, 1
        %s576 = sand.u32 %s71, 1
        %s577 = smul.addr %s576, 512
        %s578 = scalar_lea.vmem [#allocation4], %s577
        %p579 = pneg %p84
        %p580 = pneg %p81
        %s581 = sand.u32 %s99, 1
        %s582 = sand.u32 %s99, 1
        %s583 = smul.addr %s582, 16
        %s584 = scalar_lea.vmem [#allocation5], %s583
        %p585 = pneg %p112
        %p586 = pneg %p109
        %p587 = pneg %p140
        %p588 = pneg %p137
        %s589 = sand.u32 %s127, 1
        %s590 = sand.u32 %s127, 1
        %s591 = smul.addr %s590, 16
        %s592 = scalar_lea.vmem [#allocation6], %s591
        %s593 = smul.u32 2, %s19
        %s594 = smul.u32 4, %s21
        %s595 = smul.u32 64, %s21
        %s596 = smul.u32 2, %s20
        %s597 = smul.u32 2, %s19
        %s598 = smul.u32 2, %s20
        %s599 = smul.u32 2, %s19
        %s600 = smul.u32 2, %s20
        %p601 = scmp.eq.s32.totalorder %s21, 0
        // Predicated region
        $region132: #{resnet_forward.27} parent=118 // pred_check
          %p602 = pneg %p601
        $region133: #{resnet_forward.27} parent=118 // pred_check_branch
          %604 = sbr.rel (%p602) target = $region135
        $region134: #{resnet_forward.27} parent=118 // pred_region
          %605 = vst [vmem:[#allocation2] sm:$0xff] 0.0
          %606 = vst [vmem:[#allocation2 + $0x8] sm:$0xff] 0.0
          %607 = vst [vmem:[#allocation2 + $0x10] sm:$0xff] 0.0
          %608 = vst [vmem:[#allocation2 + $0x18] sm:$0xff] 0.0
        $region135: #{resnet_forward.27} parent=118 // pred_fallthru
          _
        %v609 = vld [vmem:[#allocation2] sm:$0xff]
        %v610 = vld [vmem:[#allocation2 + $0x8] sm:$0xff]
        %v611 = vld [vmem:[#allocation2 + $0x10] sm:$0xff]
        %v612 = vld [vmem:[#allocation2 + $0x18] sm:$0xff]
        %v613 = vld [vmem:[%s551] sm:$0xff]
        %v614 = vld [vmem:[%s551 + $0x8] sm:$0xff]
        %v615 = vld [vmem:[%s551 + $0x10] sm:$0xff]
        %v616 = vld [vmem:[%s551 + $0x18] sm:$0xff]
        %v617 = vld [vmem:[%s558] sm:$0xff]
        %v618 = vld [vmem:[%s558 + $0x8] sm:$0xff]
        %v619 = vld [vmem:[%s558 + $0x10] sm:$0xff]
        %v620 = vld [vmem:[%s558 + $0x18] sm:$0xff]
        %v621 = vld [vmem:[%s558 + $0x20] sm:$0xff]
        %v622 = vld [vmem:[%s558 + $0x28] sm:$0xff]
        %v623 = vld [vmem:[%s558 + $0x30] sm:$0xff]
        %v624 = vld [vmem:[%s558 + $0x38] sm:$0xff]
        %v625 = vld [vmem:[%s558 + $0x40] sm:$0xff]
        %v626 = vld [vmem:[%s558 + $0x48] sm:$0xff]
        %v627 = vld [vmem:[%s558 + $0x50] sm:$0xff]
        %v628 = vld [vmem:[%s558 + $0x58] sm:$0xff]
        %v629 = vld [vmem:[%s558 + $0x60] sm:$0xff]
        %v630 = vld [vmem:[%s558 + $0x68] sm:$0xff]
        %v631 = vld [vmem:[%s558 + $0x70] sm:$0xff]
        %v632 = vld [vmem:[%s558 + $0x78] sm:$0xff]
        %v633 = vld [vmem:[%s558 + $0x80] sm:$0xff]
        %v634 = vld [vmem:[%s558 + $0x88] sm:$0xff]
        %v635 = vld [vmem:[%s558 + $0x90] sm:$0xff]
        %v636 = vld [vmem:[%s558 + $0x98] sm:$0xff]
        %v637 = vld [vmem:[%s558 + $0xa0] sm:$0xff]
        %v638 = vld [vmem:[%s558 + $0xa8] sm:$0xff]
        %v639 = vld [vmem:[%s558 + $0xb0] sm:$0xff]
        %v640 = vld [vmem:[%s558 + $0xb8] sm:$0xff]
        %v641 = vld [vmem:[%s558 + $0xc0] sm:$0xff]
        %v642 = vld [vmem:[%s558 + $0xc8] sm:$0xff]
        %v643 = vld [vmem:[%s558 + $0xd0] sm:$0xff]
        %v644 = vld [vmem:[%s558 + $0xd8] sm:$0xff]
        %v645 = vld [vmem:[%s558 + $0xe0] sm:$0xff]
        %v646 = vld [vmem:[%s558 + $0xe8] sm:$0xff]
        %v647 = vld [vmem:[%s558 + $0xf0] sm:$0xff]
        %v648 = vld [vmem:[%s558 + $0xf8] sm:$0xff]
        %v649 = vld [vmem:[%s558 + $0x100] sm:$0xff]
        %v650 = vld [vmem:[%s558 + $0x108] sm:$0xff]
        %v651 = vld [vmem:[%s558 + $0x110] sm:$0xff]
        %v652 = vld [vmem:[%s558 + $0x118] sm:$0xff]
        %v653 = vld [vmem:[%s558 + $0x120] sm:$0xff]
        %v654 = vld [vmem:[%s558 + $0x128] sm:$0xff]
        %v655 = vld [vmem:[%s558 + $0x130] sm:$0xff]
        %v656 = vld [vmem:[%s558 + $0x138] sm:$0xff]
        %v657 = vld [vmem:[%s558 + $0x140] sm:$0xff]
        %v658 = vld [vmem:[%s558 + $0x148] sm:$0xff]
        %v659 = vld [vmem:[%s558 + $0x150] sm:$0xff]
        %v660 = vld [vmem:[%s558 + $0x158] sm:$0xff]
        %v661 = vld [vmem:[%s558 + $0x160] sm:$0xff]
        %v662 = vld [vmem:[%s558 + $0x168] sm:$0xff]
        %v663 = vld [vmem:[%s558 + $0x170] sm:$0xff]
        %v664 = vld [vmem:[%s558 + $0x178] sm:$0xff]
        %v665 = vld [vmem:[%s558 + $0x180] sm:$0xff]
        %v666 = vld [vmem:[%s558 + $0x188] sm:$0xff]
        %v667 = vld [vmem:[%s558 + $0x190] sm:$0xff]
        %v668 = vld [vmem:[%s558 + $0x198] sm:$0xff]
        %v669 = vld [vmem:[%s558 + $0x1a0] sm:$0xff]
        %v670 = vld [vmem:[%s558 + $0x1a8] sm:$0xff]
        %v671 = vld [vmem:[%s558 + $0x1b0] sm:$0xff]
        %v672 = vld [vmem:[%s558 + $0x1b8] sm:$0xff]
        %v673 = vld [vmem:[%s558 + $0x1c0] sm:$0xff]
        %v674 = vld [vmem:[%s558 + $0x1c8] sm:$0xff]
        %v675 = vld [vmem:[%s558 + $0x1d0] sm:$0xff]
        %v676 = vld [vmem:[%s558 + $0x1d8] sm:$0xff]
        %v677 = vld [vmem:[%s558 + $0x1e0] sm:$0xff]
        %v678 = vld [vmem:[%s558 + $0x1e8] sm:$0xff]
        %v679 = vld [vmem:[%s558 + $0x1f0] sm:$0xff]
        %v680 = vld [vmem:[%s558 + $0x1f8] sm:$0xff]
        %v685 = vunpack.c.l.b16 %v613
        %v686 = vunpack.c.h.b16 %v613
        %v687 = vunpack.c.l.b16 %v614
        %v688 = vunpack.c.h.b16 %v614
        %v689 = vunpack.c.l.b16 %v615
        %v690 = vunpack.c.h.b16 %v615
        %v691 = vunpack.c.l.b16 %v616
        %v692 = vunpack.c.h.b16 %v616
        %v693 = vpack.c.b16 %v689, %v685
        %v694 = vpack.c.b16 %v690, %v686
        %v695 = vpack.c.b16 %v691, %v687
        %v696 = vpack.c.b16 %v692, %v688
        %v765 = vunpack.c.l.b16 %v617
        %v766 = vunpack.c.h.b16 %v617
        %v767 = vunpack.c.l.b16 %v618
        %v768 = vunpack.c.h.b16 %v618
        %v769 = vunpack.c.l.b16 %v619
        %v770 = vunpack.c.h.b16 %v619
        %v771 = vunpack.c.l.b16 %v620
        %v772 = vunpack.c.h.b16 %v620
        %v773 = vunpack.c.l.b16 %v621
        %v774 = vunpack.c.h.b16 %v621
        %v775 = vunpack.c.l.b16 %v622
        %v776 = vunpack.c.h.b16 %v622
        %v777 = vunpack.c.l.b16 %v623
        %v778 = vunpack.c.h.b16 %v623
        %v779 = vunpack.c.l.b16 %v624
        %v780 = vunpack.c.h.b16 %v624
        %v781 = vunpack.c.l.b16 %v625
        %v782 = vunpack.c.h.b16 %v625
        %v783 = vunpack.c.l.b16 %v626
        %v784 = vunpack.c.h.b16 %v626
        %v785 = vunpack.c.l.b16 %v627
        %v786 = vunpack.c.h.b16 %v627
        %v787 = vunpack.c.l.b16 %v628
        %v788 = vunpack.c.h.b16 %v628
        %v789 = vunpack.c.l.b16 %v629
        %v790 = vunpack.c.h.b16 %v629
        %v791 = vunpack.c.l.b16 %v630
        %v792 = vunpack.c.h.b16 %v630
        %v793 = vunpack.c.l.b16 %v631
        %v794 = vunpack.c.h.b16 %v631
        %v795 = vunpack.c.l.b16 %v632
        %v796 = vunpack.c.h.b16 %v632
        %v797 = vunpack.c.l.b16 %v633
        %v798 = vunpack.c.h.b16 %v633
        %v799 = vunpack.c.l.b16 %v634
        %v800 = vunpack.c.h.b16 %v634
        %v801 = vunpack.c.l.b16 %v635
        %v802 = vunpack.c.h.b16 %v635
        %v803 = vunpack.c.l.b16 %v636
        %v804 = vunpack.c.h.b16 %v636
        %v805 = vunpack.c.l.b16 %v637
        %v806 = vunpack.c.h.b16 %v637
        %v807 = vunpack.c.l.b16 %v638
        %v808 = vunpack.c.h.b16 %v638
        %v809 = vunpack.c.l.b16 %v639
        %v810 = vunpack.c.h.b16 %v639
        %v811 = vunpack.c.l.b16 %v640
        %v812 = vunpack.c.h.b16 %v640
        %v813 = vunpack.c.l.b16 %v641
        %v814 = vunpack.c.h.b16 %v641
        %v815 = vunpack.c.l.b16 %v642
        %v816 = vunpack.c.h.b16 %v642
        %v817 = vunpack.c.l.b16 %v643
        %v818 = vunpack.c.h.b16 %v643
        %v819 = vunpack.c.l.b16 %v644
        %v820 = vunpack.c.h.b16 %v644
        %v821 = vunpack.c.l.b16 %v645
        %v822 = vunpack.c.h.b16 %v645
        %v823 = vunpack.c.l.b16 %v646
        %v824 = vunpack.c.h.b16 %v646
        %v825 = vunpack.c.l.b16 %v647
        %v826 = vunpack.c.h.b16 %v647
        %v827 = vunpack.c.l.b16 %v648
        %v828 = vunpack.c.h.b16 %v648
        %v829 = vunpack.c.l.b16 %v649
        %v830 = vunpack.c.h.b16 %v649
        %v831 = vunpack.c.l.b16 %v650
        %v832 = vunpack.c.h.b16 %v650
        %v833 = vunpack.c.l.b16 %v651
        %v834 = vunpack.c.h.b16 %v651
        %v835 = vunpack.c.l.b16 %v652
        %v836 = vunpack.c.h.b16 %v652
        %v837 = vunpack.c.l.b16 %v653
        %v838 = vunpack.c.h.b16 %v653
        %v839 = vunpack.c.l.b16 %v654
        %v840 = vunpack.c.h.b16 %v654
        %v841 = vunpack.c.l.b16 %v655
        %v842 = vunpack.c.h.b16 %v655
        %v843 = vunpack.c.l.b16 %v656
        %v844 = vunpack.c.h.b16 %v656
        %v845 = vunpack.c.l.b16 %v657
        %v846 = vunpack.c.h.b16 %v657
        %v847 = vunpack.c.l.b16 %v658
        %v848 = vunpack.c.h.b16 %v658
        %v849 = vunpack.c.l.b16 %v659
        %v850 = vunpack.c.h.b16 %v659
        %v851 = vunpack.c.l.b16 %v660
        %v852 = vunpack.c.h.b16 %v660
        %v853 = vunpack.c.l.b16 %v661
        %v854 = vunpack.c.h.b16 %v661
        %v855 = vunpack.c.l.b16 %v662
        %v856 = vunpack.c.h.b16 %v662
        %v857 = vunpack.c.l.b16 %v663
        %v858 = vunpack.c.h.b16 %v663
        %v859 = vunpack.c.l.b16 %v664
        %v860 = vunpack.c.h.b16 %v664
        %v861 = vunpack.c.l.b16 %v665
        %v862 = vunpack.c.h.b16 %v665
        %v863 = vunpack.c.l.b16 %v666
        %v864 = vunpack.c.h.b16 %v666
        %v865 = vunpack.c.l.b16 %v667
        %v866 = vunpack.c.h.b16 %v667
        %v867 = vunpack.c.l.b16 %v668
        %v868 = vunpack.c.h.b16 %v668
        %v869 = vunpack.c.l.b16 %v669
        %v870 = vunpack.c.h.b16 %v669
        %v871 = vunpack.c.l.b16 %v670
        %v872 = vunpack.c.h.b16 %v670
        %v873 = vunpack.c.l.b16 %v671
        %v874 = vunpack.c.h.b16 %v671
        %v875 = vunpack.c.l.b16 %v672
        %v876 = vunpack.c.h.b16 %v672
        %v877 = vunpack.c.l.b16 %v673
        %v878 = vunpack.c.h.b16 %v673
        %v879 = vunpack.c.l.b16 %v674
        %v880 = vunpack.c.h.b16 %v674
        %v881 = vunpack.c.l.b16 %v675
        %v882 = vunpack.c.h.b16 %v675
        %v883 = vunpack.c.l.b16 %v676
        %v884 = vunpack.c.h.b16 %v676
        %v885 = vunpack.c.l.b16 %v677
        %v886 = vunpack.c.h.b16 %v677
        %v887 = vunpack.c.l.b16 %v678
        %v888 = vunpack.c.h.b16 %v678
        %v889 = vunpack.c.l.b16 %v679
        %v890 = vunpack.c.h.b16 %v679
        %v891 = vunpack.c.l.b16 %v680
        %v892 = vunpack.c.h.b16 %v680
        %v893 = vpack.c.b16 %v767, %v765
        %v894 = vpack.c.b16 %v768, %v766
        %v895 = vpack.c.b16 %v771, %v769
        %v896 = vpack.c.b16 %v772, %v770
        %v897 = vpack.c.b16 %v775, %v773
        %v898 = vpack.c.b16 %v776, %v774
        %v899 = vpack.c.b16 %v779, %v777
        %v900 = vpack.c.b16 %v780, %v778
        %v901 = vpack.c.b16 %v783, %v781
        %v902 = vpack.c.b16 %v784, %v782
        %v903 = vpack.c.b16 %v787, %v785
        %v904 = vpack.c.b16 %v788, %v786
        %v905 = vpack.c.b16 %v791, %v789
        %v906 = vpack.c.b16 %v792, %v790
        %v907 = vpack.c.b16 %v795, %v793
        %v908 = vpack.c.b16 %v796, %v794
        %v909 = vpack.c.b16 %v799, %v797
        %v910 = vpack.c.b16 %v800, %v798
        %v911 = vpack.c.b16 %v803, %v801
        %v912 = vpack.c.b16 %v804, %v802
        %v913 = vpack.c.b16 %v807, %v805
        %v914 = vpack.c.b16 %v808, %v806
        %v915 = vpack.c.b16 %v811, %v809
        %v916 = vpack.c.b16 %v812, %v810
        %v917 = vpack.c.b16 %v815, %v813
        %v918 = vpack.c.b16 %v816, %v814
        %v919 = vpack.c.b16 %v819, %v817
        %v920 = vpack.c.b16 %v820, %v818
        %v921 = vpack.c.b16 %v823, %v821
        %v922 = vpack.c.b16 %v824, %v822
        %v923 = vpack.c.b16 %v827, %v825
        %v924 = vpack.c.b16 %v828, %v826
        %v925 = vpack.c.b16 %v831, %v829
        %v926 = vpack.c.b16 %v832, %v830
        %v927 = vpack.c.b16 %v835, %v833
        %v928 = vpack.c.b16 %v836, %v834
        %v929 = vpack.c.b16 %v839, %v837
        %v930 = vpack.c.b16 %v840, %v838
        %v931 = vpack.c.b16 %v843, %v841
        %v932 = vpack.c.b16 %v844, %v842
        %v933 = vpack.c.b16 %v847, %v845
        %v934 = vpack.c.b16 %v848, %v846
        %v935 = vpack.c.b16 %v851, %v849
        %v936 = vpack.c.b16 %v852, %v850
        %v937 = vpack.c.b16 %v855, %v853
        %v938 = vpack.c.b16 %v856, %v854
        %v939 = vpack.c.b16 %v859, %v857
        %v940 = vpack.c.b16 %v860, %v858
        %v941 = vpack.c.b16 %v863, %v861
        %v942 = vpack.c.b16 %v864, %v862
        %v943 = vpack.c.b16 %v867, %v865
        %v944 = vpack.c.b16 %v868, %v866
        %v945 = vpack.c.b16 %v871, %v869
        %v946 = vpack.c.b16 %v872, %v870
        %v947 = vpack.c.b16 %v875, %v873
        %v948 = vpack.c.b16 %v876, %v874
        %v949 = vpack.c.b16 %v879, %v877
        %v950 = vpack.c.b16 %v880, %v878
        %v951 = vpack.c.b16 %v883, %v881
        %v952 = vpack.c.b16 %v884, %v882
        %v953 = vpack.c.b16 %v887, %v885
        %v954 = vpack.c.b16 %v888, %v886
        %v955 = vpack.c.b16 %v891, %v889
        %v956 = vpack.c.b16 %v892, %v890
        %1021 = vmatprep.subr.bf16.mxu0 %v894
        %1022 = vmatpush1.bf16.msra.mxu0 %v893
        %1023 = vmatprep.subr.bf16.mxu0 %v896
        %1024 = vmatpush1.bf16.msra.mxu0 %v895
        %1025 = vmatprep.subr.bf16.mxu0 %v898
        %1026 = vmatpush1.bf16.msra.mxu0 %v897
        %1027 = vmatprep.subr.bf16.mxu0 %v900
        %1028 = vmatpush1.bf16.msra.mxu0 %v899
        %1029 = vmatprep.subr.bf16.mxu0 %v902
        %1030 = vmatpush1.bf16.msra.mxu0 %v901
        %1031 = vmatprep.subr.bf16.mxu0 %v904
        %1032 = vmatpush1.bf16.msra.mxu0 %v903
        %1033 = vmatprep.subr.bf16.mxu0 %v906
        %1034 = vmatpush1.bf16.msra.mxu0 %v905
        %1035 = vmatprep.subr.bf16.mxu0 %v908
        %1036 = vmatpush1.bf16.msra.mxu0 %v907
        %1037 = vmatprep.subr.bf16.mxu0 %v910
        %1038 = vmatpush1.bf16.msra.mxu0 %v909
        %1039 = vmatprep.subr.bf16.mxu0 %v912
        %1040 = vmatpush1.bf16.msra.mxu0 %v911
        %1041 = vmatprep.subr.bf16.mxu0 %v914
        %1042 = vmatpush1.bf16.msra.mxu0 %v913
        %1043 = vmatprep.subr.bf16.mxu0 %v916
        %1044 = vmatpush1.bf16.msra.mxu0 %v915
        %1045 = vmatprep.subr.bf16.mxu0 %v918
        %1046 = vmatpush1.bf16.msra.mxu0 %v917
        %1047 = vmatprep.subr.bf16.mxu0 %v920
        %1048 = vmatpush1.bf16.msra.mxu0 %v919
        %1049 = vmatprep.subr.bf16.mxu0 %v922
        %1050 = vmatpush1.bf16.msra.mxu0 %v921
        %1051 = vmatprep.subr.bf16.mxu0 %v924
        %1052 = vmatpush1.bf16.msra.mxu0 %v923
        %1053 = vmatprep.mubr.bf16.mxu0 %v694
        %1054 = vmatmul.mubr.bf16.gmra.mrb[0].mxu0 %v693
        %v1055 = vpop.f32.mrb[0].mxu0
        %v1056 = vadd.f32 0.0, %v1055
        %v1057 = vpop.f32.mrb[0].mxu0
        %v1058 = vadd.f32 0.0, %v1057
        %v1059 = vpop.f32.mrb[0].mxu0
        %v1060 = vadd.f32 0.0, %v1059
        %v1061 = vpop.f32.mrb[0].mxu0
        %v1062 = vadd.f32 0.0, %v1061
        %1063 = vdwg.mxu0
        %1064 = vmatprep.subr.bf16.mxu0 %v926
        %1065 = vmatpush1.bf16.msra.mxu0 %v925
        %1066 = vmatprep.subr.bf16.mxu0 %v928
        %1067 = vmatpush1.bf16.msra.mxu0 %v927
        %1068 = vmatprep.subr.bf16.mxu0 %v930
        %1069 = vmatpush1.bf16.msra.mxu0 %v929
        %1070 = vmatprep.subr.bf16.mxu0 %v932
        %1071 = vmatpush1.bf16.msra.mxu0 %v931
        %1072 = vmatprep.subr.bf16.mxu0 %v934
        %1073 = vmatpush1.bf16.msra.mxu0 %v933
        %1074 = vmatprep.subr.bf16.mxu0 %v936
        %1075 = vmatpush1.bf16.msra.mxu0 %v935
        %1076 = vmatprep.subr.bf16.mxu0 %v938
        %1077 = vmatpush1.bf16.msra.mxu0 %v937
        %1078 = vmatprep.subr.bf16.mxu0 %v940
        %1079 = vmatpush1.bf16.msra.mxu0 %v939
        %1080 = vmatprep.subr.bf16.mxu0 %v942
        %1081 = vmatpush1.bf16.msra.mxu0 %v941
        %1082 = vmatprep.subr.bf16.mxu0 %v944
        %1083 = vmatpush1.bf16.msra.mxu0 %v943
        %1084 = vmatprep.subr.bf16.mxu0 %v946
        %1085 = vmatpush1.bf16.msra.mxu0 %v945
        %1086 = vmatprep.subr.bf16.mxu0 %v948
        %1087 = vmatpush1.bf16.msra.mxu0 %v947
        %1088 = vmatprep.subr.bf16.mxu0 %v950
        %1089 = vmatpush1.bf16.msra.mxu0 %v949
        %1090 = vmatprep.subr.bf16.mxu0 %v952
        %1091 = vmatpush1.bf16.msra.mxu0 %v951
        %1092 = vmatprep.subr.bf16.mxu0 %v954
        %1093 = vmatpush1.bf16.msra.mxu0 %v953
        %1094 = vmatprep.subr.bf16.mxu0 %v956
        %1095 = vmatpush1.bf16.msra.mxu0 %v955
        %1096 = vmatprep.mubr.bf16.mxu0 %v696
        %1097 = vmatmul.mubr.bf16.gmra.mrb[0].mxu0 %v695
        %v1098 = vpop.f32.mrb[0].mxu0
        %v1099 = vadd.f32 %v1056, %v1098
        %v1100 = vpop.f32.mrb[0].mxu0
        %v1101 = vadd.f32 %v1058, %v1100
        %v1102 = vpop.f32.mrb[0].mxu0
        %v1103 = vadd.f32 %v1060, %v1102
        %v1104 = vpop.f32.mrb[0].mxu0
        %v1105 = vadd.f32 %v1062, %v1104
        %1106 = vdwg.mxu0
        %v1107 = vadd.f32 %v609, %v1099
        %v1108 = vadd.f32 %v610, %v1101
        %v1109 = vadd.f32 %v611, %v1103
        %v1110 = vadd.f32 %v612, %v1105
        %1111 = vst [vmem:[#allocation2] sm:$0xff] %v1107
        %1112 = vst [vmem:[#allocation2 + $0x8] sm:$0xff] %v1108
        %1113 = vst [vmem:[#allocation2 + $0x10] sm:$0xff] %v1109
        %1114 = vst [vmem:[#allocation2 + $0x18] sm:$0xff] %v1110
        %p1115 = scmp.eq.s32.totalorder %s21, 2
        // Predicated region
        $region136: #{resnet_forward.27} parent=118 // pred_check
          %p1116 = pneg %p1115
        $region137: #{resnet_forward.27} parent=118 // pred_check_branch
          %1118 = sbr.rel (%p1116) target = $region139
        $region138: #{resnet_forward.27} parent=118 // pred_region
          %v1119 = vld [vmem:[%s565] sm:$0xff]
          %v1120 = vld [vmem:[%s565 + $0x8] sm:$0xff]
          %v1121 = vunpack.c.l.bf16 %v1119
          %v1122 = vunpack.c.h.bf16 %v1119
          %v1123 = vunpack.c.l.bf16 %v1120
          %v1124 = vunpack.c.h.bf16 %v1120
          %v1125 = vld [vmem:[#allocation2] sm:$0xff]
          %v1126 = vld [vmem:[#allocation2 + $0x8] sm:$0xff]
          %v1127 = vld [vmem:[#allocation2 + $0x10] sm:$0xff]
          %v1128 = vld [vmem:[#allocation2 + $0x18] sm:$0xff]
          %v1129 = vadd.f32 %v1125, %v1121
          %v1130 = vadd.f32 %v1126, %v1122
          %v1131 = vadd.f32 %v1127, %v1123
          %v1132 = vadd.f32 %v1128, %v1124
          %v1133 = vmax.f32 %v1129, 0.0
          %v1134 = vmax.f32 %v1130, 0.0
          %v1135 = vmax.f32 %v1131, 0.0
          %v1136 = vmax.f32 %v1132, 0.0
          %v1137 = vpack.c.bf16 %v1135, %v1133
          %v1138 = vpack.c.bf16 %v1136, %v1134
          %v1141 = vunpack.c.l.b16 %v1137
          %v1142 = vunpack.c.l.b16 %v1138
          %v1143 = vunpack.c.h.b16 %v1137
          %v1144 = vunpack.c.h.b16 %v1138
          %v1145 = vpack.c.b16 %v1142, %v1141
          %v1146 = vpack.c.b16 %v1144, %v1143
          %1149 = vst [vmem:[%s592] sm:$0xff] %v1145
          %1150 = vst [vmem:[%s592 + $0x8] sm:$0xff] %v1146
        $region139: #{resnet_forward.27} parent=118 // pred_fallthru
          _
        %s1151 = sand.u32 %s127, 1
        %s1152 = sand.u32 %s127, 1
        %s1153 = smul.addr %s1152, 16
        %s1154 = scalar_lea.vmem [#allocation6], %s1153
        // Predicated region
        $region140: #{resnet_forward.27} parent=118 // pred_check
          %p1155 = pneg %p137
        $region141: #{resnet_forward.27} parent=118 // pred_check_branch
          %1157 = sbr.rel (%p1155) target = $region143
        $region142: #{resnet_forward.27} parent=118 // pred_region
          %s1158 = smul.u32 2, %s19
          %s1159 = smul.u32 2, %s20
          %s1160 = smul.addr %s1158, 4
          %s1161 = sadd.s32 %s1159, %s1160
          %s1162 = smul.addr %s1161, 4
          %s1163 = scalar_lea.vmem %s3, %s1162
          // Predicated region
          $region144: #{resnet_forward.27} parent=142 // pred_check
            _
          $region145: #{resnet_forward.27} parent=142 // pred_check_branch
            %1165 = sbr.rel (0) target = $region147
          $region146: #{resnet_forward.27} parent=142 // pred_region
            // Predicated region
            $region148: #{resnet_forward.27} parent=146 // pred_check
              _
            $region149: #{resnet_forward.27} parent=146 // pred_check_branch
              %1167 = sbr.rel (0) target = $region151
            $region150: #{resnet_forward.27} parent=146 // pred_region
              // Predicated region
              $region163: #{resnet_forward.27} parent=150 // pred_check
                _
              $region164: #{resnet_forward.27} parent=150 // pred_check_branch
                %1184 = sbr.rel (0) target = $region166
              $region165: #{resnet_forward.27} parent=150 // pred_region
                loop: start=0, step=1, limit=1
                $region167: #{resnet_forward.27} parent=165 // loop_pre_header
                  _
                $region168: #{resnet_forward.27} parent=165 // loop_header
                  %s1186 = sphi 0, %s1190
                  %p1187 = scmp.ge.s32.totalorder %s1186, 1
                  %s1191 = sphi %s1154, %s1154
                  %s1192 = sphi %s1163, %s1163
                $region169: #{resnet_forward.27} parent=165 // loop_header_branch
                  %1189 = sbr.rel (%p1187) target = $region173
                $region170: #{resnet_forward.27} parent=165 // loop_body
                  %v1193 = vld [vmem:[%s1191] sm:$0xff]
                  %1194 = vst [vmem:[%s1192] sm:$0xff] %v1193
                  %v1195 = vld [vmem:[%s1191 + $0x8] sm:$0xff]
                  %1196 = vst [vmem:[%s1192 + $0x10] sm:$0xff] %v1195
                $region171: #{resnet_forward.27} parent=165 // loop_footer
                  %s1190 = sadd.s32 1, %s1186
                $region172: #{resnet_forward.27} parent=165 // loop_footer_branch
                  %1185 = sbr.rel target = $region168
                $region173: #{resnet_forward.27} parent=165 // loop_exit
                  _
              $region166: #{resnet_forward.27} parent=150 // pred_fallthru
                _
              // Predicated region
              $region174: #{resnet_forward.27} parent=150 // pred_check
                _
              $region175: #{resnet_forward.27} parent=150 // pred_check_branch
                %1198 = sbr.rel target = $region177
              $region176: #{resnet_forward.27} parent=150 // pred_region
                _
              $region177: #{resnet_forward.27} parent=150 // pred_fallthru
                _
            $region151: #{resnet_forward.27} parent=146 // pred_fallthru
              _
            // Predicated region
            $region152: #{resnet_forward.27} parent=146 // pred_check
              _
            $region153: #{resnet_forward.27} parent=146 // pred_check_branch
              %1169 = sbr.rel target = $region155
            $region154: #{resnet_forward.27} parent=146 // pred_region
              loop: start=0, step=1, limit=1
              $region156: #{resnet_forward.27} parent=154 // loop_pre_header
                _
              $region157: #{resnet_forward.27} parent=154 // loop_header
                %s1172 = sphi 0, %s1176
                %p1173 = scmp.ge.s32.totalorder %s1172, 1
                %s1177 = sphi %s1154, %s1154
                %s1178 = sphi %s1163, %s1163
              $region158: #{resnet_forward.27} parent=154 // loop_header_branch
                %1175 = sbr.rel (%p1173) target = $region162
              $region159: #{resnet_forward.27} parent=154 // loop_body
                %v1179 = vld [vmem:[%s1177] sm:$0xff]
                %1180 = vst [vmem:[%s1178] sm:$0xff] %v1179
                %v1181 = vld [vmem:[%s1177 + $0x8] sm:$0xff]
                %1182 = vst [vmem:[%s1178 + $0x10] sm:$0xff] %v1181
              $region160: #{resnet_forward.27} parent=154 // loop_footer
                %s1176 = sadd.s32 1, %s1172
              $region161: #{resnet_forward.27} parent=154 // loop_footer_branch
                %1171 = sbr.rel target = $region157
              $region162: #{resnet_forward.27} parent=154 // loop_exit
                _
            $region155: #{resnet_forward.27} parent=146 // pred_fallthru
              _
          $region147: #{resnet_forward.27} parent=142 // pred_fallthru
            _
          %1199 = vnop
        $region143: #{resnet_forward.27} parent=118 // pred_fallthru
          _
      $region119: #{resnet_forward.27} parent=5 // pred_fallthru
        _
      %p1200 = scmp.le.s32.totalorder 2, %s9
      // Predicated region
      $region178: #{resnet_forward.27} parent=5 // pred_check
        %p1201 = pneg %p1200
      $region179: #{resnet_forward.27} parent=5 // pred_check_branch
        %1203 = sbr.rel (%p1201) target = $region181
      $region180: #{resnet_forward.27} parent=5 // pred_region
        %s1204 = ssub.s32 %s9, 2
        // Predicated region
        $region182: #{resnet_forward.27} parent=180 // pred_check
          %p1205 = pneg %p143
        $region183: #{resnet_forward.27} parent=180 // pred_check_branch
          %1207 = sbr.rel (%p1205) target = $region185
        $region184: #{resnet_forward.27} parent=180 // pred_region
          %s1208 = sand.u32 %s128, 1
          %s1209 = sand.u32 %s128, 1
          %s1210 = smul.addr %s1209, 16
          %s1211 = scalar_lea.vmem [#allocation6], %s1210
        $region185: #{resnet_forward.27} parent=180 // pred_fallthru
          _
      $region181: #{resnet_forward.27} parent=5 // pred_fallthru
        _
    $region6: #{resnet_forward.27} parent=1 // loop_footer
      %s13 = sadd.s32 1, %s9
    $region7: #{resnet_forward.27} parent=1 // loop_footer_branch
      %8 = sbr.rel target = $region3
    $region8: #{resnet_forward.27} parent=1 // loop_exit
      _

// kernel: resnet_forward.28
$region0: #{resnet_forward.28}
  #allocation0 [shape = 'u32[]', space=smem, size = 0x4, offset = 0x4, fixed_abs, tag = 'smem constant byte address 0x4 - core index']
  #allocation1 [shape = 'u32[144,128]{1,0:T(1,128)}', space=vmem, size = 0x12000, scoped, tag = 'internal scratch']
  %s0 = inlined_call_operand.vmem [shape: bf16[2,2,512], index: 0, kind: input, shape index: {}]
  %s1 = inlined_call_operand.vmem [shape: f32[2,512], index: 1, kind: output, shape index: {}]
  %s2 = sld [smem:[#allocation0]]
  $region14: #{resnet_forward.28} parent=0
    _
  %s4 = ssub.s32 1, %s2
  %s5 = scalar_select 0, %s4, %s2
  // Predicated region
  $region2: #{resnet_forward.28} parent=0 // pred_check
    _
  $region3: #{resnet_forward.28} parent=0 // pred_check_branch
    %7 = sbr.rel (0) target = $region5
  $region4: #{resnet_forward.28} parent=0 // pred_region
    _
  $region5: #{resnet_forward.28} parent=0 // pred_fallthru
    _
  %v8 = vld [vmem:[%s0] sm:$0xf]
  %v9 = vld [vmem:[%s0 + $0x4] sm:$0xf]
  %v10 = vunpack.c.l.bf16 %v8
  %v11 = vunpack.c.l.bf16 %v9
  %v14 = vcombine.high %v10, %v10
  %v16 = vunpack.c.l.s4 1983009808
  %v17 = vunpack.c.0.s8 %v16
  %v18 = vlaneseq
  %v19 = vshrl.u32 %v18, 7
  %v20 = vsub.s32 %v17, %v19
  %v21 = vrot.slane %v10, %v20
  %v23 = vunpack.c.l.s4 1983009808
  %v24 = vunpack.c.0.s8 %v23
  %v25 = vlaneseq
  %v26 = vshrl.u32 %v25, 7
  %v27 = vsub.s32 %v24, %v26
  %v28 = vrot.slane %v14, %v27
  %v29 = vcombine.high %v21, %v21
  %v30 = vcombine.high %v28, %v28
  %v31 = vcombine.high %v11, %v11
  %v33 = vunpack.c.l.s4 1983009808
  %v34 = vunpack.c.0.s8 %v33
  %v35 = vlaneseq
  %v36 = vshrl.u32 %v35, 7
  %v37 = vsub.s32 %v34, %v36
  %v38 = vrot.slane %v11, %v37
  %v40 = vunpack.c.l.s4 1983009808
  %v41 = vunpack.c.0.s8 %v40
  %v42 = vlaneseq
  %v43 = vshrl.u32 %v42, 7
  %v44 = vsub.s32 %v41, %v43
  %v45 = vrot.slane %v31, %v44
  %v46 = vcombine.high %v38, %v38
  %v47 = vcombine.high %v45, %v45
  %vm56 = vcmask 1041408
  %v57 = vsel %vm56, %v21, 0.0
  %v58 = vrot.slane %v57, 4
  %v59 = vadd.f32 %v57, %v58
  %v60 = vrot.slane %v59, 2
  %v61 = vadd.f32 %v59, %v60
  %v62 = vrot.slane %v61, 1
  %v63 = vadd.f32 %v61, %v62
  %v64 = vsel %vm56, %v29, 0.0
  %v65 = vrot.slane %v64, 4
  %v66 = vadd.f32 %v64, %v65
  %v67 = vrot.slane %v66, 2
  %v68 = vadd.f32 %v66, %v67
  %v69 = vrot.slane %v68, 1
  %v70 = vadd.f32 %v68, %v69
  %v71 = vsel %vm56, %v28, 0.0
  %v72 = vrot.slane %v71, 4
  %v73 = vadd.f32 %v71, %v72
  %v74 = vrot.slane %v73, 2
  %v75 = vadd.f32 %v73, %v74
  %v76 = vrot.slane %v75, 1
  %v77 = vadd.f32 %v75, %v76
  %v78 = vsel %vm56, %v30, 0.0
  %v79 = vrot.slane %v78, 4
  %v80 = vadd.f32 %v78, %v79
  %v81 = vrot.slane %v80, 2
  %v82 = vadd.f32 %v80, %v81
  %v83 = vrot.slane %v82, 1
  %v84 = vadd.f32 %v82, %v83
  %v85 = vsel %vm56, %v38, 0.0
  %v86 = vrot.slane %v85, 4
  %v87 = vadd.f32 %v85, %v86
  %v88 = vrot.slane %v87, 2
  %v89 = vadd.f32 %v87, %v88
  %v90 = vrot.slane %v89, 1
  %v91 = vadd.f32 %v89, %v90
  %v92 = vsel %vm56, %v46, 0.0
  %v93 = vrot.slane %v92, 4
  %v94 = vadd.f32 %v92, %v93
  %v95 = vrot.slane %v94, 2
  %v96 = vadd.f32 %v94, %v95
  %v97 = vrot.slane %v96, 1
  %v98 = vadd.f32 %v96, %v97
  %v99 = vsel %vm56, %v45, 0.0
  %v100 = vrot.slane %v99, 4
  %v101 = vadd.f32 %v99, %v100
  %v102 = vrot.slane %v101, 2
  %v103 = vadd.f32 %v101, %v102
  %v104 = vrot.slane %v103, 1
  %v105 = vadd.f32 %v103, %v104
  %v106 = vsel %vm56, %v47, 0.0
  %v107 = vrot.slane %v106, 4
  %v108 = vadd.f32 %v106, %v107
  %v109 = vrot.slane %v108, 2
  %v110 = vadd.f32 %v108, %v109
  %v111 = vrot.slane %v110, 1
  %v112 = vadd.f32 %v110, %v111
  %v113 = vrcp.pop 2.0
  %v114 = vmul.f32 %v63, %v113
  %v115 = vmul.f32 %v70, %v113
  %v116 = vmul.f32 %v77, %v113
  %v117 = vmul.f32 %v84, %v113
  %v118 = vmul.f32 %v91, %v113
  %v119 = vmul.f32 %v98, %v113
  %v120 = vmul.f32 %v105, %v113
  %v121 = vmul.f32 %v112, %v113
  %v130 = vcombine.low %v114, %v115
  %v131 = vcombine.low %v116, %v117
  %v133 = vunpack.c.l.s4 1983009808
  %v134 = vunpack.c.0.s8 %v133
  %v135 = vlaneseq
  %v136 = vshrl.u32 %v135, 7
  %v137 = vsub.s32 %v134, %v136
  %v138 = vrot.slane %v130, %v137
  %v140 = vunpack.c.l.s4 1983009808
  %v141 = vunpack.c.0.s8 %v140
  %v142 = vlaneseq
  %v143 = vshrl.u32 %v142, 7
  %v144 = vsub.s32 %v141, %v143
  %v145 = vrot.slane %v131, %v144
  %v146 = vcombine.low %v138, %v145
  %v147 = vcombine.low %v118, %v119
  %v148 = vcombine.low %v120, %v121
  %v150 = vunpack.c.l.s4 1983009808
  %v151 = vunpack.c.0.s8 %v150
  %v152 = vlaneseq
  %v153 = vshrl.u32 %v152, 7
  %v154 = vsub.s32 %v151, %v153
  %v155 = vrot.slane %v147, %v154
  %v157 = vunpack.c.l.s4 1983009808
  %v158 = vunpack.c.0.s8 %v157
  %v159 = vlaneseq
  %v160 = vshrl.u32 %v159, 7
  %v161 = vsub.s32 %v158, %v160
  %v162 = vrot.slane %v148, %v161
  %v163 = vcombine.low %v155, %v162
  %vm164 = vcmask 1044484
  %v165 = vsel %vm164, %v146, %v146
  %vm166 = vcmask 1046534
  %v167 = vsel %vm166, %v146, %v165
  %v168 = vrot.slane %v163, 7
  %vm169 = vcmask 1041409
  %v170 = vsel %vm169, %v168, %v167
  %vm171 = vcmask 1043459
  %v172 = vsel %vm171, %v168, %v170
  %vm173 = vcmask 1045509
  %v174 = vsel %vm173, %v168, %v172
  %vm175 = vcmask 1047559
  %v176 = vsel %vm175, %v168, %v174
  %178 = vst [vmem:[%s1] sm:$0xff] %v176
  // Predicated region
  $region6: #{resnet_forward.28} parent=0 // pred_check
    _
  $region7: #{resnet_forward.28} parent=0 // pred_check_branch
    %180 = sbr.rel (0) target = $region9
  $region8: #{resnet_forward.28} parent=0 // pred_region
    _
  $region9: #{resnet_forward.28} parent=0 // pred_fallthru
    _
  // Predicated region
  $region10: #{resnet_forward.28} parent=0 // pred_check
    _
  $region11: #{resnet_forward.28} parent=0 // pred_check_branch
    %182 = sbr.rel (0) target = $region13
  $region12: #{resnet_forward.28} parent=0 // pred_region
    _
  $region13: #{resnet_forward.28} parent=0 // pred_fallthru
    _

// kernel: resnet_forward.29
$region0: #{resnet_forward.29}
  #allocation0 [shape = 'u32[]', space=smem, size = 0x4, offset = 0x4, fixed_abs, tag = 'smem constant byte address 0x4 - core index']
  #allocation1 [shape = 'u32[144,128]{1,0:T(1,128)}', space=vmem, size = 0x12000, scoped, tag = 'internal scratch']
  #allocation2 [shape = 'f32[16,128]{1,0:T(8,128)}', space=vmem, size = 0x2000, scoped, tag = 'scratch operand']
  %s0 = inlined_call_operand.vmem [shape: bf16[16,512], index: 0, kind: input, shape index: {}]
  %s1 = inlined_call_operand.vmem [shape: bf16[512,128], index: 1, kind: input, shape index: {}]
  %s2 = inlined_call_operand.vmem [shape: f32[1,128], index: 2, kind: input, shape index: {}]
  %s3 = inlined_call_operand.vmem [shape: f32[16,128], index: 3, kind: output, shape index: {}]
  %s4 = sld [smem:[#allocation0]]
  $region30: #{resnet_forward.29} parent=0
    _
  %s6 = ssub.s32 1, %s4
  %s7 = scalar_select 0, %s6, %s4
  // Predicated region
  $region2: #{resnet_forward.29} parent=0 // pred_check
    _
  $region3: #{resnet_forward.29} parent=0 // pred_check_branch
    %9 = sbr.rel (0) target = $region5
  $region4: #{resnet_forward.29} parent=0 // pred_region
    _
  $region5: #{resnet_forward.29} parent=0 // pred_fallthru
    _
  // Predicated region
  $region6: #{resnet_forward.29} parent=0 // pred_check
    _
  $region7: #{resnet_forward.29} parent=0 // pred_check_branch
    %11 = sbr.rel (0) target = $region9
  $region8: #{resnet_forward.29} parent=0 // pred_region
    _
  $region9: #{resnet_forward.29} parent=0 // pred_fallthru
    _
  // Predicated region
  $region10: #{resnet_forward.29} parent=0 // pred_check
    _
  $region11: #{resnet_forward.29} parent=0 // pred_check_branch
    %13 = sbr.rel (0) target = $region13
  $region12: #{resnet_forward.29} parent=0 // pred_region
    _
  $region13: #{resnet_forward.29} parent=0 // pred_fallthru
    _
  %p15 = scmp.eq.s32.totalorder 0, 0
  // Predicated region
  $region14: #{resnet_forward.29} parent=0 // pred_check
    %p16 = pneg %p15
  $region15: #{resnet_forward.29} parent=0 // pred_check_branch
    %18 = sbr.rel (%p16) target = $region17
  $region16: #{resnet_forward.29} parent=0 // pred_region
    %19 = vst [vmem:[#allocation2] sm:$0xff] 0.0
    %20 = vst [vmem:[#allocation2 + $0x8] sm:$0xff] 0.0
  $region17: #{resnet_forward.29} parent=0 // pred_fallthru
    _
  %v21 = vld [vmem:[#allocation2] sm:$0xff]
  %v22 = vld [vmem:[#allocation2 + $0x8] sm:$0xff]
  %v23 = vld [vmem:[%s0] sm:$0xff]
  %v24 = vld [vmem:[%s0 + $0x8] sm:$0xff]
  %v25 = vld [vmem:[%s0 + $0x10] sm:$0xff]
  %v26 = vld [vmem:[%s0 + $0x18] sm:$0xff]
  %v27 = vld [vmem:[%s1] sm:$0xf]
  %v28 = vld [vmem:[%s1 + $0x4] sm:$0xf]
  %v29 = vld [vmem:[%s1 + $0x8] sm:$0xf]
  %v30 = vld [vmem:[%s1 + $0xc] sm:$0xf]
  %v31 = vld [vmem:[%s1 + $0x10] sm:$0xf]
  %v32 = vld [vmem:[%s1 + $0x14] sm:$0xf]
  %v33 = vld [vmem:[%s1 + $0x18] sm:$0xf]
  %v34 = vld [vmem:[%s1 + $0x1c] sm:$0xf]
  %v35 = vld [vmem:[%s1 + $0x20] sm:$0xf]
  %v36 = vld [vmem:[%s1 + $0x24] sm:$0xf]
  %v37 = vld [vmem:[%s1 + $0x28] sm:$0xf]
  %v38 = vld [vmem:[%s1 + $0x2c] sm:$0xf]
  %v39 = vld [vmem:[%s1 + $0x30] sm:$0xf]
  %v40 = vld [vmem:[%s1 + $0x34] sm:$0xf]
  %v41 = vld [vmem:[%s1 + $0x38] sm:$0xf]
  %v42 = vld [vmem:[%s1 + $0x3c] sm:$0xf]
  %v43 = vld [vmem:[%s1 + $0x40] sm:$0xf]
  %v44 = vld [vmem:[%s1 + $0x44] sm:$0xf]
  %v45 = vld [vmem:[%s1 + $0x48] sm:$0xf]
  %v46 = vld [vmem:[%s1 + $0x4c] sm:$0xf]
  %v47 = vld [vmem:[%s1 + $0x50] sm:$0xf]
  %v48 = vld [vmem:[%s1 + $0x54] sm:$0xf]
  %v49 = vld [vmem:[%s1 + $0x58] sm:$0xf]
  %v50 = vld [vmem:[%s1 + $0x5c] sm:$0xf]
  %v51 = vld [vmem:[%s1 + $0x60] sm:$0xf]
  %v52 = vld [vmem:[%s1 + $0x64] sm:$0xf]
  %v53 = vld [vmem:[%s1 + $0x68] sm:$0xf]
  %v54 = vld [vmem:[%s1 + $0x6c] sm:$0xf]
  %v55 = vld [vmem:[%s1 + $0x70] sm:$0xf]
  %v56 = vld [vmem:[%s1 + $0x74] sm:$0xf]
  %v57 = vld [vmem:[%s1 + $0x78] sm:$0xf]
  %v58 = vld [vmem:[%s1 + $0x7c] sm:$0xf]
  %v59 = vld [vmem:[%s1 + $0x80] sm:$0xf]
  %v60 = vld [vmem:[%s1 + $0x84] sm:$0xf]
  %v61 = vld [vmem:[%s1 + $0x88] sm:$0xf]
  %v62 = vld [vmem:[%s1 + $0x8c] sm:$0xf]
  %v63 = vld [vmem:[%s1 + $0x90] sm:$0xf]
  %v64 = vld [vmem:[%s1 + $0x94] sm:$0xf]
  %v65 = vld [vmem:[%s1 + $0x98] sm:$0xf]
  %v66 = vld [vmem:[%s1 + $0x9c] sm:$0xf]
  %v67 = vld [vmem:[%s1 + $0xa0] sm:$0xf]
  %v68 = vld [vmem:[%s1 + $0xa4] sm:$0xf]
  %v69 = vld [vmem:[%s1 + $0xa8] sm:$0xf]
  %v70 = vld [vmem:[%s1 + $0xac] sm:$0xf]
  %v71 = vld [vmem:[%s1 + $0xb0] sm:$0xf]
  %v72 = vld [vmem:[%s1 + $0xb4] sm:$0xf]
  %v73 = vld [vmem:[%s1 + $0xb8] sm:$0xf]
  %v74 = vld [vmem:[%s1 + $0xbc] sm:$0xf]
  %v75 = vld [vmem:[%s1 + $0xc0] sm:$0xf]
  %v76 = vld [vmem:[%s1 + $0xc4] sm:$0xf]
  %v77 = vld [vmem:[%s1 + $0xc8] sm:$0xf]
  %v78 = vld [vmem:[%s1 + $0xcc] sm:$0xf]
  %v79 = vld [vmem:[%s1 + $0xd0] sm:$0xf]
  %v80 = vld [vmem:[%s1 + $0xd4] sm:$0xf]
  %v81 = vld [vmem:[%s1 + $0xd8] sm:$0xf]
  %v82 = vld [vmem:[%s1 + $0xdc] sm:$0xf]
  %v83 = vld [vmem:[%s1 + $0xe0] sm:$0xf]
  %v84 = vld [vmem:[%s1 + $0xe4] sm:$0xf]
  %v85 = vld [vmem:[%s1 + $0xe8] sm:$0xf]
  %v86 = vld [vmem:[%s1 + $0xec] sm:$0xf]
  %v87 = vld [vmem:[%s1 + $0xf0] sm:$0xf]
  %v88 = vld [vmem:[%s1 + $0xf4] sm:$0xf]
  %v89 = vld [vmem:[%s1 + $0xf8] sm:$0xf]
  %v90 = vld [vmem:[%s1 + $0xfc] sm:$0xf]
  %v95 = vunpack.c.l.b16 %v23
  %v96 = vunpack.c.h.b16 %v23
  %v97 = vunpack.c.l.b16 %v24
  %v98 = vunpack.c.h.b16 %v24
  %v99 = vunpack.c.l.b16 %v25
  %v100 = vunpack.c.h.b16 %v25
  %v101 = vunpack.c.l.b16 %v26
  %v102 = vunpack.c.h.b16 %v26
  %v103 = vpack.c.b16 %v99, %v95
  %v104 = vpack.c.b16 %v100, %v96
  %v105 = vpack.c.b16 %v101, %v97
  %v106 = vpack.c.b16 %v102, %v98
  %v175 = vunpack.c.l.b16 %v27
  %v176 = vunpack.c.l.b16 %v28
  %v177 = vunpack.c.l.b16 %v29
  %v178 = vunpack.c.l.b16 %v30
  %v179 = vunpack.c.l.b16 %v31
  %v180 = vunpack.c.l.b16 %v32
  %v181 = vunpack.c.l.b16 %v33
  %v182 = vunpack.c.l.b16 %v34
  %v183 = vunpack.c.l.b16 %v35
  %v184 = vunpack.c.l.b16 %v36
  %v185 = vunpack.c.l.b16 %v37
  %v186 = vunpack.c.l.b16 %v38
  %v187 = vunpack.c.l.b16 %v39
  %v188 = vunpack.c.l.b16 %v40
  %v189 = vunpack.c.l.b16 %v41
  %v190 = vunpack.c.l.b16 %v42
  %v191 = vunpack.c.l.b16 %v43
  %v192 = vunpack.c.l.b16 %v44
  %v193 = vunpack.c.l.b16 %v45
  %v194 = vunpack.c.l.b16 %v46
  %v195 = vunpack.c.l.b16 %v47
  %v196 = vunpack.c.l.b16 %v48
  %v197 = vunpack.c.l.b16 %v49
  %v198 = vunpack.c.l.b16 %v50
  %v199 = vunpack.c.l.b16 %v51
  %v200 = vunpack.c.l.b16 %v52
  %v201 = vunpack.c.l.b16 %v53
  %v202 = vunpack.c.l.b16 %v54
  %v203 = vunpack.c.l.b16 %v55
  %v204 = vunpack.c.l.b16 %v56
  %v205 = vunpack.c.l.b16 %v57
  %v206 = vunpack.c.l.b16 %v58
  %v207 = vunpack.c.l.b16 %v59
  %v208 = vunpack.c.l.b16 %v60
  %v209 = vunpack.c.l.b16 %v61
  %v210 = vunpack.c.l.b16 %v62
  %v211 = vunpack.c.l.b16 %v63
  %v212 = vunpack.c.l.b16 %v64
  %v213 = vunpack.c.l.b16 %v65
  %v214 = vunpack.c.l.b16 %v66
  %v215 = vunpack.c.l.b16 %v67
  %v216 = vunpack.c.l.b16 %v68
  %v217 = vunpack.c.l.b16 %v69
  %v218 = vunpack.c.l.b16 %v70
  %v219 = vunpack.c.l.b16 %v71
  %v220 = vunpack.c.l.b16 %v72
  %v221 = vunpack.c.l.b16 %v73
  %v222 = vunpack.c.l.b16 %v74
  %v223 = vunpack.c.l.b16 %v75
  %v224 = vunpack.c.l.b16 %v76
  %v225 = vunpack.c.l.b16 %v77
  %v226 = vunpack.c.l.b16 %v78
  %v227 = vunpack.c.l.b16 %v79
  %v228 = vunpack.c.l.b16 %v80
  %v229 = vunpack.c.l.b16 %v81
  %v230 = vunpack.c.l.b16 %v82
  %v231 = vunpack.c.l.b16 %v83
  %v232 = vunpack.c.l.b16 %v84
  %v233 = vunpack.c.l.b16 %v85
  %v234 = vunpack.c.l.b16 %v86
  %v235 = vunpack.c.l.b16 %v87
  %v236 = vunpack.c.l.b16 %v88
  %v237 = vunpack.c.l.b16 %v89
  %v238 = vunpack.c.l.b16 %v90
  %v239 = vpack.c.b16 %v176, %v175
  %v240 = vpack.c.b16 %v178, %v177
  %v241 = vpack.c.b16 %v180, %v179
  %v242 = vpack.c.b16 %v182, %v181
  %v243 = vpack.c.b16 %v184, %v183
  %v244 = vpack.c.b16 %v186, %v185
  %v245 = vpack.c.b16 %v188, %v187
  %v246 = vpack.c.b16 %v190, %v189
  %v247 = vpack.c.b16 %v192, %v191
  %v248 = vpack.c.b16 %v194, %v193
  %v249 = vpack.c.b16 %v196, %v195
  %v250 = vpack.c.b16 %v198, %v197
  %v251 = vpack.c.b16 %v200, %v199
  %v252 = vpack.c.b16 %v202, %v201
  %v253 = vpack.c.b16 %v204, %v203
  %v254 = vpack.c.b16 %v206, %v205
  %v255 = vpack.c.b16 %v208, %v207
  %v256 = vpack.c.b16 %v210, %v209
  %v257 = vpack.c.b16 %v212, %v211
  %v258 = vpack.c.b16 %v214, %v213
  %v259 = vpack.c.b16 %v216, %v215
  %v260 = vpack.c.b16 %v218, %v217
  %v261 = vpack.c.b16 %v220, %v219
  %v262 = vpack.c.b16 %v222, %v221
  %v263 = vpack.c.b16 %v224, %v223
  %v264 = vpack.c.b16 %v226, %v225
  %v265 = vpack.c.b16 %v228, %v227
  %v266 = vpack.c.b16 %v230, %v229
  %v267 = vpack.c.b16 %v232, %v231
  %v268 = vpack.c.b16 %v234, %v233
  %v269 = vpack.c.b16 %v236, %v235
  %v270 = vpack.c.b16 %v238, %v237
  %303 = vmatprep.subr.bf16.mxu0 0
  %304 = vmatpush1.bf16.msra.mxu0 %v239
  %305 = vmatprep.subr.bf16.mxu0 0
  %306 = vmatpush1.bf16.msra.mxu0 %v240
  %307 = vmatprep.subr.bf16.mxu0 0
  %308 = vmatpush1.bf16.msra.mxu0 %v241
  %309 = vmatprep.subr.bf16.mxu0 0
  %310 = vmatpush1.bf16.msra.mxu0 %v242
  %311 = vmatprep.subr.bf16.mxu0 0
  %312 = vmatpush1.bf16.msra.mxu0 %v243
  %313 = vmatprep.subr.bf16.mxu0 0
  %314 = vmatpush1.bf16.msra.mxu0 %v244
  %315 = vmatprep.subr.bf16.mxu0 0
  %316 = vmatpush1.bf16.msra.mxu0 %v245
  %317 = vmatprep.subr.bf16.mxu0 0
  %318 = vmatpush1.bf16.msra.mxu0 %v246
  %319 = vmatprep.subr.bf16.mxu0 0
  %320 = vmatpush1.bf16.msra.mxu0 %v247
  %321 = vmatprep.subr.bf16.mxu0 0
  %322 = vmatpush1.bf16.msra.mxu0 %v248
  %323 = vmatprep.subr.bf16.mxu0 0
  %324 = vmatpush1.bf16.msra.mxu0 %v249
  %325 = vmatprep.subr.bf16.mxu0 0
  %326 = vmatpush1.bf16.msra.mxu0 %v250
  %327 = vmatprep.subr.bf16.mxu0 0
  %328 = vmatpush1.bf16.msra.mxu0 %v251
  %329 = vmatprep.subr.bf16.mxu0 0
  %330 = vmatpush1.bf16.msra.mxu0 %v252
  %331 = vmatprep.subr.bf16.mxu0 0
  %332 = vmatpush1.bf16.msra.mxu0 %v253
  %333 = vmatprep.subr.bf16.mxu0 0
  %334 = vmatpush1.bf16.msra.mxu0 %v254
  %335 = vmatprep.mubr.bf16.mxu0 %v104
  %336 = vmatmul.mubr.bf16.gmra.mrb[0].mxu0 %v103
  %v337 = vpop.f32.mrb[0].mxu0
  %v338 = vadd.f32 0.0, %v337
  %v339 = vpop.f32.mrb[0].mxu0
  %v340 = vpop.f32.mrb[0].mxu0
  %v341 = vadd.f32 0.0, %v340
  %v342 = vpop.f32.mrb[0].mxu0
  %343 = vdwg.mxu0
  %344 = vmatprep.subr.bf16.mxu0 0
  %345 = vmatpush1.bf16.msra.mxu0 %v255
  %346 = vmatprep.subr.bf16.mxu0 0
  %347 = vmatpush1.bf16.msra.mxu0 %v256
  %348 = vmatprep.subr.bf16.mxu0 0
  %349 = vmatpush1.bf16.msra.mxu0 %v257
  %350 = vmatprep.subr.bf16.mxu0 0
  %351 = vmatpush1.bf16.msra.mxu0 %v258
  %352 = vmatprep.subr.bf16.mxu0 0
  %353 = vmatpush1.bf16.msra.mxu0 %v259
  %354 = vmatprep.subr.bf16.mxu0 0
  %355 = vmatpush1.bf16.msra.mxu0 %v260
  %356 = vmatprep.subr.bf16.mxu0 0
  %357 = vmatpush1.bf16.msra.mxu0 %v261
  %358 = vmatprep.subr.bf16.mxu0 0
  %359 = vmatpush1.bf16.msra.mxu0 %v262
  %360 = vmatprep.subr.bf16.mxu0 0
  %361 = vmatpush1.bf16.msra.mxu0 %v263
  %362 = vmatprep.subr.bf16.mxu0 0
  %363 = vmatpush1.bf16.msra.mxu0 %v264
  %364 = vmatprep.subr.bf16.mxu0 0
  %365 = vmatpush1.bf16.msra.mxu0 %v265
  %366 = vmatprep.subr.bf16.mxu0 0
  %367 = vmatpush1.bf16.msra.mxu0 %v266
  %368 = vmatprep.subr.bf16.mxu0 0
  %369 = vmatpush1.bf16.msra.mxu0 %v267
  %370 = vmatprep.subr.bf16.mxu0 0
  %371 = vmatpush1.bf16.msra.mxu0 %v268
  %372 = vmatprep.subr.bf16.mxu0 0
  %373 = vmatpush1.bf16.msra.mxu0 %v269
  %374 = vmatprep.subr.bf16.mxu0 0
  %375 = vmatpush1.bf16.msra.mxu0 %v270
  %376 = vmatprep.mubr.bf16.mxu0 %v106
  %377 = vmatmul.mubr.bf16.gmra.mrb[0].mxu0 %v105
  %v378 = vpop.f32.mrb[0].mxu0
  %v379 = vadd.f32 %v338, %v378
  %v380 = vpop.f32.mrb[0].mxu0
  %v381 = vpop.f32.mrb[0].mxu0
  %v382 = vadd.f32 %v341, %v381
  %v383 = vpop.f32.mrb[0].mxu0
  %384 = vdwg.mxu0
  %v385 = vadd.f32 %v21, %v379
  %v386 = vadd.f32 %v22, %v382
  %387 = vst [vmem:[#allocation2] sm:$0xff] %v385
  %388 = vst [vmem:[#allocation2 + $0x8] sm:$0xff] %v386
  // Predicated region
  $region18: #{resnet_forward.29} parent=0 // pred_check
    %p389 = pneg %p15
  $region19: #{resnet_forward.29} parent=0 // pred_check_branch
    %391 = sbr.rel (%p389) target = $region21
  $region20: #{resnet_forward.29} parent=0 // pred_region
    %v392 = vld [vmem:[#allocation2] sm:$0xff]
    %v393 = vld [vmem:[#allocation2 + $0x8] sm:$0xff]
    %v394 = vld [vmem:[%s2] sm:$0x1]
    %v396 = vlaneseq
    %v397 = vshrl.u32 %v396, 7
    %v398 = vsub.s32 0, %v397
    %v399 = vrot.slane %v394, %v398
    %v401 = vadd.f32 %v392, %v399
    %v402 = vadd.f32 %v393, %v399
    %403 = vst [vmem:[%s3] sm:$0xff] %v401
    %404 = vst [vmem:[%s3 + $0x8] sm:$0xff] %v402
  $region21: #{resnet_forward.29} parent=0 // pred_fallthru
    _
  // Predicated region
  $region22: #{resnet_forward.29} parent=0 // pred_check
    _
  $region23: #{resnet_forward.29} parent=0 // pred_check_branch
    %406 = sbr.rel (0) target = $region25
  $region24: #{resnet_forward.29} parent=0 // pred_region
    _
  $region25: #{resnet_forward.29} parent=0 // pred_fallthru
    _
  // Predicated region
  $region26: #{resnet_forward.29} parent=0 // pred_check
    _
  $region27: #{resnet_forward.29} parent=0 // pred_check_branch
    %408 = sbr.rel (0) target = $region29
  $region28: #{resnet_forward.29} parent=0 // pred_region
    _
  $region29: #{resnet_forward.29} parent=0 // pred_fallthru
    _

</llo_original>
